<compile_context>
chip_gen: v6e
topology: v6e:2x2x1
jax: 0.10.0
libtpu: 0.0.40
codegen_flags: <defaults>
</compile_context>

<pallas_src>
import functools
import math

import jax
import jax.numpy as jnp
from jax.experimental import pallas as pl
from jax.experimental.pallas import tpu as pltpu

# ----------------------------- config (scaled-down swin_large) --------------
PATCH = 4
IN_CHANS = 3
EMBED_DIM = 256                 # multiple of 128 -> lane-dense (swin_large: 192)
NUM_HEADS = 2                   # head_dim = 128 -> vreg-aligned head slices
HEAD_DIM = EMBED_DIM // NUM_HEADS
MLP_RATIO = 4
DEPTH = 2                       # swin_large: 2+2+18+2
NUM_FEATURES = EMBED_DIM        # swin_large: 1536
NUM_CLASSES = 2                 # head: nn.Linear(num_features, 2)
NUM_CLASSES_PAD = 128           # pad head output to full lane width; slice on host
PATCH_FEATS = IN_CHANS * PATCH * PATCH      # 48
PATCH_FEATS_PAD = 128                       # zero-pad K of patch-embed matmul

_VMEM = pl.BlockSpec(memory_space=pltpu.MemorySpace.VMEM)


# ----------------------------- in-kernel helpers ----------------------------
def _ln(x, g, b, eps=1e-5):
    mu = jnp.mean(x, axis=-1, keepdims=True)
    var = jnp.mean(jnp.square(x - mu), axis=-1, keepdims=True)
    return (x - mu) * jax.lax.rsqrt(var + eps) * g + b


def _mm(x, w):
    # bf16 MXU operands, f32 accumulation.
    return jnp.dot(x.astype(jnp.bfloat16), w.astype(jnp.bfloat16),
                   preferred_element_type=jnp.float32)


def _erf(x):
    # Abramowitz & Stegun 7.1.26 rational approximation, |err| < 1.5e-7.
    # (Avoids relying on an erf primitive lowering; only exp/mul/add/where.)
    a1, a2, a3, a4, a5 = 0.254829592, -0.284496736, 1.421413741, -1.453152027, 1.061405429
    p = 0.3275911
    sgn = jnp.where(x < 0.0, -1.0, 1.0)
    ax = jnp.abs(x)
    t = 1.0 / (1.0 + p * ax)
    poly = t * (a1 + t * (a2 + t * (a3 + t * (a4 + t * a5))))
    return sgn * (1.0 - poly * jnp.exp(-ax * ax))


def _gelu_exact(x):
    # Matches nn.GELU (erf form) used by timm Swin.
    return 0.5 * x * (1.0 + _erf(x * (1.0 / math.sqrt(2.0))))


# ----------------------------- fused forward kernel -------------------------
def _regnet_kernel(tok_ref, pe_w_ref, pe_b_ref, pe_g_ref, pe_be_ref,
                   ln1_g_ref, ln1_b_ref, qkv_w_ref, qkv_b_ref,
                   proj_w_ref, proj_b_ref, ln2_g_ref, ln2_b_ref,
                   w1_ref, b1_ref, w2_ref, b2_ref,
                   norm_g_ref, norm_b_ref, head_w_ref, head_b_ref,
                   out_ref, *, batch, seq):
    m = batch * seq
    scale = HEAD_DIM ** -0.5

    # patch embedding (conv-as-matmul, zero-padded K) + LayerNorm
    t = _mm(tok_ref[...], pe_w_ref[...]) + pe_b_ref[...]
    t = _ln(t, pe_g_ref[...], pe_be_ref[...])

    for d in range(DEPTH):                     # unrolled; weights stacked on axis 0
        # --- attention sub-block (pre-LN, residual), fused ---
        h = _ln(t, ln1_g_ref[d], ln1_b_ref[d])
        qkv = _mm(h, qkv_w_ref[d]) + qkv_b_ref[d]            # [M, 3E] f32
        a = jnp.zeros((m, EMBED_DIM), jnp.float32)
        for hd in range(NUM_HEADS):
            lo = hd * HEAD_DIM                                # 128-aligned lane slice
            q = qkv[:, lo:lo + HEAD_DIM].reshape(batch, seq, HEAD_DIM)
            k = qkv[:, EMBED_DIM + lo:EMBED_DIM + lo + HEAD_DIM].reshape(
                batch, seq, HEAD_DIM)
            v = qkv[:, 2 * EMBED_DIM + lo:2 * EMBED_DIM + lo + HEAD_DIM].reshape(
                batch, seq, HEAD_DIM)
            s = jnp.einsum('bqd,bkd->bqk', q.astype(jnp.bfloat16),
                           k.astype(jnp.bfloat16),
                           preferred_element_type=jnp.float32) * scale
            s = s - jnp.max(s, axis=-1, keepdims=True)
            p = jnp.exp(s)
            p = p * pl.reciprocal(jnp.sum(p, axis=-1, keepdims=True), approx=True)
            o = jnp.einsum('bqk,bkd->bqd', p.astype(jnp.bfloat16),
                           v.astype(jnp.bfloat16),
                           preferred_element_type=jnp.float32)      # [B, S, D]
            # per-head output projection (block-row of proj_w); summing over heads
            # is mathematically identical to concat-then-project.
            a = a + _mm(o.reshape(m, HEAD_DIM), proj_w_ref[d, lo:lo + HEAD_DIM, :])
        t = t + a + proj_b_ref[d]                                   # in-kernel residual

        # --- MLP sub-block (pre-LN, residual), exact GELU, fused ---
        h = _ln(t, ln2_g_ref[d], ln2_b_ref[d])
        h = _gelu_exact(_mm(h, w1_ref[d]) + b1_ref[d])
        t = t + _mm(h, w2_ref[d]) + b2_ref[d]                       # in-kernel residual

    # final norm -> global average pool ('avg') -> Linear head (padded to 128 lanes)
    t = _ln(t, norm_g_ref[...], norm_b_ref[...])
    feat = jnp.mean(t.reshape(batch, seq, EMBED_DIM), axis=1)       # [B, E]
    out_ref[...] = _mm(feat, head_w_ref[...]) + head_b_ref[...]


# ----------------------------- parameters -----------------------------------
def init_params(key):
    ks = iter(jax.random.split(key, 16))

    def w(k, shape):
        return (0.02 * jax.random.normal(k, shape, jnp.float32)).astype(jnp.bfloat16)

    p = {}
    # patch embed: Conv2d(3, E, kernel=4, stride=4) as matmul (K zero-padded to 128)
    pe_w = 0.02 * jax.random.normal(next(ks), (PATCH_FEATS, EMBED_DIM), jnp.float32)
    p['pe_w'] = jnp.pad(pe_w, ((0, PATCH_FEATS_PAD - PATCH_FEATS), (0, 0))).astype(jnp.bfloat16)
    p['pe_b'] = jnp.zeros((1, EMBED_DIM), jnp.float32)
    p['pe_g'] = jnp.ones((1, EMBED_DIM), jnp.float32)
    p['pe_be'] = jnp.zeros((1, EMBED_DIM), jnp.float32)
    # transformer blocks, stacked along DEPTH (each weight DMA'd exactly once)
    p['ln1_g'] = jnp.ones((DEPTH, 1, EMBED_DIM), jnp.float32)
    p['ln1_b'] = jnp.zeros((DEPTH, 1, EMBED_DIM), jnp.float32)
    p['qkv_w'] = w(next(ks), (DEPTH, EMBED_DIM, 3 * EMBED_DIM))
    p['qkv_b'] = jnp.zeros((DEPTH, 1, 3 * EMBED_DIM), jnp.float32)
    p['proj_w'] = w(next(ks), (DEPTH, EMBED_DIM, EMBED_DIM))
    p['proj_b'] = jnp.zeros((DEPTH, 1, EMBED_DIM), jnp.float32)
    p['ln2_g'] = jnp.ones((DEPTH, 1, EMBED_DIM), jnp.float32)
    p['ln2_b'] = jnp.zeros((DEPTH, 1, EMBED_DIM), jnp.float32)
    p['w1'] = w(next(ks), (DEPTH, EMBED_DIM, MLP_RATIO * EMBED_DIM))
    p['b1'] = jnp.zeros((DEPTH, 1, MLP_RATIO * EMBED_DIM), jnp.float32)
    p['w2'] = w(next(ks), (DEPTH, MLP_RATIO * EMBED_DIM, EMBED_DIM))
    p['b2'] = jnp.zeros((DEPTH, 1, EMBED_DIM), jnp.float32)
    # final norm + head: nn.Linear(num_features, 2) (N zero-padded to 128 lanes)
    p['norm_g'] = jnp.ones((1, NUM_FEATURES), jnp.float32)
    p['norm_b'] = jnp.zeros((1, NUM_FEATURES), jnp.float32)
    head_w = 0.02 * jax.random.normal(next(ks), (NUM_FEATURES, NUM_CLASSES), jnp.float32)
    p['head_w'] = jnp.pad(head_w, ((0, 0), (0, NUM_CLASSES_PAD - NUM_CLASSES))).astype(jnp.bfloat16)
    p['head_b'] = jnp.zeros((1, NUM_CLASSES_PAD), jnp.float32)
    return p


# ----------------------------- host-side forward -----------------------------
def patchify(x):
    # NCHW -> [B, tokens, C*P*P]  (flatten order matches Conv2d weight [out,in,kh,kw])
    b, c, h, w = x.shape
    x = x.reshape(b, c, h // PATCH, PATCH, w // PATCH, PATCH)
    x = x.transpose(0, 2, 4, 1, 3, 5)
    return x.reshape(b, (h // PATCH) * (w // PATCH), c * PATCH * PATCH)


@jax.jit
def regnet_forward(params, x):
    b, _, hh, ww = x.shape
    s = (hh // PATCH) * (ww // PATCH)
    tok = patchify(x).reshape(b * s, PATCH_FEATS)
    tok = jnp.pad(tok, ((0, 0), (0, PATCH_FEATS_PAD - PATCH_FEATS))).astype(jnp.bfloat16)

    kernel = functools.partial(_regnet_kernel, batch=b, seq=s)
    logits_pad = pl.pallas_call(
        kernel,
        out_shape=jax.ShapeDtypeStruct((b, NUM_CLASSES_PAD), jnp.float32),
        in_specs=[_VMEM] * 21,
        out_specs=_VMEM,
    )(tok,
      params['pe_w'], params['pe_b'], params['pe_g'], params['pe_be'],
      params['ln1_g'], params['ln1_b'], params['qkv_w'], params['qkv_b'],
      params['proj_w'], params['proj_b'], params['ln2_g'], params['ln2_b'],
      params['w1'], params['b1'], params['w2'], params['b2'],
      params['norm_g'], params['norm_b'], params['head_w'], params['head_b'])
    return logits_pad[:, :NUM_CLASSES]                              # [B, 2]


# ----------------------------- main ------------------------------------------
if __name__ == "__main__":
    key = jax.random.PRNGKey(0)
    k_param, k_x = jax.random.split(key)
    params = init_params(k_param)
    # small image consistent with the module: NCHW, 3 channels, 16x16 spatial
    x = jax.random.normal(k_x, (2, IN_CHANS, 16, 16), jnp.float32)

    out = regnet_forward(params, x)
    out = jax.block_until_ready(out)
    assert out.shape == (2, NUM_CLASSES), out.shape
    assert bool(jnp.all(jnp.isfinite(out)))
    print("KERNEL_OK")
</pallas_src>

<mosaic_0001>
module attributes {stable_mosaic.version = 11 : i64} {
  func.func @_regnet_kernel(%arg0: memref<32x128xbf16, #tpu.memory_space<vmem>>, %arg1: memref<128x256xbf16, #tpu.memory_space<vmem>>, %arg2: memref<1x256xf32, #tpu.memory_space<vmem>>, %arg3: memref<1x256xf32, #tpu.memory_space<vmem>>, %arg4: memref<1x256xf32, #tpu.memory_space<vmem>>, %arg5: memref<2x1x256xf32, #tpu.memory_space<vmem>>, %arg6: memref<2x1x256xf32, #tpu.memory_space<vmem>>, %arg7: memref<2x256x768xbf16, #tpu.memory_space<vmem>>, %arg8: memref<2x1x768xf32, #tpu.memory_space<vmem>>, %arg9: memref<2x256x256xbf16, #tpu.memory_space<vmem>>, %arg10: memref<2x1x256xf32, #tpu.memory_space<vmem>>, %arg11: memref<2x1x256xf32, #tpu.memory_space<vmem>>, %arg12: memref<2x1x256xf32, #tpu.memory_space<vmem>>, %arg13: memref<2x256x1024xbf16, #tpu.memory_space<vmem>>, %arg14: memref<2x1x1024xf32, #tpu.memory_space<vmem>>, %arg15: memref<2x1024x256xbf16, #tpu.memory_space<vmem>>, %arg16: memref<2x1x256xf32, #tpu.memory_space<vmem>>, %arg17: memref<1x256xf32, #tpu.memory_space<vmem>>, %arg18: memref<1x256xf32, #tpu.memory_space<vmem>>, %arg19: memref<256x128xbf16, #tpu.memory_space<vmem>>, %arg20: memref<1x128xf32, #tpu.memory_space<vmem>>, %arg21: memref<2x128xf32, #tpu.memory_space<vmem>>) attributes {dimension_semantics = [], scalar_prefetch = 0 : i64, scratch_operands = 0 : i64, tpu.core_type = #tpu.core_type<tc>} {
    %c0 = arith.constant 0 : index
    %c0_0 = arith.constant 0 : index
    %0 = vector.load %arg0[%c0, %c0_0] : memref<32x128xbf16, #tpu.memory_space<vmem>>, vector<32x128xbf16>
    %c0_1 = arith.constant 0 : index
    %c0_2 = arith.constant 0 : index
    %1 = vector.load %arg1[%c0_1, %c0_2] : memref<128x256xbf16, #tpu.memory_space<vmem>>, vector<128x256xbf16>
    %cst = arith.constant dense<0.000000e+00> : vector<32x256xf32>
    %2 = tpu.matmul %0, %1, %cst {dimension_numbers = #tpu.dot_dimension_numbers<[1], [0], [0], [1], [0, 0, 1, 1], [], []>} : vector<32x128xbf16>, vector<128x256xbf16>, vector<32x256xf32> -> vector<32x256xf32>
    %c0_3 = arith.constant 0 : index
    %c0_4 = arith.constant 0 : index
    %3 = vector.load %arg2[%c0_3, %c0_4] : memref<1x256xf32, #tpu.memory_space<vmem>>, vector<1x256xf32>
    %4 = vector.broadcast %3 : vector<1x256xf32> to vector<32x256xf32>
    %5 = arith.addf %2, %4 : vector<32x256xf32>
    %c0_5 = arith.constant 0 : index
    %c0_6 = arith.constant 0 : index
    %6 = vector.load %arg3[%c0_5, %c0_6] : memref<1x256xf32, #tpu.memory_space<vmem>>, vector<1x256xf32>
    %c0_7 = arith.constant 0 : index
    %c0_8 = arith.constant 0 : index
    %7 = vector.load %arg4[%c0_7, %c0_8] : memref<1x256xf32, #tpu.memory_space<vmem>>, vector<1x256xf32>
    %cst_9 = arith.constant dense<0.000000e+00> : vector<32xf32>
    %8 = vector.multi_reduction <add>, %5, %cst_9 [1] : vector<32x256xf32> to vector<32xf32>
    %9 = vector.shape_cast %8 : vector<32xf32> to vector<32x1xf32>
    %cst_10 = arith.constant 2.560000e+02 : f32
    %10 = vector.broadcast %cst_10 : f32 to vector<32x1xf32>
    %11 = arith.divf %9, %10 : vector<32x1xf32>
    %12 = vector.broadcast %11 : vector<32x1xf32> to vector<32x256xf32>
    %13 = arith.subf %5, %12 : vector<32x256xf32>
    %14 = arith.mulf %13, %13 : vector<32x256xf32>
    %cst_11 = arith.constant dense<0.000000e+00> : vector<32xf32>
    %15 = vector.multi_reduction <add>, %14, %cst_11 [1] : vector<32x256xf32> to vector<32xf32>
    %16 = vector.shape_cast %15 : vector<32xf32> to vector<32x1xf32>
    %cst_12 = arith.constant 2.560000e+02 : f32
    %17 = vector.broadcast %cst_12 : f32 to vector<32x1xf32>
    %18 = arith.divf %16, %17 : vector<32x1xf32>
    %19 = vector.broadcast %11 : vector<32x1xf32> to vector<32x256xf32>
    %20 = arith.subf %5, %19 : vector<32x256xf32>
    %cst_13 = arith.constant 9.99999974E-6 : f32
    %21 = vector.broadcast %cst_13 : f32 to vector<32x1xf32>
    %22 = arith.addf %18, %21 : vector<32x1xf32>
    %23 = math.rsqrt %22 : vector<32x1xf32>
    %24 = vector.broadcast %23 : vector<32x1xf32> to vector<32x256xf32>
    %25 = arith.mulf %20, %24 : vector<32x256xf32>
    %26 = vector.broadcast %6 : vector<1x256xf32> to vector<32x256xf32>
    %27 = arith.mulf %25, %26 : vector<32x256xf32>
    %28 = vector.broadcast %7 : vector<1x256xf32> to vector<32x256xf32>
    %29 = arith.addf %27, %28 : vector<32x256xf32>
    %c0_14 = arith.constant 0 : index
    %c0_15 = arith.constant 0 : index
    %c0_16 = arith.constant 0 : index
    %30 = vector.load %arg5[%c0_14, %c0_15, %c0_16] : memref<2x1x256xf32, #tpu.memory_space<vmem>>, vector<1x1x256xf32>
    %31 = vector.shape_cast %30 : vector<1x1x256xf32> to vector<1x256xf32>
    %c0_17 = arith.constant 0 : index
    %c0_18 = arith.constant 0 : index
    %c0_19 = arith.constant 0 : index
    %32 = vector.load %arg6[%c0_17, %c0_18, %c0_19] : memref<2x1x256xf32, #tpu.memory_space<vmem>>, vector<1x1x256xf32>
    %33 = vector.shape_cast %32 : vector<1x1x256xf32> to vector<1x256xf32>
    %cst_20 = arith.constant dense<0.000000e+00> : vector<32xf32>
    %34 = vector.multi_reduction <add>, %29, %cst_20 [1] : vector<32x256xf32> to vector<32xf32>
    %35 = vector.shape_cast %34 : vector<32xf32> to vector<32x1xf32>
    %cst_21 = arith.constant 2.560000e+02 : f32
    %36 = vector.broadcast %cst_21 : f32 to vector<32x1xf32>
    %37 = arith.divf %35, %36 : vector<32x1xf32>
    %38 = vector.broadcast %37 : vector<32x1xf32> to vector<32x256xf32>
    %39 = arith.subf %29, %38 : vector<32x256xf32>
    %40 = arith.mulf %39, %39 : vector<32x256xf32>
    %cst_22 = arith.constant dense<0.000000e+00> : vector<32xf32>
    %41 = vector.multi_reduction <add>, %40, %cst_22 [1] : vector<32x256xf32> to vector<32xf32>
    %42 = vector.shape_cast %41 : vector<32xf32> to vector<32x1xf32>
    %cst_23 = arith.constant 2.560000e+02 : f32
    %43 = vector.broadcast %cst_23 : f32 to vector<32x1xf32>
    %44 = arith.divf %42, %43 : vector<32x1xf32>
    %45 = vector.broadcast %37 : vector<32x1xf32> to vector<32x256xf32>
    %46 = arith.subf %29, %45 : vector<32x256xf32>
    %cst_24 = arith.constant 9.99999974E-6 : f32
    %47 = vector.broadcast %cst_24 : f32 to vector<32x1xf32>
    %48 = arith.addf %44, %47 : vector<32x1xf32>
    %49 = math.rsqrt %48 : vector<32x1xf32>
    %50 = vector.broadcast %49 : vector<32x1xf32> to vector<32x256xf32>
    %51 = arith.mulf %46, %50 : vector<32x256xf32>
    %52 = vector.broadcast %31 : vector<1x256xf32> to vector<32x256xf32>
    %53 = arith.mulf %51, %52 : vector<32x256xf32>
    %54 = vector.broadcast %33 : vector<1x256xf32> to vector<32x256xf32>
    %55 = arith.addf %53, %54 : vector<32x256xf32>
    %c0_25 = arith.constant 0 : index
    %c0_26 = arith.constant 0 : index
    %c0_27 = arith.constant 0 : index
    %56 = vector.load %arg7[%c0_25, %c0_26, %c0_27] : memref<2x256x768xbf16, #tpu.memory_space<vmem>>, vector<1x256x768xbf16>
    %57 = vector.shape_cast %56 : vector<1x256x768xbf16> to vector<256x768xbf16>
    %58 = arith.truncf %55 : vector<32x256xf32> to vector<32x256xbf16>
    %cst_28 = arith.constant dense<0.000000e+00> : vector<32x768xf32>
    %59 = tpu.matmul %58, %57, %cst_28 {dimension_numbers = #tpu.dot_dimension_numbers<[1], [0], [0], [1], [0, 0, 1, 1], [], []>} : vector<32x256xbf16>, vector<256x768xbf16>, vector<32x768xf32> -> vector<32x768xf32>
    %c0_29 = arith.constant 0 : index
    %c0_30 = arith.constant 0 : index
    %c0_31 = arith.constant 0 : index
    %60 = vector.load %arg8[%c0_29, %c0_30, %c0_31] : memref<2x1x768xf32, #tpu.memory_space<vmem>>, vector<1x1x768xf32>
    %61 = vector.shape_cast %60 : vector<1x1x768xf32> to vector<1x768xf32>
    %62 = vector.broadcast %61 : vector<1x768xf32> to vector<32x768xf32>
    %63 = arith.addf %59, %62 : vector<32x768xf32>
    %cst_32 = arith.constant 0.000000e+00 : f32
    %64 = vector.broadcast %cst_32 : f32 to vector<32x256xf32>
    %65 = vector.extract_strided_slice %63 {offsets = [0, 0], sizes = [32, 128], strides = [1, 1]} : vector<32x768xf32> to vector<32x128xf32>
    %66 = vector.shape_cast %65 : vector<32x128xf32> to vector<2x16x128xf32>
    %67 = vector.extract_strided_slice %63 {offsets = [0, 256], sizes = [32, 128], strides = [1, 1]} : vector<32x768xf32> to vector<32x128xf32>
    %68 = vector.shape_cast %67 : vector<32x128xf32> to vector<2x16x128xf32>
    %69 = vector.extract_strided_slice %63 {offsets = [0, 512], sizes = [32, 128], strides = [1, 1]} : vector<32x768xf32> to vector<32x128xf32>
    %70 = vector.shape_cast %69 : vector<32x128xf32> to vector<2x16x128xf32>
    %71 = arith.truncf %66 : vector<2x16x128xf32> to vector<2x16x128xbf16>
    %72 = arith.truncf %68 : vector<2x16x128xf32> to vector<2x16x128xbf16>
    "tpu.trace_start"() <{level = 10 : i32, message = "bqd,bkd->bqk"}> : () -> ()
    %cst_33 = arith.constant dense<0.000000e+00> : vector<2x16x16xf32>
    %73 = tpu.matmul %71, %72, %cst_33 {dimension_numbers = #tpu.dot_dimension_numbers<[2], [2], [1], [1], [0, 0, 0, 1, 1, 1], [0], [0]>} : vector<2x16x128xbf16>, vector<2x16x128xbf16>, vector<2x16x16xf32> -> vector<2x16x16xf32>
    "tpu.trace_stop"() : () -> ()
    %cst_34 = arith.constant 0.0883883461 : f32
    %74 = vector.broadcast %cst_34 : f32 to vector<2x16x16xf32>
    %75 = arith.mulf %73, %74 : vector<2x16x16xf32>
    %cst_35 = arith.constant dense<0xFF800000> : vector<2x16xf32>
    %76 = vector.multi_reduction <maximumf>, %75, %cst_35 [2] : vector<2x16x16xf32> to vector<2x16xf32>
    %77 = vector.shape_cast %76 : vector<2x16xf32> to vector<2x16x1xf32>
    %78 = vector.broadcast %77 : vector<2x16x1xf32> to vector<2x16x16xf32>
    %79 = arith.subf %75, %78 : vector<2x16x16xf32>
    %80 = math.exp %79 : vector<2x16x16xf32>
    %cst_36 = arith.constant dense<0.000000e+00> : vector<2x16xf32>
    %81 = vector.multi_reduction <add>, %80, %cst_36 [2] : vector<2x16x16xf32> to vector<2x16xf32>
    %82 = vector.shape_cast %81 : vector<2x16xf32> to vector<2x16x1xf32>
    %83 = tpu.reciprocal %82 {approx = true} : vector<2x16x1xf32> -> vector<2x16x1xf32>
    %84 = vector.broadcast %83 : vector<2x16x1xf32> to vector<2x16x16xf32>
    %85 = arith.mulf %80, %84 : vector<2x16x16xf32>
    %86 = arith.truncf %85 : vector<2x16x16xf32> to vector<2x16x16xbf16>
    %87 = arith.truncf %70 : vector<2x16x128xf32> to vector<2x16x128xbf16>
    "tpu.trace_start"() <{level = 10 : i32, message = "bqk,bkd->bqd"}> : () -> ()
    %cst_37 = arith.constant dense<0.000000e+00> : vector<2x16x128xf32>
    %88 = tpu.matmul %86, %87, %cst_37 {dimension_numbers = #tpu.dot_dimension_numbers<[2], [1], [1], [2], [0, 0, 0, 1, 1, 2], [0], [0]>} : vector<2x16x16xbf16>, vector<2x16x128xbf16>, vector<2x16x128xf32> -> vector<2x16x128xf32>
    "tpu.trace_stop"() : () -> ()
    %89 = vector.shape_cast %88 : vector<2x16x128xf32> to vector<32x128xf32>
    %c0_38 = arith.constant 0 : index
    %c0_39 = arith.constant 0 : index
    %c0_40 = arith.constant 0 : index
    %90 = vector.load %arg9[%c0_38, %c0_39, %c0_40] : memref<2x256x256xbf16, #tpu.memory_space<vmem>>, vector<1x128x256xbf16>
    %91 = vector.shape_cast %90 : vector<1x128x256xbf16> to vector<128x256xbf16>
    %92 = arith.truncf %89 : vector<32x128xf32> to vector<32x128xbf16>
    %cst_41 = arith.constant dense<0.000000e+00> : vector<32x256xf32>
    %93 = tpu.matmul %92, %91, %cst_41 {dimension_numbers = #tpu.dot_dimension_numbers<[1], [0], [0], [1], [0, 0, 1, 1], [], []>} : vector<32x128xbf16>, vector<128x256xbf16>, vector<32x256xf32> -> vector<32x256xf32>
    %94 = arith.addf %64, %93 : vector<32x256xf32>
    %95 = vector.extract_strided_slice %63 {offsets = [0, 128], sizes = [32, 128], strides = [1, 1]} : vector<32x768xf32> to vector<32x128xf32>
    %96 = vector.shape_cast %95 : vector<32x128xf32> to vector<2x16x128xf32>
    %97 = vector.extract_strided_slice %63 {offsets = [0, 384], sizes = [32, 128], strides = [1, 1]} : vector<32x768xf32> to vector<32x128xf32>
    %98 = vector.shape_cast %97 : vector<32x128xf32> to vector<2x16x128xf32>
    %99 = vector.extract_strided_slice %63 {offsets = [0, 640], sizes = [32, 128], strides = [1, 1]} : vector<32x768xf32> to vector<32x128xf32>
    %100 = vector.shape_cast %99 : vector<32x128xf32> to vector<2x16x128xf32>
    %101 = arith.truncf %96 : vector<2x16x128xf32> to vector<2x16x128xbf16>
    %102 = arith.truncf %98 : vector<2x16x128xf32> to vector<2x16x128xbf16>
    "tpu.trace_start"() <{level = 10 : i32, message = "bqd,bkd->bqk"}> : () -> ()
    %cst_42 = arith.constant dense<0.000000e+00> : vector<2x16x16xf32>
    %103 = tpu.matmul %101, %102, %cst_42 {dimension_numbers = #tpu.dot_dimension_numbers<[2], [2], [1], [1], [0, 0, 0, 1, 1, 1], [0], [0]>} : vector<2x16x128xbf16>, vector<2x16x128xbf16>, vector<2x16x16xf32> -> vector<2x16x16xf32>
    "tpu.trace_stop"() : () -> ()
    %cst_43 = arith.constant 0.0883883461 : f32
    %104 = vector.broadcast %cst_43 : f32 to vector<2x16x16xf32>
    %105 = arith.mulf %103, %104 : vector<2x16x16xf32>
    %cst_44 = arith.constant dense<0xFF800000> : vector<2x16xf32>
    %106 = vector.multi_reduction <maximumf>, %105, %cst_44 [2] : vector<2x16x16xf32> to vector<2x16xf32>
    %107 = vector.shape_cast %106 : vector<2x16xf32> to vector<2x16x1xf32>
    %108 = vector.broadcast %107 : vector<2x16x1xf32> to vector<2x16x16xf32>
    %109 = arith.subf %105, %108 : vector<2x16x16xf32>
    %110 = math.exp %109 : vector<2x16x16xf32>
    %cst_45 = arith.constant dense<0.000000e+00> : vector<2x16xf32>
    %111 = vector.multi_reduction <add>, %110, %cst_45 [2] : vector<2x16x16xf32> to vector<2x16xf32>
    %112 = vector.shape_cast %111 : vector<2x16xf32> to vector<2x16x1xf32>
    %113 = tpu.reciprocal %112 {approx = true} : vector<2x16x1xf32> -> vector<2x16x1xf32>
    %114 = vector.broadcast %113 : vector<2x16x1xf32> to vector<2x16x16xf32>
    %115 = arith.mulf %110, %114 : vector<2x16x16xf32>
    %116 = arith.truncf %115 : vector<2x16x16xf32> to vector<2x16x16xbf16>
    %117 = arith.truncf %100 : vector<2x16x128xf32> to vector<2x16x128xbf16>
    "tpu.trace_start"() <{level = 10 : i32, message = "bqk,bkd->bqd"}> : () -> ()
    %cst_46 = arith.constant dense<0.000000e+00> : vector<2x16x128xf32>
    %118 = tpu.matmul %116, %117, %cst_46 {dimension_numbers = #tpu.dot_dimension_numbers<[2], [1], [1], [2], [0, 0, 0, 1, 1, 2], [0], [0]>} : vector<2x16x16xbf16>, vector<2x16x128xbf16>, vector<2x16x128xf32> -> vector<2x16x128xf32>
    "tpu.trace_stop"() : () -> ()
    %119 = vector.shape_cast %118 : vector<2x16x128xf32> to vector<32x128xf32>
    %c0_47 = arith.constant 0 : index
    %c128 = arith.constant 128 : index
    %c0_48 = arith.constant 0 : index
    %120 = vector.load %arg9[%c0_47, %c128, %c0_48] : memref<2x256x256xbf16, #tpu.memory_space<vmem>>, vector<1x128x256xbf16>
    %121 = vector.shape_cast %120 : vector<1x128x256xbf16> to vector<128x256xbf16>
    %122 = arith.truncf %119 : vector<32x128xf32> to vector<32x128xbf16>
    %cst_49 = arith.constant dense<0.000000e+00> : vector<32x256xf32>
    %123 = tpu.matmul %122, %121, %cst_49 {dimension_numbers = #tpu.dot_dimension_numbers<[1], [0], [0], [1], [0, 0, 1, 1], [], []>} : vector<32x128xbf16>, vector<128x256xbf16>, vector<32x256xf32> -> vector<32x256xf32>
    %124 = arith.addf %94, %123 : vector<32x256xf32>
    %125 = arith.addf %29, %124 : vector<32x256xf32>
    %c0_50 = arith.constant 0 : index
    %c0_51 = arith.constant 0 : index
    %c0_52 = arith.constant 0 : index
    %126 = vector.load %arg10[%c0_50, %c0_51, %c0_52] : memref<2x1x256xf32, #tpu.memory_space<vmem>>, vector<1x1x256xf32>
    %127 = vector.shape_cast %126 : vector<1x1x256xf32> to vector<1x256xf32>
    %128 = vector.broadcast %127 : vector<1x256xf32> to vector<32x256xf32>
    %129 = arith.addf %125, %128 : vector<32x256xf32>
    %c0_53 = arith.constant 0 : index
    %c0_54 = arith.constant 0 : index
    %c0_55 = arith.constant 0 : index
    %130 = vector.load %arg11[%c0_53, %c0_54, %c0_55] : memref<2x1x256xf32, #tpu.memory_space<vmem>>, vector<1x1x256xf32>
    %131 = vector.shape_cast %130 : vector<1x1x256xf32> to vector<1x256xf32>
    %c0_56 = arith.constant 0 : index
    %c0_57 = arith.constant 0 : index
    %c0_58 = arith.constant 0 : index
    %132 = vector.load %arg12[%c0_56, %c0_57, %c0_58] : memref<2x1x256xf32, #tpu.memory_space<vmem>>, vector<1x1x256xf32>
    %133 = vector.shape_cast %132 : vector<1x1x256xf32> to vector<1x256xf32>
    %cst_59 = arith.constant dense<0.000000e+00> : vector<32xf32>
    %134 = vector.multi_reduction <add>, %129, %cst_59 [1] : vector<32x256xf32> to vector<32xf32>
    %135 = vector.shape_cast %134 : vector<32xf32> to vector<32x1xf32>
    %cst_60 = arith.constant 2.560000e+02 : f32
    %136 = vector.broadcast %cst_60 : f32 to vector<32x1xf32>
    %137 = arith.divf %135, %136 : vector<32x1xf32>
    %138 = vector.broadcast %137 : vector<32x1xf32> to vector<32x256xf32>
    %139 = arith.subf %129, %138 : vector<32x256xf32>
    %140 = arith.mulf %139, %139 : vector<32x256xf32>
    %cst_61 = arith.constant dense<0.000000e+00> : vector<32xf32>
    %141 = vector.multi_reduction <add>, %140, %cst_61 [1] : vector<32x256xf32> to vector<32xf32>
    %142 = vector.shape_cast %141 : vector<32xf32> to vector<32x1xf32>
    %cst_62 = arith.constant 2.560000e+02 : f32
    %143 = vector.broadcast %cst_62 : f32 to vector<32x1xf32>
    %144 = arith.divf %142, %143 : vector<32x1xf32>
    %145 = vector.broadcast %137 : vector<32x1xf32> to vector<32x256xf32>
    %146 = arith.subf %129, %145 : vector<32x256xf32>
    %cst_63 = arith.constant 9.99999974E-6 : f32
    %147 = vector.broadcast %cst_63 : f32 to vector<32x1xf32>
    %148 = arith.addf %144, %147 : vector<32x1xf32>
    %149 = math.rsqrt %148 : vector<32x1xf32>
    %150 = vector.broadcast %149 : vector<32x1xf32> to vector<32x256xf32>
    %151 = arith.mulf %146, %150 : vector<32x256xf32>
    %152 = vector.broadcast %131 : vector<1x256xf32> to vector<32x256xf32>
    %153 = arith.mulf %151, %152 : vector<32x256xf32>
    %154 = vector.broadcast %133 : vector<1x256xf32> to vector<32x256xf32>
    %155 = arith.addf %153, %154 : vector<32x256xf32>
    %c0_64 = arith.constant 0 : index
    %c0_65 = arith.constant 0 : index
    %c0_66 = arith.constant 0 : index
    %156 = vector.load %arg13[%c0_64, %c0_65, %c0_66] : memref<2x256x1024xbf16, #tpu.memory_space<vmem>>, vector<1x256x1024xbf16>
    %157 = vector.shape_cast %156 : vector<1x256x1024xbf16> to vector<256x1024xbf16>
    %158 = arith.truncf %155 : vector<32x256xf32> to vector<32x256xbf16>
    %cst_67 = arith.constant dense<0.000000e+00> : vector<32x1024xf32>
    %159 = tpu.matmul %158, %157, %cst_67 {dimension_numbers = #tpu.dot_dimension_numbers<[1], [0], [0], [1], [0, 0, 1, 1], [], []>} : vector<32x256xbf16>, vector<256x1024xbf16>, vector<32x1024xf32> -> vector<32x1024xf32>
    %c0_68 = arith.constant 0 : index
    %c0_69 = arith.constant 0 : index
    %c0_70 = arith.constant 0 : index
    %160 = vector.load %arg14[%c0_68, %c0_69, %c0_70] : memref<2x1x1024xf32, #tpu.memory_space<vmem>>, vector<1x1x1024xf32>
    %161 = vector.shape_cast %160 : vector<1x1x1024xf32> to vector<1x1024xf32>
    %162 = vector.broadcast %161 : vector<1x1024xf32> to vector<32x1024xf32>
    %163 = arith.addf %159, %162 : vector<32x1024xf32>
    %cst_71 = arith.constant 5.000000e-01 : f32
    %164 = vector.broadcast %cst_71 : f32 to vector<32x1024xf32>
    %165 = arith.mulf %164, %163 : vector<32x1024xf32>
    %cst_72 = arith.constant 0.707106769 : f32
    %166 = vector.broadcast %cst_72 : f32 to vector<32x1024xf32>
    %167 = arith.mulf %163, %166 : vector<32x1024xf32>
    %cst_73 = arith.constant 0.000000e+00 : f32
    %168 = vector.broadcast %cst_73 : f32 to vector<32x1024xf32>
    %169 = arith.cmpf olt, %167, %168 : vector<32x1024xf32>
    %cst_74 = arith.constant -1.000000e+00 : f32
    %cst_75 = arith.constant 1.000000e+00 : f32
    %170 = vector.broadcast %cst_74 : f32 to vector<32x1024xf32>
    %171 = vector.broadcast %cst_75 : f32 to vector<32x1024xf32>
    %172 = arith.select %169, %170, %171 : vector<32x1024xi1>, vector<32x1024xf32>
    %173 = math.absf %167 : vector<32x1024xf32>
    %cst_76 = arith.constant 0.327591091 : f32
    %174 = vector.broadcast %cst_76 : f32 to vector<32x1024xf32>
    %175 = arith.mulf %174, %173 : vector<32x1024xf32>
    %cst_77 = arith.constant 1.000000e+00 : f32
    %176 = vector.broadcast %cst_77 : f32 to vector<32x1024xf32>
    %177 = arith.addf %176, %175 : vector<32x1024xf32>
    %cst_78 = arith.constant 1.000000e+00 : f32
    %178 = vector.broadcast %cst_78 : f32 to vector<32x1024xf32>
    %179 = arith.divf %178, %177 : vector<32x1024xf32>
    %cst_79 = arith.constant 1.06140542 : f32
    %180 = vector.broadcast %cst_79 : f32 to vector<32x1024xf32>
    %181 = arith.mulf %179, %180 : vector<32x1024xf32>
    %cst_80 = arith.constant -1.45315206 : f32
    %182 = vector.broadcast %cst_80 : f32 to vector<32x1024xf32>
    %183 = arith.addf %182, %181 : vector<32x1024xf32>
    %184 = arith.mulf %179, %183 : vector<32x1024xf32>
    %cst_81 = arith.constant 1.42141378 : f32
    %185 = vector.broadcast %cst_81 : f32 to vector<32x1024xf32>
    %186 = arith.addf %185, %184 : vector<32x1024xf32>
    %187 = arith.mulf %179, %186 : vector<32x1024xf32>
    %cst_82 = arith.constant -0.284496725 : f32
    %188 = vector.broadcast %cst_82 : f32 to vector<32x1024xf32>
    %189 = arith.addf %188, %187 : vector<32x1024xf32>
    %190 = arith.mulf %179, %189 : vector<32x1024xf32>
    %cst_83 = arith.constant 0.254829586 : f32
    %191 = vector.broadcast %cst_83 : f32 to vector<32x1024xf32>
    %192 = arith.addf %191, %190 : vector<32x1024xf32>
    %193 = arith.mulf %179, %192 : vector<32x1024xf32>
    %cst_84 = arith.constant 0.000000e+00 : f32
    %194 = vector.broadcast %cst_84 : f32 to vector<32x1024xf32>
    %195 = arith.subf %194, %173 : vector<32x1024xf32>
    %196 = arith.mulf %195, %173 : vector<32x1024xf32>
    %197 = math.exp %196 : vector<32x1024xf32>
    %198 = arith.mulf %193, %197 : vector<32x1024xf32>
    %cst_85 = arith.constant 1.000000e+00 : f32
    %199 = vector.broadcast %cst_85 : f32 to vector<32x1024xf32>
    %200 = arith.subf %199, %198 : vector<32x1024xf32>
    %201 = arith.mulf %172, %200 : vector<32x1024xf32>
    %cst_86 = arith.constant 1.000000e+00 : f32
    %202 = vector.broadcast %cst_86 : f32 to vector<32x1024xf32>
    %203 = arith.addf %202, %201 : vector<32x1024xf32>
    %204 = arith.mulf %165, %203 : vector<32x1024xf32>
    %c0_87 = arith.constant 0 : index
    %c0_88 = arith.constant 0 : index
    %c0_89 = arith.constant 0 : index
    %205 = vector.load %arg15[%c0_87, %c0_88, %c0_89] : memref<2x1024x256xbf16, #tpu.memory_space<vmem>>, vector<1x1024x256xbf16>
    %206 = vector.shape_cast %205 : vector<1x1024x256xbf16> to vector<1024x256xbf16>
    %207 = arith.truncf %204 : vector<32x1024xf32> to vector<32x1024xbf16>
    %cst_90 = arith.constant dense<0.000000e+00> : vector<32x256xf32>
    %208 = tpu.matmul %207, %206, %cst_90 {dimension_numbers = #tpu.dot_dimension_numbers<[1], [0], [0], [1], [0, 0, 1, 1], [], []>} : vector<32x1024xbf16>, vector<1024x256xbf16>, vector<32x256xf32> -> vector<32x256xf32>
    %209 = arith.addf %129, %208 : vector<32x256xf32>
    %c0_91 = arith.constant 0 : index
    %c0_92 = arith.constant 0 : index
    %c0_93 = arith.constant 0 : index
    %210 = vector.load %arg16[%c0_91, %c0_92, %c0_93] : memref<2x1x256xf32, #tpu.memory_space<vmem>>, vector<1x1x256xf32>
    %211 = vector.shape_cast %210 : vector<1x1x256xf32> to vector<1x256xf32>
    %212 = vector.broadcast %211 : vector<1x256xf32> to vector<32x256xf32>
    %213 = arith.addf %209, %212 : vector<32x256xf32>
    %c1 = arith.constant 1 : index
    %c0_94 = arith.constant 0 : index
    %c0_95 = arith.constant 0 : index
    %214 = vector.load %arg5[%c1, %c0_94, %c0_95] : memref<2x1x256xf32, #tpu.memory_space<vmem>>, vector<1x1x256xf32>
    %215 = vector.shape_cast %214 : vector<1x1x256xf32> to vector<1x256xf32>
    %c1_96 = arith.constant 1 : index
    %c0_97 = arith.constant 0 : index
    %c0_98 = arith.constant 0 : index
    %216 = vector.load %arg6[%c1_96, %c0_97, %c0_98] : memref<2x1x256xf32, #tpu.memory_space<vmem>>, vector<1x1x256xf32>
    %217 = vector.shape_cast %216 : vector<1x1x256xf32> to vector<1x256xf32>
    %cst_99 = arith.constant dense<0.000000e+00> : vector<32xf32>
    %218 = vector.multi_reduction <add>, %213, %cst_99 [1] : vector<32x256xf32> to vector<32xf32>
    %219 = vector.shape_cast %218 : vector<32xf32> to vector<32x1xf32>
    %cst_100 = arith.constant 2.560000e+02 : f32
    %220 = vector.broadcast %cst_100 : f32 to vector<32x1xf32>
    %221 = arith.divf %219, %220 : vector<32x1xf32>
    %222 = vector.broadcast %221 : vector<32x1xf32> to vector<32x256xf32>
    %223 = arith.subf %213, %222 : vector<32x256xf32>
    %224 = arith.mulf %223, %223 : vector<32x256xf32>
    %cst_101 = arith.constant dense<0.000000e+00> : vector<32xf32>
    %225 = vector.multi_reduction <add>, %224, %cst_101 [1] : vector<32x256xf32> to vector<32xf32>
    %226 = vector.shape_cast %225 : vector<32xf32> to vector<32x1xf32>
    %cst_102 = arith.constant 2.560000e+02 : f32
    %227 = vector.broadcast %cst_102 : f32 to vector<32x1xf32>
    %228 = arith.divf %226, %227 : vector<32x1xf32>
    %229 = vector.broadcast %221 : vector<32x1xf32> to vector<32x256xf32>
    %230 = arith.subf %213, %229 : vector<32x256xf32>
    %cst_103 = arith.constant 9.99999974E-6 : f32
    %231 = vector.broadcast %cst_103 : f32 to vector<32x1xf32>
    %232 = arith.addf %228, %231 : vector<32x1xf32>
    %233 = math.rsqrt %232 : vector<32x1xf32>
    %234 = vector.broadcast %233 : vector<32x1xf32> to vector<32x256xf32>
    %235 = arith.mulf %230, %234 : vector<32x256xf32>
    %236 = vector.broadcast %215 : vector<1x256xf32> to vector<32x256xf32>
    %237 = arith.mulf %235, %236 : vector<32x256xf32>
    %238 = vector.broadcast %217 : vector<1x256xf32> to vector<32x256xf32>
    %239 = arith.addf %237, %238 : vector<32x256xf32>
    %c1_104 = arith.constant 1 : index
    %c0_105 = arith.constant 0 : index
    %c0_106 = arith.constant 0 : index
    %240 = vector.load %arg7[%c1_104, %c0_105, %c0_106] : memref<2x256x768xbf16, #tpu.memory_space<vmem>>, vector<1x256x768xbf16>
    %241 = vector.shape_cast %240 : vector<1x256x768xbf16> to vector<256x768xbf16>
    %242 = arith.truncf %239 : vector<32x256xf32> to vector<32x256xbf16>
    %cst_107 = arith.constant dense<0.000000e+00> : vector<32x768xf32>
    %243 = tpu.matmul %242, %241, %cst_107 {dimension_numbers = #tpu.dot_dimension_numbers<[1], [0], [0], [1], [0, 0, 1, 1], [], []>} : vector<32x256xbf16>, vector<256x768xbf16>, vector<32x768xf32> -> vector<32x768xf32>
    %c1_108 = arith.constant 1 : index
    %c0_109 = arith.constant 0 : index
    %c0_110 = arith.constant 0 : index
    %244 = vector.load %arg8[%c1_108, %c0_109, %c0_110] : memref<2x1x768xf32, #tpu.memory_space<vmem>>, vector<1x1x768xf32>
    %245 = vector.shape_cast %244 : vector<1x1x768xf32> to vector<1x768xf32>
    %246 = vector.broadcast %245 : vector<1x768xf32> to vector<32x768xf32>
    %247 = arith.addf %243, %246 : vector<32x768xf32>
    %cst_111 = arith.constant 0.000000e+00 : f32
    %248 = vector.broadcast %cst_111 : f32 to vector<32x256xf32>
    %249 = vector.extract_strided_slice %247 {offsets = [0, 0], sizes = [32, 128], strides = [1, 1]} : vector<32x768xf32> to vector<32x128xf32>
    %250 = vector.shape_cast %249 : vector<32x128xf32> to vector<2x16x128xf32>
    %251 = vector.extract_strided_slice %247 {offsets = [0, 256], sizes = [32, 128], strides = [1, 1]} : vector<32x768xf32> to vector<32x128xf32>
    %252 = vector.shape_cast %251 : vector<32x128xf32> to vector<2x16x128xf32>
    %253 = vector.extract_strided_slice %247 {offsets = [0, 512], sizes = [32, 128], strides = [1, 1]} : vector<32x768xf32> to vector<32x128xf32>
    %254 = vector.shape_cast %253 : vector<32x128xf32> to vector<2x16x128xf32>
    %255 = arith.truncf %250 : vector<2x16x128xf32> to vector<2x16x128xbf16>
    %256 = arith.truncf %252 : vector<2x16x128xf32> to vector<2x16x128xbf16>
    "tpu.trace_start"() <{level = 10 : i32, message = "bqd,bkd->bqk"}> : () -> ()
    %cst_112 = arith.constant dense<0.000000e+00> : vector<2x16x16xf32>
    %257 = tpu.matmul %255, %256, %cst_112 {dimension_numbers = #tpu.dot_dimension_numbers<[2], [2], [1], [1], [0, 0, 0, 1, 1, 1], [0], [0]>} : vector<2x16x128xbf16>, vector<2x16x128xbf16>, vector<2x16x16xf32> -> vector<2x16x16xf32>
    "tpu.trace_stop"() : () -> ()
    %cst_113 = arith.constant 0.0883883461 : f32
    %258 = vector.broadcast %cst_113 : f32 to vector<2x16x16xf32>
    %259 = arith.mulf %257, %258 : vector<2x16x16xf32>
    %cst_114 = arith.constant dense<0xFF800000> : vector<2x16xf32>
    %260 = vector.multi_reduction <maximumf>, %259, %cst_114 [2] : vector<2x16x16xf32> to vector<2x16xf32>
    %261 = vector.shape_cast %260 : vector<2x16xf32> to vector<2x16x1xf32>
    %262 = vector.broadcast %261 : vector<2x16x1xf32> to vector<2x16x16xf32>
    %263 = arith.subf %259, %262 : vector<2x16x16xf32>
    %264 = math.exp %263 : vector<2x16x16xf32>
    %cst_115 = arith.constant dense<0.000000e+00> : vector<2x16xf32>
    %265 = vector.multi_reduction <add>, %264, %cst_115 [2] : vector<2x16x16xf32> to vector<2x16xf32>
    %266 = vector.shape_cast %265 : vector<2x16xf32> to vector<2x16x1xf32>
    %267 = tpu.reciprocal %266 {approx = true} : vector<2x16x1xf32> -> vector<2x16x1xf32>
    %268 = vector.broadcast %267 : vector<2x16x1xf32> to vector<2x16x16xf32>
    %269 = arith.mulf %264, %268 : vector<2x16x16xf32>
    %270 = arith.truncf %269 : vector<2x16x16xf32> to vector<2x16x16xbf16>
    %271 = arith.truncf %254 : vector<2x16x128xf32> to vector<2x16x128xbf16>
    "tpu.trace_start"() <{level = 10 : i32, message = "bqk,bkd->bqd"}> : () -> ()
    %cst_116 = arith.constant dense<0.000000e+00> : vector<2x16x128xf32>
    %272 = tpu.matmul %270, %271, %cst_116 {dimension_numbers = #tpu.dot_dimension_numbers<[2], [1], [1], [2], [0, 0, 0, 1, 1, 2], [0], [0]>} : vector<2x16x16xbf16>, vector<2x16x128xbf16>, vector<2x16x128xf32> -> vector<2x16x128xf32>
    "tpu.trace_stop"() : () -> ()
    %273 = vector.shape_cast %272 : vector<2x16x128xf32> to vector<32x128xf32>
    %c1_117 = arith.constant 1 : index
    %c0_118 = arith.constant 0 : index
    %c0_119 = arith.constant 0 : index
    %274 = vector.load %arg9[%c1_117, %c0_118, %c0_119] : memref<2x256x256xbf16, #tpu.memory_space<vmem>>, vector<1x128x256xbf16>
    %275 = vector.shape_cast %274 : vector<1x128x256xbf16> to vector<128x256xbf16>
    %276 = arith.truncf %273 : vector<32x128xf32> to vector<32x128xbf16>
    %cst_120 = arith.constant dense<0.000000e+00> : vector<32x256xf32>
    %277 = tpu.matmul %276, %275, %cst_120 {dimension_numbers = #tpu.dot_dimension_numbers<[1], [0], [0], [1], [0, 0, 1, 1], [], []>} : vector<32x128xbf16>, vector<128x256xbf16>, vector<32x256xf32> -> vector<32x256xf32>
    %278 = arith.addf %248, %277 : vector<32x256xf32>
    %279 = vector.extract_strided_slice %247 {offsets = [0, 128], sizes = [32, 128], strides = [1, 1]} : vector<32x768xf32> to vector<32x128xf32>
    %280 = vector.shape_cast %279 : vector<32x128xf32> to vector<2x16x128xf32>
    %281 = vector.extract_strided_slice %247 {offsets = [0, 384], sizes = [32, 128], strides = [1, 1]} : vector<32x768xf32> to vector<32x128xf32>
    %282 = vector.shape_cast %281 : vector<32x128xf32> to vector<2x16x128xf32>
    %283 = vector.extract_strided_slice %247 {offsets = [0, 640], sizes = [32, 128], strides = [1, 1]} : vector<32x768xf32> to vector<32x128xf32>
    %284 = vector.shape_cast %283 : vector<32x128xf32> to vector<2x16x128xf32>
    %285 = arith.truncf %280 : vector<2x16x128xf32> to vector<2x16x128xbf16>
    %286 = arith.truncf %282 : vector<2x16x128xf32> to vector<2x16x128xbf16>
    "tpu.trace_start"() <{level = 10 : i32, message = "bqd,bkd->bqk"}> : () -> ()
    %cst_121 = arith.constant dense<0.000000e+00> : vector<2x16x16xf32>
    %287 = tpu.matmul %285, %286, %cst_121 {dimension_numbers = #tpu.dot_dimension_numbers<[2], [2], [1], [1], [0, 0, 0, 1, 1, 1], [0], [0]>} : vector<2x16x128xbf16>, vector<2x16x128xbf16>, vector<2x16x16xf32> -> vector<2x16x16xf32>
    "tpu.trace_stop"() : () -> ()
    %cst_122 = arith.constant 0.0883883461 : f32
    %288 = vector.broadcast %cst_122 : f32 to vector<2x16x16xf32>
    %289 = arith.mulf %287, %288 : vector<2x16x16xf32>
    %cst_123 = arith.constant dense<0xFF800000> : vector<2x16xf32>
    %290 = vector.multi_reduction <maximumf>, %289, %cst_123 [2] : vector<2x16x16xf32> to vector<2x16xf32>
    %291 = vector.shape_cast %290 : vector<2x16xf32> to vector<2x16x1xf32>
    %292 = vector.broadcast %291 : vector<2x16x1xf32> to vector<2x16x16xf32>
    %293 = arith.subf %289, %292 : vector<2x16x16xf32>
    %294 = math.exp %293 : vector<2x16x16xf32>
    %cst_124 = arith.constant dense<0.000000e+00> : vector<2x16xf32>
    %295 = vector.multi_reduction <add>, %294, %cst_124 [2] : vector<2x16x16xf32> to vector<2x16xf32>
    %296 = vector.shape_cast %295 : vector<2x16xf32> to vector<2x16x1xf32>
    %297 = tpu.reciprocal %296 {approx = true} : vector<2x16x1xf32> -> vector<2x16x1xf32>
    %298 = vector.broadcast %297 : vector<2x16x1xf32> to vector<2x16x16xf32>
    %299 = arith.mulf %294, %298 : vector<2x16x16xf32>
    %300 = arith.truncf %299 : vector<2x16x16xf32> to vector<2x16x16xbf16>
    %301 = arith.truncf %284 : vector<2x16x128xf32> to vector<2x16x128xbf16>
    "tpu.trace_start"() <{level = 10 : i32, message = "bqk,bkd->bqd"}> : () -> ()
    %cst_125 = arith.constant dense<0.000000e+00> : vector<2x16x128xf32>
    %302 = tpu.matmul %300, %301, %cst_125 {dimension_numbers = #tpu.dot_dimension_numbers<[2], [1], [1], [2], [0, 0, 0, 1, 1, 2], [0], [0]>} : vector<2x16x16xbf16>, vector<2x16x128xbf16>, vector<2x16x128xf32> -> vector<2x16x128xf32>
    "tpu.trace_stop"() : () -> ()
    %303 = vector.shape_cast %302 : vector<2x16x128xf32> to vector<32x128xf32>
    %c1_126 = arith.constant 1 : index
    %c128_127 = arith.constant 128 : index
    %c0_128 = arith.constant 0 : index
    %304 = vector.load %arg9[%c1_126, %c128_127, %c0_128] : memref<2x256x256xbf16, #tpu.memory_space<vmem>>, vector<1x128x256xbf16>
    %305 = vector.shape_cast %304 : vector<1x128x256xbf16> to vector<128x256xbf16>
    %306 = arith.truncf %303 : vector<32x128xf32> to vector<32x128xbf16>
    %cst_129 = arith.constant dense<0.000000e+00> : vector<32x256xf32>
    %307 = tpu.matmul %306, %305, %cst_129 {dimension_numbers = #tpu.dot_dimension_numbers<[1], [0], [0], [1], [0, 0, 1, 1], [], []>} : vector<32x128xbf16>, vector<128x256xbf16>, vector<32x256xf32> -> vector<32x256xf32>
    %308 = arith.addf %278, %307 : vector<32x256xf32>
    %309 = arith.addf %213, %308 : vector<32x256xf32>
    %c1_130 = arith.constant 1 : index
    %c0_131 = arith.constant 0 : index
    %c0_132 = arith.constant 0 : index
    %310 = vector.load %arg10[%c1_130, %c0_131, %c0_132] : memref<2x1x256xf32, #tpu.memory_space<vmem>>, vector<1x1x256xf32>
    %311 = vector.shape_cast %310 : vector<1x1x256xf32> to vector<1x256xf32>
    %312 = vector.broadcast %311 : vector<1x256xf32> to vector<32x256xf32>
    %313 = arith.addf %309, %312 : vector<32x256xf32>
    %c1_133 = arith.constant 1 : index
    %c0_134 = arith.constant 0 : index
    %c0_135 = arith.constant 0 : index
    %314 = vector.load %arg11[%c1_133, %c0_134, %c0_135] : memref<2x1x256xf32, #tpu.memory_space<vmem>>, vector<1x1x256xf32>
    %315 = vector.shape_cast %314 : vector<1x1x256xf32> to vector<1x256xf32>
    %c1_136 = arith.constant 1 : index
    %c0_137 = arith.constant 0 : index
    %c0_138 = arith.constant 0 : index
    %316 = vector.load %arg12[%c1_136, %c0_137, %c0_138] : memref<2x1x256xf32, #tpu.memory_space<vmem>>, vector<1x1x256xf32>
    %317 = vector.shape_cast %316 : vector<1x1x256xf32> to vector<1x256xf32>
    %cst_139 = arith.constant dense<0.000000e+00> : vector<32xf32>
    %318 = vector.multi_reduction <add>, %313, %cst_139 [1] : vector<32x256xf32> to vector<32xf32>
    %319 = vector.shape_cast %318 : vector<32xf32> to vector<32x1xf32>
    %cst_140 = arith.constant 2.560000e+02 : f32
    %320 = vector.broadcast %cst_140 : f32 to vector<32x1xf32>
    %321 = arith.divf %319, %320 : vector<32x1xf32>
    %322 = vector.broadcast %321 : vector<32x1xf32> to vector<32x256xf32>
    %323 = arith.subf %313, %322 : vector<32x256xf32>
    %324 = arith.mulf %323, %323 : vector<32x256xf32>
    %cst_141 = arith.constant dense<0.000000e+00> : vector<32xf32>
    %325 = vector.multi_reduction <add>, %324, %cst_141 [1] : vector<32x256xf32> to vector<32xf32>
    %326 = vector.shape_cast %325 : vector<32xf32> to vector<32x1xf32>
    %cst_142 = arith.constant 2.560000e+02 : f32
    %327 = vector.broadcast %cst_142 : f32 to vector<32x1xf32>
    %328 = arith.divf %326, %327 : vector<32x1xf32>
    %329 = vector.broadcast %321 : vector<32x1xf32> to vector<32x256xf32>
    %330 = arith.subf %313, %329 : vector<32x256xf32>
    %cst_143 = arith.constant 9.99999974E-6 : f32
    %331 = vector.broadcast %cst_143 : f32 to vector<32x1xf32>
    %332 = arith.addf %328, %331 : vector<32x1xf32>
    %333 = math.rsqrt %332 : vector<32x1xf32>
    %334 = vector.broadcast %333 : vector<32x1xf32> to vector<32x256xf32>
    %335 = arith.mulf %330, %334 : vector<32x256xf32>
    %336 = vector.broadcast %315 : vector<1x256xf32> to vector<32x256xf32>
    %337 = arith.mulf %335, %336 : vector<32x256xf32>
    %338 = vector.broadcast %317 : vector<1x256xf32> to vector<32x256xf32>
    %339 = arith.addf %337, %338 : vector<32x256xf32>
    %c1_144 = arith.constant 1 : index
    %c0_145 = arith.constant 0 : index
    %c0_146 = arith.constant 0 : index
    %340 = vector.load %arg13[%c1_144, %c0_145, %c0_146] : memref<2x256x1024xbf16, #tpu.memory_space<vmem>>, vector<1x256x1024xbf16>
    %341 = vector.shape_cast %340 : vector<1x256x1024xbf16> to vector<256x1024xbf16>
    %342 = arith.truncf %339 : vector<32x256xf32> to vector<32x256xbf16>
    %cst_147 = arith.constant dense<0.000000e+00> : vector<32x1024xf32>
    %343 = tpu.matmul %342, %341, %cst_147 {dimension_numbers = #tpu.dot_dimension_numbers<[1], [0], [0], [1], [0, 0, 1, 1], [], []>} : vector<32x256xbf16>, vector<256x1024xbf16>, vector<32x1024xf32> -> vector<32x1024xf32>
    %c1_148 = arith.constant 1 : index
    %c0_149 = arith.constant 0 : index
    %c0_150 = arith.constant 0 : index
    %344 = vector.load %arg14[%c1_148, %c0_149, %c0_150] : memref<2x1x1024xf32, #tpu.memory_space<vmem>>, vector<1x1x1024xf32>
    %345 = vector.shape_cast %344 : vector<1x1x1024xf32> to vector<1x1024xf32>
    %346 = vector.broadcast %345 : vector<1x1024xf32> to vector<32x1024xf32>
    %347 = arith.addf %343, %346 : vector<32x1024xf32>
    %cst_151 = arith.constant 5.000000e-01 : f32
    %348 = vector.broadcast %cst_151 : f32 to vector<32x1024xf32>
    %349 = arith.mulf %348, %347 : vector<32x1024xf32>
    %cst_152 = arith.constant 0.707106769 : f32
    %350 = vector.broadcast %cst_152 : f32 to vector<32x1024xf32>
    %351 = arith.mulf %347, %350 : vector<32x1024xf32>
    %cst_153 = arith.constant 0.000000e+00 : f32
    %352 = vector.broadcast %cst_153 : f32 to vector<32x1024xf32>
    %353 = arith.cmpf olt, %351, %352 : vector<32x1024xf32>
    %cst_154 = arith.constant -1.000000e+00 : f32
    %cst_155 = arith.constant 1.000000e+00 : f32
    %354 = vector.broadcast %cst_154 : f32 to vector<32x1024xf32>
    %355 = vector.broadcast %cst_155 : f32 to vector<32x1024xf32>
    %356 = arith.select %353, %354, %355 : vector<32x1024xi1>, vector<32x1024xf32>
    %357 = math.absf %351 : vector<32x1024xf32>
    %cst_156 = arith.constant 0.327591091 : f32
    %358 = vector.broadcast %cst_156 : f32 to vector<32x1024xf32>
    %359 = arith.mulf %358, %357 : vector<32x1024xf32>
    %cst_157 = arith.constant 1.000000e+00 : f32
    %360 = vector.broadcast %cst_157 : f32 to vector<32x1024xf32>
    %361 = arith.addf %360, %359 : vector<32x1024xf32>
    %cst_158 = arith.constant 1.000000e+00 : f32
    %362 = vector.broadcast %cst_158 : f32 to vector<32x1024xf32>
    %363 = arith.divf %362, %361 : vector<32x1024xf32>
    %cst_159 = arith.constant 1.06140542 : f32
    %364 = vector.broadcast %cst_159 : f32 to vector<32x1024xf32>
    %365 = arith.mulf %363, %364 : vector<32x1024xf32>
    %cst_160 = arith.constant -1.45315206 : f32
    %366 = vector.broadcast %cst_160 : f32 to vector<32x1024xf32>
    %367 = arith.addf %366, %365 : vector<32x1024xf32>
    %368 = arith.mulf %363, %367 : vector<32x1024xf32>
    %cst_161 = arith.constant 1.42141378 : f32
    %369 = vector.broadcast %cst_161 : f32 to vector<32x1024xf32>
    %370 = arith.addf %369, %368 : vector<32x1024xf32>
    %371 = arith.mulf %363, %370 : vector<32x1024xf32>
    %cst_162 = arith.constant -0.284496725 : f32
    %372 = vector.broadcast %cst_162 : f32 to vector<32x1024xf32>
    %373 = arith.addf %372, %371 : vector<32x1024xf32>
    %374 = arith.mulf %363, %373 : vector<32x1024xf32>
    %cst_163 = arith.constant 0.254829586 : f32
    %375 = vector.broadcast %cst_163 : f32 to vector<32x1024xf32>
    %376 = arith.addf %375, %374 : vector<32x1024xf32>
    %377 = arith.mulf %363, %376 : vector<32x1024xf32>
    %cst_164 = arith.constant 0.000000e+00 : f32
    %378 = vector.broadcast %cst_164 : f32 to vector<32x1024xf32>
    %379 = arith.subf %378, %357 : vector<32x1024xf32>
    %380 = arith.mulf %379, %357 : vector<32x1024xf32>
    %381 = math.exp %380 : vector<32x1024xf32>
    %382 = arith.mulf %377, %381 : vector<32x1024xf32>
    %cst_165 = arith.constant 1.000000e+00 : f32
    %383 = vector.broadcast %cst_165 : f32 to vector<32x1024xf32>
    %384 = arith.subf %383, %382 : vector<32x1024xf32>
    %385 = arith.mulf %356, %384 : vector<32x1024xf32>
    %cst_166 = arith.constant 1.000000e+00 : f32
    %386 = vector.broadcast %cst_166 : f32 to vector<32x1024xf32>
    %387 = arith.addf %386, %385 : vector<32x1024xf32>
    %388 = arith.mulf %349, %387 : vector<32x1024xf32>
    %c1_167 = arith.constant 1 : index
    %c0_168 = arith.constant 0 : index
    %c0_169 = arith.constant 0 : index
    %389 = vector.load %arg15[%c1_167, %c0_168, %c0_169] : memref<2x1024x256xbf16, #tpu.memory_space<vmem>>, vector<1x1024x256xbf16>
    %390 = vector.shape_cast %389 : vector<1x1024x256xbf16> to vector<1024x256xbf16>
    %391 = arith.truncf %388 : vector<32x1024xf32> to vector<32x1024xbf16>
    %cst_170 = arith.constant dense<0.000000e+00> : vector<32x256xf32>
    %392 = tpu.matmul %391, %390, %cst_170 {dimension_numbers = #tpu.dot_dimension_numbers<[1], [0], [0], [1], [0, 0, 1, 1], [], []>} : vector<32x1024xbf16>, vector<1024x256xbf16>, vector<32x256xf32> -> vector<32x256xf32>
    %393 = arith.addf %313, %392 : vector<32x256xf32>
    %c1_171 = arith.constant 1 : index
    %c0_172 = arith.constant 0 : index
    %c0_173 = arith.constant 0 : index
    %394 = vector.load %arg16[%c1_171, %c0_172, %c0_173] : memref<2x1x256xf32, #tpu.memory_space<vmem>>, vector<1x1x256xf32>
    %395 = vector.shape_cast %394 : vector<1x1x256xf32> to vector<1x256xf32>
    %396 = vector.broadcast %395 : vector<1x256xf32> to vector<32x256xf32>
    %397 = arith.addf %393, %396 : vector<32x256xf32>
    %c0_174 = arith.constant 0 : index
    %c0_175 = arith.constant 0 : index
    %398 = vector.load %arg17[%c0_174, %c0_175] : memref<1x256xf32, #tpu.memory_space<vmem>>, vector<1x256xf32>
    %c0_176 = arith.constant 0 : index
    %c0_177 = arith.constant 0 : index
    %399 = vector.load %arg18[%c0_176, %c0_177] : memref<1x256xf32, #tpu.memory_space<vmem>>, vector<1x256xf32>
    %cst_178 = arith.constant dense<0.000000e+00> : vector<32xf32>
    %400 = vector.multi_reduction <add>, %397, %cst_178 [1] : vector<32x256xf32> to vector<32xf32>
    %401 = vector.shape_cast %400 : vector<32xf32> to vector<32x1xf32>
    %cst_179 = arith.constant 2.560000e+02 : f32
    %402 = vector.broadcast %cst_179 : f32 to vector<32x1xf32>
    %403 = arith.divf %401, %402 : vector<32x1xf32>
    %404 = vector.broadcast %403 : vector<32x1xf32> to vector<32x256xf32>
    %405 = arith.subf %397, %404 : vector<32x256xf32>
    %406 = arith.mulf %405, %405 : vector<32x256xf32>
    %cst_180 = arith.constant dense<0.000000e+00> : vector<32xf32>
    %407 = vector.multi_reduction <add>, %406, %cst_180 [1] : vector<32x256xf32> to vector<32xf32>
    %408 = vector.shape_cast %407 : vector<32xf32> to vector<32x1xf32>
    %cst_181 = arith.constant 2.560000e+02 : f32
    %409 = vector.broadcast %cst_181 : f32 to vector<32x1xf32>
    %410 = arith.divf %408, %409 : vector<32x1xf32>
    %411 = vector.broadcast %403 : vector<32x1xf32> to vector<32x256xf32>
    %412 = arith.subf %397, %411 : vector<32x256xf32>
    %cst_182 = arith.constant 9.99999974E-6 : f32
    %413 = vector.broadcast %cst_182 : f32 to vector<32x1xf32>
    %414 = arith.addf %410, %413 : vector<32x1xf32>
    %415 = math.rsqrt %414 : vector<32x1xf32>
    %416 = vector.broadcast %415 : vector<32x1xf32> to vector<32x256xf32>
    %417 = arith.mulf %412, %416 : vector<32x256xf32>
    %418 = vector.broadcast %398 : vector<1x256xf32> to vector<32x256xf32>
    %419 = arith.mulf %417, %418 : vector<32x256xf32>
    %420 = vector.broadcast %399 : vector<1x256xf32> to vector<32x256xf32>
    %421 = arith.addf %419, %420 : vector<32x256xf32>
    %422 = vector.shape_cast %421 : vector<32x256xf32> to vector<2x16x256xf32>
    %cst_183 = arith.constant dense<0.000000e+00> : vector<2x256xf32>
    %423 = vector.multi_reduction <add>, %422, %cst_183 [1] : vector<2x16x256xf32> to vector<2x256xf32>
    %cst_184 = arith.constant 1.600000e+01 : f32
    %424 = vector.broadcast %cst_184 : f32 to vector<2x256xf32>
    %425 = arith.divf %423, %424 : vector<2x256xf32>
    %c0_185 = arith.constant 0 : index
    %c0_186 = arith.constant 0 : index
    %426 = vector.load %arg19[%c0_185, %c0_186] : memref<256x128xbf16, #tpu.memory_space<vmem>>, vector<256x128xbf16>
    %427 = arith.truncf %425 : vector<2x256xf32> to vector<2x256xbf16>
    %cst_187 = arith.constant dense<0.000000e+00> : vector<2x128xf32>
    %428 = tpu.matmul %427, %426, %cst_187 {dimension_numbers = #tpu.dot_dimension_numbers<[1], [0], [0], [1], [0, 0, 1, 1], [], []>} : vector<2x256xbf16>, vector<256x128xbf16>, vector<2x128xf32> -> vector<2x128xf32>
    %c0_188 = arith.constant 0 : index
    %c0_189 = arith.constant 0 : index
    %429 = vector.load %arg20[%c0_188, %c0_189] : memref<1x128xf32, #tpu.memory_space<vmem>>, vector<1x128xf32>
    %430 = vector.broadcast %429 : vector<1x128xf32> to vector<2x128xf32>
    %431 = arith.addf %428, %430 : vector<2x128xf32>
    %c0_190 = arith.constant 0 : index
    %c0_191 = arith.constant 0 : index
    %432 = vector.load %arg21[%c0_190, %c0_191] : memref<2x128xf32, #tpu.memory_space<vmem>>, vector<2x128xf32>
    tpu.vector_store %arg21[%c0_190, %c0_191], %431 {strides = array<i32>} : memref<2x128xf32, #tpu.memory_space<vmem>>, vector<2x128xf32>,
    return
  }
}

</mosaic_0001>

<llo_original>
// kernel: regnet_forward.1
$region0: #{regnet_forward.1}
  #allocation0 [shape = 'u32[]', space=smem, size = 0x4, offset = 0x4, fixed_abs, tag = 'smem constant byte address 0x4 - core index']
  #allocation1 [shape = 'u32[144,128]{1,0:T(1,128)}', space=vmem, size = 0x12000, scoped, tag = 'internal scratch']
  %s0 = inlined_call_operand.vmem [shape: bf16[32,128], index: 0, kind: input, shape index: {}]
  %s1 = inlined_call_operand.vmem [shape: bf16[128,256], index: 1, kind: input, shape index: {}]
  %s2 = inlined_call_operand.vmem [shape: f32[1,256], index: 2, kind: input, shape index: {}]
  %s3 = inlined_call_operand.vmem [shape: f32[1,256], index: 3, kind: input, shape index: {}]
  %s4 = inlined_call_operand.vmem [shape: f32[1,256], index: 4, kind: input, shape index: {}]
  %s5 = inlined_call_operand.vmem [shape: f32[2,1,256], index: 5, kind: input, shape index: {}]
  %s6 = inlined_call_operand.vmem [shape: f32[2,1,256], index: 6, kind: input, shape index: {}]
  %s7 = inlined_call_operand.hbm [shape: bf16[2,256,768], index: 7, kind: input, shape index: {}]
  %s8 = inlined_call_operand.vmem [shape: f32[2,1,768], index: 8, kind: input, shape index: {}]
  %s9 = inlined_call_operand.vmem [shape: bf16[2,256,256], index: 9, kind: input, shape index: {}]
  %s10 = inlined_call_operand.vmem [shape: f32[2,1,256], index: 10, kind: input, shape index: {}]
  %s11 = inlined_call_operand.vmem [shape: f32[2,1,256], index: 11, kind: input, shape index: {}]
  %s12 = inlined_call_operand.vmem [shape: f32[2,1,256], index: 12, kind: input, shape index: {}]
  %s13 = inlined_call_operand.hbm [shape: bf16[2,256,1024], index: 13, kind: input, shape index: {}]
  %s14 = inlined_call_operand.vmem [shape: f32[2,1,1024], index: 14, kind: input, shape index: {}]
  %s15 = inlined_call_operand.hbm [shape: bf16[2,1024,256], index: 15, kind: input, shape index: {}]
  %s16 = inlined_call_operand.vmem [shape: f32[2,1,256], index: 16, kind: input, shape index: {}]
  %s17 = inlined_call_operand.vmem [shape: f32[1,256], index: 17, kind: input, shape index: {}]
  %s18 = inlined_call_operand.vmem [shape: f32[1,256], index: 18, kind: input, shape index: {}]
  %s19 = inlined_call_operand.vmem [shape: bf16[256,128], index: 19, kind: input, shape index: {}]
  %s20 = inlined_call_operand.vmem [shape: f32[1,128], index: 20, kind: input, shape index: {}]
  %s21 = inlined_call_operand.hbm [shape: f32[2,128], index: 21, kind: output, shape index: {}]
  %s22 = sld [smem:[#allocation0]]
  $region106: #{regnet_forward.1} parent=0
    _
  %s24 = ssub.s32 1, %s22
  %s25 = scalar_select 0, %s24, %s22
  $region1: #{regnet_forward.1} parent=0
    #allocation2 [shape = 'u8[786432]{0}', space=vmem, size = 0xc0000, scoped, tag = 'input window, operand 7, single buffered']
    #allocation3 [shape = 's32[1]{0}', space=sflag, size = 0x4, scoped, tag = 'scoped memory for regnet_forward.1']
    #allocation4 [shape = 's32[1]{0}', space=sflag, size = 0x4, scoped, tag = 'scoped memory for regnet_forward.1']
    #allocation5 [shape = 'u8[1048576]{0}', space=vmem, size = 0x100000, scoped, tag = 'input window, operand 13, single buffered']
    #allocation6 [shape = 's32[1]{0}', space=sflag, size = 0x4, scoped, tag = 'scoped memory for regnet_forward.1']
    #allocation7 [shape = 'u8[1048576]{0}', space=vmem, size = 0x100000, scoped, tag = 'input window, operand 15, single buffered']
    #allocation8 [shape = 'u8[1024]{0}', space=vmem, size = 0x400, scoped, tag = 'output window, operand 0, single buffered']
    %26 = vsyncpa [#allocation3], 0
    %27 = vsyncpa [#allocation6], 0
    %28 = vsyncpa [#allocation4], 0
    // Predicated region
    $region2: #{regnet_forward.1} parent=1 // pred_check
      _
    $region3: #{regnet_forward.1} parent=1 // pred_check_branch
      %30 = sbr.rel (0) target = $region5
    $region4: #{regnet_forward.1} parent=1 // pred_region
      _
    $region5: #{regnet_forward.1} parent=1 // pred_fallthru
      _
    // Predicated region
    $region6: #{regnet_forward.1} parent=1 // pred_check
      _
    $region7: #{regnet_forward.1} parent=1 // pred_check_branch
      %32 = sbr.rel (0) target = $region9
    $region8: #{regnet_forward.1} parent=1 // pred_region
      _
    $region9: #{regnet_forward.1} parent=1 // pred_fallthru
      _
    // Predicated region
    $region10: #{regnet_forward.1} parent=1 // pred_check
      _
    $region11: #{regnet_forward.1} parent=1 // pred_check_branch
      %34 = sbr.rel (0) target = $region13
    $region12: #{regnet_forward.1} parent=1 // pred_region
      _
    $region13: #{regnet_forward.1} parent=1 // pred_fallthru
      _
    // Predicated region
    $region14: #{regnet_forward.1} parent=1 // pred_check
      _
    $region15: #{regnet_forward.1} parent=1 // pred_check_branch
      %36 = sbr.rel (0) target = $region17
    $region16: #{regnet_forward.1} parent=1 // pred_region
      _
    $region17: #{regnet_forward.1} parent=1 // pred_fallthru
      _
    // Predicated region
    $region18: #{regnet_forward.1} parent=1 // pred_check
      _
    $region19: #{regnet_forward.1} parent=1 // pred_check_branch
      %38 = sbr.rel (0) target = $region21
    $region20: #{regnet_forward.1} parent=1 // pred_region
      _
    $region21: #{regnet_forward.1} parent=1 // pred_fallthru
      _
    // Predicated region
    $region22: #{regnet_forward.1} parent=1 // pred_check
      _
    $region23: #{regnet_forward.1} parent=1 // pred_check_branch
      %40 = sbr.rel (0) target = $region25
    $region24: #{regnet_forward.1} parent=1 // pred_region
      _
    $region25: #{regnet_forward.1} parent=1 // pred_fallthru
      _
    // Predicated region
    $region26: #{regnet_forward.1} parent=1 // pred_check
      _
    $region27: #{regnet_forward.1} parent=1 // pred_check_branch
      %42 = sbr.rel (0) target = $region29
    $region28: #{regnet_forward.1} parent=1 // pred_region
      _
    $region29: #{regnet_forward.1} parent=1 // pred_fallthru
      _
    // Predicated region
    $region30: #{regnet_forward.1} parent=1 // pred_check
      _
    $region31: #{regnet_forward.1} parent=1 // pred_check_branch
      %44 = sbr.rel (0) target = $region33
    $region32: #{regnet_forward.1} parent=1 // pred_region
      %s46 = ssub.s32 24576, 24576
      %47 = vsyncadd [#allocation3], %s46
      %s48 = sshll.u32 [#allocation2], 4
      %s49 = int_to_ptr.vmem [resolvable:$true] %s48
      %54 = dma.hbm_to_vmem [thread:$0]  %s7, 24576, %s49, [#allocation3], 384, 384, 24
    $region33: #{regnet_forward.1} parent=1 // pred_fallthru
      _
    // Predicated region
    $region34: #{regnet_forward.1} parent=1 // pred_check
      _
    $region35: #{regnet_forward.1} parent=1 // pred_check_branch
      %56 = sbr.rel (0) target = $region37
    $region36: #{regnet_forward.1} parent=1 // pred_region
      _
    $region37: #{regnet_forward.1} parent=1 // pred_fallthru
      _
    // Predicated region
    $region38: #{regnet_forward.1} parent=1 // pred_check
      _
    $region39: #{regnet_forward.1} parent=1 // pred_check_branch
      %58 = sbr.rel (0) target = $region41
    $region40: #{regnet_forward.1} parent=1 // pred_region
      _
    $region41: #{regnet_forward.1} parent=1 // pred_fallthru
      _
    // Predicated region
    $region42: #{regnet_forward.1} parent=1 // pred_check
      _
    $region43: #{regnet_forward.1} parent=1 // pred_check_branch
      %60 = sbr.rel (0) target = $region45
    $region44: #{regnet_forward.1} parent=1 // pred_region
      _
    $region45: #{regnet_forward.1} parent=1 // pred_fallthru
      _
    // Predicated region
    $region46: #{regnet_forward.1} parent=1 // pred_check
      _
    $region47: #{regnet_forward.1} parent=1 // pred_check_branch
      %62 = sbr.rel (0) target = $region49
    $region48: #{regnet_forward.1} parent=1 // pred_region
      _
    $region49: #{regnet_forward.1} parent=1 // pred_fallthru
      _
    // Predicated region
    $region50: #{regnet_forward.1} parent=1 // pred_check
      _
    $region51: #{regnet_forward.1} parent=1 // pred_check_branch
      %64 = sbr.rel (0) target = $region53
    $region52: #{regnet_forward.1} parent=1 // pred_region
      _
    $region53: #{regnet_forward.1} parent=1 // pred_fallthru
      _
    // Predicated region
    $region54: #{regnet_forward.1} parent=1 // pred_check
      _
    $region55: #{regnet_forward.1} parent=1 // pred_check_branch
      %66 = sbr.rel (0) target = $region57
    $region56: #{regnet_forward.1} parent=1 // pred_region
      %s68 = ssub.s32 32768, 32768
      %69 = vsyncadd [#allocation6], %s68
      %s70 = sshll.u32 [#allocation5], 4
      %s71 = int_to_ptr.vmem [resolvable:$true] %s70
      %76 = dma.hbm_to_vmem [thread:$0]  %s13, 32768, %s71, [#allocation6], 512, 512, 32
    $region57: #{regnet_forward.1} parent=1 // pred_fallthru
      _
    // Predicated region
    $region58: #{regnet_forward.1} parent=1 // pred_check
      _
    $region59: #{regnet_forward.1} parent=1 // pred_check_branch
      %78 = sbr.rel (0) target = $region61
    $region60: #{regnet_forward.1} parent=1 // pred_region
      _
    $region61: #{regnet_forward.1} parent=1 // pred_fallthru
      _
    // Predicated region
    $region62: #{regnet_forward.1} parent=1 // pred_check
      _
    $region63: #{regnet_forward.1} parent=1 // pred_check_branch
      %80 = sbr.rel (0) target = $region65
    $region64: #{regnet_forward.1} parent=1 // pred_region
      %s82 = ssub.s32 32768, 32768
      %83 = vsyncadd [#allocation6], %s82
      %s84 = sshll.u32 [#allocation7], 4
      %s85 = int_to_ptr.vmem [resolvable:$true] %s84
      %90 = dma.hbm_to_vmem [thread:$0]  %s15, 32768, %s85, [#allocation6], 128, 128, 8
    $region65: #{regnet_forward.1} parent=1 // pred_fallthru
      _
    // Predicated region
    $region66: #{regnet_forward.1} parent=1 // pred_check
      _
    $region67: #{regnet_forward.1} parent=1 // pred_check_branch
      %92 = sbr.rel (0) target = $region69
    $region68: #{regnet_forward.1} parent=1 // pred_region
      _
    $region69: #{regnet_forward.1} parent=1 // pred_fallthru
      _
    // Predicated region
    $region70: #{regnet_forward.1} parent=1 // pred_check
      _
    $region71: #{regnet_forward.1} parent=1 // pred_check_branch
      %94 = sbr.rel (0) target = $region73
    $region72: #{regnet_forward.1} parent=1 // pred_region
      _
    $region73: #{regnet_forward.1} parent=1 // pred_fallthru
      _
    // Predicated region
    $region74: #{regnet_forward.1} parent=1 // pred_check
      _
    $region75: #{regnet_forward.1} parent=1 // pred_check_branch
      %96 = sbr.rel (0) target = $region77
    $region76: #{regnet_forward.1} parent=1 // pred_region
      _
    $region77: #{regnet_forward.1} parent=1 // pred_fallthru
      _
    // Predicated region
    $region78: #{regnet_forward.1} parent=1 // pred_check
      _
    $region79: #{regnet_forward.1} parent=1 // pred_check_branch
      %98 = sbr.rel (0) target = $region81
    $region80: #{regnet_forward.1} parent=1 // pred_region
      _
    $region81: #{regnet_forward.1} parent=1 // pred_fallthru
      _
    // Predicated region
    $region82: #{regnet_forward.1} parent=1 // pred_check
      _
    $region83: #{regnet_forward.1} parent=1 // pred_check_branch
      %100 = sbr.rel (0) target = $region85
    $region84: #{regnet_forward.1} parent=1 // pred_region
      _
    $region85: #{regnet_forward.1} parent=1 // pred_fallthru
      _
    // Predicated region
    $region86: #{regnet_forward.1} parent=1 // pred_check
      _
    $region87: #{regnet_forward.1} parent=1 // pred_check_branch
      %102 = sbr.rel (0) target = $region89
    $region88: #{regnet_forward.1} parent=1 // pred_region
      %103 = dma.done [#allocation3], 24576
    $region89: #{regnet_forward.1} parent=1 // pred_fallthru
      _
    // Predicated region
    $region90: #{regnet_forward.1} parent=1 // pred_check
      _
    $region91: #{regnet_forward.1} parent=1 // pred_check_branch
      %105 = sbr.rel (0) target = $region93
    $region92: #{regnet_forward.1} parent=1 // pred_region
      %106 = dma.done [#allocation6], 32768
    $region93: #{regnet_forward.1} parent=1 // pred_fallthru
      _
    // Predicated region
    $region94: #{regnet_forward.1} parent=1 // pred_check
      _
    $region95: #{regnet_forward.1} parent=1 // pred_check_branch
      %108 = sbr.rel (0) target = $region97
    $region96: #{regnet_forward.1} parent=1 // pred_region
      %109 = dma.done [#allocation6], 32768
    $region97: #{regnet_forward.1} parent=1 // pred_fallthru
      _
    %v111 = vld [vmem:[%s0] sm:$0xf]
    %v112 = vld [vmem:[%s0 + $0x4] sm:$0xf]
    %v113 = vld [vmem:[%s0 + $0x8] sm:$0xf]
    %v114 = vld [vmem:[%s0 + $0xc] sm:$0xf]
    %v115 = vld [vmem:[%s1] sm:$0xff]
    %v116 = vld [vmem:[%s1 + $0x8] sm:$0xff]
    %v117 = vld [vmem:[%s1 + $0x10] sm:$0xff]
    %v118 = vld [vmem:[%s1 + $0x18] sm:$0xff]
    %v119 = vld [vmem:[%s1 + $0x20] sm:$0xff]
    %v120 = vld [vmem:[%s1 + $0x28] sm:$0xff]
    %v121 = vld [vmem:[%s1 + $0x30] sm:$0xff]
    %v122 = vld [vmem:[%s1 + $0x38] sm:$0xff]
    %v123 = vld [vmem:[%s1 + $0x40] sm:$0xff]
    %v124 = vld [vmem:[%s1 + $0x48] sm:$0xff]
    %v125 = vld [vmem:[%s1 + $0x50] sm:$0xff]
    %v126 = vld [vmem:[%s1 + $0x58] sm:$0xff]
    %v127 = vld [vmem:[%s1 + $0x60] sm:$0xff]
    %v128 = vld [vmem:[%s1 + $0x68] sm:$0xff]
    %v129 = vld [vmem:[%s1 + $0x70] sm:$0xff]
    %v130 = vld [vmem:[%s1 + $0x78] sm:$0xff]
    %v131 = vld [vmem:[%s2] sm:$0x3]
    %v133 = vlaneseq
    %v134 = vshrl.u32 %v133, 7
    %v135 = vsub.s32 0, %v134
    %v136 = vrot.slane %v131, %v135
    %v137 = vlaneseq
    %v138 = vshrl.u32 %v137, 7
    %v139 = vsub.s32 1, %v138
    %v140 = vrot.slane %v131, %v139
    %v147 = vunpack.c.l.b16 %v111
    %v148 = vunpack.c.l.b16 %v112
    %v149 = vunpack.c.l.b16 %v113
    %v150 = vunpack.c.l.b16 %v114
    %v151 = vpack.c.b16 %v148, %v147
    %v152 = vpack.c.b16 %v150, %v149
    %v171 = vunpack.c.l.b16 %v115
    %v172 = vunpack.c.h.b16 %v115
    %v173 = vunpack.c.l.b16 %v116
    %v174 = vunpack.c.h.b16 %v116
    %v175 = vunpack.c.l.b16 %v117
    %v176 = vunpack.c.h.b16 %v117
    %v177 = vunpack.c.l.b16 %v118
    %v178 = vunpack.c.h.b16 %v118
    %v179 = vunpack.c.l.b16 %v119
    %v180 = vunpack.c.h.b16 %v119
    %v181 = vunpack.c.l.b16 %v120
    %v182 = vunpack.c.h.b16 %v120
    %v183 = vunpack.c.l.b16 %v121
    %v184 = vunpack.c.h.b16 %v121
    %v185 = vunpack.c.l.b16 %v122
    %v186 = vunpack.c.h.b16 %v122
    %v187 = vunpack.c.l.b16 %v123
    %v188 = vunpack.c.h.b16 %v123
    %v189 = vunpack.c.l.b16 %v124
    %v190 = vunpack.c.h.b16 %v124
    %v191 = vunpack.c.l.b16 %v125
    %v192 = vunpack.c.h.b16 %v125
    %v193 = vunpack.c.l.b16 %v126
    %v194 = vunpack.c.h.b16 %v126
    %v195 = vunpack.c.l.b16 %v127
    %v196 = vunpack.c.h.b16 %v127
    %v197 = vunpack.c.l.b16 %v128
    %v198 = vunpack.c.h.b16 %v128
    %v199 = vunpack.c.l.b16 %v129
    %v200 = vunpack.c.h.b16 %v129
    %v201 = vunpack.c.l.b16 %v130
    %v202 = vunpack.c.h.b16 %v130
    %v203 = vpack.c.b16 %v173, %v171
    %v204 = vpack.c.b16 %v174, %v172
    %v205 = vpack.c.b16 %v177, %v175
    %v206 = vpack.c.b16 %v178, %v176
    %v207 = vpack.c.b16 %v181, %v179
    %v208 = vpack.c.b16 %v182, %v180
    %v209 = vpack.c.b16 %v185, %v183
    %v210 = vpack.c.b16 %v186, %v184
    %v211 = vpack.c.b16 %v189, %v187
    %v212 = vpack.c.b16 %v190, %v188
    %v213 = vpack.c.b16 %v193, %v191
    %v214 = vpack.c.b16 %v194, %v192
    %v215 = vpack.c.b16 %v197, %v195
    %v216 = vpack.c.b16 %v198, %v196
    %v217 = vpack.c.b16 %v201, %v199
    %v218 = vpack.c.b16 %v202, %v200
    %235 = vmatprep.subr.bf16.mxu0 %v218
    %236 = vmatpush1.bf16.msra.mxu0 %v217
    %237 = vmatprep.subr.bf16.mxu0 %v216
    %238 = vmatpush1.bf16.msra.mxu0 %v215
    %239 = vmatprep.subr.bf16.mxu0 %v214
    %240 = vmatpush1.bf16.msra.mxu0 %v213
    %241 = vmatprep.subr.bf16.mxu0 %v212
    %242 = vmatpush1.bf16.msra.mxu0 %v211
    %243 = vmatprep.subr.bf16.mxu0 %v210
    %244 = vmatpush1.bf16.msra.mxu0 %v209
    %245 = vmatprep.subr.bf16.mxu0 %v208
    %246 = vmatpush1.bf16.msra.mxu0 %v207
    %247 = vmatprep.subr.bf16.mxu0 %v206
    %248 = vmatpush1.bf16.msra.mxu0 %v205
    %249 = vmatprep.subr.bf16.mxu0 %v204
    %250 = vmatpush1.bf16.msra.mxu0 %v203
    %251 = vmatprep.subr.bf16.mxu0 0
    %252 = vmatpush2.bf16.msra.mxu0 0
    %253 = vmatprep.subr.bf16.mxu0 0
    %254 = vmatpush2.bf16.msra.mxu0 0
    %255 = vmatprep.subr.bf16.mxu0 0
    %256 = vmatpush2.bf16.msra.mxu0 0
    %257 = vmatprep.subr.bf16.mxu0 0
    %258 = vmatpush2.bf16.msra.mxu0 0
    %259 = vmatprep.subr.bf16.mxu0 0
    %260 = vmatpush2.bf16.msra.mxu0 0
    %261 = vmatprep.subr.bf16.mxu0 0
    %262 = vmatpush2.bf16.msra.mxu0 0
    %263 = vmatprep.subr.bf16.mxu0 0
    %264 = vmatpush2.bf16.msra.mxu0 0
    %265 = vmatprep.subr.bf16.mxu0 0
    %266 = vmatpush2.bf16.msra.mxu0 0
    %267 = vmatprep.mubr.bf16.mxu0 0
    %268 = vmatmul.mubr.bf16.gmra.mxu0 %v151
    %v269 = vpop.f32.mrf.mxu0
    %v270 = vadd.f32 %v136, %v269
    %v271 = vpop.f32.mrf.mxu0
    %v272 = vadd.f32 %v140, %v271
    %v273 = vpop.f32.mrf.mxu0
    %v274 = vadd.f32 %v136, %v273
    %v275 = vpop.f32.mrf.mxu0
    %v276 = vadd.f32 %v140, %v275
    %277 = vmatprep.mubr.bf16.mxu0 0
    %278 = vmatmul.mubr.bf16.gmra.mxu0 %v152
    %v279 = vpop.f32.mrf.mxu0
    %v280 = vadd.f32 %v136, %v279
    %v281 = vpop.f32.mrf.mxu0
    %v282 = vadd.f32 %v140, %v281
    %v283 = vpop.f32.mrf.mxu0
    %v284 = vadd.f32 %v136, %v283
    %v285 = vpop.f32.mrf.mxu0
    %v286 = vadd.f32 %v140, %v285
    %287 = vdwg.mxu0
    %v288 = vld [vmem:[%s3] sm:$0x3]
    %v289 = vld [vmem:[%s4] sm:$0x3]
    %v290 = vadd.f32 %v270, %v272
    %291 = vadd.xlane.f32.xlu0 %v290
    %v292 = vpop.xlane.xlu0 %291
    %v293 = vadd.f32 %v274, %v276
    %294 = vadd.xlane.f32.xlu0 %v293
    %v295 = vpop.xlane.xlu0 %294
    %v296 = vadd.f32 %v280, %v282
    %297 = vadd.xlane.f32.xlu0 %v296
    %v298 = vpop.xlane.xlu0 %297
    %v299 = vadd.f32 %v284, %v286
    %300 = vadd.xlane.f32.xlu0 %v299
    %v301 = vpop.xlane.xlu0 %300
    %v302 = vrcp.pop 256.0
    %v303 = vmul.f32 %v292, %v302
    %v304 = vmul.f32 %v295, %v302
    %v305 = vmul.f32 %v298, %v302
    %v306 = vmul.f32 %v301, %v302
    %v307 = vsub.f32 %v270, %v303
    %v308 = vsub.f32 %v272, %v303
    %v309 = vsub.f32 %v274, %v304
    %v310 = vsub.f32 %v276, %v304
    %v311 = vsub.f32 %v280, %v305
    %v312 = vsub.f32 %v282, %v305
    %v313 = vsub.f32 %v284, %v306
    %v314 = vsub.f32 %v286, %v306
    %v315 = vmul.f32 %v307, %v307
    %v316 = vmul.f32 %v308, %v308
    %v317 = vmul.f32 %v309, %v309
    %v318 = vmul.f32 %v310, %v310
    %v319 = vmul.f32 %v311, %v311
    %v320 = vmul.f32 %v312, %v312
    %v321 = vmul.f32 %v313, %v313
    %v322 = vmul.f32 %v314, %v314
    %v323 = vadd.f32 %v315, %v316
    %324 = vadd.xlane.f32.xlu0 %v323
    %v325 = vpop.xlane.xlu0 %324
    %v326 = vadd.f32 %v317, %v318
    %327 = vadd.xlane.f32.xlu0 %v326
    %v328 = vpop.xlane.xlu0 %327
    %v329 = vadd.f32 %v319, %v320
    %330 = vadd.xlane.f32.xlu0 %v329
    %v331 = vpop.xlane.xlu0 %330
    %v332 = vadd.f32 %v321, %v322
    %333 = vadd.xlane.f32.xlu0 %v332
    %v334 = vpop.xlane.xlu0 %333
    %v335 = vmul.f32 %v325, %v302
    %v336 = vmul.f32 %v328, %v302
    %v337 = vmul.f32 %v331, %v302
    %v338 = vmul.f32 %v334, %v302
    %v339 = vadd.f32 %v335, 1e-05
    %v340 = vadd.f32 %v336, 1e-05
    %v341 = vadd.f32 %v337, 1e-05
    %v342 = vadd.f32 %v338, 1e-05
    %v343 = vrsqrt.pop %v339
    %v344 = vrsqrt.pop %v340
    %v345 = vrsqrt.pop %v341
    %v346 = vrsqrt.pop %v342
    %v347 = vmul.f32 %v307, %v343
    %v348 = vmul.f32 %v308, %v343
    %v349 = vmul.f32 %v309, %v344
    %v350 = vmul.f32 %v310, %v344
    %v351 = vmul.f32 %v311, %v345
    %v352 = vmul.f32 %v312, %v345
    %v353 = vmul.f32 %v313, %v346
    %v354 = vmul.f32 %v314, %v346
    %v356 = vlaneseq
    %v357 = vshrl.u32 %v356, 7
    %v358 = vsub.s32 0, %v357
    %v359 = vrot.slane %v288, %v358
    %v360 = vlaneseq
    %v361 = vshrl.u32 %v360, 7
    %v362 = vsub.s32 1, %v361
    %v363 = vrot.slane %v288, %v362
    %v366 = vmul.f32 %v347, %v359
    %v367 = vmul.f32 %v348, %v363
    %v368 = vmul.f32 %v349, %v359
    %v369 = vmul.f32 %v350, %v363
    %v370 = vmul.f32 %v351, %v359
    %v371 = vmul.f32 %v352, %v363
    %v372 = vmul.f32 %v353, %v359
    %v373 = vmul.f32 %v354, %v363
    %v375 = vlaneseq
    %v376 = vshrl.u32 %v375, 7
    %v377 = vsub.s32 0, %v376
    %v378 = vrot.slane %v289, %v377
    %v379 = vlaneseq
    %v380 = vshrl.u32 %v379, 7
    %v381 = vsub.s32 1, %v380
    %v382 = vrot.slane %v289, %v381
    %v385 = vadd.f32 %v366, %v378
    %v386 = vadd.f32 %v367, %v382
    %v387 = vadd.f32 %v368, %v378
    %v388 = vadd.f32 %v369, %v382
    %v389 = vadd.f32 %v370, %v378
    %v390 = vadd.f32 %v371, %v382
    %v391 = vadd.f32 %v372, %v378
    %v392 = vadd.f32 %v373, %v382
    %v393 = vld [vmem:[%s5] sm:$0x3]
    %v394 = vld [vmem:[%s6] sm:$0x3]
    %v395 = vadd.f32 %v385, %v386
    %396 = vadd.xlane.f32.xlu0 %v395
    %v397 = vpop.xlane.xlu0 %396
    %v398 = vadd.f32 %v387, %v388
    %399 = vadd.xlane.f32.xlu0 %v398
    %v400 = vpop.xlane.xlu0 %399
    %v401 = vadd.f32 %v389, %v390
    %402 = vadd.xlane.f32.xlu0 %v401
    %v403 = vpop.xlane.xlu0 %402
    %v404 = vadd.f32 %v391, %v392
    %405 = vadd.xlane.f32.xlu0 %v404
    %v406 = vpop.xlane.xlu0 %405
    %v407 = vmul.f32 %v397, %v302
    %v408 = vmul.f32 %v400, %v302
    %v409 = vmul.f32 %v403, %v302
    %v410 = vmul.f32 %v406, %v302
    %v411 = vsub.f32 %v385, %v407
    %v412 = vsub.f32 %v386, %v407
    %v413 = vsub.f32 %v387, %v408
    %v414 = vsub.f32 %v388, %v408
    %v415 = vsub.f32 %v389, %v409
    %v416 = vsub.f32 %v390, %v409
    %v417 = vsub.f32 %v391, %v410
    %v418 = vsub.f32 %v392, %v410
    %v419 = vmul.f32 %v411, %v411
    %v420 = vmul.f32 %v412, %v412
    %v421 = vmul.f32 %v413, %v413
    %v422 = vmul.f32 %v414, %v414
    %v423 = vmul.f32 %v415, %v415
    %v424 = vmul.f32 %v416, %v416
    %v425 = vmul.f32 %v417, %v417
    %v426 = vmul.f32 %v418, %v418
    %v427 = vadd.f32 %v419, %v420
    %428 = vadd.xlane.f32.xlu0 %v427
    %v429 = vpop.xlane.xlu0 %428
    %v430 = vadd.f32 %v421, %v422
    %431 = vadd.xlane.f32.xlu0 %v430
    %v432 = vpop.xlane.xlu0 %431
    %v433 = vadd.f32 %v423, %v424
    %434 = vadd.xlane.f32.xlu0 %v433
    %v435 = vpop.xlane.xlu0 %434
    %v436 = vadd.f32 %v425, %v426
    %437 = vadd.xlane.f32.xlu0 %v436
    %v438 = vpop.xlane.xlu0 %437
    %v439 = vmul.f32 %v429, %v302
    %v440 = vmul.f32 %v432, %v302
    %v441 = vmul.f32 %v435, %v302
    %v442 = vmul.f32 %v438, %v302
    %v443 = vadd.f32 %v439, 1e-05
    %v444 = vadd.f32 %v440, 1e-05
    %v445 = vadd.f32 %v441, 1e-05
    %v446 = vadd.f32 %v442, 1e-05
    %v447 = vrsqrt.pop %v443
    %v448 = vrsqrt.pop %v444
    %v449 = vrsqrt.pop %v445
    %v450 = vrsqrt.pop %v446
    %v451 = vmul.f32 %v411, %v447
    %v452 = vmul.f32 %v412, %v447
    %v453 = vmul.f32 %v413, %v448
    %v454 = vmul.f32 %v414, %v448
    %v455 = vmul.f32 %v415, %v449
    %v456 = vmul.f32 %v416, %v449
    %v457 = vmul.f32 %v417, %v450
    %v458 = vmul.f32 %v418, %v450
    %v460 = vlaneseq
    %v461 = vshrl.u32 %v460, 7
    %v462 = vsub.s32 0, %v461
    %v463 = vrot.slane %v393, %v462
    %v464 = vlaneseq
    %v465 = vshrl.u32 %v464, 7
    %v466 = vsub.s32 1, %v465
    %v467 = vrot.slane %v393, %v466
    %v470 = vmul.f32 %v451, %v463
    %v471 = vmul.f32 %v452, %v467
    %v472 = vmul.f32 %v453, %v463
    %v473 = vmul.f32 %v454, %v467
    %v474 = vmul.f32 %v455, %v463
    %v475 = vmul.f32 %v456, %v467
    %v476 = vmul.f32 %v457, %v463
    %v477 = vmul.f32 %v458, %v467
    %v479 = vlaneseq
    %v480 = vshrl.u32 %v479, 7
    %v481 = vsub.s32 0, %v480
    %v482 = vrot.slane %v394, %v481
    %v483 = vlaneseq
    %v484 = vshrl.u32 %v483, 7
    %v485 = vsub.s32 1, %v484
    %v486 = vrot.slane %v394, %v485
    %v489 = vadd.f32 %v470, %v482
    %v490 = vadd.f32 %v471, %v486
    %v491 = vadd.f32 %v472, %v482
    %v492 = vadd.f32 %v473, %v486
    %v493 = vadd.f32 %v474, %v482
    %v494 = vadd.f32 %v475, %v486
    %v495 = vadd.f32 %v476, %v482
    %v496 = vadd.f32 %v477, %v486
    %v497 = vld [vmem:[#allocation2] sm:$0xff]
    %v498 = vld [vmem:[#allocation2 + $0x8] sm:$0xff]
    %v499 = vld [vmem:[#allocation2 + $0x10] sm:$0xff]
    %v500 = vld [vmem:[#allocation2 + $0x18] sm:$0xff]
    %v501 = vld [vmem:[#allocation2 + $0x20] sm:$0xff]
    %v502 = vld [vmem:[#allocation2 + $0x28] sm:$0xff]
    %v503 = vld [vmem:[#allocation2 + $0x30] sm:$0xff]
    %v504 = vld [vmem:[#allocation2 + $0x38] sm:$0xff]
    %v505 = vld [vmem:[#allocation2 + $0x40] sm:$0xff]
    %v506 = vld [vmem:[#allocation2 + $0x48] sm:$0xff]
    %v507 = vld [vmem:[#allocation2 + $0x50] sm:$0xff]
    %v508 = vld [vmem:[#allocation2 + $0x58] sm:$0xff]
    %v509 = vld [vmem:[#allocation2 + $0x60] sm:$0xff]
    %v510 = vld [vmem:[#allocation2 + $0x68] sm:$0xff]
    %v511 = vld [vmem:[#allocation2 + $0x70] sm:$0xff]
    %v512 = vld [vmem:[#allocation2 + $0x78] sm:$0xff]
    %v513 = vld [vmem:[#allocation2 + $0x80] sm:$0xff]
    %v514 = vld [vmem:[#allocation2 + $0x88] sm:$0xff]
    %v515 = vld [vmem:[#allocation2 + $0x90] sm:$0xff]
    %v516 = vld [vmem:[#allocation2 + $0x98] sm:$0xff]
    %v517 = vld [vmem:[#allocation2 + $0xa0] sm:$0xff]
    %v518 = vld [vmem:[#allocation2 + $0xa8] sm:$0xff]
    %v519 = vld [vmem:[#allocation2 + $0xb0] sm:$0xff]
    %v520 = vld [vmem:[#allocation2 + $0xb8] sm:$0xff]
    %v521 = vld [vmem:[#allocation2 + $0xc0] sm:$0xff]
    %v522 = vld [vmem:[#allocation2 + $0xc8] sm:$0xff]
    %v523 = vld [vmem:[#allocation2 + $0xd0] sm:$0xff]
    %v524 = vld [vmem:[#allocation2 + $0xd8] sm:$0xff]
    %v525 = vld [vmem:[#allocation2 + $0xe0] sm:$0xff]
    %v526 = vld [vmem:[#allocation2 + $0xe8] sm:$0xff]
    %v527 = vld [vmem:[#allocation2 + $0xf0] sm:$0xff]
    %v528 = vld [vmem:[#allocation2 + $0xf8] sm:$0xff]
    %v529 = vld [vmem:[#allocation2 + $0x100] sm:$0xff]
    %v530 = vld [vmem:[#allocation2 + $0x108] sm:$0xff]
    %v531 = vld [vmem:[#allocation2 + $0x110] sm:$0xff]
    %v532 = vld [vmem:[#allocation2 + $0x118] sm:$0xff]
    %v533 = vld [vmem:[#allocation2 + $0x120] sm:$0xff]
    %v534 = vld [vmem:[#allocation2 + $0x128] sm:$0xff]
    %v535 = vld [vmem:[#allocation2 + $0x130] sm:$0xff]
    %v536 = vld [vmem:[#allocation2 + $0x138] sm:$0xff]
    %v537 = vld [vmem:[#allocation2 + $0x140] sm:$0xff]
    %v538 = vld [vmem:[#allocation2 + $0x148] sm:$0xff]
    %v539 = vld [vmem:[#allocation2 + $0x150] sm:$0xff]
    %v540 = vld [vmem:[#allocation2 + $0x158] sm:$0xff]
    %v541 = vld [vmem:[#allocation2 + $0x160] sm:$0xff]
    %v542 = vld [vmem:[#allocation2 + $0x168] sm:$0xff]
    %v543 = vld [vmem:[#allocation2 + $0x170] sm:$0xff]
    %v544 = vld [vmem:[#allocation2 + $0x178] sm:$0xff]
    %v545 = vld [vmem:[#allocation2 + $0x180] sm:$0xff]
    %v546 = vld [vmem:[#allocation2 + $0x188] sm:$0xff]
    %v547 = vld [vmem:[#allocation2 + $0x190] sm:$0xff]
    %v548 = vld [vmem:[#allocation2 + $0x198] sm:$0xff]
    %v549 = vld [vmem:[#allocation2 + $0x1a0] sm:$0xff]
    %v550 = vld [vmem:[#allocation2 + $0x1a8] sm:$0xff]
    %v551 = vld [vmem:[#allocation2 + $0x1b0] sm:$0xff]
    %v552 = vld [vmem:[#allocation2 + $0x1b8] sm:$0xff]
    %v553 = vld [vmem:[#allocation2 + $0x1c0] sm:$0xff]
    %v554 = vld [vmem:[#allocation2 + $0x1c8] sm:$0xff]
    %v555 = vld [vmem:[#allocation2 + $0x1d0] sm:$0xff]
    %v556 = vld [vmem:[#allocation2 + $0x1d8] sm:$0xff]
    %v557 = vld [vmem:[#allocation2 + $0x1e0] sm:$0xff]
    %v558 = vld [vmem:[#allocation2 + $0x1e8] sm:$0xff]
    %v559 = vld [vmem:[#allocation2 + $0x1f0] sm:$0xff]
    %v560 = vld [vmem:[#allocation2 + $0x1f8] sm:$0xff]
    %v561 = vld [vmem:[#allocation2 + $0x200] sm:$0xff]
    %v562 = vld [vmem:[#allocation2 + $0x208] sm:$0xff]
    %v563 = vld [vmem:[#allocation2 + $0x210] sm:$0xff]
    %v564 = vld [vmem:[#allocation2 + $0x218] sm:$0xff]
    %v565 = vld [vmem:[#allocation2 + $0x220] sm:$0xff]
    %v566 = vld [vmem:[#allocation2 + $0x228] sm:$0xff]
    %v567 = vld [vmem:[#allocation2 + $0x230] sm:$0xff]
    %v568 = vld [vmem:[#allocation2 + $0x238] sm:$0xff]
    %v569 = vld [vmem:[#allocation2 + $0x240] sm:$0xff]
    %v570 = vld [vmem:[#allocation2 + $0x248] sm:$0xff]
    %v571 = vld [vmem:[#allocation2 + $0x250] sm:$0xff]
    %v572 = vld [vmem:[#allocation2 + $0x258] sm:$0xff]
    %v573 = vld [vmem:[#allocation2 + $0x260] sm:$0xff]
    %v574 = vld [vmem:[#allocation2 + $0x268] sm:$0xff]
    %v575 = vld [vmem:[#allocation2 + $0x270] sm:$0xff]
    %v576 = vld [vmem:[#allocation2 + $0x278] sm:$0xff]
    %v577 = vld [vmem:[#allocation2 + $0x280] sm:$0xff]
    %v578 = vld [vmem:[#allocation2 + $0x288] sm:$0xff]
    %v579 = vld [vmem:[#allocation2 + $0x290] sm:$0xff]
    %v580 = vld [vmem:[#allocation2 + $0x298] sm:$0xff]
    %v581 = vld [vmem:[#allocation2 + $0x2a0] sm:$0xff]
    %v582 = vld [vmem:[#allocation2 + $0x2a8] sm:$0xff]
    %v583 = vld [vmem:[#allocation2 + $0x2b0] sm:$0xff]
    %v584 = vld [vmem:[#allocation2 + $0x2b8] sm:$0xff]
    %v585 = vld [vmem:[#allocation2 + $0x2c0] sm:$0xff]
    %v586 = vld [vmem:[#allocation2 + $0x2c8] sm:$0xff]
    %v587 = vld [vmem:[#allocation2 + $0x2d0] sm:$0xff]
    %v588 = vld [vmem:[#allocation2 + $0x2d8] sm:$0xff]
    %v589 = vld [vmem:[#allocation2 + $0x2e0] sm:$0xff]
    %v590 = vld [vmem:[#allocation2 + $0x2e8] sm:$0xff]
    %v591 = vld [vmem:[#allocation2 + $0x2f0] sm:$0xff]
    %v592 = vld [vmem:[#allocation2 + $0x2f8] sm:$0xff]
    %v593 = vpack.c.bf16 %v491, %v489
    %v594 = vpack.c.bf16 %v492, %v490
    %v595 = vpack.c.bf16 %v495, %v493
    %v596 = vpack.c.bf16 %v496, %v494
    %v597 = vld [vmem:[%s8] sm:$0x3f]
    %v599 = vlaneseq
    %v600 = vshrl.u32 %v599, 7
    %v601 = vsub.s32 0, %v600
    %v602 = vrot.slane %v597, %v601
    %v603 = vlaneseq
    %v604 = vshrl.u32 %v603, 7
    %v605 = vsub.s32 1, %v604
    %v606 = vrot.slane %v597, %v605
    %v607 = vlaneseq
    %v608 = vshrl.u32 %v607, 7
    %v609 = vsub.s32 2, %v608
    %v610 = vrot.slane %v597, %v609
    %v611 = vlaneseq
    %v612 = vshrl.u32 %v611, 7
    %v613 = vsub.s32 3, %v612
    %v614 = vrot.slane %v597, %v613
    %v615 = vlaneseq
    %v616 = vshrl.u32 %v615, 7
    %v617 = vsub.s32 4, %v616
    %v618 = vrot.slane %v597, %v617
    %v619 = vlaneseq
    %v620 = vshrl.u32 %v619, 7
    %v621 = vsub.s32 5, %v620
    %v622 = vrot.slane %v597, %v621
    %v725 = vunpack.c.l.b16 %v497
    %v726 = vunpack.c.h.b16 %v497
    %v727 = vunpack.c.l.b16 %v498
    %v728 = vunpack.c.h.b16 %v498
    %v729 = vunpack.c.l.b16 %v499
    %v730 = vunpack.c.h.b16 %v499
    %v731 = vunpack.c.l.b16 %v500
    %v732 = vunpack.c.h.b16 %v500
    %v733 = vunpack.c.l.b16 %v501
    %v734 = vunpack.c.h.b16 %v501
    %v735 = vunpack.c.l.b16 %v502
    %v736 = vunpack.c.h.b16 %v502
    %v737 = vunpack.c.l.b16 %v503
    %v738 = vunpack.c.h.b16 %v503
    %v739 = vunpack.c.l.b16 %v504
    %v740 = vunpack.c.h.b16 %v504
    %v741 = vunpack.c.l.b16 %v505
    %v742 = vunpack.c.h.b16 %v505
    %v743 = vunpack.c.l.b16 %v506
    %v744 = vunpack.c.h.b16 %v506
    %v745 = vunpack.c.l.b16 %v507
    %v746 = vunpack.c.h.b16 %v507
    %v747 = vunpack.c.l.b16 %v508
    %v748 = vunpack.c.h.b16 %v508
    %v749 = vunpack.c.l.b16 %v509
    %v750 = vunpack.c.h.b16 %v509
    %v751 = vunpack.c.l.b16 %v510
    %v752 = vunpack.c.h.b16 %v510
    %v753 = vunpack.c.l.b16 %v511
    %v754 = vunpack.c.h.b16 %v511
    %v755 = vunpack.c.l.b16 %v512
    %v756 = vunpack.c.h.b16 %v512
    %v757 = vunpack.c.l.b16 %v513
    %v758 = vunpack.c.h.b16 %v513
    %v759 = vunpack.c.l.b16 %v514
    %v760 = vunpack.c.h.b16 %v514
    %v761 = vunpack.c.l.b16 %v515
    %v762 = vunpack.c.h.b16 %v515
    %v763 = vunpack.c.l.b16 %v516
    %v764 = vunpack.c.h.b16 %v516
    %v765 = vunpack.c.l.b16 %v517
    %v766 = vunpack.c.h.b16 %v517
    %v767 = vunpack.c.l.b16 %v518
    %v768 = vunpack.c.h.b16 %v518
    %v769 = vunpack.c.l.b16 %v519
    %v770 = vunpack.c.h.b16 %v519
    %v771 = vunpack.c.l.b16 %v520
    %v772 = vunpack.c.h.b16 %v520
    %v773 = vunpack.c.l.b16 %v521
    %v774 = vunpack.c.h.b16 %v521
    %v775 = vunpack.c.l.b16 %v522
    %v776 = vunpack.c.h.b16 %v522
    %v777 = vunpack.c.l.b16 %v523
    %v778 = vunpack.c.h.b16 %v523
    %v779 = vunpack.c.l.b16 %v524
    %v780 = vunpack.c.h.b16 %v524
    %v781 = vunpack.c.l.b16 %v525
    %v782 = vunpack.c.h.b16 %v525
    %v783 = vunpack.c.l.b16 %v526
    %v784 = vunpack.c.h.b16 %v526
    %v785 = vunpack.c.l.b16 %v527
    %v786 = vunpack.c.h.b16 %v527
    %v787 = vunpack.c.l.b16 %v528
    %v788 = vunpack.c.h.b16 %v528
    %v789 = vunpack.c.l.b16 %v529
    %v790 = vunpack.c.h.b16 %v529
    %v791 = vunpack.c.l.b16 %v530
    %v792 = vunpack.c.h.b16 %v530
    %v793 = vunpack.c.l.b16 %v531
    %v794 = vunpack.c.h.b16 %v531
    %v795 = vunpack.c.l.b16 %v532
    %v796 = vunpack.c.h.b16 %v532
    %v797 = vunpack.c.l.b16 %v533
    %v798 = vunpack.c.h.b16 %v533
    %v799 = vunpack.c.l.b16 %v534
    %v800 = vunpack.c.h.b16 %v534
    %v801 = vunpack.c.l.b16 %v535
    %v802 = vunpack.c.h.b16 %v535
    %v803 = vunpack.c.l.b16 %v536
    %v804 = vunpack.c.h.b16 %v536
    %v805 = vunpack.c.l.b16 %v537
    %v806 = vunpack.c.h.b16 %v537
    %v807 = vunpack.c.l.b16 %v538
    %v808 = vunpack.c.h.b16 %v538
    %v809 = vunpack.c.l.b16 %v539
    %v810 = vunpack.c.h.b16 %v539
    %v811 = vunpack.c.l.b16 %v540
    %v812 = vunpack.c.h.b16 %v540
    %v813 = vunpack.c.l.b16 %v541
    %v814 = vunpack.c.h.b16 %v541
    %v815 = vunpack.c.l.b16 %v542
    %v816 = vunpack.c.h.b16 %v542
    %v817 = vunpack.c.l.b16 %v543
    %v818 = vunpack.c.h.b16 %v543
    %v819 = vunpack.c.l.b16 %v544
    %v820 = vunpack.c.h.b16 %v544
    %v821 = vunpack.c.l.b16 %v545
    %v822 = vunpack.c.h.b16 %v545
    %v823 = vunpack.c.l.b16 %v546
    %v824 = vunpack.c.h.b16 %v546
    %v825 = vunpack.c.l.b16 %v547
    %v826 = vunpack.c.h.b16 %v547
    %v827 = vunpack.c.l.b16 %v548
    %v828 = vunpack.c.h.b16 %v548
    %v829 = vunpack.c.l.b16 %v549
    %v830 = vunpack.c.h.b16 %v549
    %v831 = vunpack.c.l.b16 %v550
    %v832 = vunpack.c.h.b16 %v550
    %v833 = vunpack.c.l.b16 %v551
    %v834 = vunpack.c.h.b16 %v551
    %v835 = vunpack.c.l.b16 %v552
    %v836 = vunpack.c.h.b16 %v552
    %v837 = vunpack.c.l.b16 %v553
    %v838 = vunpack.c.h.b16 %v553
    %v839 = vunpack.c.l.b16 %v554
    %v840 = vunpack.c.h.b16 %v554
    %v841 = vunpack.c.l.b16 %v555
    %v842 = vunpack.c.h.b16 %v555
    %v843 = vunpack.c.l.b16 %v556
    %v844 = vunpack.c.h.b16 %v556
    %v845 = vunpack.c.l.b16 %v557
    %v846 = vunpack.c.h.b16 %v557
    %v847 = vunpack.c.l.b16 %v558
    %v848 = vunpack.c.h.b16 %v558
    %v849 = vunpack.c.l.b16 %v559
    %v850 = vunpack.c.h.b16 %v559
    %v851 = vunpack.c.l.b16 %v560
    %v852 = vunpack.c.h.b16 %v560
    %v853 = vunpack.c.l.b16 %v561
    %v854 = vunpack.c.h.b16 %v561
    %v855 = vunpack.c.l.b16 %v562
    %v856 = vunpack.c.h.b16 %v562
    %v857 = vunpack.c.l.b16 %v563
    %v858 = vunpack.c.h.b16 %v563
    %v859 = vunpack.c.l.b16 %v564
    %v860 = vunpack.c.h.b16 %v564
    %v861 = vunpack.c.l.b16 %v565
    %v862 = vunpack.c.h.b16 %v565
    %v863 = vunpack.c.l.b16 %v566
    %v864 = vunpack.c.h.b16 %v566
    %v865 = vunpack.c.l.b16 %v567
    %v866 = vunpack.c.h.b16 %v567
    %v867 = vunpack.c.l.b16 %v568
    %v868 = vunpack.c.h.b16 %v568
    %v869 = vunpack.c.l.b16 %v569
    %v870 = vunpack.c.h.b16 %v569
    %v871 = vunpack.c.l.b16 %v570
    %v872 = vunpack.c.h.b16 %v570
    %v873 = vunpack.c.l.b16 %v571
    %v874 = vunpack.c.h.b16 %v571
    %v875 = vunpack.c.l.b16 %v572
    %v876 = vunpack.c.h.b16 %v572
    %v877 = vunpack.c.l.b16 %v573
    %v878 = vunpack.c.h.b16 %v573
    %v879 = vunpack.c.l.b16 %v574
    %v880 = vunpack.c.h.b16 %v574
    %v881 = vunpack.c.l.b16 %v575
    %v882 = vunpack.c.h.b16 %v575
    %v883 = vunpack.c.l.b16 %v576
    %v884 = vunpack.c.h.b16 %v576
    %v885 = vunpack.c.l.b16 %v577
    %v886 = vunpack.c.h.b16 %v577
    %v887 = vunpack.c.l.b16 %v578
    %v888 = vunpack.c.h.b16 %v578
    %v889 = vunpack.c.l.b16 %v579
    %v890 = vunpack.c.h.b16 %v579
    %v891 = vunpack.c.l.b16 %v580
    %v892 = vunpack.c.h.b16 %v580
    %v893 = vunpack.c.l.b16 %v581
    %v894 = vunpack.c.h.b16 %v581
    %v895 = vunpack.c.l.b16 %v582
    %v896 = vunpack.c.h.b16 %v582
    %v897 = vunpack.c.l.b16 %v583
    %v898 = vunpack.c.h.b16 %v583
    %v899 = vunpack.c.l.b16 %v584
    %v900 = vunpack.c.h.b16 %v584
    %v901 = vunpack.c.l.b16 %v585
    %v902 = vunpack.c.h.b16 %v585
    %v903 = vunpack.c.l.b16 %v586
    %v904 = vunpack.c.h.b16 %v586
    %v905 = vunpack.c.l.b16 %v587
    %v906 = vunpack.c.h.b16 %v587
    %v907 = vunpack.c.l.b16 %v588
    %v908 = vunpack.c.h.b16 %v588
    %v909 = vunpack.c.l.b16 %v589
    %v910 = vunpack.c.h.b16 %v589
    %v911 = vunpack.c.l.b16 %v590
    %v912 = vunpack.c.h.b16 %v590
    %v913 = vunpack.c.l.b16 %v591
    %v914 = vunpack.c.h.b16 %v591
    %v915 = vunpack.c.l.b16 %v592
    %v916 = vunpack.c.h.b16 %v592
    %v917 = vpack.c.b16 %v731, %v725
    %v918 = vpack.c.b16 %v732, %v726
    %v919 = vpack.c.b16 %v733, %v727
    %v920 = vpack.c.b16 %v734, %v728
    %v921 = vpack.c.b16 %v735, %v729
    %v922 = vpack.c.b16 %v736, %v730
    %v923 = vpack.c.b16 %v743, %v737
    %v924 = vpack.c.b16 %v744, %v738
    %v925 = vpack.c.b16 %v745, %v739
    %v926 = vpack.c.b16 %v746, %v740
    %v927 = vpack.c.b16 %v747, %v741
    %v928 = vpack.c.b16 %v748, %v742
    %v929 = vpack.c.b16 %v755, %v749
    %v930 = vpack.c.b16 %v756, %v750
    %v931 = vpack.c.b16 %v757, %v751
    %v932 = vpack.c.b16 %v758, %v752
    %v933 = vpack.c.b16 %v759, %v753
    %v934 = vpack.c.b16 %v760, %v754
    %v935 = vpack.c.b16 %v767, %v761
    %v936 = vpack.c.b16 %v768, %v762
    %v937 = vpack.c.b16 %v769, %v763
    %v938 = vpack.c.b16 %v770, %v764
    %v939 = vpack.c.b16 %v771, %v765
    %v940 = vpack.c.b16 %v772, %v766
    %v941 = vpack.c.b16 %v779, %v773
    %v942 = vpack.c.b16 %v780, %v774
    %v943 = vpack.c.b16 %v781, %v775
    %v944 = vpack.c.b16 %v782, %v776
    %v945 = vpack.c.b16 %v783, %v777
    %v946 = vpack.c.b16 %v784, %v778
    %v947 = vpack.c.b16 %v791, %v785
    %v948 = vpack.c.b16 %v792, %v786
    %v949 = vpack.c.b16 %v793, %v787
    %v950 = vpack.c.b16 %v794, %v788
    %v951 = vpack.c.b16 %v795, %v789
    %v952 = vpack.c.b16 %v796, %v790
    %v953 = vpack.c.b16 %v803, %v797
    %v954 = vpack.c.b16 %v804, %v798
    %v955 = vpack.c.b16 %v805, %v799
    %v956 = vpack.c.b16 %v806, %v800
    %v957 = vpack.c.b16 %v807, %v801
    %v958 = vpack.c.b16 %v808, %v802
    %v959 = vpack.c.b16 %v815, %v809
    %v960 = vpack.c.b16 %v816, %v810
    %v961 = vpack.c.b16 %v817, %v811
    %v962 = vpack.c.b16 %v818, %v812
    %v963 = vpack.c.b16 %v819, %v813
    %v964 = vpack.c.b16 %v820, %v814
    %v965 = vpack.c.b16 %v827, %v821
    %v966 = vpack.c.b16 %v828, %v822
    %v967 = vpack.c.b16 %v829, %v823
    %v968 = vpack.c.b16 %v830, %v824
    %v969 = vpack.c.b16 %v831, %v825
    %v970 = vpack.c.b16 %v832, %v826
    %v971 = vpack.c.b16 %v839, %v833
    %v972 = vpack.c.b16 %v840, %v834
    %v973 = vpack.c.b16 %v841, %v835
    %v974 = vpack.c.b16 %v842, %v836
    %v975 = vpack.c.b16 %v843, %v837
    %v976 = vpack.c.b16 %v844, %v838
    %v977 = vpack.c.b16 %v851, %v845
    %v978 = vpack.c.b16 %v852, %v846
    %v979 = vpack.c.b16 %v853, %v847
    %v980 = vpack.c.b16 %v854, %v848
    %v981 = vpack.c.b16 %v855, %v849
    %v982 = vpack.c.b16 %v856, %v850
    %v983 = vpack.c.b16 %v863, %v857
    %v984 = vpack.c.b16 %v864, %v858
    %v985 = vpack.c.b16 %v865, %v859
    %v986 = vpack.c.b16 %v866, %v860
    %v987 = vpack.c.b16 %v867, %v861
    %v988 = vpack.c.b16 %v868, %v862
    %v989 = vpack.c.b16 %v875, %v869
    %v990 = vpack.c.b16 %v876, %v870
    %v991 = vpack.c.b16 %v877, %v871
    %v992 = vpack.c.b16 %v878, %v872
    %v993 = vpack.c.b16 %v879, %v873
    %v994 = vpack.c.b16 %v880, %v874
    %v995 = vpack.c.b16 %v887, %v881
    %v996 = vpack.c.b16 %v888, %v882
    %v997 = vpack.c.b16 %v889, %v883
    %v998 = vpack.c.b16 %v890, %v884
    %v999 = vpack.c.b16 %v891, %v885
    %v1000 = vpack.c.b16 %v892, %v886
    %v1001 = vpack.c.b16 %v899, %v893
    %v1002 = vpack.c.b16 %v900, %v894
    %v1003 = vpack.c.b16 %v901, %v895
    %v1004 = vpack.c.b16 %v902, %v896
    %v1005 = vpack.c.b16 %v903, %v897
    %v1006 = vpack.c.b16 %v904, %v898
    %v1007 = vpack.c.b16 %v911, %v905
    %v1008 = vpack.c.b16 %v912, %v906
    %v1009 = vpack.c.b16 %v913, %v907
    %v1010 = vpack.c.b16 %v914, %v908
    %v1011 = vpack.c.b16 %v915, %v909
    %v1012 = vpack.c.b16 %v916, %v910
    %1109 = vmatprep.subr.bf16.mxu0 %v960
    %1110 = vmatpush1.bf16.msra.mxu0 %v959
    %1111 = vmatprep.subr.bf16.mxu0 %v954
    %1112 = vmatpush1.bf16.msra.mxu0 %v953
    %1113 = vmatprep.subr.bf16.mxu0 %v948
    %1114 = vmatpush1.bf16.msra.mxu0 %v947
    %1115 = vmatprep.subr.bf16.mxu0 %v942
    %1116 = vmatpush1.bf16.msra.mxu0 %v941
    %1117 = vmatprep.subr.bf16.mxu0 %v936
    %1118 = vmatpush1.bf16.msra.mxu0 %v935
    %1119 = vmatprep.subr.bf16.mxu0 %v930
    %1120 = vmatpush1.bf16.msra.mxu0 %v929
    %1121 = vmatprep.subr.bf16.mxu0 %v924
    %1122 = vmatpush1.bf16.msra.mxu0 %v923
    %1123 = vmatprep.subr.bf16.mxu0 %v918
    %1124 = vmatpush1.bf16.msra.mxu0 %v917
    %1125 = vmatprep.subr.bf16.mxu0 %v1008
    %1126 = vmatpush2.bf16.msra.mxu0 %v1007
    %1127 = vmatprep.subr.bf16.mxu0 %v1002
    %1128 = vmatpush2.bf16.msra.mxu0 %v1001
    %1129 = vmatprep.subr.bf16.mxu0 %v996
    %1130 = vmatpush2.bf16.msra.mxu0 %v995
    %1131 = vmatprep.subr.bf16.mxu0 %v990
    %1132 = vmatpush2.bf16.msra.mxu0 %v989
    %1133 = vmatprep.subr.bf16.mxu0 %v984
    %1134 = vmatpush2.bf16.msra.mxu0 %v983
    %1135 = vmatprep.subr.bf16.mxu0 %v978
    %1136 = vmatpush2.bf16.msra.mxu0 %v977
    %1137 = vmatprep.subr.bf16.mxu0 %v972
    %1138 = vmatpush2.bf16.msra.mxu0 %v971
    %1139 = vmatprep.subr.bf16.mxu0 %v966
    %1140 = vmatpush2.bf16.msra.mxu0 %v965
    %1141 = vmatprep.mubr.bf16.mxu0 %v594
    %1142 = vmatmul.mubr.bf16.gmra.mxu0 %v593
    %v1143 = vpop.f32.mrf.mxu0
    %v1144 = vadd.f32 %v602, %v1143
    %v1145 = vpop.f32.mrf.mxu0
    %v1146 = vadd.f32 %v606, %v1145
    %v1147 = vpop.f32.mrf.mxu0
    %v1148 = vadd.f32 %v602, %v1147
    %v1149 = vpop.f32.mrf.mxu0
    %v1150 = vadd.f32 %v606, %v1149
    %1151 = vmatprep.mubr.bf16.mxu0 %v596
    %1152 = vmatmul.mubr.bf16.gmra.mxu0 %v595
    %v1153 = vpop.f32.mrf.mxu0
    %v1154 = vadd.f32 %v602, %v1153
    %v1155 = vpop.f32.mrf.mxu0
    %v1156 = vadd.f32 %v606, %v1155
    %v1157 = vpop.f32.mrf.mxu0
    %v1158 = vadd.f32 %v602, %v1157
    %v1159 = vpop.f32.mrf.mxu0
    %v1160 = vadd.f32 %v606, %v1159
    %1161 = vdwg.mxu0
    %1162 = vmatprep.subr.bf16.mxu0 %v962
    %1163 = vmatpush1.bf16.msra.mxu0 %v961
    %1164 = vmatprep.subr.bf16.mxu0 %v956
    %1165 = vmatpush1.bf16.msra.mxu0 %v955
    %1166 = vmatprep.subr.bf16.mxu0 %v950
    %1167 = vmatpush1.bf16.msra.mxu0 %v949
    %1168 = vmatprep.subr.bf16.mxu0 %v944
    %1169 = vmatpush1.bf16.msra.mxu0 %v943
    %1170 = vmatprep.subr.bf16.mxu0 %v938
    %1171 = vmatpush1.bf16.msra.mxu0 %v937
    %1172 = vmatprep.subr.bf16.mxu0 %v932
    %1173 = vmatpush1.bf16.msra.mxu0 %v931
    %1174 = vmatprep.subr.bf16.mxu0 %v926
    %1175 = vmatpush1.bf16.msra.mxu0 %v925
    %1176 = vmatprep.subr.bf16.mxu0 %v920
    %1177 = vmatpush1.bf16.msra.mxu0 %v919
    %1178 = vmatprep.subr.bf16.mxu0 %v1010
    %1179 = vmatpush2.bf16.msra.mxu0 %v1009
    %1180 = vmatprep.subr.bf16.mxu0 %v1004
    %1181 = vmatpush2.bf16.msra.mxu0 %v1003
    %1182 = vmatprep.subr.bf16.mxu0 %v998
    %1183 = vmatpush2.bf16.msra.mxu0 %v997
    %1184 = vmatprep.subr.bf16.mxu0 %v992
    %1185 = vmatpush2.bf16.msra.mxu0 %v991
    %1186 = vmatprep.subr.bf16.mxu0 %v986
    %1187 = vmatpush2.bf16.msra.mxu0 %v985
    %1188 = vmatprep.subr.bf16.mxu0 %v980
    %1189 = vmatpush2.bf16.msra.mxu0 %v979
    %1190 = vmatprep.subr.bf16.mxu0 %v974
    %1191 = vmatpush2.bf16.msra.mxu0 %v973
    %1192 = vmatprep.subr.bf16.mxu0 %v968
    %1193 = vmatpush2.bf16.msra.mxu0 %v967
    %1194 = vmatprep.mubr.bf16.mxu0 %v594
    %1195 = vmatmul.mubr.bf16.gmra.mxu0 %v593
    %v1196 = vpop.f32.mrf.mxu0
    %v1197 = vadd.f32 %v610, %v1196
    %v1198 = vpop.f32.mrf.mxu0
    %v1199 = vadd.f32 %v614, %v1198
    %v1200 = vpop.f32.mrf.mxu0
    %v1201 = vadd.f32 %v610, %v1200
    %v1202 = vpop.f32.mrf.mxu0
    %v1203 = vadd.f32 %v614, %v1202
    %1204 = vmatprep.mubr.bf16.mxu0 %v596
    %1205 = vmatmul.mubr.bf16.gmra.mxu0 %v595
    %v1206 = vpop.f32.mrf.mxu0
    %v1207 = vadd.f32 %v610, %v1206
    %v1208 = vpop.f32.mrf.mxu0
    %v1209 = vadd.f32 %v614, %v1208
    %v1210 = vpop.f32.mrf.mxu0
    %v1211 = vadd.f32 %v610, %v1210
    %v1212 = vpop.f32.mrf.mxu0
    %v1213 = vadd.f32 %v614, %v1212
    %1214 = vdwg.mxu0
    %1215 = vmatprep.subr.bf16.mxu0 %v964
    %1216 = vmatpush1.bf16.msra.mxu0 %v963
    %1217 = vmatprep.subr.bf16.mxu0 %v958
    %1218 = vmatpush1.bf16.msra.mxu0 %v957
    %1219 = vmatprep.subr.bf16.mxu0 %v952
    %1220 = vmatpush1.bf16.msra.mxu0 %v951
    %1221 = vmatprep.subr.bf16.mxu0 %v946
    %1222 = vmatpush1.bf16.msra.mxu0 %v945
    %1223 = vmatprep.subr.bf16.mxu0 %v940
    %1224 = vmatpush1.bf16.msra.mxu0 %v939
    %1225 = vmatprep.subr.bf16.mxu0 %v934
    %1226 = vmatpush1.bf16.msra.mxu0 %v933
    %1227 = vmatprep.subr.bf16.mxu0 %v928
    %1228 = vmatpush1.bf16.msra.mxu0 %v927
    %1229 = vmatprep.subr.bf16.mxu0 %v922
    %1230 = vmatpush1.bf16.msra.mxu0 %v921
    %1231 = vmatprep.subr.bf16.mxu0 %v1012
    %1232 = vmatpush2.bf16.msra.mxu0 %v1011
    %1233 = vmatprep.subr.bf16.mxu0 %v1006
    %1234 = vmatpush2.bf16.msra.mxu0 %v1005
    %1235 = vmatprep.subr.bf16.mxu0 %v1000
    %1236 = vmatpush2.bf16.msra.mxu0 %v999
    %1237 = vmatprep.subr.bf16.mxu0 %v994
    %1238 = vmatpush2.bf16.msra.mxu0 %v993
    %1239 = vmatprep.subr.bf16.mxu0 %v988
    %1240 = vmatpush2.bf16.msra.mxu0 %v987
    %1241 = vmatprep.subr.bf16.mxu0 %v982
    %1242 = vmatpush2.bf16.msra.mxu0 %v981
    %1243 = vmatprep.subr.bf16.mxu0 %v976
    %1244 = vmatpush2.bf16.msra.mxu0 %v975
    %1245 = vmatprep.subr.bf16.mxu0 %v970
    %1246 = vmatpush2.bf16.msra.mxu0 %v969
    %1247 = vmatprep.mubr.bf16.mxu0 %v594
    %1248 = vmatmul.mubr.bf16.gmra.mxu0 %v593
    %v1249 = vpop.f32.mrf.mxu0
    %v1250 = vadd.f32 %v618, %v1249
    %v1251 = vpop.f32.mrf.mxu0
    %v1252 = vadd.f32 %v622, %v1251
    %v1253 = vpop.f32.mrf.mxu0
    %v1254 = vadd.f32 %v618, %v1253
    %v1255 = vpop.f32.mrf.mxu0
    %v1256 = vadd.f32 %v622, %v1255
    %1257 = vmatprep.mubr.bf16.mxu0 %v596
    %1258 = vmatmul.mubr.bf16.gmra.mxu0 %v595
    %v1259 = vpop.f32.mrf.mxu0
    %v1260 = vadd.f32 %v618, %v1259
    %v1261 = vpop.f32.mrf.mxu0
    %v1262 = vadd.f32 %v622, %v1261
    %v1263 = vpop.f32.mrf.mxu0
    %v1264 = vadd.f32 %v618, %v1263
    %v1265 = vpop.f32.mrf.mxu0
    %v1266 = vadd.f32 %v622, %v1265
    %1267 = vdwg.mxu0
    %v1268 = vpack.c.bf16 %v1148, %v1144
    %v1269 = vpack.c.bf16 %v1158, %v1154
    %v1270 = vpack.c.bf16 %v1201, %v1197
    %v1271 = vpack.c.bf16 %v1211, %v1207
    %1272 = vmatprep.subr.bf16.mxu0 0
    %1273 = vmatpush1.bf16.xpose.msra.mxu0 0
    %1274 = vmatprep.subr.bf16.mxu0 0
    %1275 = vmatpush1.bf16.xpose.msra.mxu0 0
    %1276 = vmatprep.subr.bf16.mxu0 0
    %1277 = vmatpush1.bf16.xpose.msra.mxu0 0
    %1278 = vmatprep.subr.bf16.mxu0 0
    %1279 = vmatpush1.bf16.xpose.msra.mxu0 0
    %1280 = vmatprep.subr.bf16.mxu0 0
    %1281 = vmatpush1.bf16.xpose.msra.mxu0 0
    %1282 = vmatprep.subr.bf16.mxu0 0
    %1283 = vmatpush1.bf16.xpose.msra.mxu0 0
    %1284 = vmatprep.subr.bf16.mxu0 0
    %1285 = vmatpush1.bf16.xpose.msra.mxu0 0
    %1286 = vmatprep.subr.bf16.mxu0 0
    %1287 = vmatpush1.bf16.xpose.msra.mxu0 %v1270
    %1288 = vmatprep.subr.bf16.mxu0 0
    %1289 = vmatpush2.bf16.xpose.msra.mxu0 0
    %1290 = vmatprep.subr.bf16.mxu0 0
    %1291 = vmatpush2.bf16.xpose.msra.mxu0 0
    %1292 = vmatprep.subr.bf16.mxu0 0
    %1293 = vmatpush2.bf16.xpose.msra.mxu0 0
    %1294 = vmatprep.subr.bf16.mxu0 0
    %1295 = vmatpush2.bf16.xpose.msra.mxu0 0
    %1296 = vmatprep.subr.bf16.mxu0 0
    %1297 = vmatpush2.bf16.xpose.msra.mxu0 0
    %1298 = vmatprep.subr.bf16.mxu0 0
    %1299 = vmatpush2.bf16.xpose.msra.mxu0 0
    %1300 = vmatprep.subr.bf16.mxu0 0
    %1301 = vmatpush2.bf16.xpose.msra.mxu0 0
    %1302 = vmatprep.subr.bf16.mxu0 0
    %1303 = vmatpush2.bf16.xpose.msra.mxu0 0
    %1304 = vmatprep.mubr.bf16.mxu0 0
    %1305 = vmatmul.mubr.bf16.gmra.mxu0 %v1268
    %v1306 = vpop.f32.mrf.mxu0
    %v1307 = vadd.f32 0.0, %v1306
    %v1308 = vpop.f32.mrf.mxu0
    %v1309 = vpop.f32.mrf.mxu0
    %v1310 = vadd.f32 0.0, %v1309
    %v1311 = vpop.f32.mrf.mxu0
    %1312 = vdwg.mxu0
    %1313 = vmatprep.subr.bf16.mxu0 0
    %1314 = vmatpush1.bf16.xpose.msra.mxu0 0
    %1315 = vmatprep.subr.bf16.mxu0 0
    %1316 = vmatpush1.bf16.xpose.msra.mxu0 0
    %1317 = vmatprep.subr.bf16.mxu0 0
    %1318 = vmatpush1.bf16.xpose.msra.mxu0 0
    %1319 = vmatprep.subr.bf16.mxu0 0
    %1320 = vmatpush1.bf16.xpose.msra.mxu0 0
    %1321 = vmatprep.subr.bf16.mxu0 0
    %1322 = vmatpush1.bf16.xpose.msra.mxu0 0
    %1323 = vmatprep.subr.bf16.mxu0 0
    %1324 = vmatpush1.bf16.xpose.msra.mxu0 0
    %1325 = vmatprep.subr.bf16.mxu0 0
    %1326 = vmatpush1.bf16.xpose.msra.mxu0 0
    %1327 = vmatprep.subr.bf16.mxu0 0
    %1328 = vmatpush1.bf16.xpose.msra.mxu0 %v1271
    %1329 = vmatprep.subr.bf16.mxu0 0
    %1330 = vmatpush2.bf16.xpose.msra.mxu0 0
    %1331 = vmatprep.subr.bf16.mxu0 0
    %1332 = vmatpush2.bf16.xpose.msra.mxu0 0
    %1333 = vmatprep.subr.bf16.mxu0 0
    %1334 = vmatpush2.bf16.xpose.msra.mxu0 0
    %1335 = vmatprep.subr.bf16.mxu0 0
    %1336 = vmatpush2.bf16.xpose.msra.mxu0 0
    %1337 = vmatprep.subr.bf16.mxu0 0
    %1338 = vmatpush2.bf16.xpose.msra.mxu0 0
    %1339 = vmatprep.subr.bf16.mxu0 0
    %1340 = vmatpush2.bf16.xpose.msra.mxu0 0
    %1341 = vmatprep.subr.bf16.mxu0 0
    %1342 = vmatpush2.bf16.xpose.msra.mxu0 0
    %1343 = vmatprep.subr.bf16.mxu0 0
    %1344 = vmatpush2.bf16.xpose.msra.mxu0 0
    %1345 = vmatprep.mubr.bf16.mxu0 0
    %1346 = vmatmul.mubr.bf16.gmra.mxu0 %v1269
    %v1347 = vpop.f32.mrf.mxu0
    %v1348 = vadd.f32 0.0, %v1347
    %v1349 = vpop.f32.mrf.mxu0
    %v1350 = vpop.f32.mrf.mxu0
    %v1351 = vadd.f32 0.0, %v1350
    %v1352 = vpop.f32.mrf.mxu0
    %1353 = vdwg.mxu0
    %v1354 = vmul.f32 %v1307, 0.088388346
    %v1355 = vmul.f32 %v1310, 0.088388346
    %v1356 = vmul.f32 %v1348, 0.088388346
    %v1357 = vmul.f32 %v1351, 0.088388346
    %vm1358 = vcmask 130048
    %v1359 = vsel %vm1358, %v1354, -inf
    %1360 = vmax.xlane.f32.xlu0 %v1359
    %v1361 = vpop.xlane.xlu0 %1360
    %v1362 = vsel %vm1358, %v1355, -inf
    %1363 = vmax.xlane.f32.xlu0 %v1362
    %v1364 = vpop.xlane.xlu0 %1363
    %v1365 = vsel %vm1358, %v1356, -inf
    %1366 = vmax.xlane.f32.xlu0 %v1365
    %v1367 = vpop.xlane.xlu0 %1366
    %v1368 = vsel %vm1358, %v1357, -inf
    %1369 = vmax.xlane.f32.xlu0 %v1368
    %v1370 = vpop.xlane.xlu0 %1369
    %v1371 = vsub.f32 %v1354, %v1361
    %v1372 = vsub.f32 %v1355, %v1364
    %v1373 = vsub.f32 %v1356, %v1367
    %v1374 = vsub.f32 %v1357, %v1370
    %v1375 = vmul.f32 %v1371, 1.442695
    %v1376 = vpow.pop %v1375
    %v1377 = vmul.f32 %v1372, 1.442695
    %v1378 = vpow.pop %v1377
    %v1379 = vmul.f32 %v1373, 1.442695
    %v1380 = vpow.pop %v1379
    %v1381 = vmul.f32 %v1374, 1.442695
    %v1382 = vpow.pop %v1381
    %v1383 = vsel %vm1358, %v1376, 0.0
    %1384 = vadd.xlane.f32.xlu0 %v1383
    %v1385 = vpop.xlane.xlu0 %1384
    %v1386 = vsel %vm1358, %v1378, 0.0
    %1387 = vadd.xlane.f32.xlu0 %v1386
    %v1388 = vpop.xlane.xlu0 %1387
    %v1389 = vsel %vm1358, %v1380, 0.0
    %1390 = vadd.xlane.f32.xlu0 %v1389
    %v1391 = vpop.xlane.xlu0 %1390
    %v1392 = vsel %vm1358, %v1382, 0.0
    %1393 = vadd.xlane.f32.xlu0 %v1392
    %v1394 = vpop.xlane.xlu0 %1393
    %v1395 = vrcp.pop %v1385
    %v1396 = vrcp.pop %v1388
    %v1397 = vrcp.pop %v1391
    %v1398 = vrcp.pop %v1394
    %v1399 = vmul.f32 %v1376, %v1395
    %v1400 = vmul.f32 %v1378, %v1396
    %v1401 = vmul.f32 %v1380, %v1397
    %v1402 = vmul.f32 %v1382, %v1398
    %v1403 = vpack.c.bf16 %v1400, %v1399
    %v1404 = vpack.c.bf16 %v1402, %v1401
    %v1405 = vpack.c.bf16 %v1254, %v1250
    %v1406 = vpack.c.bf16 %v1264, %v1260
    %v1408 = vsel %vm1358, %v1403, 0
    %1410 = vmatprep.subr.bf16.mxu0 0
    %1411 = vmatpush1.bf16.msra.mxu0 0
    %1412 = vmatprep.subr.bf16.mxu0 0
    %1413 = vmatpush1.bf16.msra.mxu0 0
    %1414 = vmatprep.subr.bf16.mxu0 0
    %1415 = vmatpush1.bf16.msra.mxu0 0
    %1416 = vmatprep.subr.bf16.mxu0 0
    %1417 = vmatpush1.bf16.msra.mxu0 0
    %1418 = vmatprep.subr.bf16.mxu0 0
    %1419 = vmatpush1.bf16.msra.mxu0 0
    %1420 = vmatprep.subr.bf16.mxu0 0
    %1421 = vmatpush1.bf16.msra.mxu0 0
    %1422 = vmatprep.subr.bf16.mxu0 0
    %1423 = vmatpush1.bf16.msra.mxu0 0
    %1424 = vmatprep.subr.bf16.mxu0 0
    %1425 = vmatpush1.bf16.msra.mxu0 %v1405
    %1426 = vmatprep.subr.bf16.mxu0 0
    %1427 = vmatpush2.bf16.msra.mxu0 0
    %1428 = vmatprep.subr.bf16.mxu0 0
    %1429 = vmatpush2.bf16.msra.mxu0 0
    %1430 = vmatprep.subr.bf16.mxu0 0
    %1431 = vmatpush2.bf16.msra.mxu0 0
    %1432 = vmatprep.subr.bf16.mxu0 0
    %1433 = vmatpush2.bf16.msra.mxu0 0
    %1434 = vmatprep.subr.bf16.mxu0 0
    %1435 = vmatpush2.bf16.msra.mxu0 0
    %1436 = vmatprep.subr.bf16.mxu0 0
    %1437 = vmatpush2.bf16.msra.mxu0 0
    %1438 = vmatprep.subr.bf16.mxu0 0
    %1439 = vmatpush2.bf16.msra.mxu0 0
    %1440 = vmatprep.subr.bf16.mxu0 0
    %1441 = vmatpush2.bf16.msra.mxu0 0
    %1442 = vmatprep.mubr.bf16.mxu0 0
    %1443 = vmatmul.mubr.bf16.gmra.mxu0 %v1408
    %v1444 = vpop.f32.mrf.mxu0
    %v1445 = vadd.f32 0.0, %v1444
    %v1446 = vpop.f32.mrf.mxu0
    %v1447 = vpop.f32.mrf.mxu0
    %v1448 = vadd.f32 0.0, %v1447
    %v1449 = vpop.f32.mrf.mxu0
    %1450 = vdwg.mxu0
    %v1452 = vsel %vm1358, %v1404, 0
    %1454 = vmatprep.subr.bf16.mxu0 0
    %1455 = vmatpush1.bf16.msra.mxu0 0
    %1456 = vmatprep.subr.bf16.mxu0 0
    %1457 = vmatpush1.bf16.msra.mxu0 0
    %1458 = vmatprep.subr.bf16.mxu0 0
    %1459 = vmatpush1.bf16.msra.mxu0 0
    %1460 = vmatprep.subr.bf16.mxu0 0
    %1461 = vmatpush1.bf16.msra.mxu0 0
    %1462 = vmatprep.subr.bf16.mxu0 0
    %1463 = vmatpush1.bf16.msra.mxu0 0
    %1464 = vmatprep.subr.bf16.mxu0 0
    %1465 = vmatpush1.bf16.msra.mxu0 0
    %1466 = vmatprep.subr.bf16.mxu0 0
    %1467 = vmatpush1.bf16.msra.mxu0 0
    %1468 = vmatprep.subr.bf16.mxu0 0
    %1469 = vmatpush1.bf16.msra.mxu0 %v1406
    %1470 = vmatprep.subr.bf16.mxu0 0
    %1471 = vmatpush2.bf16.msra.mxu0 0
    %1472 = vmatprep.subr.bf16.mxu0 0
    %1473 = vmatpush2.bf16.msra.mxu0 0
    %1474 = vmatprep.subr.bf16.mxu0 0
    %1475 = vmatpush2.bf16.msra.mxu0 0
    %1476 = vmatprep.subr.bf16.mxu0 0
    %1477 = vmatpush2.bf16.msra.mxu0 0
    %1478 = vmatprep.subr.bf16.mxu0 0
    %1479 = vmatpush2.bf16.msra.mxu0 0
    %1480 = vmatprep.subr.bf16.mxu0 0
    %1481 = vmatpush2.bf16.msra.mxu0 0
    %1482 = vmatprep.subr.bf16.mxu0 0
    %1483 = vmatpush2.bf16.msra.mxu0 0
    %1484 = vmatprep.subr.bf16.mxu0 0
    %1485 = vmatpush2.bf16.msra.mxu0 0
    %1486 = vmatprep.mubr.bf16.mxu0 0
    %1487 = vmatmul.mubr.bf16.gmra.mxu0 %v1452
    %v1488 = vpop.f32.mrf.mxu0
    %v1489 = vadd.f32 0.0, %v1488
    %v1490 = vpop.f32.mrf.mxu0
    %v1491 = vpop.f32.mrf.mxu0
    %v1492 = vadd.f32 0.0, %v1491
    %v1493 = vpop.f32.mrf.mxu0
    %1494 = vdwg.mxu0
    %v1495 = vld [vmem:[%s9] sm:$0xff]
    %v1496 = vld [vmem:[%s9 + $0x8] sm:$0xff]
    %v1497 = vld [vmem:[%s9 + $0x10] sm:$0xff]
    %v1498 = vld [vmem:[%s9 + $0x18] sm:$0xff]
    %v1499 = vld [vmem:[%s9 + $0x20] sm:$0xff]
    %v1500 = vld [vmem:[%s9 + $0x28] sm:$0xff]
    %v1501 = vld [vmem:[%s9 + $0x30] sm:$0xff]
    %v1502 = vld [vmem:[%s9 + $0x38] sm:$0xff]
    %v1503 = vld [vmem:[%s9 + $0x40] sm:$0xff]
    %v1504 = vld [vmem:[%s9 + $0x48] sm:$0xff]
    %v1505 = vld [vmem:[%s9 + $0x50] sm:$0xff]
    %v1506 = vld [vmem:[%s9 + $0x58] sm:$0xff]
    %v1507 = vld [vmem:[%s9 + $0x60] sm:$0xff]
    %v1508 = vld [vmem:[%s9 + $0x68] sm:$0xff]
    %v1509 = vld [vmem:[%s9 + $0x70] sm:$0xff]
    %v1510 = vld [vmem:[%s9 + $0x78] sm:$0xff]
    %v1511 = vpack.c.bf16 %v1448, %v1445
    %v1512 = vpack.c.bf16 %v1492, %v1489
    %v1513 = vpack.c.bf16 %v1150, %v1146
    %v1514 = vpack.c.bf16 %v1160, %v1156
    %v1515 = vpack.c.bf16 %v1203, %v1199
    %v1516 = vpack.c.bf16 %v1213, %v1209
    %1517 = vmatprep.subr.bf16.mxu0 0
    %1518 = vmatpush1.bf16.xpose.msra.mxu0 0
    %1519 = vmatprep.subr.bf16.mxu0 0
    %1520 = vmatpush1.bf16.xpose.msra.mxu0 0
    %1521 = vmatprep.subr.bf16.mxu0 0
    %1522 = vmatpush1.bf16.xpose.msra.mxu0 0
    %1523 = vmatprep.subr.bf16.mxu0 0
    %1524 = vmatpush1.bf16.xpose.msra.mxu0 0
    %1525 = vmatprep.subr.bf16.mxu0 0
    %1526 = vmatpush1.bf16.xpose.msra.mxu0 0
    %1527 = vmatprep.subr.bf16.mxu0 0
    %1528 = vmatpush1.bf16.xpose.msra.mxu0 0
    %1529 = vmatprep.subr.bf16.mxu0 0
    %1530 = vmatpush1.bf16.xpose.msra.mxu0 0
    %1531 = vmatprep.subr.bf16.mxu0 0
    %1532 = vmatpush1.bf16.xpose.msra.mxu0 %v1515
    %1533 = vmatprep.subr.bf16.mxu0 0
    %1534 = vmatpush2.bf16.xpose.msra.mxu0 0
    %1535 = vmatprep.subr.bf16.mxu0 0
    %1536 = vmatpush2.bf16.xpose.msra.mxu0 0
    %1537 = vmatprep.subr.bf16.mxu0 0
    %1538 = vmatpush2.bf16.xpose.msra.mxu0 0
    %1539 = vmatprep.subr.bf16.mxu0 0
    %1540 = vmatpush2.bf16.xpose.msra.mxu0 0
    %1541 = vmatprep.subr.bf16.mxu0 0
    %1542 = vmatpush2.bf16.xpose.msra.mxu0 0
    %1543 = vmatprep.subr.bf16.mxu0 0
    %1544 = vmatpush2.bf16.xpose.msra.mxu0 0
    %1545 = vmatprep.subr.bf16.mxu0 0
    %1546 = vmatpush2.bf16.xpose.msra.mxu0 0
    %1547 = vmatprep.subr.bf16.mxu0 0
    %1548 = vmatpush2.bf16.xpose.msra.mxu0 0
    %1549 = vmatprep.mubr.bf16.mxu0 0
    %1550 = vmatmul.mubr.bf16.gmra.mxu0 %v1513
    %v1551 = vpop.f32.mrf.mxu0
    %v1552 = vadd.f32 0.0, %v1551
    %v1553 = vpop.f32.mrf.mxu0
    %v1554 = vpop.f32.mrf.mxu0
    %v1555 = vadd.f32 0.0, %v1554
    %v1556 = vpop.f32.mrf.mxu0
    %1557 = vdwg.mxu0
    %1558 = vmatprep.subr.bf16.mxu0 0
    %1559 = vmatpush1.bf16.xpose.msra.mxu0 0
    %1560 = vmatprep.subr.bf16.mxu0 0
    %1561 = vmatpush1.bf16.xpose.msra.mxu0 0
    %1562 = vmatprep.subr.bf16.mxu0 0
    %1563 = vmatpush1.bf16.xpose.msra.mxu0 0
    %1564 = vmatprep.subr.bf16.mxu0 0
    %1565 = vmatpush1.bf16.xpose.msra.mxu0 0
    %1566 = vmatprep.subr.bf16.mxu0 0
    %1567 = vmatpush1.bf16.xpose.msra.mxu0 0
    %1568 = vmatprep.subr.bf16.mxu0 0
    %1569 = vmatpush1.bf16.xpose.msra.mxu0 0
    %1570 = vmatprep.subr.bf16.mxu0 0
    %1571 = vmatpush1.bf16.xpose.msra.mxu0 0
    %1572 = vmatprep.subr.bf16.mxu0 0
    %1573 = vmatpush1.bf16.xpose.msra.mxu0 %v1516
    %1574 = vmatprep.subr.bf16.mxu0 0
    %1575 = vmatpush2.bf16.xpose.msra.mxu0 0
    %1576 = vmatprep.subr.bf16.mxu0 0
    %1577 = vmatpush2.bf16.xpose.msra.mxu0 0
    %1578 = vmatprep.subr.bf16.mxu0 0
    %1579 = vmatpush2.bf16.xpose.msra.mxu0 0
    %1580 = vmatprep.subr.bf16.mxu0 0
    %1581 = vmatpush2.bf16.xpose.msra.mxu0 0
    %1582 = vmatprep.subr.bf16.mxu0 0
    %1583 = vmatpush2.bf16.xpose.msra.mxu0 0
    %1584 = vmatprep.subr.bf16.mxu0 0
    %1585 = vmatpush2.bf16.xpose.msra.mxu0 0
    %1586 = vmatprep.subr.bf16.mxu0 0
    %1587 = vmatpush2.bf16.xpose.msra.mxu0 0
    %1588 = vmatprep.subr.bf16.mxu0 0
    %1589 = vmatpush2.bf16.xpose.msra.mxu0 0
    %1590 = vmatprep.mubr.bf16.mxu0 0
    %1591 = vmatmul.mubr.bf16.gmra.mxu0 %v1514
    %v1592 = vpop.f32.mrf.mxu0
    %v1593 = vadd.f32 0.0, %v1592
    %v1594 = vpop.f32.mrf.mxu0
    %v1595 = vpop.f32.mrf.mxu0
    %v1596 = vadd.f32 0.0, %v1595
    %v1597 = vpop.f32.mrf.mxu0
    %1598 = vdwg.mxu0
    %v1599 = vmul.f32 %v1552, 0.088388346
    %v1600 = vmul.f32 %v1555, 0.088388346
    %v1601 = vmul.f32 %v1593, 0.088388346
    %v1602 = vmul.f32 %v1596, 0.088388346
    %v1603 = vsel %vm1358, %v1599, -inf
    %1604 = vmax.xlane.f32.xlu0 %v1603
    %v1605 = vpop.xlane.xlu0 %1604
    %v1606 = vsel %vm1358, %v1600, -inf
    %1607 = vmax.xlane.f32.xlu0 %v1606
    %v1608 = vpop.xlane.xlu0 %1607
    %v1609 = vsel %vm1358, %v1601, -inf
    %1610 = vmax.xlane.f32.xlu0 %v1609
    %v1611 = vpop.xlane.xlu0 %1610
    %v1612 = vsel %vm1358, %v1602, -inf
    %1613 = vmax.xlane.f32.xlu0 %v1612
    %v1614 = vpop.xlane.xlu0 %1613
    %v1615 = vsub.f32 %v1599, %v1605
    %v1616 = vsub.f32 %v1600, %v1608
    %v1617 = vsub.f32 %v1601, %v1611
    %v1618 = vsub.f32 %v1602, %v1614
    %v1619 = vmul.f32 %v1615, 1.442695
    %v1620 = vpow.pop %v1619
    %v1621 = vmul.f32 %v1616, 1.442695
    %v1622 = vpow.pop %v1621
    %v1623 = vmul.f32 %v1617, 1.442695
    %v1624 = vpow.pop %v1623
    %v1625 = vmul.f32 %v1618, 1.442695
    %v1626 = vpow.pop %v1625
    %v1627 = vsel %vm1358, %v1620, 0.0
    %1628 = vadd.xlane.f32.xlu0 %v1627
    %v1629 = vpop.xlane.xlu0 %1628
    %v1630 = vsel %vm1358, %v1622, 0.0
    %1631 = vadd.xlane.f32.xlu0 %v1630
    %v1632 = vpop.xlane.xlu0 %1631
    %v1633 = vsel %vm1358, %v1624, 0.0
    %1634 = vadd.xlane.f32.xlu0 %v1633
    %v1635 = vpop.xlane.xlu0 %1634
    %v1636 = vsel %vm1358, %v1626, 0.0
    %1637 = vadd.xlane.f32.xlu0 %v1636
    %v1638 = vpop.xlane.xlu0 %1637
    %v1639 = vrcp.pop %v1629
    %v1640 = vrcp.pop %v1632
    %v1641 = vrcp.pop %v1635
    %v1642 = vrcp.pop %v1638
    %v1643 = vmul.f32 %v1620, %v1639
    %v1644 = vmul.f32 %v1622, %v1640
    %v1645 = vmul.f32 %v1624, %v1641
    %v1646 = vmul.f32 %v1626, %v1642
    %v1647 = vpack.c.bf16 %v1644, %v1643
    %v1648 = vpack.c.bf16 %v1646, %v1645
    %v1649 = vpack.c.bf16 %v1256, %v1252
    %v1650 = vpack.c.bf16 %v1266, %v1262
    %v1652 = vsel %vm1358, %v1647, 0
    %1654 = vmatprep.subr.bf16.mxu0 0
    %1655 = vmatpush1.bf16.msra.mxu0 0
    %1656 = vmatprep.subr.bf16.mxu0 0
    %1657 = vmatpush1.bf16.msra.mxu0 0
    %1658 = vmatprep.subr.bf16.mxu0 0
    %1659 = vmatpush1.bf16.msra.mxu0 0
    %1660 = vmatprep.subr.bf16.mxu0 0
    %1661 = vmatpush1.bf16.msra.mxu0 0
    %1662 = vmatprep.subr.bf16.mxu0 0
    %1663 = vmatpush1.bf16.msra.mxu0 0
    %1664 = vmatprep.subr.bf16.mxu0 0
    %1665 = vmatpush1.bf16.msra.mxu0 0
    %1666 = vmatprep.subr.bf16.mxu0 0
    %1667 = vmatpush1.bf16.msra.mxu0 0
    %1668 = vmatprep.subr.bf16.mxu0 0
    %1669 = vmatpush1.bf16.msra.mxu0 %v1649
    %1670 = vmatprep.subr.bf16.mxu0 0
    %1671 = vmatpush2.bf16.msra.mxu0 0
    %1672 = vmatprep.subr.bf16.mxu0 0
    %1673 = vmatpush2.bf16.msra.mxu0 0
    %1674 = vmatprep.subr.bf16.mxu0 0
    %1675 = vmatpush2.bf16.msra.mxu0 0
    %1676 = vmatprep.subr.bf16.mxu0 0
    %1677 = vmatpush2.bf16.msra.mxu0 0
    %1678 = vmatprep.subr.bf16.mxu0 0
    %1679 = vmatpush2.bf16.msra.mxu0 0
    %1680 = vmatprep.subr.bf16.mxu0 0
    %1681 = vmatpush2.bf16.msra.mxu0 0
    %1682 = vmatprep.subr.bf16.mxu0 0
    %1683 = vmatpush2.bf16.msra.mxu0 0
    %1684 = vmatprep.subr.bf16.mxu0 0
    %1685 = vmatpush2.bf16.msra.mxu0 0
    %1686 = vmatprep.mubr.bf16.mxu0 0
    %1687 = vmatmul.mubr.bf16.gmra.mxu0 %v1652
    %v1688 = vpop.f32.mrf.mxu0
    %v1689 = vadd.f32 0.0, %v1688
    %v1690 = vpop.f32.mrf.mxu0
    %v1691 = vpop.f32.mrf.mxu0
    %v1692 = vadd.f32 0.0, %v1691
    %v1693 = vpop.f32.mrf.mxu0
    %1694 = vdwg.mxu0
    %v1696 = vsel %vm1358, %v1648, 0
    %1698 = vmatprep.subr.bf16.mxu0 0
    %1699 = vmatpush1.bf16.msra.mxu0 0
    %1700 = vmatprep.subr.bf16.mxu0 0
    %1701 = vmatpush1.bf16.msra.mxu0 0
    %1702 = vmatprep.subr.bf16.mxu0 0
    %1703 = vmatpush1.bf16.msra.mxu0 0
    %1704 = vmatprep.subr.bf16.mxu0 0
    %1705 = vmatpush1.bf16.msra.mxu0 0
    %1706 = vmatprep.subr.bf16.mxu0 0
    %1707 = vmatpush1.bf16.msra.mxu0 0
    %1708 = vmatprep.subr.bf16.mxu0 0
    %1709 = vmatpush1.bf16.msra.mxu0 0
    %1710 = vmatprep.subr.bf16.mxu0 0
    %1711 = vmatpush1.bf16.msra.mxu0 0
    %1712 = vmatprep.subr.bf16.mxu0 0
    %1713 = vmatpush1.bf16.msra.mxu0 %v1650
    %1714 = vmatprep.subr.bf16.mxu0 0
    %1715 = vmatpush2.bf16.msra.mxu0 0
    %1716 = vmatprep.subr.bf16.mxu0 0
    %1717 = vmatpush2.bf16.msra.mxu0 0
    %1718 = vmatprep.subr.bf16.mxu0 0
    %1719 = vmatpush2.bf16.msra.mxu0 0
    %1720 = vmatprep.subr.bf16.mxu0 0
    %1721 = vmatpush2.bf16.msra.mxu0 0
    %1722 = vmatprep.subr.bf16.mxu0 0
    %1723 = vmatpush2.bf16.msra.mxu0 0
    %1724 = vmatprep.subr.bf16.mxu0 0
    %1725 = vmatpush2.bf16.msra.mxu0 0
    %1726 = vmatprep.subr.bf16.mxu0 0
    %1727 = vmatpush2.bf16.msra.mxu0 0
    %1728 = vmatprep.subr.bf16.mxu0 0
    %1729 = vmatpush2.bf16.msra.mxu0 0
    %1730 = vmatprep.mubr.bf16.mxu0 0
    %1731 = vmatmul.mubr.bf16.gmra.mxu0 %v1696
    %v1732 = vpop.f32.mrf.mxu0
    %v1733 = vadd.f32 0.0, %v1732
    %v1734 = vpop.f32.mrf.mxu0
    %v1735 = vpop.f32.mrf.mxu0
    %v1736 = vadd.f32 0.0, %v1735
    %v1737 = vpop.f32.mrf.mxu0
    %1738 = vdwg.mxu0
    %v1739 = vld [vmem:[%s9 + $0x80] sm:$0xff]
    %v1740 = vld [vmem:[%s9 + $0x88] sm:$0xff]
    %v1741 = vld [vmem:[%s9 + $0x90] sm:$0xff]
    %v1742 = vld [vmem:[%s9 + $0x98] sm:$0xff]
    %v1743 = vld [vmem:[%s9 + $0xa0] sm:$0xff]
    %v1744 = vld [vmem:[%s9 + $0xa8] sm:$0xff]
    %v1745 = vld [vmem:[%s9 + $0xb0] sm:$0xff]
    %v1746 = vld [vmem:[%s9 + $0xb8] sm:$0xff]
    %v1747 = vld [vmem:[%s9 + $0xc0] sm:$0xff]
    %v1748 = vld [vmem:[%s9 + $0xc8] sm:$0xff]
    %v1749 = vld [vmem:[%s9 + $0xd0] sm:$0xff]
    %v1750 = vld [vmem:[%s9 + $0xd8] sm:$0xff]
    %v1751 = vld [vmem:[%s9 + $0xe0] sm:$0xff]
    %v1752 = vld [vmem:[%s9 + $0xe8] sm:$0xff]
    %v1753 = vld [vmem:[%s9 + $0xf0] sm:$0xff]
    %v1754 = vld [vmem:[%s9 + $0xf8] sm:$0xff]
    %v1755 = vpack.c.bf16 %v1692, %v1689
    %v1756 = vpack.c.bf16 %v1736, %v1733
    %v1773 = vunpack.c.l.b16 %v1739
    %v1774 = vunpack.c.h.b16 %v1739
    %v1775 = vunpack.c.l.b16 %v1740
    %v1776 = vunpack.c.h.b16 %v1740
    %v1777 = vunpack.c.l.b16 %v1741
    %v1778 = vunpack.c.h.b16 %v1741
    %v1779 = vunpack.c.l.b16 %v1742
    %v1780 = vunpack.c.h.b16 %v1742
    %v1781 = vunpack.c.l.b16 %v1743
    %v1782 = vunpack.c.h.b16 %v1743
    %v1783 = vunpack.c.l.b16 %v1744
    %v1784 = vunpack.c.h.b16 %v1744
    %v1785 = vunpack.c.l.b16 %v1745
    %v1786 = vunpack.c.h.b16 %v1745
    %v1787 = vunpack.c.l.b16 %v1746
    %v1788 = vunpack.c.h.b16 %v1746
    %v1789 = vunpack.c.l.b16 %v1747
    %v1790 = vunpack.c.h.b16 %v1747
    %v1791 = vunpack.c.l.b16 %v1748
    %v1792 = vunpack.c.h.b16 %v1748
    %v1793 = vunpack.c.l.b16 %v1749
    %v1794 = vunpack.c.h.b16 %v1749
    %v1795 = vunpack.c.l.b16 %v1750
    %v1796 = vunpack.c.h.b16 %v1750
    %v1797 = vunpack.c.l.b16 %v1751
    %v1798 = vunpack.c.h.b16 %v1751
    %v1799 = vunpack.c.l.b16 %v1752
    %v1800 = vunpack.c.h.b16 %v1752
    %v1801 = vunpack.c.l.b16 %v1753
    %v1802 = vunpack.c.h.b16 %v1753
    %v1803 = vunpack.c.l.b16 %v1754
    %v1804 = vunpack.c.h.b16 %v1754
    %v1805 = vpack.c.b16 %v1775, %v1773
    %v1806 = vpack.c.b16 %v1776, %v1774
    %v1807 = vpack.c.b16 %v1779, %v1777
    %v1808 = vpack.c.b16 %v1780, %v1778
    %v1809 = vpack.c.b16 %v1783, %v1781
    %v1810 = vpack.c.b16 %v1784, %v1782
    %v1811 = vpack.c.b16 %v1787, %v1785
    %v1812 = vpack.c.b16 %v1788, %v1786
    %v1813 = vpack.c.b16 %v1791, %v1789
    %v1814 = vpack.c.b16 %v1792, %v1790
    %v1815 = vpack.c.b16 %v1795, %v1793
    %v1816 = vpack.c.b16 %v1796, %v1794
    %v1817 = vpack.c.b16 %v1799, %v1797
    %v1818 = vpack.c.b16 %v1800, %v1798
    %v1819 = vpack.c.b16 %v1803, %v1801
    %v1820 = vpack.c.b16 %v1804, %v1802
    %1837 = vmatprep.subr.bf16.mxu0 %v1820
    %1838 = vmatpush1.bf16.msra.mxu0 %v1819
    %1839 = vmatprep.subr.bf16.mxu0 %v1818
    %1840 = vmatpush1.bf16.msra.mxu0 %v1817
    %1841 = vmatprep.subr.bf16.mxu0 %v1816
    %1842 = vmatpush1.bf16.msra.mxu0 %v1815
    %1843 = vmatprep.subr.bf16.mxu0 %v1814
    %1844 = vmatpush1.bf16.msra.mxu0 %v1813
    %1845 = vmatprep.subr.bf16.mxu0 %v1812
    %1846 = vmatpush1.bf16.msra.mxu0 %v1811
    %1847 = vmatprep.subr.bf16.mxu0 %v1810
    %1848 = vmatpush1.bf16.msra.mxu0 %v1809
    %1849 = vmatprep.subr.bf16.mxu0 %v1808
    %1850 = vmatpush1.bf16.msra.mxu0 %v1807
    %1851 = vmatprep.subr.bf16.mxu0 %v1806
    %1852 = vmatpush1.bf16.msra.mxu0 %v1805
    %1853 = vmatprep.subr.bf16.mxu0 0
    %1854 = vmatpush2.bf16.msra.mxu0 0
    %1855 = vmatprep.subr.bf16.mxu0 0
    %1856 = vmatpush2.bf16.msra.mxu0 0
    %1857 = vmatprep.subr.bf16.mxu0 0
    %1858 = vmatpush2.bf16.msra.mxu0 0
    %1859 = vmatprep.subr.bf16.mxu0 0
    %1860 = vmatpush2.bf16.msra.mxu0 0
    %1861 = vmatprep.subr.bf16.mxu0 0
    %1862 = vmatpush2.bf16.msra.mxu0 0
    %1863 = vmatprep.subr.bf16.mxu0 0
    %1864 = vmatpush2.bf16.msra.mxu0 0
    %1865 = vmatprep.subr.bf16.mxu0 0
    %1866 = vmatpush2.bf16.msra.mxu0 0
    %1867 = vmatprep.subr.bf16.mxu0 0
    %1868 = vmatpush2.bf16.msra.mxu0 0
    %1869 = vmatprep.mubr.bf16.mxu0 0
    %1870 = vmatmul.mubr.bf16.gmra.mxu0 %v1755
    %v1871 = vpop.f32.mrf.mxu0
    %v1872 = vadd.f32 0.0, %v1871
    %v1873 = vpop.f32.mrf.mxu0
    %v1874 = vadd.f32 0.0, %v1873
    %v1875 = vpop.f32.mrf.mxu0
    %v1876 = vadd.f32 0.0, %v1875
    %v1877 = vpop.f32.mrf.mxu0
    %v1878 = vadd.f32 0.0, %v1877
    %1879 = vmatprep.mubr.bf16.mxu0 0
    %1880 = vmatmul.mubr.bf16.gmra.mxu0 %v1756
    %v1881 = vpop.f32.mrf.mxu0
    %v1882 = vadd.f32 0.0, %v1881
    %v1883 = vpop.f32.mrf.mxu0
    %v1884 = vadd.f32 0.0, %v1883
    %v1885 = vpop.f32.mrf.mxu0
    %v1886 = vadd.f32 0.0, %v1885
    %v1887 = vpop.f32.mrf.mxu0
    %v1888 = vadd.f32 0.0, %v1887
    %1889 = vdwg.mxu0
    %v1906 = vunpack.c.l.b16 %v1495
    %v1907 = vunpack.c.h.b16 %v1495
    %v1908 = vunpack.c.l.b16 %v1496
    %v1909 = vunpack.c.h.b16 %v1496
    %v1910 = vunpack.c.l.b16 %v1497
    %v1911 = vunpack.c.h.b16 %v1497
    %v1912 = vunpack.c.l.b16 %v1498
    %v1913 = vunpack.c.h.b16 %v1498
    %v1914 = vunpack.c.l.b16 %v1499
    %v1915 = vunpack.c.h.b16 %v1499
    %v1916 = vunpack.c.l.b16 %v1500
    %v1917 = vunpack.c.h.b16 %v1500
    %v1918 = vunpack.c.l.b16 %v1501
    %v1919 = vunpack.c.h.b16 %v1501
    %v1920 = vunpack.c.l.b16 %v1502
    %v1921 = vunpack.c.h.b16 %v1502
    %v1922 = vunpack.c.l.b16 %v1503
    %v1923 = vunpack.c.h.b16 %v1503
    %v1924 = vunpack.c.l.b16 %v1504
    %v1925 = vunpack.c.h.b16 %v1504
    %v1926 = vunpack.c.l.b16 %v1505
    %v1927 = vunpack.c.h.b16 %v1505
    %v1928 = vunpack.c.l.b16 %v1506
    %v1929 = vunpack.c.h.b16 %v1506
    %v1930 = vunpack.c.l.b16 %v1507
    %v1931 = vunpack.c.h.b16 %v1507
    %v1932 = vunpack.c.l.b16 %v1508
    %v1933 = vunpack.c.h.b16 %v1508
    %v1934 = vunpack.c.l.b16 %v1509
    %v1935 = vunpack.c.h.b16 %v1509
    %v1936 = vunpack.c.l.b16 %v1510
    %v1937 = vunpack.c.h.b16 %v1510
    %v1938 = vpack.c.b16 %v1908, %v1906
    %v1939 = vpack.c.b16 %v1909, %v1907
    %v1940 = vpack.c.b16 %v1912, %v1910
    %v1941 = vpack.c.b16 %v1913, %v1911
    %v1942 = vpack.c.b16 %v1916, %v1914
    %v1943 = vpack.c.b16 %v1917, %v1915
    %v1944 = vpack.c.b16 %v1920, %v1918
    %v1945 = vpack.c.b16 %v1921, %v1919
    %v1946 = vpack.c.b16 %v1924, %v1922
    %v1947 = vpack.c.b16 %v1925, %v1923
    %v1948 = vpack.c.b16 %v1928, %v1926
    %v1949 = vpack.c.b16 %v1929, %v1927
    %v1950 = vpack.c.b16 %v1932, %v1930
    %v1951 = vpack.c.b16 %v1933, %v1931
    %v1952 = vpack.c.b16 %v1936, %v1934
    %v1953 = vpack.c.b16 %v1937, %v1935
    %1970 = vmatprep.subr.bf16.mxu0 %v1953
    %1971 = vmatpush1.bf16.msra.mxu0 %v1952
    %1972 = vmatprep.subr.bf16.mxu0 %v1951
    %1973 = vmatpush1.bf16.msra.mxu0 %v1950
    %1974 = vmatprep.subr.bf16.mxu0 %v1949
    %1975 = vmatpush1.bf16.msra.mxu0 %v1948
    %1976 = vmatprep.subr.bf16.mxu0 %v1947
    %1977 = vmatpush1.bf16.msra.mxu0 %v1946
    %1978 = vmatprep.subr.bf16.mxu0 %v1945
    %1979 = vmatpush1.bf16.msra.mxu0 %v1944
    %1980 = vmatprep.subr.bf16.mxu0 %v1943
    %1981 = vmatpush1.bf16.msra.mxu0 %v1942
    %1982 = vmatprep.subr.bf16.mxu0 %v1941
    %1983 = vmatpush1.bf16.msra.mxu0 %v1940
    %1984 = vmatprep.subr.bf16.mxu0 %v1939
    %1985 = vmatpush1.bf16.msra.mxu0 %v1938
    %1986 = vmatprep.subr.bf16.mxu0 0
    %1987 = vmatpush2.bf16.msra.mxu0 0
    %1988 = vmatprep.subr.bf16.mxu0 0
    %1989 = vmatpush2.bf16.msra.mxu0 0
    %1990 = vmatprep.subr.bf16.mxu0 0
    %1991 = vmatpush2.bf16.msra.mxu0 0
    %1992 = vmatprep.subr.bf16.mxu0 0
    %1993 = vmatpush2.bf16.msra.mxu0 0
    %1994 = vmatprep.subr.bf16.mxu0 0
    %1995 = vmatpush2.bf16.msra.mxu0 0
    %1996 = vmatprep.subr.bf16.mxu0 0
    %1997 = vmatpush2.bf16.msra.mxu0 0
    %1998 = vmatprep.subr.bf16.mxu0 0
    %1999 = vmatpush2.bf16.msra.mxu0 0
    %2000 = vmatprep.subr.bf16.mxu0 0
    %2001 = vmatpush2.bf16.msra.mxu0 0
    %2002 = vmatprep.mubr.bf16.mxu0 0
    %2003 = vmatmul.mubr.bf16.gmra.mxu0 %v1511
    %v2004 = vpop.f32.mrf.mxu0
    %v2005 = vadd.f32 %v1872, %v2004
    %v2006 = vpop.f32.mrf.mxu0
    %v2007 = vadd.f32 %v1874, %v2006
    %v2008 = vpop.f32.mrf.mxu0
    %v2009 = vadd.f32 %v1876, %v2008
    %v2010 = vpop.f32.mrf.mxu0
    %v2011 = vadd.f32 %v1878, %v2010
    %2012 = vmatprep.mubr.bf16.mxu0 0
    %2013 = vmatmul.mubr.bf16.gmra.mxu0 %v1512
    %v2014 = vpop.f32.mrf.mxu0
    %v2015 = vadd.f32 %v1882, %v2014
    %v2016 = vpop.f32.mrf.mxu0
    %v2017 = vadd.f32 %v1884, %v2016
    %v2018 = vpop.f32.mrf.mxu0
    %v2019 = vadd.f32 %v1886, %v2018
    %v2020 = vpop.f32.mrf.mxu0
    %v2021 = vadd.f32 %v1888, %v2020
    %2022 = vdwg.mxu0
    %v2023 = vadd.f32 %v385, %v2005
    %v2024 = vadd.f32 %v386, %v2007
    %v2025 = vadd.f32 %v387, %v2009
    %v2026 = vadd.f32 %v388, %v2011
    %v2027 = vadd.f32 %v389, %v2015
    %v2028 = vadd.f32 %v390, %v2017
    %v2029 = vadd.f32 %v391, %v2019
    %v2030 = vadd.f32 %v392, %v2021
    %v2031 = vld [vmem:[%s10] sm:$0x3]
    %v2033 = vlaneseq
    %v2034 = vshrl.u32 %v2033, 7
    %v2035 = vsub.s32 0, %v2034
    %v2036 = vrot.slane %v2031, %v2035
    %v2037 = vlaneseq
    %v2038 = vshrl.u32 %v2037, 7
    %v2039 = vsub.s32 1, %v2038
    %v2040 = vrot.slane %v2031, %v2039
    %v2043 = vadd.f32 %v2023, %v2036
    %v2044 = vadd.f32 %v2024, %v2040
    %v2045 = vadd.f32 %v2025, %v2036
    %v2046 = vadd.f32 %v2026, %v2040
    %v2047 = vadd.f32 %v2027, %v2036
    %v2048 = vadd.f32 %v2028, %v2040
    %v2049 = vadd.f32 %v2029, %v2036
    %v2050 = vadd.f32 %v2030, %v2040
    %v2051 = vld [vmem:[%s11] sm:$0x3]
    %v2052 = vld [vmem:[%s12] sm:$0x3]
    %v2053 = vadd.f32 %v2043, %v2044
    %2054 = vadd.xlane.f32.xlu0 %v2053
    %v2055 = vpop.xlane.xlu0 %2054
    %v2056 = vadd.f32 %v2045, %v2046
    %2057 = vadd.xlane.f32.xlu0 %v2056
    %v2058 = vpop.xlane.xlu0 %2057
    %v2059 = vadd.f32 %v2047, %v2048
    %2060 = vadd.xlane.f32.xlu0 %v2059
    %v2061 = vpop.xlane.xlu0 %2060
    %v2062 = vadd.f32 %v2049, %v2050
    %2063 = vadd.xlane.f32.xlu0 %v2062
    %v2064 = vpop.xlane.xlu0 %2063
    %v2065 = vmul.f32 %v2055, %v302
    %v2066 = vmul.f32 %v2058, %v302
    %v2067 = vmul.f32 %v2061, %v302
    %v2068 = vmul.f32 %v2064, %v302
    %v2069 = vsub.f32 %v2043, %v2065
    %v2070 = vsub.f32 %v2044, %v2065
    %v2071 = vsub.f32 %v2045, %v2066
    %v2072 = vsub.f32 %v2046, %v2066
    %v2073 = vsub.f32 %v2047, %v2067
    %v2074 = vsub.f32 %v2048, %v2067
    %v2075 = vsub.f32 %v2049, %v2068
    %v2076 = vsub.f32 %v2050, %v2068
    %v2077 = vmul.f32 %v2069, %v2069
    %v2078 = vmul.f32 %v2070, %v2070
    %v2079 = vmul.f32 %v2071, %v2071
    %v2080 = vmul.f32 %v2072, %v2072
    %v2081 = vmul.f32 %v2073, %v2073
    %v2082 = vmul.f32 %v2074, %v2074
    %v2083 = vmul.f32 %v2075, %v2075
    %v2084 = vmul.f32 %v2076, %v2076
    %v2085 = vadd.f32 %v2077, %v2078
    %2086 = vadd.xlane.f32.xlu0 %v2085
    %v2087 = vpop.xlane.xlu0 %2086
    %v2088 = vadd.f32 %v2079, %v2080
    %2089 = vadd.xlane.f32.xlu0 %v2088
    %v2090 = vpop.xlane.xlu0 %2089
    %v2091 = vadd.f32 %v2081, %v2082
    %2092 = vadd.xlane.f32.xlu0 %v2091
    %v2093 = vpop.xlane.xlu0 %2092
    %v2094 = vadd.f32 %v2083, %v2084
    %2095 = vadd.xlane.f32.xlu0 %v2094
    %v2096 = vpop.xlane.xlu0 %2095
    %v2097 = vmul.f32 %v2087, %v302
    %v2098 = vmul.f32 %v2090, %v302
    %v2099 = vmul.f32 %v2093, %v302
    %v2100 = vmul.f32 %v2096, %v302
    %v2101 = vadd.f32 %v2097, 1e-05
    %v2102 = vadd.f32 %v2098, 1e-05
    %v2103 = vadd.f32 %v2099, 1e-05
    %v2104 = vadd.f32 %v2100, 1e-05
    %v2105 = vrsqrt.pop %v2101
    %v2106 = vrsqrt.pop %v2102
    %v2107 = vrsqrt.pop %v2103
    %v2108 = vrsqrt.pop %v2104
    %v2109 = vmul.f32 %v2069, %v2105
    %v2110 = vmul.f32 %v2070, %v2105
    %v2111 = vmul.f32 %v2071, %v2106
    %v2112 = vmul.f32 %v2072, %v2106
    %v2113 = vmul.f32 %v2073, %v2107
    %v2114 = vmul.f32 %v2074, %v2107
    %v2115 = vmul.f32 %v2075, %v2108
    %v2116 = vmul.f32 %v2076, %v2108
    %v2118 = vlaneseq
    %v2119 = vshrl.u32 %v2118, 7
    %v2120 = vsub.s32 0, %v2119
    %v2121 = vrot.slane %v2051, %v2120
    %v2122 = vlaneseq
    %v2123 = vshrl.u32 %v2122, 7
    %v2124 = vsub.s32 1, %v2123
    %v2125 = vrot.slane %v2051, %v2124
    %v2128 = vmul.f32 %v2109, %v2121
    %v2129 = vmul.f32 %v2110, %v2125
    %v2130 = vmul.f32 %v2111, %v2121
    %v2131 = vmul.f32 %v2112, %v2125
    %v2132 = vmul.f32 %v2113, %v2121
    %v2133 = vmul.f32 %v2114, %v2125
    %v2134 = vmul.f32 %v2115, %v2121
    %v2135 = vmul.f32 %v2116, %v2125
    %v2137 = vlaneseq
    %v2138 = vshrl.u32 %v2137, 7
    %v2139 = vsub.s32 0, %v2138
    %v2140 = vrot.slane %v2052, %v2139
    %v2141 = vlaneseq
    %v2142 = vshrl.u32 %v2141, 7
    %v2143 = vsub.s32 1, %v2142
    %v2144 = vrot.slane %v2052, %v2143
    %v2147 = vadd.f32 %v2128, %v2140
    %v2148 = vadd.f32 %v2129, %v2144
    %v2149 = vadd.f32 %v2130, %v2140
    %v2150 = vadd.f32 %v2131, %v2144
    %v2151 = vadd.f32 %v2132, %v2140
    %v2152 = vadd.f32 %v2133, %v2144
    %v2153 = vadd.f32 %v2134, %v2140
    %v2154 = vadd.f32 %v2135, %v2144
    %v2155 = vld [vmem:[#allocation5] sm:$0xff]
    %v2156 = vld [vmem:[#allocation5 + $0x8] sm:$0xff]
    %v2157 = vld [vmem:[#allocation5 + $0x10] sm:$0xff]
    %v2158 = vld [vmem:[#allocation5 + $0x18] sm:$0xff]
    %v2159 = vld [vmem:[#allocation5 + $0x20] sm:$0xff]
    %v2160 = vld [vmem:[#allocation5 + $0x28] sm:$0xff]
    %v2161 = vld [vmem:[#allocation5 + $0x30] sm:$0xff]
    %v2162 = vld [vmem:[#allocation5 + $0x38] sm:$0xff]
    %v2163 = vld [vmem:[#allocation5 + $0x40] sm:$0xff]
    %v2164 = vld [vmem:[#allocation5 + $0x48] sm:$0xff]
    %v2165 = vld [vmem:[#allocation5 + $0x50] sm:$0xff]
    %v2166 = vld [vmem:[#allocation5 + $0x58] sm:$0xff]
    %v2167 = vld [vmem:[#allocation5 + $0x60] sm:$0xff]
    %v2168 = vld [vmem:[#allocation5 + $0x68] sm:$0xff]
    %v2169 = vld [vmem:[#allocation5 + $0x70] sm:$0xff]
    %v2170 = vld [vmem:[#allocation5 + $0x78] sm:$0xff]
    %v2171 = vld [vmem:[#allocation5 + $0x80] sm:$0xff]
    %v2172 = vld [vmem:[#allocation5 + $0x88] sm:$0xff]
    %v2173 = vld [vmem:[#allocation5 + $0x90] sm:$0xff]
    %v2174 = vld [vmem:[#allocation5 + $0x98] sm:$0xff]
    %v2175 = vld [vmem:[#allocation5 + $0xa0] sm:$0xff]
    %v2176 = vld [vmem:[#allocation5 + $0xa8] sm:$0xff]
    %v2177 = vld [vmem:[#allocation5 + $0xb0] sm:$0xff]
    %v2178 = vld [vmem:[#allocation5 + $0xb8] sm:$0xff]
    %v2179 = vld [vmem:[#allocation5 + $0xc0] sm:$0xff]
    %v2180 = vld [vmem:[#allocation5 + $0xc8] sm:$0xff]
    %v2181 = vld [vmem:[#allocation5 + $0xd0] sm:$0xff]
    %v2182 = vld [vmem:[#allocation5 + $0xd8] sm:$0xff]
    %v2183 = vld [vmem:[#allocation5 + $0xe0] sm:$0xff]
    %v2184 = vld [vmem:[#allocation5 + $0xe8] sm:$0xff]
    %v2185 = vld [vmem:[#allocation5 + $0xf0] sm:$0xff]
    %v2186 = vld [vmem:[#allocation5 + $0xf8] sm:$0xff]
    %v2187 = vld [vmem:[#allocation5 + $0x100] sm:$0xff]
    %v2188 = vld [vmem:[#allocation5 + $0x108] sm:$0xff]
    %v2189 = vld [vmem:[#allocation5 + $0x110] sm:$0xff]
    %v2190 = vld [vmem:[#allocation5 + $0x118] sm:$0xff]
    %v2191 = vld [vmem:[#allocation5 + $0x120] sm:$0xff]
    %v2192 = vld [vmem:[#allocation5 + $0x128] sm:$0xff]
    %v2193 = vld [vmem:[#allocation5 + $0x130] sm:$0xff]
    %v2194 = vld [vmem:[#allocation5 + $0x138] sm:$0xff]
    %v2195 = vld [vmem:[#allocation5 + $0x140] sm:$0xff]
    %v2196 = vld [vmem:[#allocation5 + $0x148] sm:$0xff]
    %v2197 = vld [vmem:[#allocation5 + $0x150] sm:$0xff]
    %v2198 = vld [vmem:[#allocation5 + $0x158] sm:$0xff]
    %v2199 = vld [vmem:[#allocation5 + $0x160] sm:$0xff]
    %v2200 = vld [vmem:[#allocation5 + $0x168] sm:$0xff]
    %v2201 = vld [vmem:[#allocation5 + $0x170] sm:$0xff]
    %v2202 = vld [vmem:[#allocation5 + $0x178] sm:$0xff]
    %v2203 = vld [vmem:[#allocation5 + $0x180] sm:$0xff]
    %v2204 = vld [vmem:[#allocation5 + $0x188] sm:$0xff]
    %v2205 = vld [vmem:[#allocation5 + $0x190] sm:$0xff]
    %v2206 = vld [vmem:[#allocation5 + $0x198] sm:$0xff]
    %v2207 = vld [vmem:[#allocation5 + $0x1a0] sm:$0xff]
    %v2208 = vld [vmem:[#allocation5 + $0x1a8] sm:$0xff]
    %v2209 = vld [vmem:[#allocation5 + $0x1b0] sm:$0xff]
    %v2210 = vld [vmem:[#allocation5 + $0x1b8] sm:$0xff]
    %v2211 = vld [vmem:[#allocation5 + $0x1c0] sm:$0xff]
    %v2212 = vld [vmem:[#allocation5 + $0x1c8] sm:$0xff]
    %v2213 = vld [vmem:[#allocation5 + $0x1d0] sm:$0xff]
    %v2214 = vld [vmem:[#allocation5 + $0x1d8] sm:$0xff]
    %v2215 = vld [vmem:[#allocation5 + $0x1e0] sm:$0xff]
    %v2216 = vld [vmem:[#allocation5 + $0x1e8] sm:$0xff]
    %v2217 = vld [vmem:[#allocation5 + $0x1f0] sm:$0xff]
    %v2218 = vld [vmem:[#allocation5 + $0x1f8] sm:$0xff]
    %v2219 = vld [vmem:[#allocation5 + $0x200] sm:$0xff]
    %v2220 = vld [vmem:[#allocation5 + $0x208] sm:$0xff]
    %v2221 = vld [vmem:[#allocation5 + $0x210] sm:$0xff]
    %v2222 = vld [vmem:[#allocation5 + $0x218] sm:$0xff]
    %v2223 = vld [vmem:[#allocation5 + $0x220] sm:$0xff]
    %v2224 = vld [vmem:[#allocation5 + $0x228] sm:$0xff]
    %v2225 = vld [vmem:[#allocation5 + $0x230] sm:$0xff]
    %v2226 = vld [vmem:[#allocation5 + $0x238] sm:$0xff]
    %v2227 = vld [vmem:[#allocation5 + $0x240] sm:$0xff]
    %v2228 = vld [vmem:[#allocation5 + $0x248] sm:$0xff]
    %v2229 = vld [vmem:[#allocation5 + $0x250] sm:$0xff]
    %v2230 = vld [vmem:[#allocation5 + $0x258] sm:$0xff]
    %v2231 = vld [vmem:[#allocation5 + $0x260] sm:$0xff]
    %v2232 = vld [vmem:[#allocation5 + $0x268] sm:$0xff]
    %v2233 = vld [vmem:[#allocation5 + $0x270] sm:$0xff]
    %v2234 = vld [vmem:[#allocation5 + $0x278] sm:$0xff]
    %v2235 = vld [vmem:[#allocation5 + $0x280] sm:$0xff]
    %v2236 = vld [vmem:[#allocation5 + $0x288] sm:$0xff]
    %v2237 = vld [vmem:[#allocation5 + $0x290] sm:$0xff]
    %v2238 = vld [vmem:[#allocation5 + $0x298] sm:$0xff]
    %v2239 = vld [vmem:[#allocation5 + $0x2a0] sm:$0xff]
    %v2240 = vld [vmem:[#allocation5 + $0x2a8] sm:$0xff]
    %v2241 = vld [vmem:[#allocation5 + $0x2b0] sm:$0xff]
    %v2242 = vld [vmem:[#allocation5 + $0x2b8] sm:$0xff]
    %v2243 = vld [vmem:[#allocation5 + $0x2c0] sm:$0xff]
    %v2244 = vld [vmem:[#allocation5 + $0x2c8] sm:$0xff]
    %v2245 = vld [vmem:[#allocation5 + $0x2d0] sm:$0xff]
    %v2246 = vld [vmem:[#allocation5 + $0x2d8] sm:$0xff]
    %v2247 = vld [vmem:[#allocation5 + $0x2e0] sm:$0xff]
    %v2248 = vld [vmem:[#allocation5 + $0x2e8] sm:$0xff]
    %v2249 = vld [vmem:[#allocation5 + $0x2f0] sm:$0xff]
    %v2250 = vld [vmem:[#allocation5 + $0x2f8] sm:$0xff]
    %v2251 = vld [vmem:[#allocation5 + $0x300] sm:$0xff]
    %v2252 = vld [vmem:[#allocation5 + $0x308] sm:$0xff]
    %v2253 = vld [vmem:[#allocation5 + $0x310] sm:$0xff]
    %v2254 = vld [vmem:[#allocation5 + $0x318] sm:$0xff]
    %v2255 = vld [vmem:[#allocation5 + $0x320] sm:$0xff]
    %v2256 = vld [vmem:[#allocation5 + $0x328] sm:$0xff]
    %v2257 = vld [vmem:[#allocation5 + $0x330] sm:$0xff]
    %v2258 = vld [vmem:[#allocation5 + $0x338] sm:$0xff]
    %v2259 = vld [vmem:[#allocation5 + $0x340] sm:$0xff]
    %v2260 = vld [vmem:[#allocation5 + $0x348] sm:$0xff]
    %v2261 = vld [vmem:[#allocation5 + $0x350] sm:$0xff]
    %v2262 = vld [vmem:[#allocation5 + $0x358] sm:$0xff]
    %v2263 = vld [vmem:[#allocation5 + $0x360] sm:$0xff]
    %v2264 = vld [vmem:[#allocation5 + $0x368] sm:$0xff]
    %v2265 = vld [vmem:[#allocation5 + $0x370] sm:$0xff]
    %v2266 = vld [vmem:[#allocation5 + $0x378] sm:$0xff]
    %v2267 = vld [vmem:[#allocation5 + $0x380] sm:$0xff]
    %v2268 = vld [vmem:[#allocation5 + $0x388] sm:$0xff]
    %v2269 = vld [vmem:[#allocation5 + $0x390] sm:$0xff]
    %v2270 = vld [vmem:[#allocation5 + $0x398] sm:$0xff]
    %v2271 = vld [vmem:[#allocation5 + $0x3a0] sm:$0xff]
    %v2272 = vld [vmem:[#allocation5 + $0x3a8] sm:$0xff]
    %v2273 = vld [vmem:[#allocation5 + $0x3b0] sm:$0xff]
    %v2274 = vld [vmem:[#allocation5 + $0x3b8] sm:$0xff]
    %v2275 = vld [vmem:[#allocation5 + $0x3c0] sm:$0xff]
    %v2276 = vld [vmem:[#allocation5 + $0x3c8] sm:$0xff]
    %v2277 = vld [vmem:[#allocation5 + $0x3d0] sm:$0xff]
    %v2278 = vld [vmem:[#allocation5 + $0x3d8] sm:$0xff]
    %v2279 = vld [vmem:[#allocation5 + $0x3e0] sm:$0xff]
    %v2280 = vld [vmem:[#allocation5 + $0x3e8] sm:$0xff]
    %v2281 = vld [vmem:[#allocation5 + $0x3f0] sm:$0xff]
    %v2282 = vld [vmem:[#allocation5 + $0x3f8] sm:$0xff]
    %v2283 = vpack.c.bf16 %v2149, %v2147
    %v2284 = vpack.c.bf16 %v2150, %v2148
    %v2285 = vpack.c.bf16 %v2153, %v2151
    %v2286 = vpack.c.bf16 %v2154, %v2152
    %v2287 = vld [vmem:[%s14] sm:$0xff]
    %v2289 = vlaneseq
    %v2290 = vshrl.u32 %v2289, 7
    %v2291 = vsub.s32 0, %v2290
    %v2292 = vrot.slane %v2287, %v2291
    %v2293 = vlaneseq
    %v2294 = vshrl.u32 %v2293, 7
    %v2295 = vsub.s32 1, %v2294
    %v2296 = vrot.slane %v2287, %v2295
    %v2297 = vlaneseq
    %v2298 = vshrl.u32 %v2297, 7
    %v2299 = vsub.s32 2, %v2298
    %v2300 = vrot.slane %v2287, %v2299
    %v2301 = vlaneseq
    %v2302 = vshrl.u32 %v2301, 7
    %v2303 = vsub.s32 3, %v2302
    %v2304 = vrot.slane %v2287, %v2303
    %v2305 = vlaneseq
    %v2306 = vshrl.u32 %v2305, 7
    %v2307 = vsub.s32 4, %v2306
    %v2308 = vrot.slane %v2287, %v2307
    %v2309 = vlaneseq
    %v2310 = vshrl.u32 %v2309, 7
    %v2311 = vsub.s32 5, %v2310
    %v2312 = vrot.slane %v2287, %v2311
    %v2313 = vlaneseq
    %v2314 = vshrl.u32 %v2313, 7
    %v2315 = vsub.s32 6, %v2314
    %v2316 = vrot.slane %v2287, %v2315
    %v2317 = vlaneseq
    %v2318 = vshrl.u32 %v2317, 7
    %v2319 = vsub.s32 7, %v2318
    %v2320 = vrot.slane %v2287, %v2319
    %v2457 = vunpack.c.l.b16 %v2155
    %v2458 = vunpack.c.h.b16 %v2155
    %v2459 = vunpack.c.l.b16 %v2156
    %v2460 = vunpack.c.h.b16 %v2156
    %v2461 = vunpack.c.l.b16 %v2157
    %v2462 = vunpack.c.h.b16 %v2157
    %v2463 = vunpack.c.l.b16 %v2158
    %v2464 = vunpack.c.h.b16 %v2158
    %v2465 = vunpack.c.l.b16 %v2159
    %v2466 = vunpack.c.h.b16 %v2159
    %v2467 = vunpack.c.l.b16 %v2160
    %v2468 = vunpack.c.h.b16 %v2160
    %v2469 = vunpack.c.l.b16 %v2161
    %v2470 = vunpack.c.h.b16 %v2161
    %v2471 = vunpack.c.l.b16 %v2162
    %v2472 = vunpack.c.h.b16 %v2162
    %v2473 = vunpack.c.l.b16 %v2163
    %v2474 = vunpack.c.h.b16 %v2163
    %v2475 = vunpack.c.l.b16 %v2164
    %v2476 = vunpack.c.h.b16 %v2164
    %v2477 = vunpack.c.l.b16 %v2165
    %v2478 = vunpack.c.h.b16 %v2165
    %v2479 = vunpack.c.l.b16 %v2166
    %v2480 = vunpack.c.h.b16 %v2166
    %v2481 = vunpack.c.l.b16 %v2167
    %v2482 = vunpack.c.h.b16 %v2167
    %v2483 = vunpack.c.l.b16 %v2168
    %v2484 = vunpack.c.h.b16 %v2168
    %v2485 = vunpack.c.l.b16 %v2169
    %v2486 = vunpack.c.h.b16 %v2169
    %v2487 = vunpack.c.l.b16 %v2170
    %v2488 = vunpack.c.h.b16 %v2170
    %v2489 = vunpack.c.l.b16 %v2171
    %v2490 = vunpack.c.h.b16 %v2171
    %v2491 = vunpack.c.l.b16 %v2172
    %v2492 = vunpack.c.h.b16 %v2172
    %v2493 = vunpack.c.l.b16 %v2173
    %v2494 = vunpack.c.h.b16 %v2173
    %v2495 = vunpack.c.l.b16 %v2174
    %v2496 = vunpack.c.h.b16 %v2174
    %v2497 = vunpack.c.l.b16 %v2175
    %v2498 = vunpack.c.h.b16 %v2175
    %v2499 = vunpack.c.l.b16 %v2176
    %v2500 = vunpack.c.h.b16 %v2176
    %v2501 = vunpack.c.l.b16 %v2177
    %v2502 = vunpack.c.h.b16 %v2177
    %v2503 = vunpack.c.l.b16 %v2178
    %v2504 = vunpack.c.h.b16 %v2178
    %v2505 = vunpack.c.l.b16 %v2179
    %v2506 = vunpack.c.h.b16 %v2179
    %v2507 = vunpack.c.l.b16 %v2180
    %v2508 = vunpack.c.h.b16 %v2180
    %v2509 = vunpack.c.l.b16 %v2181
    %v2510 = vunpack.c.h.b16 %v2181
    %v2511 = vunpack.c.l.b16 %v2182
    %v2512 = vunpack.c.h.b16 %v2182
    %v2513 = vunpack.c.l.b16 %v2183
    %v2514 = vunpack.c.h.b16 %v2183
    %v2515 = vunpack.c.l.b16 %v2184
    %v2516 = vunpack.c.h.b16 %v2184
    %v2517 = vunpack.c.l.b16 %v2185
    %v2518 = vunpack.c.h.b16 %v2185
    %v2519 = vunpack.c.l.b16 %v2186
    %v2520 = vunpack.c.h.b16 %v2186
    %v2521 = vunpack.c.l.b16 %v2187
    %v2522 = vunpack.c.h.b16 %v2187
    %v2523 = vunpack.c.l.b16 %v2188
    %v2524 = vunpack.c.h.b16 %v2188
    %v2525 = vunpack.c.l.b16 %v2189
    %v2526 = vunpack.c.h.b16 %v2189
    %v2527 = vunpack.c.l.b16 %v2190
    %v2528 = vunpack.c.h.b16 %v2190
    %v2529 = vunpack.c.l.b16 %v2191
    %v2530 = vunpack.c.h.b16 %v2191
    %v2531 = vunpack.c.l.b16 %v2192
    %v2532 = vunpack.c.h.b16 %v2192
    %v2533 = vunpack.c.l.b16 %v2193
    %v2534 = vunpack.c.h.b16 %v2193
    %v2535 = vunpack.c.l.b16 %v2194
    %v2536 = vunpack.c.h.b16 %v2194
    %v2537 = vunpack.c.l.b16 %v2195
    %v2538 = vunpack.c.h.b16 %v2195
    %v2539 = vunpack.c.l.b16 %v2196
    %v2540 = vunpack.c.h.b16 %v2196
    %v2541 = vunpack.c.l.b16 %v2197
    %v2542 = vunpack.c.h.b16 %v2197
    %v2543 = vunpack.c.l.b16 %v2198
    %v2544 = vunpack.c.h.b16 %v2198
    %v2545 = vunpack.c.l.b16 %v2199
    %v2546 = vunpack.c.h.b16 %v2199
    %v2547 = vunpack.c.l.b16 %v2200
    %v2548 = vunpack.c.h.b16 %v2200
    %v2549 = vunpack.c.l.b16 %v2201
    %v2550 = vunpack.c.h.b16 %v2201
    %v2551 = vunpack.c.l.b16 %v2202
    %v2552 = vunpack.c.h.b16 %v2202
    %v2553 = vunpack.c.l.b16 %v2203
    %v2554 = vunpack.c.h.b16 %v2203
    %v2555 = vunpack.c.l.b16 %v2204
    %v2556 = vunpack.c.h.b16 %v2204
    %v2557 = vunpack.c.l.b16 %v2205
    %v2558 = vunpack.c.h.b16 %v2205
    %v2559 = vunpack.c.l.b16 %v2206
    %v2560 = vunpack.c.h.b16 %v2206
    %v2561 = vunpack.c.l.b16 %v2207
    %v2562 = vunpack.c.h.b16 %v2207
    %v2563 = vunpack.c.l.b16 %v2208
    %v2564 = vunpack.c.h.b16 %v2208
    %v2565 = vunpack.c.l.b16 %v2209
    %v2566 = vunpack.c.h.b16 %v2209
    %v2567 = vunpack.c.l.b16 %v2210
    %v2568 = vunpack.c.h.b16 %v2210
    %v2569 = vunpack.c.l.b16 %v2211
    %v2570 = vunpack.c.h.b16 %v2211
    %v2571 = vunpack.c.l.b16 %v2212
    %v2572 = vunpack.c.h.b16 %v2212
    %v2573 = vunpack.c.l.b16 %v2213
    %v2574 = vunpack.c.h.b16 %v2213
    %v2575 = vunpack.c.l.b16 %v2214
    %v2576 = vunpack.c.h.b16 %v2214
    %v2577 = vunpack.c.l.b16 %v2215
    %v2578 = vunpack.c.h.b16 %v2215
    %v2579 = vunpack.c.l.b16 %v2216
    %v2580 = vunpack.c.h.b16 %v2216
    %v2581 = vunpack.c.l.b16 %v2217
    %v2582 = vunpack.c.h.b16 %v2217
    %v2583 = vunpack.c.l.b16 %v2218
    %v2584 = vunpack.c.h.b16 %v2218
    %v2585 = vunpack.c.l.b16 %v2219
    %v2586 = vunpack.c.h.b16 %v2219
    %v2587 = vunpack.c.l.b16 %v2220
    %v2588 = vunpack.c.h.b16 %v2220
    %v2589 = vunpack.c.l.b16 %v2221
    %v2590 = vunpack.c.h.b16 %v2221
    %v2591 = vunpack.c.l.b16 %v2222
    %v2592 = vunpack.c.h.b16 %v2222
    %v2593 = vunpack.c.l.b16 %v2223
    %v2594 = vunpack.c.h.b16 %v2223
    %v2595 = vunpack.c.l.b16 %v2224
    %v2596 = vunpack.c.h.b16 %v2224
    %v2597 = vunpack.c.l.b16 %v2225
    %v2598 = vunpack.c.h.b16 %v2225
    %v2599 = vunpack.c.l.b16 %v2226
    %v2600 = vunpack.c.h.b16 %v2226
    %v2601 = vunpack.c.l.b16 %v2227
    %v2602 = vunpack.c.h.b16 %v2227
    %v2603 = vunpack.c.l.b16 %v2228
    %v2604 = vunpack.c.h.b16 %v2228
    %v2605 = vunpack.c.l.b16 %v2229
    %v2606 = vunpack.c.h.b16 %v2229
    %v2607 = vunpack.c.l.b16 %v2230
    %v2608 = vunpack.c.h.b16 %v2230
    %v2609 = vunpack.c.l.b16 %v2231
    %v2610 = vunpack.c.h.b16 %v2231
    %v2611 = vunpack.c.l.b16 %v2232
    %v2612 = vunpack.c.h.b16 %v2232
    %v2613 = vunpack.c.l.b16 %v2233
    %v2614 = vunpack.c.h.b16 %v2233
    %v2615 = vunpack.c.l.b16 %v2234
    %v2616 = vunpack.c.h.b16 %v2234
    %v2617 = vunpack.c.l.b16 %v2235
    %v2618 = vunpack.c.h.b16 %v2235
    %v2619 = vunpack.c.l.b16 %v2236
    %v2620 = vunpack.c.h.b16 %v2236
    %v2621 = vunpack.c.l.b16 %v2237
    %v2622 = vunpack.c.h.b16 %v2237
    %v2623 = vunpack.c.l.b16 %v2238
    %v2624 = vunpack.c.h.b16 %v2238
    %v2625 = vunpack.c.l.b16 %v2239
    %v2626 = vunpack.c.h.b16 %v2239
    %v2627 = vunpack.c.l.b16 %v2240
    %v2628 = vunpack.c.h.b16 %v2240
    %v2629 = vunpack.c.l.b16 %v2241
    %v2630 = vunpack.c.h.b16 %v2241
    %v2631 = vunpack.c.l.b16 %v2242
    %v2632 = vunpack.c.h.b16 %v2242
    %v2633 = vunpack.c.l.b16 %v2243
    %v2634 = vunpack.c.h.b16 %v2243
    %v2635 = vunpack.c.l.b16 %v2244
    %v2636 = vunpack.c.h.b16 %v2244
    %v2637 = vunpack.c.l.b16 %v2245
    %v2638 = vunpack.c.h.b16 %v2245
    %v2639 = vunpack.c.l.b16 %v2246
    %v2640 = vunpack.c.h.b16 %v2246
    %v2641 = vunpack.c.l.b16 %v2247
    %v2642 = vunpack.c.h.b16 %v2247
    %v2643 = vunpack.c.l.b16 %v2248
    %v2644 = vunpack.c.h.b16 %v2248
    %v2645 = vunpack.c.l.b16 %v2249
    %v2646 = vunpack.c.h.b16 %v2249
    %v2647 = vunpack.c.l.b16 %v2250
    %v2648 = vunpack.c.h.b16 %v2250
    %v2649 = vunpack.c.l.b16 %v2251
    %v2650 = vunpack.c.h.b16 %v2251
    %v2651 = vunpack.c.l.b16 %v2252
    %v2652 = vunpack.c.h.b16 %v2252
    %v2653 = vunpack.c.l.b16 %v2253
    %v2654 = vunpack.c.h.b16 %v2253
    %v2655 = vunpack.c.l.b16 %v2254
    %v2656 = vunpack.c.h.b16 %v2254
    %v2657 = vunpack.c.l.b16 %v2255
    %v2658 = vunpack.c.h.b16 %v2255
    %v2659 = vunpack.c.l.b16 %v2256
    %v2660 = vunpack.c.h.b16 %v2256
    %v2661 = vunpack.c.l.b16 %v2257
    %v2662 = vunpack.c.h.b16 %v2257
    %v2663 = vunpack.c.l.b16 %v2258
    %v2664 = vunpack.c.h.b16 %v2258
    %v2665 = vunpack.c.l.b16 %v2259
    %v2666 = vunpack.c.h.b16 %v2259
    %v2667 = vunpack.c.l.b16 %v2260
    %v2668 = vunpack.c.h.b16 %v2260
    %v2669 = vunpack.c.l.b16 %v2261
    %v2670 = vunpack.c.h.b16 %v2261
    %v2671 = vunpack.c.l.b16 %v2262
    %v2672 = vunpack.c.h.b16 %v2262
    %v2673 = vunpack.c.l.b16 %v2263
    %v2674 = vunpack.c.h.b16 %v2263
    %v2675 = vunpack.c.l.b16 %v2264
    %v2676 = vunpack.c.h.b16 %v2264
    %v2677 = vunpack.c.l.b16 %v2265
    %v2678 = vunpack.c.h.b16 %v2265
    %v2679 = vunpack.c.l.b16 %v2266
    %v2680 = vunpack.c.h.b16 %v2266
    %v2681 = vunpack.c.l.b16 %v2267
    %v2682 = vunpack.c.h.b16 %v2267
    %v2683 = vunpack.c.l.b16 %v2268
    %v2684 = vunpack.c.h.b16 %v2268
    %v2685 = vunpack.c.l.b16 %v2269
    %v2686 = vunpack.c.h.b16 %v2269
    %v2687 = vunpack.c.l.b16 %v2270
    %v2688 = vunpack.c.h.b16 %v2270
    %v2689 = vunpack.c.l.b16 %v2271
    %v2690 = vunpack.c.h.b16 %v2271
    %v2691 = vunpack.c.l.b16 %v2272
    %v2692 = vunpack.c.h.b16 %v2272
    %v2693 = vunpack.c.l.b16 %v2273
    %v2694 = vunpack.c.h.b16 %v2273
    %v2695 = vunpack.c.l.b16 %v2274
    %v2696 = vunpack.c.h.b16 %v2274
    %v2697 = vunpack.c.l.b16 %v2275
    %v2698 = vunpack.c.h.b16 %v2275
    %v2699 = vunpack.c.l.b16 %v2276
    %v2700 = vunpack.c.h.b16 %v2276
    %v2701 = vunpack.c.l.b16 %v2277
    %v2702 = vunpack.c.h.b16 %v2277
    %v2703 = vunpack.c.l.b16 %v2278
    %v2704 = vunpack.c.h.b16 %v2278
    %v2705 = vunpack.c.l.b16 %v2279
    %v2706 = vunpack.c.h.b16 %v2279
    %v2707 = vunpack.c.l.b16 %v2280
    %v2708 = vunpack.c.h.b16 %v2280
    %v2709 = vunpack.c.l.b16 %v2281
    %v2710 = vunpack.c.h.b16 %v2281
    %v2711 = vunpack.c.l.b16 %v2282
    %v2712 = vunpack.c.h.b16 %v2282
    %v2713 = vpack.c.b16 %v2465, %v2457
    %v2714 = vpack.c.b16 %v2466, %v2458
    %v2715 = vpack.c.b16 %v2467, %v2459
    %v2716 = vpack.c.b16 %v2468, %v2460
    %v2717 = vpack.c.b16 %v2469, %v2461
    %v2718 = vpack.c.b16 %v2470, %v2462
    %v2719 = vpack.c.b16 %v2471, %v2463
    %v2720 = vpack.c.b16 %v2472, %v2464
    %v2721 = vpack.c.b16 %v2481, %v2473
    %v2722 = vpack.c.b16 %v2482, %v2474
    %v2723 = vpack.c.b16 %v2483, %v2475
    %v2724 = vpack.c.b16 %v2484, %v2476
    %v2725 = vpack.c.b16 %v2485, %v2477
    %v2726 = vpack.c.b16 %v2486, %v2478
    %v2727 = vpack.c.b16 %v2487, %v2479
    %v2728 = vpack.c.b16 %v2488, %v2480
    %v2729 = vpack.c.b16 %v2497, %v2489
    %v2730 = vpack.c.b16 %v2498, %v2490
    %v2731 = vpack.c.b16 %v2499, %v2491
    %v2732 = vpack.c.b16 %v2500, %v2492
    %v2733 = vpack.c.b16 %v2501, %v2493
    %v2734 = vpack.c.b16 %v2502, %v2494
    %v2735 = vpack.c.b16 %v2503, %v2495
    %v2736 = vpack.c.b16 %v2504, %v2496
    %v2737 = vpack.c.b16 %v2513, %v2505
    %v2738 = vpack.c.b16 %v2514, %v2506
    %v2739 = vpack.c.b16 %v2515, %v2507
    %v2740 = vpack.c.b16 %v2516, %v2508
    %v2741 = vpack.c.b16 %v2517, %v2509
    %v2742 = vpack.c.b16 %v2518, %v2510
    %v2743 = vpack.c.b16 %v2519, %v2511
    %v2744 = vpack.c.b16 %v2520, %v2512
    %v2745 = vpack.c.b16 %v2529, %v2521
    %v2746 = vpack.c.b16 %v2530, %v2522
    %v2747 = vpack.c.b16 %v2531, %v2523
    %v2748 = vpack.c.b16 %v2532, %v2524
    %v2749 = vpack.c.b16 %v2533, %v2525
    %v2750 = vpack.c.b16 %v2534, %v2526
    %v2751 = vpack.c.b16 %v2535, %v2527
    %v2752 = vpack.c.b16 %v2536, %v2528
    %v2753 = vpack.c.b16 %v2545, %v2537
    %v2754 = vpack.c.b16 %v2546, %v2538
    %v2755 = vpack.c.b16 %v2547, %v2539
    %v2756 = vpack.c.b16 %v2548, %v2540
    %v2757 = vpack.c.b16 %v2549, %v2541
    %v2758 = vpack.c.b16 %v2550, %v2542
    %v2759 = vpack.c.b16 %v2551, %v2543
    %v2760 = vpack.c.b16 %v2552, %v2544
    %v2761 = vpack.c.b16 %v2561, %v2553
    %v2762 = vpack.c.b16 %v2562, %v2554
    %v2763 = vpack.c.b16 %v2563, %v2555
    %v2764 = vpack.c.b16 %v2564, %v2556
    %v2765 = vpack.c.b16 %v2565, %v2557
    %v2766 = vpack.c.b16 %v2566, %v2558
    %v2767 = vpack.c.b16 %v2567, %v2559
    %v2768 = vpack.c.b16 %v2568, %v2560
    %v2769 = vpack.c.b16 %v2577, %v2569
    %v2770 = vpack.c.b16 %v2578, %v2570
    %v2771 = vpack.c.b16 %v2579, %v2571
    %v2772 = vpack.c.b16 %v2580, %v2572
    %v2773 = vpack.c.b16 %v2581, %v2573
    %v2774 = vpack.c.b16 %v2582, %v2574
    %v2775 = vpack.c.b16 %v2583, %v2575
    %v2776 = vpack.c.b16 %v2584, %v2576
    %v2777 = vpack.c.b16 %v2593, %v2585
    %v2778 = vpack.c.b16 %v2594, %v2586
    %v2779 = vpack.c.b16 %v2595, %v2587
    %v2780 = vpack.c.b16 %v2596, %v2588
    %v2781 = vpack.c.b16 %v2597, %v2589
    %v2782 = vpack.c.b16 %v2598, %v2590
    %v2783 = vpack.c.b16 %v2599, %v2591
    %v2784 = vpack.c.b16 %v2600, %v2592
    %v2785 = vpack.c.b16 %v2609, %v2601
    %v2786 = vpack.c.b16 %v2610, %v2602
    %v2787 = vpack.c.b16 %v2611, %v2603
    %v2788 = vpack.c.b16 %v2612, %v2604
    %v2789 = vpack.c.b16 %v2613, %v2605
    %v2790 = vpack.c.b16 %v2614, %v2606
    %v2791 = vpack.c.b16 %v2615, %v2607
    %v2792 = vpack.c.b16 %v2616, %v2608
    %v2793 = vpack.c.b16 %v2625, %v2617
    %v2794 = vpack.c.b16 %v2626, %v2618
    %v2795 = vpack.c.b16 %v2627, %v2619
    %v2796 = vpack.c.b16 %v2628, %v2620
    %v2797 = vpack.c.b16 %v2629, %v2621
    %v2798 = vpack.c.b16 %v2630, %v2622
    %v2799 = vpack.c.b16 %v2631, %v2623
    %v2800 = vpack.c.b16 %v2632, %v2624
    %v2801 = vpack.c.b16 %v2641, %v2633
    %v2802 = vpack.c.b16 %v2642, %v2634
    %v2803 = vpack.c.b16 %v2643, %v2635
    %v2804 = vpack.c.b16 %v2644, %v2636
    %v2805 = vpack.c.b16 %v2645, %v2637
    %v2806 = vpack.c.b16 %v2646, %v2638
    %v2807 = vpack.c.b16 %v2647, %v2639
    %v2808 = vpack.c.b16 %v2648, %v2640
    %v2809 = vpack.c.b16 %v2657, %v2649
    %v2810 = vpack.c.b16 %v2658, %v2650
    %v2811 = vpack.c.b16 %v2659, %v2651
    %v2812 = vpack.c.b16 %v2660, %v2652
    %v2813 = vpack.c.b16 %v2661, %v2653
    %v2814 = vpack.c.b16 %v2662, %v2654
    %v2815 = vpack.c.b16 %v2663, %v2655
    %v2816 = vpack.c.b16 %v2664, %v2656
    %v2817 = vpack.c.b16 %v2673, %v2665
    %v2818 = vpack.c.b16 %v2674, %v2666
    %v2819 = vpack.c.b16 %v2675, %v2667
    %v2820 = vpack.c.b16 %v2676, %v2668
    %v2821 = vpack.c.b16 %v2677, %v2669
    %v2822 = vpack.c.b16 %v2678, %v2670
    %v2823 = vpack.c.b16 %v2679, %v2671
    %v2824 = vpack.c.b16 %v2680, %v2672
    %v2825 = vpack.c.b16 %v2689, %v2681
    %v2826 = vpack.c.b16 %v2690, %v2682
    %v2827 = vpack.c.b16 %v2691, %v2683
    %v2828 = vpack.c.b16 %v2692, %v2684
    %v2829 = vpack.c.b16 %v2693, %v2685
    %v2830 = vpack.c.b16 %v2694, %v2686
    %v2831 = vpack.c.b16 %v2695, %v2687
    %v2832 = vpack.c.b16 %v2696, %v2688
    %v2833 = vpack.c.b16 %v2705, %v2697
    %v2834 = vpack.c.b16 %v2706, %v2698
    %v2835 = vpack.c.b16 %v2707, %v2699
    %v2836 = vpack.c.b16 %v2708, %v2700
    %v2837 = vpack.c.b16 %v2709, %v2701
    %v2838 = vpack.c.b16 %v2710, %v2702
    %v2839 = vpack.c.b16 %v2711, %v2703
    %v2840 = vpack.c.b16 %v2712, %v2704
    %2969 = vmatprep.subr.bf16.mxu0 %v2770
    %2970 = vmatpush1.bf16.msra.mxu0 %v2769
    %2971 = vmatprep.subr.bf16.mxu0 %v2762
    %2972 = vmatpush1.bf16.msra.mxu0 %v2761
    %2973 = vmatprep.subr.bf16.mxu0 %v2754
    %2974 = vmatpush1.bf16.msra.mxu0 %v2753
    %2975 = vmatprep.subr.bf16.mxu0 %v2746
    %2976 = vmatpush1.bf16.msra.mxu0 %v2745
    %2977 = vmatprep.subr.bf16.mxu0 %v2738
    %2978 = vmatpush1.bf16.msra.mxu0 %v2737
    %2979 = vmatprep.subr.bf16.mxu0 %v2730
    %2980 = vmatpush1.bf16.msra.mxu0 %v2729
    %2981 = vmatprep.subr.bf16.mxu0 %v2722
    %2982 = vmatpush1.bf16.msra.mxu0 %v2721
    %2983 = vmatprep.subr.bf16.mxu0 %v2714
    %2984 = vmatpush1.bf16.msra.mxu0 %v2713
    %2985 = vmatprep.subr.bf16.mxu0 %v2834
    %2986 = vmatpush2.bf16.msra.mxu0 %v2833
    %2987 = vmatprep.subr.bf16.mxu0 %v2826
    %2988 = vmatpush2.bf16.msra.mxu0 %v2825
    %2989 = vmatprep.subr.bf16.mxu0 %v2818
    %2990 = vmatpush2.bf16.msra.mxu0 %v2817
    %2991 = vmatprep.subr.bf16.mxu0 %v2810
    %2992 = vmatpush2.bf16.msra.mxu0 %v2809
    %2993 = vmatprep.subr.bf16.mxu0 %v2802
    %2994 = vmatpush2.bf16.msra.mxu0 %v2801
    %2995 = vmatprep.subr.bf16.mxu0 %v2794
    %2996 = vmatpush2.bf16.msra.mxu0 %v2793
    %2997 = vmatprep.subr.bf16.mxu0 %v2786
    %2998 = vmatpush2.bf16.msra.mxu0 %v2785
    %2999 = vmatprep.subr.bf16.mxu0 %v2778
    %3000 = vmatpush2.bf16.msra.mxu0 %v2777
    %3001 = vmatprep.mubr.bf16.mxu0 %v2284
    %3002 = vmatmul.mubr.bf16.gmra.mxu0 %v2283
    %v3003 = vpop.f32.mrf.mxu0
    %v3004 = vadd.f32 %v2292, %v3003
    %v3005 = vpop.f32.mrf.mxu0
    %v3006 = vadd.f32 %v2296, %v3005
    %v3007 = vpop.f32.mrf.mxu0
    %v3008 = vadd.f32 %v2292, %v3007
    %v3009 = vpop.f32.mrf.mxu0
    %v3010 = vadd.f32 %v2296, %v3009
    %3011 = vmatprep.mubr.bf16.mxu0 %v2286
    %3012 = vmatmul.mubr.bf16.gmra.mxu0 %v2285
    %v3013 = vpop.f32.mrf.mxu0
    %v3014 = vadd.f32 %v2292, %v3013
    %v3015 = vpop.f32.mrf.mxu0
    %v3016 = vadd.f32 %v2296, %v3015
    %v3017 = vpop.f32.mrf.mxu0
    %v3018 = vadd.f32 %v2292, %v3017
    %v3019 = vpop.f32.mrf.mxu0
    %v3020 = vadd.f32 %v2296, %v3019
    %3021 = vdwg.mxu0
    %3022 = vmatprep.subr.bf16.mxu0 %v2772
    %3023 = vmatpush1.bf16.msra.mxu0 %v2771
    %3024 = vmatprep.subr.bf16.mxu0 %v2764
    %3025 = vmatpush1.bf16.msra.mxu0 %v2763
    %3026 = vmatprep.subr.bf16.mxu0 %v2756
    %3027 = vmatpush1.bf16.msra.mxu0 %v2755
    %3028 = vmatprep.subr.bf16.mxu0 %v2748
    %3029 = vmatpush1.bf16.msra.mxu0 %v2747
    %3030 = vmatprep.subr.bf16.mxu0 %v2740
    %3031 = vmatpush1.bf16.msra.mxu0 %v2739
    %3032 = vmatprep.subr.bf16.mxu0 %v2732
    %3033 = vmatpush1.bf16.msra.mxu0 %v2731
    %3034 = vmatprep.subr.bf16.mxu0 %v2724
    %3035 = vmatpush1.bf16.msra.mxu0 %v2723
    %3036 = vmatprep.subr.bf16.mxu0 %v2716
    %3037 = vmatpush1.bf16.msra.mxu0 %v2715
    %3038 = vmatprep.subr.bf16.mxu0 %v2836
    %3039 = vmatpush2.bf16.msra.mxu0 %v2835
    %3040 = vmatprep.subr.bf16.mxu0 %v2828
    %3041 = vmatpush2.bf16.msra.mxu0 %v2827
    %3042 = vmatprep.subr.bf16.mxu0 %v2820
    %3043 = vmatpush2.bf16.msra.mxu0 %v2819
    %3044 = vmatprep.subr.bf16.mxu0 %v2812
    %3045 = vmatpush2.bf16.msra.mxu0 %v2811
    %3046 = vmatprep.subr.bf16.mxu0 %v2804
    %3047 = vmatpush2.bf16.msra.mxu0 %v2803
    %3048 = vmatprep.subr.bf16.mxu0 %v2796
    %3049 = vmatpush2.bf16.msra.mxu0 %v2795
    %3050 = vmatprep.subr.bf16.mxu0 %v2788
    %3051 = vmatpush2.bf16.msra.mxu0 %v2787
    %3052 = vmatprep.subr.bf16.mxu0 %v2780
    %3053 = vmatpush2.bf16.msra.mxu0 %v2779
    %3054 = vmatprep.mubr.bf16.mxu0 %v2284
    %3055 = vmatmul.mubr.bf16.gmra.mxu0 %v2283
    %v3056 = vpop.f32.mrf.mxu0
    %v3057 = vadd.f32 %v2300, %v3056
    %v3058 = vpop.f32.mrf.mxu0
    %v3059 = vadd.f32 %v2304, %v3058
    %v3060 = vpop.f32.mrf.mxu0
    %v3061 = vadd.f32 %v2300, %v3060
    %v3062 = vpop.f32.mrf.mxu0
    %v3063 = vadd.f32 %v2304, %v3062
    %3064 = vmatprep.mubr.bf16.mxu0 %v2286
    %3065 = vmatmul.mubr.bf16.gmra.mxu0 %v2285
    %v3066 = vpop.f32.mrf.mxu0
    %v3067 = vadd.f32 %v2300, %v3066
    %v3068 = vpop.f32.mrf.mxu0
    %v3069 = vadd.f32 %v2304, %v3068
    %v3070 = vpop.f32.mrf.mxu0
    %v3071 = vadd.f32 %v2300, %v3070
    %v3072 = vpop.f32.mrf.mxu0
    %v3073 = vadd.f32 %v2304, %v3072
    %3074 = vdwg.mxu0
    %3075 = vmatprep.subr.bf16.mxu0 %v2774
    %3076 = vmatpush1.bf16.msra.mxu0 %v2773
    %3077 = vmatprep.subr.bf16.mxu0 %v2766
    %3078 = vmatpush1.bf16.msra.mxu0 %v2765
    %3079 = vmatprep.subr.bf16.mxu0 %v2758
    %3080 = vmatpush1.bf16.msra.mxu0 %v2757
    %3081 = vmatprep.subr.bf16.mxu0 %v2750
    %3082 = vmatpush1.bf16.msra.mxu0 %v2749
    %3083 = vmatprep.subr.bf16.mxu0 %v2742
    %3084 = vmatpush1.bf16.msra.mxu0 %v2741
    %3085 = vmatprep.subr.bf16.mxu0 %v2734
    %3086 = vmatpush1.bf16.msra.mxu0 %v2733
    %3087 = vmatprep.subr.bf16.mxu0 %v2726
    %3088 = vmatpush1.bf16.msra.mxu0 %v2725
    %3089 = vmatprep.subr.bf16.mxu0 %v2718
    %3090 = vmatpush1.bf16.msra.mxu0 %v2717
    %3091 = vmatprep.subr.bf16.mxu0 %v2838
    %3092 = vmatpush2.bf16.msra.mxu0 %v2837
    %3093 = vmatprep.subr.bf16.mxu0 %v2830
    %3094 = vmatpush2.bf16.msra.mxu0 %v2829
    %3095 = vmatprep.subr.bf16.mxu0 %v2822
    %3096 = vmatpush2.bf16.msra.mxu0 %v2821
    %3097 = vmatprep.subr.bf16.mxu0 %v2814
    %3098 = vmatpush2.bf16.msra.mxu0 %v2813
    %3099 = vmatprep.subr.bf16.mxu0 %v2806
    %3100 = vmatpush2.bf16.msra.mxu0 %v2805
    %3101 = vmatprep.subr.bf16.mxu0 %v2798
    %3102 = vmatpush2.bf16.msra.mxu0 %v2797
    %3103 = vmatprep.subr.bf16.mxu0 %v2790
    %3104 = vmatpush2.bf16.msra.mxu0 %v2789
    %3105 = vmatprep.subr.bf16.mxu0 %v2782
    %3106 = vmatpush2.bf16.msra.mxu0 %v2781
    %3107 = vmatprep.mubr.bf16.mxu0 %v2284
    %3108 = vmatmul.mubr.bf16.gmra.mxu0 %v2283
    %v3109 = vpop.f32.mrf.mxu0
    %v3110 = vadd.f32 %v2308, %v3109
    %v3111 = vpop.f32.mrf.mxu0
    %v3112 = vadd.f32 %v2312, %v3111
    %v3113 = vpop.f32.mrf.mxu0
    %v3114 = vadd.f32 %v2308, %v3113
    %v3115 = vpop.f32.mrf.mxu0
    %v3116 = vadd.f32 %v2312, %v3115
    %3117 = vmatprep.mubr.bf16.mxu0 %v2286
    %3118 = vmatmul.mubr.bf16.gmra.mxu0 %v2285
    %v3119 = vpop.f32.mrf.mxu0
    %v3120 = vadd.f32 %v2308, %v3119
    %v3121 = vpop.f32.mrf.mxu0
    %v3122 = vadd.f32 %v2312, %v3121
    %v3123 = vpop.f32.mrf.mxu0
    %v3124 = vadd.f32 %v2308, %v3123
    %v3125 = vpop.f32.mrf.mxu0
    %v3126 = vadd.f32 %v2312, %v3125
    %3127 = vdwg.mxu0
    %3128 = vmatprep.subr.bf16.mxu0 %v2776
    %3129 = vmatpush1.bf16.msra.mxu0 %v2775
    %3130 = vmatprep.subr.bf16.mxu0 %v2768
    %3131 = vmatpush1.bf16.msra.mxu0 %v2767
    %3132 = vmatprep.subr.bf16.mxu0 %v2760
    %3133 = vmatpush1.bf16.msra.mxu0 %v2759
    %3134 = vmatprep.subr.bf16.mxu0 %v2752
    %3135 = vmatpush1.bf16.msra.mxu0 %v2751
    %3136 = vmatprep.subr.bf16.mxu0 %v2744
    %3137 = vmatpush1.bf16.msra.mxu0 %v2743
    %3138 = vmatprep.subr.bf16.mxu0 %v2736
    %3139 = vmatpush1.bf16.msra.mxu0 %v2735
    %3140 = vmatprep.subr.bf16.mxu0 %v2728
    %3141 = vmatpush1.bf16.msra.mxu0 %v2727
    %3142 = vmatprep.subr.bf16.mxu0 %v2720
    %3143 = vmatpush1.bf16.msra.mxu0 %v2719
    %3144 = vmatprep.subr.bf16.mxu0 %v2840
    %3145 = vmatpush2.bf16.msra.mxu0 %v2839
    %3146 = vmatprep.subr.bf16.mxu0 %v2832
    %3147 = vmatpush2.bf16.msra.mxu0 %v2831
    %3148 = vmatprep.subr.bf16.mxu0 %v2824
    %3149 = vmatpush2.bf16.msra.mxu0 %v2823
    %3150 = vmatprep.subr.bf16.mxu0 %v2816
    %3151 = vmatpush2.bf16.msra.mxu0 %v2815
    %3152 = vmatprep.subr.bf16.mxu0 %v2808
    %3153 = vmatpush2.bf16.msra.mxu0 %v2807
    %3154 = vmatprep.subr.bf16.mxu0 %v2800
    %3155 = vmatpush2.bf16.msra.mxu0 %v2799
    %3156 = vmatprep.subr.bf16.mxu0 %v2792
    %3157 = vmatpush2.bf16.msra.mxu0 %v2791
    %3158 = vmatprep.subr.bf16.mxu0 %v2784
    %3159 = vmatpush2.bf16.msra.mxu0 %v2783
    %3160 = vmatprep.mubr.bf16.mxu0 %v2284
    %3161 = vmatmul.mubr.bf16.gmra.mxu0 %v2283
    %v3162 = vpop.f32.mrf.mxu0
    %v3163 = vadd.f32 %v2316, %v3162
    %v3164 = vpop.f32.mrf.mxu0
    %v3165 = vadd.f32 %v2320, %v3164
    %v3166 = vpop.f32.mrf.mxu0
    %v3167 = vadd.f32 %v2316, %v3166
    %v3168 = vpop.f32.mrf.mxu0
    %v3169 = vadd.f32 %v2320, %v3168
    %3170 = vmatprep.mubr.bf16.mxu0 %v2286
    %3171 = vmatmul.mubr.bf16.gmra.mxu0 %v2285
    %v3172 = vpop.f32.mrf.mxu0
    %v3173 = vadd.f32 %v2316, %v3172
    %v3174 = vpop.f32.mrf.mxu0
    %v3175 = vadd.f32 %v2320, %v3174
    %v3176 = vpop.f32.mrf.mxu0
    %v3177 = vadd.f32 %v2316, %v3176
    %v3178 = vpop.f32.mrf.mxu0
    %v3179 = vadd.f32 %v2320, %v3178
    %3180 = vdwg.mxu0
    %v3181 = vmul.f32 %v3004, 0.5
    %v3182 = vmul.f32 %v3006, 0.5
    %v3183 = vmul.f32 %v3057, 0.5
    %v3184 = vmul.f32 %v3059, 0.5
    %v3185 = vmul.f32 %v3110, 0.5
    %v3186 = vmul.f32 %v3112, 0.5
    %v3187 = vmul.f32 %v3163, 0.5
    %v3188 = vmul.f32 %v3165, 0.5
    %v3189 = vmul.f32 %v3008, 0.5
    %v3190 = vmul.f32 %v3010, 0.5
    %v3191 = vmul.f32 %v3061, 0.5
    %v3192 = vmul.f32 %v3063, 0.5
    %v3193 = vmul.f32 %v3114, 0.5
    %v3194 = vmul.f32 %v3116, 0.5
    %v3195 = vmul.f32 %v3167, 0.5
    %v3196 = vmul.f32 %v3169, 0.5
    %v3197 = vmul.f32 %v3014, 0.5
    %v3198 = vmul.f32 %v3016, 0.5
    %v3199 = vmul.f32 %v3067, 0.5
    %v3200 = vmul.f32 %v3069, 0.5
    %v3201 = vmul.f32 %v3120, 0.5
    %v3202 = vmul.f32 %v3122, 0.5
    %v3203 = vmul.f32 %v3173, 0.5
    %v3204 = vmul.f32 %v3175, 0.5
    %v3205 = vmul.f32 %v3018, 0.5
    %v3206 = vmul.f32 %v3020, 0.5
    %v3207 = vmul.f32 %v3071, 0.5
    %v3208 = vmul.f32 %v3073, 0.5
    %v3209 = vmul.f32 %v3124, 0.5
    %v3210 = vmul.f32 %v3126, 0.5
    %v3211 = vmul.f32 %v3177, 0.5
    %v3212 = vmul.f32 %v3179, 0.5
    %v3213 = vmul.f32 %v3004, 0.70710677
    %v3214 = vmul.f32 %v3006, 0.70710677
    %v3215 = vmul.f32 %v3057, 0.70710677
    %v3216 = vmul.f32 %v3059, 0.70710677
    %v3217 = vmul.f32 %v3110, 0.70710677
    %v3218 = vmul.f32 %v3112, 0.70710677
    %v3219 = vmul.f32 %v3163, 0.70710677
    %v3220 = vmul.f32 %v3165, 0.70710677
    %v3221 = vmul.f32 %v3008, 0.70710677
    %v3222 = vmul.f32 %v3010, 0.70710677
    %v3223 = vmul.f32 %v3061, 0.70710677
    %v3224 = vmul.f32 %v3063, 0.70710677
    %v3225 = vmul.f32 %v3114, 0.70710677
    %v3226 = vmul.f32 %v3116, 0.70710677
    %v3227 = vmul.f32 %v3167, 0.70710677
    %v3228 = vmul.f32 %v3169, 0.70710677
    %v3229 = vmul.f32 %v3014, 0.70710677
    %v3230 = vmul.f32 %v3016, 0.70710677
    %v3231 = vmul.f32 %v3067, 0.70710677
    %v3232 = vmul.f32 %v3069, 0.70710677
    %v3233 = vmul.f32 %v3120, 0.70710677
    %v3234 = vmul.f32 %v3122, 0.70710677
    %v3235 = vmul.f32 %v3173, 0.70710677
    %v3236 = vmul.f32 %v3175, 0.70710677
    %v3237 = vmul.f32 %v3018, 0.70710677
    %v3238 = vmul.f32 %v3020, 0.70710677
    %v3239 = vmul.f32 %v3071, 0.70710677
    %v3240 = vmul.f32 %v3073, 0.70710677
    %v3241 = vmul.f32 %v3124, 0.70710677
    %v3242 = vmul.f32 %v3126, 0.70710677
    %v3243 = vmul.f32 %v3177, 0.70710677
    %v3244 = vmul.f32 %v3179, 0.70710677
    %vm3245 = vcmp.lt.f32.partialorder %v3213, 0.0
    %vm3246 = vcmp.lt.f32.partialorder %v3214, 0.0
    %vm3247 = vcmp.lt.f32.partialorder %v3215, 0.0
    %vm3248 = vcmp.lt.f32.partialorder %v3216, 0.0
    %vm3249 = vcmp.lt.f32.partialorder %v3217, 0.0
    %vm3250 = vcmp.lt.f32.partialorder %v3218, 0.0
    %vm3251 = vcmp.lt.f32.partialorder %v3219, 0.0
    %vm3252 = vcmp.lt.f32.partialorder %v3220, 0.0
    %vm3253 = vcmp.lt.f32.partialorder %v3221, 0.0
    %vm3254 = vcmp.lt.f32.partialorder %v3222, 0.0
    %vm3255 = vcmp.lt.f32.partialorder %v3223, 0.0
    %vm3256 = vcmp.lt.f32.partialorder %v3224, 0.0
    %vm3257 = vcmp.lt.f32.partialorder %v3225, 0.0
    %vm3258 = vcmp.lt.f32.partialorder %v3226, 0.0
    %vm3259 = vcmp.lt.f32.partialorder %v3227, 0.0
    %vm3260 = vcmp.lt.f32.partialorder %v3228, 0.0
    %vm3261 = vcmp.lt.f32.partialorder %v3229, 0.0
    %vm3262 = vcmp.lt.f32.partialorder %v3230, 0.0
    %vm3263 = vcmp.lt.f32.partialorder %v3231, 0.0
    %vm3264 = vcmp.lt.f32.partialorder %v3232, 0.0
    %vm3265 = vcmp.lt.f32.partialorder %v3233, 0.0
    %vm3266 = vcmp.lt.f32.partialorder %v3234, 0.0
    %vm3267 = vcmp.lt.f32.partialorder %v3235, 0.0
    %vm3268 = vcmp.lt.f32.partialorder %v3236, 0.0
    %vm3269 = vcmp.lt.f32.partialorder %v3237, 0.0
    %vm3270 = vcmp.lt.f32.partialorder %v3238, 0.0
    %vm3271 = vcmp.lt.f32.partialorder %v3239, 0.0
    %vm3272 = vcmp.lt.f32.partialorder %v3240, 0.0
    %vm3273 = vcmp.lt.f32.partialorder %v3241, 0.0
    %vm3274 = vcmp.lt.f32.partialorder %v3242, 0.0
    %vm3275 = vcmp.lt.f32.partialorder %v3243, 0.0
    %vm3276 = vcmp.lt.f32.partialorder %v3244, 0.0
    %v3277 = vsel %vm3245, -1.0, 1.0
    %v3278 = vsel %vm3246, -1.0, 1.0
    %v3279 = vsel %vm3247, -1.0, 1.0
    %v3280 = vsel %vm3248, -1.0, 1.0
    %v3281 = vsel %vm3249, -1.0, 1.0
    %v3282 = vsel %vm3250, -1.0, 1.0
    %v3283 = vsel %vm3251, -1.0, 1.0
    %v3284 = vsel %vm3252, -1.0, 1.0
    %v3285 = vsel %vm3253, -1.0, 1.0
    %v3286 = vsel %vm3254, -1.0, 1.0
    %v3287 = vsel %vm3255, -1.0, 1.0
    %v3288 = vsel %vm3256, -1.0, 1.0
    %v3289 = vsel %vm3257, -1.0, 1.0
    %v3290 = vsel %vm3258, -1.0, 1.0
    %v3291 = vsel %vm3259, -1.0, 1.0
    %v3292 = vsel %vm3260, -1.0, 1.0
    %v3293 = vsel %vm3261, -1.0, 1.0
    %v3294 = vsel %vm3262, -1.0, 1.0
    %v3295 = vsel %vm3263, -1.0, 1.0
    %v3296 = vsel %vm3264, -1.0, 1.0
    %v3297 = vsel %vm3265, -1.0, 1.0
    %v3298 = vsel %vm3266, -1.0, 1.0
    %v3299 = vsel %vm3267, -1.0, 1.0
    %v3300 = vsel %vm3268, -1.0, 1.0
    %v3301 = vsel %vm3269, -1.0, 1.0
    %v3302 = vsel %vm3270, -1.0, 1.0
    %v3303 = vsel %vm3271, -1.0, 1.0
    %v3304 = vsel %vm3272, -1.0, 1.0
    %v3305 = vsel %vm3273, -1.0, 1.0
    %v3306 = vsel %vm3274, -1.0, 1.0
    %v3307 = vsel %vm3275, -1.0, 1.0
    %v3308 = vsel %vm3276, -1.0, 1.0
    %v3309 = vand.u32 2147483647, %v3213
    %v3310 = vand.u32 2147483647, %v3214
    %v3311 = vand.u32 2147483647, %v3215
    %v3312 = vand.u32 2147483647, %v3216
    %v3313 = vand.u32 2147483647, %v3217
    %v3314 = vand.u32 2147483647, %v3218
    %v3315 = vand.u32 2147483647, %v3219
    %v3316 = vand.u32 2147483647, %v3220
    %v3317 = vand.u32 2147483647, %v3221
    %v3318 = vand.u32 2147483647, %v3222
    %v3319 = vand.u32 2147483647, %v3223
    %v3320 = vand.u32 2147483647, %v3224
    %v3321 = vand.u32 2147483647, %v3225
    %v3322 = vand.u32 2147483647, %v3226
    %v3323 = vand.u32 2147483647, %v3227
    %v3324 = vand.u32 2147483647, %v3228
    %v3325 = vand.u32 2147483647, %v3229
    %v3326 = vand.u32 2147483647, %v3230
    %v3327 = vand.u32 2147483647, %v3231
    %v3328 = vand.u32 2147483647, %v3232
    %v3329 = vand.u32 2147483647, %v3233
    %v3330 = vand.u32 2147483647, %v3234
    %v3331 = vand.u32 2147483647, %v3235
    %v3332 = vand.u32 2147483647, %v3236
    %v3333 = vand.u32 2147483647, %v3237
    %v3334 = vand.u32 2147483647, %v3238
    %v3335 = vand.u32 2147483647, %v3239
    %v3336 = vand.u32 2147483647, %v3240
    %v3337 = vand.u32 2147483647, %v3241
    %v3338 = vand.u32 2147483647, %v3242
    %v3339 = vand.u32 2147483647, %v3243
    %v3340 = vand.u32 2147483647, %v3244
    %v3341 = vmul.f32 %v3309, 0.3275911
    %v3342 = vmul.f32 %v3310, 0.3275911
    %v3343 = vmul.f32 %v3311, 0.3275911
    %v3344 = vmul.f32 %v3312, 0.3275911
    %v3345 = vmul.f32 %v3313, 0.3275911
    %v3346 = vmul.f32 %v3314, 0.3275911
    %v3347 = vmul.f32 %v3315, 0.3275911
    %v3348 = vmul.f32 %v3316, 0.3275911
    %v3349 = vmul.f32 %v3317, 0.3275911
    %v3350 = vmul.f32 %v3318, 0.3275911
    %v3351 = vmul.f32 %v3319, 0.3275911
    %v3352 = vmul.f32 %v3320, 0.3275911
    %v3353 = vmul.f32 %v3321, 0.3275911
    %v3354 = vmul.f32 %v3322, 0.3275911
    %v3355 = vmul.f32 %v3323, 0.3275911
    %v3356 = vmul.f32 %v3324, 0.3275911
    %v3357 = vmul.f32 %v3325, 0.3275911
    %v3358 = vmul.f32 %v3326, 0.3275911
    %v3359 = vmul.f32 %v3327, 0.3275911
    %v3360 = vmul.f32 %v3328, 0.3275911
    %v3361 = vmul.f32 %v3329, 0.3275911
    %v3362 = vmul.f32 %v3330, 0.3275911
    %v3363 = vmul.f32 %v3331, 0.3275911
    %v3364 = vmul.f32 %v3332, 0.3275911
    %v3365 = vmul.f32 %v3333, 0.3275911
    %v3366 = vmul.f32 %v3334, 0.3275911
    %v3367 = vmul.f32 %v3335, 0.3275911
    %v3368 = vmul.f32 %v3336, 0.3275911
    %v3369 = vmul.f32 %v3337, 0.3275911
    %v3370 = vmul.f32 %v3338, 0.3275911
    %v3371 = vmul.f32 %v3339, 0.3275911
    %v3372 = vmul.f32 %v3340, 0.3275911
    %v3373 = vadd.f32 %v3341, 1.0
    %v3374 = vadd.f32 %v3342, 1.0
    %v3375 = vadd.f32 %v3343, 1.0
    %v3376 = vadd.f32 %v3344, 1.0
    %v3377 = vadd.f32 %v3345, 1.0
    %v3378 = vadd.f32 %v3346, 1.0
    %v3379 = vadd.f32 %v3347, 1.0
    %v3380 = vadd.f32 %v3348, 1.0
    %v3381 = vadd.f32 %v3349, 1.0
    %v3382 = vadd.f32 %v3350, 1.0
    %v3383 = vadd.f32 %v3351, 1.0
    %v3384 = vadd.f32 %v3352, 1.0
    %v3385 = vadd.f32 %v3353, 1.0
    %v3386 = vadd.f32 %v3354, 1.0
    %v3387 = vadd.f32 %v3355, 1.0
    %v3388 = vadd.f32 %v3356, 1.0
    %v3389 = vadd.f32 %v3357, 1.0
    %v3390 = vadd.f32 %v3358, 1.0
    %v3391 = vadd.f32 %v3359, 1.0
    %v3392 = vadd.f32 %v3360, 1.0
    %v3393 = vadd.f32 %v3361, 1.0
    %v3394 = vadd.f32 %v3362, 1.0
    %v3395 = vadd.f32 %v3363, 1.0
    %v3396 = vadd.f32 %v3364, 1.0
    %v3397 = vadd.f32 %v3365, 1.0
    %v3398 = vadd.f32 %v3366, 1.0
    %v3399 = vadd.f32 %v3367, 1.0
    %v3400 = vadd.f32 %v3368, 1.0
    %v3401 = vadd.f32 %v3369, 1.0
    %v3402 = vadd.f32 %v3370, 1.0
    %v3403 = vadd.f32 %v3371, 1.0
    %v3404 = vadd.f32 %v3372, 1.0
    %v3405 = vrcp.pop %v3373
    %v3406 = vmul.f32 1.0, %v3405
    %v3407 = vrcp.pop %v3374
    %v3408 = vmul.f32 1.0, %v3407
    %v3409 = vrcp.pop %v3375
    %v3410 = vmul.f32 1.0, %v3409
    %v3411 = vrcp.pop %v3376
    %v3412 = vmul.f32 1.0, %v3411
    %v3413 = vrcp.pop %v3377
    %v3414 = vmul.f32 1.0, %v3413
    %v3415 = vrcp.pop %v3378
    %v3416 = vmul.f32 1.0, %v3415
    %v3417 = vrcp.pop %v3379
    %v3418 = vmul.f32 1.0, %v3417
    %v3419 = vrcp.pop %v3380
    %v3420 = vmul.f32 1.0, %v3419
    %v3421 = vrcp.pop %v3381
    %v3422 = vmul.f32 1.0, %v3421
    %v3423 = vrcp.pop %v3382
    %v3424 = vmul.f32 1.0, %v3423
    %v3425 = vrcp.pop %v3383
    %v3426 = vmul.f32 1.0, %v3425
    %v3427 = vrcp.pop %v3384
    %v3428 = vmul.f32 1.0, %v3427
    %v3429 = vrcp.pop %v3385
    %v3430 = vmul.f32 1.0, %v3429
    %v3431 = vrcp.pop %v3386
    %v3432 = vmul.f32 1.0, %v3431
    %v3433 = vrcp.pop %v3387
    %v3434 = vmul.f32 1.0, %v3433
    %v3435 = vrcp.pop %v3388
    %v3436 = vmul.f32 1.0, %v3435
    %v3437 = vrcp.pop %v3389
    %v3438 = vmul.f32 1.0, %v3437
    %v3439 = vrcp.pop %v3390
    %v3440 = vmul.f32 1.0, %v3439
    %v3441 = vrcp.pop %v3391
    %v3442 = vmul.f32 1.0, %v3441
    %v3443 = vrcp.pop %v3392
    %v3444 = vmul.f32 1.0, %v3443
    %v3445 = vrcp.pop %v3393
    %v3446 = vmul.f32 1.0, %v3445
    %v3447 = vrcp.pop %v3394
    %v3448 = vmul.f32 1.0, %v3447
    %v3449 = vrcp.pop %v3395
    %v3450 = vmul.f32 1.0, %v3449
    %v3451 = vrcp.pop %v3396
    %v3452 = vmul.f32 1.0, %v3451
    %v3453 = vrcp.pop %v3397
    %v3454 = vmul.f32 1.0, %v3453
    %v3455 = vrcp.pop %v3398
    %v3456 = vmul.f32 1.0, %v3455
    %v3457 = vrcp.pop %v3399
    %v3458 = vmul.f32 1.0, %v3457
    %v3459 = vrcp.pop %v3400
    %v3460 = vmul.f32 1.0, %v3459
    %v3461 = vrcp.pop %v3401
    %v3462 = vmul.f32 1.0, %v3461
    %v3463 = vrcp.pop %v3402
    %v3464 = vmul.f32 1.0, %v3463
    %v3465 = vrcp.pop %v3403
    %v3466 = vmul.f32 1.0, %v3465
    %v3467 = vrcp.pop %v3404
    %v3468 = vmul.f32 1.0, %v3467
    %v3469 = vmul.f32 %v3406, 1.0614054
    %v3470 = vmul.f32 %v3408, 1.0614054
    %v3471 = vmul.f32 %v3410, 1.0614054
    %v3472 = vmul.f32 %v3412, 1.0614054
    %v3473 = vmul.f32 %v3414, 1.0614054
    %v3474 = vmul.f32 %v3416, 1.0614054
    %v3475 = vmul.f32 %v3418, 1.0614054
    %v3476 = vmul.f32 %v3420, 1.0614054
    %v3477 = vmul.f32 %v3422, 1.0614054
    %v3478 = vmul.f32 %v3424, 1.0614054
    %v3479 = vmul.f32 %v3426, 1.0614054
    %v3480 = vmul.f32 %v3428, 1.0614054
    %v3481 = vmul.f32 %v3430, 1.0614054
    %v3482 = vmul.f32 %v3432, 1.0614054
    %v3483 = vmul.f32 %v3434, 1.0614054
    %v3484 = vmul.f32 %v3436, 1.0614054
    %v3485 = vmul.f32 %v3438, 1.0614054
    %v3486 = vmul.f32 %v3440, 1.0614054
    %v3487 = vmul.f32 %v3442, 1.0614054
    %v3488 = vmul.f32 %v3444, 1.0614054
    %v3489 = vmul.f32 %v3446, 1.0614054
    %v3490 = vmul.f32 %v3448, 1.0614054
    %v3491 = vmul.f32 %v3450, 1.0614054
    %v3492 = vmul.f32 %v3452, 1.0614054
    %v3493 = vmul.f32 %v3454, 1.0614054
    %v3494 = vmul.f32 %v3456, 1.0614054
    %v3495 = vmul.f32 %v3458, 1.0614054
    %v3496 = vmul.f32 %v3460, 1.0614054
    %v3497 = vmul.f32 %v3462, 1.0614054
    %v3498 = vmul.f32 %v3464, 1.0614054
    %v3499 = vmul.f32 %v3466, 1.0614054
    %v3500 = vmul.f32 %v3468, 1.0614054
    %v3501 = vadd.f32 %v3469, -1.4531521
    %v3502 = vadd.f32 %v3470, -1.4531521
    %v3503 = vadd.f32 %v3471, -1.4531521
    %v3504 = vadd.f32 %v3472, -1.4531521
    %v3505 = vadd.f32 %v3473, -1.4531521
    %v3506 = vadd.f32 %v3474, -1.4531521
    %v3507 = vadd.f32 %v3475, -1.4531521
    %v3508 = vadd.f32 %v3476, -1.4531521
    %v3509 = vadd.f32 %v3477, -1.4531521
    %v3510 = vadd.f32 %v3478, -1.4531521
    %v3511 = vadd.f32 %v3479, -1.4531521
    %v3512 = vadd.f32 %v3480, -1.4531521
    %v3513 = vadd.f32 %v3481, -1.4531521
    %v3514 = vadd.f32 %v3482, -1.4531521
    %v3515 = vadd.f32 %v3483, -1.4531521
    %v3516 = vadd.f32 %v3484, -1.4531521
    %v3517 = vadd.f32 %v3485, -1.4531521
    %v3518 = vadd.f32 %v3486, -1.4531521
    %v3519 = vadd.f32 %v3487, -1.4531521
    %v3520 = vadd.f32 %v3488, -1.4531521
    %v3521 = vadd.f32 %v3489, -1.4531521
    %v3522 = vadd.f32 %v3490, -1.4531521
    %v3523 = vadd.f32 %v3491, -1.4531521
    %v3524 = vadd.f32 %v3492, -1.4531521
    %v3525 = vadd.f32 %v3493, -1.4531521
    %v3526 = vadd.f32 %v3494, -1.4531521
    %v3527 = vadd.f32 %v3495, -1.4531521
    %v3528 = vadd.f32 %v3496, -1.4531521
    %v3529 = vadd.f32 %v3497, -1.4531521
    %v3530 = vadd.f32 %v3498, -1.4531521
    %v3531 = vadd.f32 %v3499, -1.4531521
    %v3532 = vadd.f32 %v3500, -1.4531521
    %v3533 = vmul.f32 %v3406, %v3501
    %v3534 = vmul.f32 %v3408, %v3502
    %v3535 = vmul.f32 %v3410, %v3503
    %v3536 = vmul.f32 %v3412, %v3504
    %v3537 = vmul.f32 %v3414, %v3505
    %v3538 = vmul.f32 %v3416, %v3506
    %v3539 = vmul.f32 %v3418, %v3507
    %v3540 = vmul.f32 %v3420, %v3508
    %v3541 = vmul.f32 %v3422, %v3509
    %v3542 = vmul.f32 %v3424, %v3510
    %v3543 = vmul.f32 %v3426, %v3511
    %v3544 = vmul.f32 %v3428, %v3512
    %v3545 = vmul.f32 %v3430, %v3513
    %v3546 = vmul.f32 %v3432, %v3514
    %v3547 = vmul.f32 %v3434, %v3515
    %v3548 = vmul.f32 %v3436, %v3516
    %v3549 = vmul.f32 %v3438, %v3517
    %v3550 = vmul.f32 %v3440, %v3518
    %v3551 = vmul.f32 %v3442, %v3519
    %v3552 = vmul.f32 %v3444, %v3520
    %v3553 = vmul.f32 %v3446, %v3521
    %v3554 = vmul.f32 %v3448, %v3522
    %v3555 = vmul.f32 %v3450, %v3523
    %v3556 = vmul.f32 %v3452, %v3524
    %v3557 = vmul.f32 %v3454, %v3525
    %v3558 = vmul.f32 %v3456, %v3526
    %v3559 = vmul.f32 %v3458, %v3527
    %v3560 = vmul.f32 %v3460, %v3528
    %v3561 = vmul.f32 %v3462, %v3529
    %v3562 = vmul.f32 %v3464, %v3530
    %v3563 = vmul.f32 %v3466, %v3531
    %v3564 = vmul.f32 %v3468, %v3532
    %v3565 = vadd.f32 %v3533, 1.4214138
    %v3566 = vadd.f32 %v3534, 1.4214138
    %v3567 = vadd.f32 %v3535, 1.4214138
    %v3568 = vadd.f32 %v3536, 1.4214138
    %v3569 = vadd.f32 %v3537, 1.4214138
    %v3570 = vadd.f32 %v3538, 1.4214138
    %v3571 = vadd.f32 %v3539, 1.4214138
    %v3572 = vadd.f32 %v3540, 1.4214138
    %v3573 = vadd.f32 %v3541, 1.4214138
    %v3574 = vadd.f32 %v3542, 1.4214138
    %v3575 = vadd.f32 %v3543, 1.4214138
    %v3576 = vadd.f32 %v3544, 1.4214138
    %v3577 = vadd.f32 %v3545, 1.4214138
    %v3578 = vadd.f32 %v3546, 1.4214138
    %v3579 = vadd.f32 %v3547, 1.4214138
    %v3580 = vadd.f32 %v3548, 1.4214138
    %v3581 = vadd.f32 %v3549, 1.4214138
    %v3582 = vadd.f32 %v3550, 1.4214138
    %v3583 = vadd.f32 %v3551, 1.4214138
    %v3584 = vadd.f32 %v3552, 1.4214138
    %v3585 = vadd.f32 %v3553, 1.4214138
    %v3586 = vadd.f32 %v3554, 1.4214138
    %v3587 = vadd.f32 %v3555, 1.4214138
    %v3588 = vadd.f32 %v3556, 1.4214138
    %v3589 = vadd.f32 %v3557, 1.4214138
    %v3590 = vadd.f32 %v3558, 1.4214138
    %v3591 = vadd.f32 %v3559, 1.4214138
    %v3592 = vadd.f32 %v3560, 1.4214138
    %v3593 = vadd.f32 %v3561, 1.4214138
    %v3594 = vadd.f32 %v3562, 1.4214138
    %v3595 = vadd.f32 %v3563, 1.4214138
    %v3596 = vadd.f32 %v3564, 1.4214138
    %v3597 = vmul.f32 %v3406, %v3565
    %v3598 = vmul.f32 %v3408, %v3566
    %v3599 = vmul.f32 %v3410, %v3567
    %v3600 = vmul.f32 %v3412, %v3568
    %v3601 = vmul.f32 %v3414, %v3569
    %v3602 = vmul.f32 %v3416, %v3570
    %v3603 = vmul.f32 %v3418, %v3571
    %v3604 = vmul.f32 %v3420, %v3572
    %v3605 = vmul.f32 %v3422, %v3573
    %v3606 = vmul.f32 %v3424, %v3574
    %v3607 = vmul.f32 %v3426, %v3575
    %v3608 = vmul.f32 %v3428, %v3576
    %v3609 = vmul.f32 %v3430, %v3577
    %v3610 = vmul.f32 %v3432, %v3578
    %v3611 = vmul.f32 %v3434, %v3579
    %v3612 = vmul.f32 %v3436, %v3580
    %v3613 = vmul.f32 %v3438, %v3581
    %v3614 = vmul.f32 %v3440, %v3582
    %v3615 = vmul.f32 %v3442, %v3583
    %v3616 = vmul.f32 %v3444, %v3584
    %v3617 = vmul.f32 %v3446, %v3585
    %v3618 = vmul.f32 %v3448, %v3586
    %v3619 = vmul.f32 %v3450, %v3587
    %v3620 = vmul.f32 %v3452, %v3588
    %v3621 = vmul.f32 %v3454, %v3589
    %v3622 = vmul.f32 %v3456, %v3590
    %v3623 = vmul.f32 %v3458, %v3591
    %v3624 = vmul.f32 %v3460, %v3592
    %v3625 = vmul.f32 %v3462, %v3593
    %v3626 = vmul.f32 %v3464, %v3594
    %v3627 = vmul.f32 %v3466, %v3595
    %v3628 = vmul.f32 %v3468, %v3596
    %v3629 = vadd.f32 %v3597, -0.28449672
    %v3630 = vadd.f32 %v3598, -0.28449672
    %v3631 = vadd.f32 %v3599, -0.28449672
    %v3632 = vadd.f32 %v3600, -0.28449672
    %v3633 = vadd.f32 %v3601, -0.28449672
    %v3634 = vadd.f32 %v3602, -0.28449672
    %v3635 = vadd.f32 %v3603, -0.28449672
    %v3636 = vadd.f32 %v3604, -0.28449672
    %v3637 = vadd.f32 %v3605, -0.28449672
    %v3638 = vadd.f32 %v3606, -0.28449672
    %v3639 = vadd.f32 %v3607, -0.28449672
    %v3640 = vadd.f32 %v3608, -0.28449672
    %v3641 = vadd.f32 %v3609, -0.28449672
    %v3642 = vadd.f32 %v3610, -0.28449672
    %v3643 = vadd.f32 %v3611, -0.28449672
    %v3644 = vadd.f32 %v3612, -0.28449672
    %v3645 = vadd.f32 %v3613, -0.28449672
    %v3646 = vadd.f32 %v3614, -0.28449672
    %v3647 = vadd.f32 %v3615, -0.28449672
    %v3648 = vadd.f32 %v3616, -0.28449672
    %v3649 = vadd.f32 %v3617, -0.28449672
    %v3650 = vadd.f32 %v3618, -0.28449672
    %v3651 = vadd.f32 %v3619, -0.28449672
    %v3652 = vadd.f32 %v3620, -0.28449672
    %v3653 = vadd.f32 %v3621, -0.28449672
    %v3654 = vadd.f32 %v3622, -0.28449672
    %v3655 = vadd.f32 %v3623, -0.28449672
    %v3656 = vadd.f32 %v3624, -0.28449672
    %v3657 = vadd.f32 %v3625, -0.28449672
    %v3658 = vadd.f32 %v3626, -0.28449672
    %v3659 = vadd.f32 %v3627, -0.28449672
    %v3660 = vadd.f32 %v3628, -0.28449672
    %v3661 = vmul.f32 %v3406, %v3629
    %v3662 = vmul.f32 %v3408, %v3630
    %v3663 = vmul.f32 %v3410, %v3631
    %v3664 = vmul.f32 %v3412, %v3632
    %v3665 = vmul.f32 %v3414, %v3633
    %v3666 = vmul.f32 %v3416, %v3634
    %v3667 = vmul.f32 %v3418, %v3635
    %v3668 = vmul.f32 %v3420, %v3636
    %v3669 = vmul.f32 %v3422, %v3637
    %v3670 = vmul.f32 %v3424, %v3638
    %v3671 = vmul.f32 %v3426, %v3639
    %v3672 = vmul.f32 %v3428, %v3640
    %v3673 = vmul.f32 %v3430, %v3641
    %v3674 = vmul.f32 %v3432, %v3642
    %v3675 = vmul.f32 %v3434, %v3643
    %v3676 = vmul.f32 %v3436, %v3644
    %v3677 = vmul.f32 %v3438, %v3645
    %v3678 = vmul.f32 %v3440, %v3646
    %v3679 = vmul.f32 %v3442, %v3647
    %v3680 = vmul.f32 %v3444, %v3648
    %v3681 = vmul.f32 %v3446, %v3649
    %v3682 = vmul.f32 %v3448, %v3650
    %v3683 = vmul.f32 %v3450, %v3651
    %v3684 = vmul.f32 %v3452, %v3652
    %v3685 = vmul.f32 %v3454, %v3653
    %v3686 = vmul.f32 %v3456, %v3654
    %v3687 = vmul.f32 %v3458, %v3655
    %v3688 = vmul.f32 %v3460, %v3656
    %v3689 = vmul.f32 %v3462, %v3657
    %v3690 = vmul.f32 %v3464, %v3658
    %v3691 = vmul.f32 %v3466, %v3659
    %v3692 = vmul.f32 %v3468, %v3660
    %v3693 = vadd.f32 %v3661, 0.2548296
    %v3694 = vadd.f32 %v3662, 0.2548296
    %v3695 = vadd.f32 %v3663, 0.2548296
    %v3696 = vadd.f32 %v3664, 0.2548296
    %v3697 = vadd.f32 %v3665, 0.2548296
    %v3698 = vadd.f32 %v3666, 0.2548296
    %v3699 = vadd.f32 %v3667, 0.2548296
    %v3700 = vadd.f32 %v3668, 0.2548296
    %v3701 = vadd.f32 %v3669, 0.2548296
    %v3702 = vadd.f32 %v3670, 0.2548296
    %v3703 = vadd.f32 %v3671, 0.2548296
    %v3704 = vadd.f32 %v3672, 0.2548296
    %v3705 = vadd.f32 %v3673, 0.2548296
    %v3706 = vadd.f32 %v3674, 0.2548296
    %v3707 = vadd.f32 %v3675, 0.2548296
    %v3708 = vadd.f32 %v3676, 0.2548296
    %v3709 = vadd.f32 %v3677, 0.2548296
    %v3710 = vadd.f32 %v3678, 0.2548296
    %v3711 = vadd.f32 %v3679, 0.2548296
    %v3712 = vadd.f32 %v3680, 0.2548296
    %v3713 = vadd.f32 %v3681, 0.2548296
    %v3714 = vadd.f32 %v3682, 0.2548296
    %v3715 = vadd.f32 %v3683, 0.2548296
    %v3716 = vadd.f32 %v3684, 0.2548296
    %v3717 = vadd.f32 %v3685, 0.2548296
    %v3718 = vadd.f32 %v3686, 0.2548296
    %v3719 = vadd.f32 %v3687, 0.2548296
    %v3720 = vadd.f32 %v3688, 0.2548296
    %v3721 = vadd.f32 %v3689, 0.2548296
    %v3722 = vadd.f32 %v3690, 0.2548296
    %v3723 = vadd.f32 %v3691, 0.2548296
    %v3724 = vadd.f32 %v3692, 0.2548296
    %v3725 = vmul.f32 %v3406, %v3693
    %v3726 = vmul.f32 %v3408, %v3694
    %v3727 = vmul.f32 %v3410, %v3695
    %v3728 = vmul.f32 %v3412, %v3696
    %v3729 = vmul.f32 %v3414, %v3697
    %v3730 = vmul.f32 %v3416, %v3698
    %v3731 = vmul.f32 %v3418, %v3699
    %v3732 = vmul.f32 %v3420, %v3700
    %v3733 = vmul.f32 %v3422, %v3701
    %v3734 = vmul.f32 %v3424, %v3702
    %v3735 = vmul.f32 %v3426, %v3703
    %v3736 = vmul.f32 %v3428, %v3704
    %v3737 = vmul.f32 %v3430, %v3705
    %v3738 = vmul.f32 %v3432, %v3706
    %v3739 = vmul.f32 %v3434, %v3707
    %v3740 = vmul.f32 %v3436, %v3708
    %v3741 = vmul.f32 %v3438, %v3709
    %v3742 = vmul.f32 %v3440, %v3710
    %v3743 = vmul.f32 %v3442, %v3711
    %v3744 = vmul.f32 %v3444, %v3712
    %v3745 = vmul.f32 %v3446, %v3713
    %v3746 = vmul.f32 %v3448, %v3714
    %v3747 = vmul.f32 %v3450, %v3715
    %v3748 = vmul.f32 %v3452, %v3716
    %v3749 = vmul.f32 %v3454, %v3717
    %v3750 = vmul.f32 %v3456, %v3718
    %v3751 = vmul.f32 %v3458, %v3719
    %v3752 = vmul.f32 %v3460, %v3720
    %v3753 = vmul.f32 %v3462, %v3721
    %v3754 = vmul.f32 %v3464, %v3722
    %v3755 = vmul.f32 %v3466, %v3723
    %v3756 = vmul.f32 %v3468, %v3724
    %v3757 = vsub.f32 0.0, %v3309
    %v3758 = vsub.f32 0.0, %v3310
    %v3759 = vsub.f32 0.0, %v3311
    %v3760 = vsub.f32 0.0, %v3312
    %v3761 = vsub.f32 0.0, %v3313
    %v3762 = vsub.f32 0.0, %v3314
    %v3763 = vsub.f32 0.0, %v3315
    %v3764 = vsub.f32 0.0, %v3316
    %v3765 = vsub.f32 0.0, %v3317
    %v3766 = vsub.f32 0.0, %v3318
    %v3767 = vsub.f32 0.0, %v3319
    %v3768 = vsub.f32 0.0, %v3320
    %v3769 = vsub.f32 0.0, %v3321
    %v3770 = vsub.f32 0.0, %v3322
    %v3771 = vsub.f32 0.0, %v3323
    %v3772 = vsub.f32 0.0, %v3324
    %v3773 = vsub.f32 0.0, %v3325
    %v3774 = vsub.f32 0.0, %v3326
    %v3775 = vsub.f32 0.0, %v3327
    %v3776 = vsub.f32 0.0, %v3328
    %v3777 = vsub.f32 0.0, %v3329
    %v3778 = vsub.f32 0.0, %v3330
    %v3779 = vsub.f32 0.0, %v3331
    %v3780 = vsub.f32 0.0, %v3332
    %v3781 = vsub.f32 0.0, %v3333
    %v3782 = vsub.f32 0.0, %v3334
    %v3783 = vsub.f32 0.0, %v3335
    %v3784 = vsub.f32 0.0, %v3336
    %v3785 = vsub.f32 0.0, %v3337
    %v3786 = vsub.f32 0.0, %v3338
    %v3787 = vsub.f32 0.0, %v3339
    %v3788 = vsub.f32 0.0, %v3340
    %v3789 = vmul.f32 %v3757, %v3309
    %v3790 = vmul.f32 %v3758, %v3310
    %v3791 = vmul.f32 %v3759, %v3311
    %v3792 = vmul.f32 %v3760, %v3312
    %v3793 = vmul.f32 %v3761, %v3313
    %v3794 = vmul.f32 %v3762, %v3314
    %v3795 = vmul.f32 %v3763, %v3315
    %v3796 = vmul.f32 %v3764, %v3316
    %v3797 = vmul.f32 %v3765, %v3317
    %v3798 = vmul.f32 %v3766, %v3318
    %v3799 = vmul.f32 %v3767, %v3319
    %v3800 = vmul.f32 %v3768, %v3320
    %v3801 = vmul.f32 %v3769, %v3321
    %v3802 = vmul.f32 %v3770, %v3322
    %v3803 = vmul.f32 %v3771, %v3323
    %v3804 = vmul.f32 %v3772, %v3324
    %v3805 = vmul.f32 %v3773, %v3325
    %v3806 = vmul.f32 %v3774, %v3326
    %v3807 = vmul.f32 %v3775, %v3327
    %v3808 = vmul.f32 %v3776, %v3328
    %v3809 = vmul.f32 %v3777, %v3329
    %v3810 = vmul.f32 %v3778, %v3330
    %v3811 = vmul.f32 %v3779, %v3331
    %v3812 = vmul.f32 %v3780, %v3332
    %v3813 = vmul.f32 %v3781, %v3333
    %v3814 = vmul.f32 %v3782, %v3334
    %v3815 = vmul.f32 %v3783, %v3335
    %v3816 = vmul.f32 %v3784, %v3336
    %v3817 = vmul.f32 %v3785, %v3337
    %v3818 = vmul.f32 %v3786, %v3338
    %v3819 = vmul.f32 %v3787, %v3339
    %v3820 = vmul.f32 %v3788, %v3340
    %v3821 = vmul.f32 %v3789, 1.442695
    %v3822 = vpow.pop %v3821
    %v3823 = vmul.f32 %v3790, 1.442695
    %v3824 = vpow.pop %v3823
    %v3825 = vmul.f32 %v3791, 1.442695
    %v3826 = vpow.pop %v3825
    %v3827 = vmul.f32 %v3792, 1.442695
    %v3828 = vpow.pop %v3827
    %v3829 = vmul.f32 %v3793, 1.442695
    %v3830 = vpow.pop %v3829
    %v3831 = vmul.f32 %v3794, 1.442695
    %v3832 = vpow.pop %v3831
    %v3833 = vmul.f32 %v3795, 1.442695
    %v3834 = vpow.pop %v3833
    %v3835 = vmul.f32 %v3796, 1.442695
    %v3836 = vpow.pop %v3835
    %v3837 = vmul.f32 %v3797, 1.442695
    %v3838 = vpow.pop %v3837
    %v3839 = vmul.f32 %v3798, 1.442695
    %v3840 = vpow.pop %v3839
    %v3841 = vmul.f32 %v3799, 1.442695
    %v3842 = vpow.pop %v3841
    %v3843 = vmul.f32 %v3800, 1.442695
    %v3844 = vpow.pop %v3843
    %v3845 = vmul.f32 %v3801, 1.442695
    %v3846 = vpow.pop %v3845
    %v3847 = vmul.f32 %v3802, 1.442695
    %v3848 = vpow.pop %v3847
    %v3849 = vmul.f32 %v3803, 1.442695
    %v3850 = vpow.pop %v3849
    %v3851 = vmul.f32 %v3804, 1.442695
    %v3852 = vpow.pop %v3851
    %v3853 = vmul.f32 %v3805, 1.442695
    %v3854 = vpow.pop %v3853
    %v3855 = vmul.f32 %v3806, 1.442695
    %v3856 = vpow.pop %v3855
    %v3857 = vmul.f32 %v3807, 1.442695
    %v3858 = vpow.pop %v3857
    %v3859 = vmul.f32 %v3808, 1.442695
    %v3860 = vpow.pop %v3859
    %v3861 = vmul.f32 %v3809, 1.442695
    %v3862 = vpow.pop %v3861
    %v3863 = vmul.f32 %v3810, 1.442695
    %v3864 = vpow.pop %v3863
    %v3865 = vmul.f32 %v3811, 1.442695
    %v3866 = vpow.pop %v3865
    %v3867 = vmul.f32 %v3812, 1.442695
    %v3868 = vpow.pop %v3867
    %v3869 = vmul.f32 %v3813, 1.442695
    %v3870 = vpow.pop %v3869
    %v3871 = vmul.f32 %v3814, 1.442695
    %v3872 = vpow.pop %v3871
    %v3873 = vmul.f32 %v3815, 1.442695
    %v3874 = vpow.pop %v3873
    %v3875 = vmul.f32 %v3816, 1.442695
    %v3876 = vpow.pop %v3875
    %v3877 = vmul.f32 %v3817, 1.442695
    %v3878 = vpow.pop %v3877
    %v3879 = vmul.f32 %v3818, 1.442695
    %v3880 = vpow.pop %v3879
    %v3881 = vmul.f32 %v3819, 1.442695
    %v3882 = vpow.pop %v3881
    %v3883 = vmul.f32 %v3820, 1.442695
    %v3884 = vpow.pop %v3883
    %v3885 = vmul.f32 %v3725, %v3822
    %v3886 = vmul.f32 %v3726, %v3824
    %v3887 = vmul.f32 %v3727, %v3826
    %v3888 = vmul.f32 %v3728, %v3828
    %v3889 = vmul.f32 %v3729, %v3830
    %v3890 = vmul.f32 %v3730, %v3832
    %v3891 = vmul.f32 %v3731, %v3834
    %v3892 = vmul.f32 %v3732, %v3836
    %v3893 = vmul.f32 %v3733, %v3838
    %v3894 = vmul.f32 %v3734, %v3840
    %v3895 = vmul.f32 %v3735, %v3842
    %v3896 = vmul.f32 %v3736, %v3844
    %v3897 = vmul.f32 %v3737, %v3846
    %v3898 = vmul.f32 %v3738, %v3848
    %v3899 = vmul.f32 %v3739, %v3850
    %v3900 = vmul.f32 %v3740, %v3852
    %v3901 = vmul.f32 %v3741, %v3854
    %v3902 = vmul.f32 %v3742, %v3856
    %v3903 = vmul.f32 %v3743, %v3858
    %v3904 = vmul.f32 %v3744, %v3860
    %v3905 = vmul.f32 %v3745, %v3862
    %v3906 = vmul.f32 %v3746, %v3864
    %v3907 = vmul.f32 %v3747, %v3866
    %v3908 = vmul.f32 %v3748, %v3868
    %v3909 = vmul.f32 %v3749, %v3870
    %v3910 = vmul.f32 %v3750, %v3872
    %v3911 = vmul.f32 %v3751, %v3874
    %v3912 = vmul.f32 %v3752, %v3876
    %v3913 = vmul.f32 %v3753, %v3878
    %v3914 = vmul.f32 %v3754, %v3880
    %v3915 = vmul.f32 %v3755, %v3882
    %v3916 = vmul.f32 %v3756, %v3884
    %v3917 = vsub.f32 1.0, %v3885
    %v3918 = vsub.f32 1.0, %v3886
    %v3919 = vsub.f32 1.0, %v3887
    %v3920 = vsub.f32 1.0, %v3888
    %v3921 = vsub.f32 1.0, %v3889
    %v3922 = vsub.f32 1.0, %v3890
    %v3923 = vsub.f32 1.0, %v3891
    %v3924 = vsub.f32 1.0, %v3892
    %v3925 = vsub.f32 1.0, %v3893
    %v3926 = vsub.f32 1.0, %v3894
    %v3927 = vsub.f32 1.0, %v3895
    %v3928 = vsub.f32 1.0, %v3896
    %v3929 = vsub.f32 1.0, %v3897
    %v3930 = vsub.f32 1.0, %v3898
    %v3931 = vsub.f32 1.0, %v3899
    %v3932 = vsub.f32 1.0, %v3900
    %v3933 = vsub.f32 1.0, %v3901
    %v3934 = vsub.f32 1.0, %v3902
    %v3935 = vsub.f32 1.0, %v3903
    %v3936 = vsub.f32 1.0, %v3904
    %v3937 = vsub.f32 1.0, %v3905
    %v3938 = vsub.f32 1.0, %v3906
    %v3939 = vsub.f32 1.0, %v3907
    %v3940 = vsub.f32 1.0, %v3908
    %v3941 = vsub.f32 1.0, %v3909
    %v3942 = vsub.f32 1.0, %v3910
    %v3943 = vsub.f32 1.0, %v3911
    %v3944 = vsub.f32 1.0, %v3912
    %v3945 = vsub.f32 1.0, %v3913
    %v3946 = vsub.f32 1.0, %v3914
    %v3947 = vsub.f32 1.0, %v3915
    %v3948 = vsub.f32 1.0, %v3916
    %v3949 = vmul.f32 %v3277, %v3917
    %v3950 = vmul.f32 %v3278, %v3918
    %v3951 = vmul.f32 %v3279, %v3919
    %v3952 = vmul.f32 %v3280, %v3920
    %v3953 = vmul.f32 %v3281, %v3921
    %v3954 = vmul.f32 %v3282, %v3922
    %v3955 = vmul.f32 %v3283, %v3923
    %v3956 = vmul.f32 %v3284, %v3924
    %v3957 = vmul.f32 %v3285, %v3925
    %v3958 = vmul.f32 %v3286, %v3926
    %v3959 = vmul.f32 %v3287, %v3927
    %v3960 = vmul.f32 %v3288, %v3928
    %v3961 = vmul.f32 %v3289, %v3929
    %v3962 = vmul.f32 %v3290, %v3930
    %v3963 = vmul.f32 %v3291, %v3931
    %v3964 = vmul.f32 %v3292, %v3932
    %v3965 = vmul.f32 %v3293, %v3933
    %v3966 = vmul.f32 %v3294, %v3934
    %v3967 = vmul.f32 %v3295, %v3935
    %v3968 = vmul.f32 %v3296, %v3936
    %v3969 = vmul.f32 %v3297, %v3937
    %v3970 = vmul.f32 %v3298, %v3938
    %v3971 = vmul.f32 %v3299, %v3939
    %v3972 = vmul.f32 %v3300, %v3940
    %v3973 = vmul.f32 %v3301, %v3941
    %v3974 = vmul.f32 %v3302, %v3942
    %v3975 = vmul.f32 %v3303, %v3943
    %v3976 = vmul.f32 %v3304, %v3944
    %v3977 = vmul.f32 %v3305, %v3945
    %v3978 = vmul.f32 %v3306, %v3946
    %v3979 = vmul.f32 %v3307, %v3947
    %v3980 = vmul.f32 %v3308, %v3948
    %v3981 = vadd.f32 %v3949, 1.0
    %v3982 = vadd.f32 %v3950, 1.0
    %v3983 = vadd.f32 %v3951, 1.0
    %v3984 = vadd.f32 %v3952, 1.0
    %v3985 = vadd.f32 %v3953, 1.0
    %v3986 = vadd.f32 %v3954, 1.0
    %v3987 = vadd.f32 %v3955, 1.0
    %v3988 = vadd.f32 %v3956, 1.0
    %v3989 = vadd.f32 %v3957, 1.0
    %v3990 = vadd.f32 %v3958, 1.0
    %v3991 = vadd.f32 %v3959, 1.0
    %v3992 = vadd.f32 %v3960, 1.0
    %v3993 = vadd.f32 %v3961, 1.0
    %v3994 = vadd.f32 %v3962, 1.0
    %v3995 = vadd.f32 %v3963, 1.0
    %v3996 = vadd.f32 %v3964, 1.0
    %v3997 = vadd.f32 %v3965, 1.0
    %v3998 = vadd.f32 %v3966, 1.0
    %v3999 = vadd.f32 %v3967, 1.0
    %v4000 = vadd.f32 %v3968, 1.0
    %v4001 = vadd.f32 %v3969, 1.0
    %v4002 = vadd.f32 %v3970, 1.0
    %v4003 = vadd.f32 %v3971, 1.0
    %v4004 = vadd.f32 %v3972, 1.0
    %v4005 = vadd.f32 %v3973, 1.0
    %v4006 = vadd.f32 %v3974, 1.0
    %v4007 = vadd.f32 %v3975, 1.0
    %v4008 = vadd.f32 %v3976, 1.0
    %v4009 = vadd.f32 %v3977, 1.0
    %v4010 = vadd.f32 %v3978, 1.0
    %v4011 = vadd.f32 %v3979, 1.0
    %v4012 = vadd.f32 %v3980, 1.0
    %v4013 = vmul.f32 %v3181, %v3981
    %v4014 = vmul.f32 %v3182, %v3982
    %v4015 = vmul.f32 %v3183, %v3983
    %v4016 = vmul.f32 %v3184, %v3984
    %v4017 = vmul.f32 %v3185, %v3985
    %v4018 = vmul.f32 %v3186, %v3986
    %v4019 = vmul.f32 %v3187, %v3987
    %v4020 = vmul.f32 %v3188, %v3988
    %v4021 = vmul.f32 %v3189, %v3989
    %v4022 = vmul.f32 %v3190, %v3990
    %v4023 = vmul.f32 %v3191, %v3991
    %v4024 = vmul.f32 %v3192, %v3992
    %v4025 = vmul.f32 %v3193, %v3993
    %v4026 = vmul.f32 %v3194, %v3994
    %v4027 = vmul.f32 %v3195, %v3995
    %v4028 = vmul.f32 %v3196, %v3996
    %v4029 = vmul.f32 %v3197, %v3997
    %v4030 = vmul.f32 %v3198, %v3998
    %v4031 = vmul.f32 %v3199, %v3999
    %v4032 = vmul.f32 %v3200, %v4000
    %v4033 = vmul.f32 %v3201, %v4001
    %v4034 = vmul.f32 %v3202, %v4002
    %v4035 = vmul.f32 %v3203, %v4003
    %v4036 = vmul.f32 %v3204, %v4004
    %v4037 = vmul.f32 %v3205, %v4005
    %v4038 = vmul.f32 %v3206, %v4006
    %v4039 = vmul.f32 %v3207, %v4007
    %v4040 = vmul.f32 %v3208, %v4008
    %v4041 = vmul.f32 %v3209, %v4009
    %v4042 = vmul.f32 %v3210, %v4010
    %v4043 = vmul.f32 %v3211, %v4011
    %v4044 = vmul.f32 %v3212, %v4012
    %v4045 = vld [vmem:[#allocation7] sm:$0xff]
    %v4046 = vld [vmem:[#allocation7 + $0x8] sm:$0xff]
    %v4047 = vld [vmem:[#allocation7 + $0x10] sm:$0xff]
    %v4048 = vld [vmem:[#allocation7 + $0x18] sm:$0xff]
    %v4049 = vld [vmem:[#allocation7 + $0x20] sm:$0xff]
    %v4050 = vld [vmem:[#allocation7 + $0x28] sm:$0xff]
    %v4051 = vld [vmem:[#allocation7 + $0x30] sm:$0xff]
    %v4052 = vld [vmem:[#allocation7 + $0x38] sm:$0xff]
    %v4053 = vld [vmem:[#allocation7 + $0x40] sm:$0xff]
    %v4054 = vld [vmem:[#allocation7 + $0x48] sm:$0xff]
    %v4055 = vld [vmem:[#allocation7 + $0x50] sm:$0xff]
    %v4056 = vld [vmem:[#allocation7 + $0x58] sm:$0xff]
    %v4057 = vld [vmem:[#allocation7 + $0x60] sm:$0xff]
    %v4058 = vld [vmem:[#allocation7 + $0x68] sm:$0xff]
    %v4059 = vld [vmem:[#allocation7 + $0x70] sm:$0xff]
    %v4060 = vld [vmem:[#allocation7 + $0x78] sm:$0xff]
    %v4061 = vld [vmem:[#allocation7 + $0x80] sm:$0xff]
    %v4062 = vld [vmem:[#allocation7 + $0x88] sm:$0xff]
    %v4063 = vld [vmem:[#allocation7 + $0x90] sm:$0xff]
    %v4064 = vld [vmem:[#allocation7 + $0x98] sm:$0xff]
    %v4065 = vld [vmem:[#allocation7 + $0xa0] sm:$0xff]
    %v4066 = vld [vmem:[#allocation7 + $0xa8] sm:$0xff]
    %v4067 = vld [vmem:[#allocation7 + $0xb0] sm:$0xff]
    %v4068 = vld [vmem:[#allocation7 + $0xb8] sm:$0xff]
    %v4069 = vld [vmem:[#allocation7 + $0xc0] sm:$0xff]
    %v4070 = vld [vmem:[#allocation7 + $0xc8] sm:$0xff]
    %v4071 = vld [vmem:[#allocation7 + $0xd0] sm:$0xff]
    %v4072 = vld [vmem:[#allocation7 + $0xd8] sm:$0xff]
    %v4073 = vld [vmem:[#allocation7 + $0xe0] sm:$0xff]
    %v4074 = vld [vmem:[#allocation7 + $0xe8] sm:$0xff]
    %v4075 = vld [vmem:[#allocation7 + $0xf0] sm:$0xff]
    %v4076 = vld [vmem:[#allocation7 + $0xf8] sm:$0xff]
    %v4077 = vld [vmem:[#allocation7 + $0x100] sm:$0xff]
    %v4078 = vld [vmem:[#allocation7 + $0x108] sm:$0xff]
    %v4079 = vld [vmem:[#allocation7 + $0x110] sm:$0xff]
    %v4080 = vld [vmem:[#allocation7 + $0x118] sm:$0xff]
    %v4081 = vld [vmem:[#allocation7 + $0x120] sm:$0xff]
    %v4082 = vld [vmem:[#allocation7 + $0x128] sm:$0xff]
    %v4083 = vld [vmem:[#allocation7 + $0x130] sm:$0xff]
    %v4084 = vld [vmem:[#allocation7 + $0x138] sm:$0xff]
    %v4085 = vld [vmem:[#allocation7 + $0x140] sm:$0xff]
    %v4086 = vld [vmem:[#allocation7 + $0x148] sm:$0xff]
    %v4087 = vld [vmem:[#allocation7 + $0x150] sm:$0xff]
    %v4088 = vld [vmem:[#allocation7 + $0x158] sm:$0xff]
    %v4089 = vld [vmem:[#allocation7 + $0x160] sm:$0xff]
    %v4090 = vld [vmem:[#allocation7 + $0x168] sm:$0xff]
    %v4091 = vld [vmem:[#allocation7 + $0x170] sm:$0xff]
    %v4092 = vld [vmem:[#allocation7 + $0x178] sm:$0xff]
    %v4093 = vld [vmem:[#allocation7 + $0x180] sm:$0xff]
    %v4094 = vld [vmem:[#allocation7 + $0x188] sm:$0xff]
    %v4095 = vld [vmem:[#allocation7 + $0x190] sm:$0xff]
    %v4096 = vld [vmem:[#allocation7 + $0x198] sm:$0xff]
    %v4097 = vld [vmem:[#allocation7 + $0x1a0] sm:$0xff]
    %v4098 = vld [vmem:[#allocation7 + $0x1a8] sm:$0xff]
    %v4099 = vld [vmem:[#allocation7 + $0x1b0] sm:$0xff]
    %v4100 = vld [vmem:[#allocation7 + $0x1b8] sm:$0xff]
    %v4101 = vld [vmem:[#allocation7 + $0x1c0] sm:$0xff]
    %v4102 = vld [vmem:[#allocation7 + $0x1c8] sm:$0xff]
    %v4103 = vld [vmem:[#allocation7 + $0x1d0] sm:$0xff]
    %v4104 = vld [vmem:[#allocation7 + $0x1d8] sm:$0xff]
    %v4105 = vld [vmem:[#allocation7 + $0x1e0] sm:$0xff]
    %v4106 = vld [vmem:[#allocation7 + $0x1e8] sm:$0xff]
    %v4107 = vld [vmem:[#allocation7 + $0x1f0] sm:$0xff]
    %v4108 = vld [vmem:[#allocation7 + $0x1f8] sm:$0xff]
    %v4109 = vld [vmem:[#allocation7 + $0x200] sm:$0xff]
    %v4110 = vld [vmem:[#allocation7 + $0x208] sm:$0xff]
    %v4111 = vld [vmem:[#allocation7 + $0x210] sm:$0xff]
    %v4112 = vld [vmem:[#allocation7 + $0x218] sm:$0xff]
    %v4113 = vld [vmem:[#allocation7 + $0x220] sm:$0xff]
    %v4114 = vld [vmem:[#allocation7 + $0x228] sm:$0xff]
    %v4115 = vld [vmem:[#allocation7 + $0x230] sm:$0xff]
    %v4116 = vld [vmem:[#allocation7 + $0x238] sm:$0xff]
    %v4117 = vld [vmem:[#allocation7 + $0x240] sm:$0xff]
    %v4118 = vld [vmem:[#allocation7 + $0x248] sm:$0xff]
    %v4119 = vld [vmem:[#allocation7 + $0x250] sm:$0xff]
    %v4120 = vld [vmem:[#allocation7 + $0x258] sm:$0xff]
    %v4121 = vld [vmem:[#allocation7 + $0x260] sm:$0xff]
    %v4122 = vld [vmem:[#allocation7 + $0x268] sm:$0xff]
    %v4123 = vld [vmem:[#allocation7 + $0x270] sm:$0xff]
    %v4124 = vld [vmem:[#allocation7 + $0x278] sm:$0xff]
    %v4125 = vld [vmem:[#allocation7 + $0x280] sm:$0xff]
    %v4126 = vld [vmem:[#allocation7 + $0x288] sm:$0xff]
    %v4127 = vld [vmem:[#allocation7 + $0x290] sm:$0xff]
    %v4128 = vld [vmem:[#allocation7 + $0x298] sm:$0xff]
    %v4129 = vld [vmem:[#allocation7 + $0x2a0] sm:$0xff]
    %v4130 = vld [vmem:[#allocation7 + $0x2a8] sm:$0xff]
    %v4131 = vld [vmem:[#allocation7 + $0x2b0] sm:$0xff]
    %v4132 = vld [vmem:[#allocation7 + $0x2b8] sm:$0xff]
    %v4133 = vld [vmem:[#allocation7 + $0x2c0] sm:$0xff]
    %v4134 = vld [vmem:[#allocation7 + $0x2c8] sm:$0xff]
    %v4135 = vld [vmem:[#allocation7 + $0x2d0] sm:$0xff]
    %v4136 = vld [vmem:[#allocation7 + $0x2d8] sm:$0xff]
    %v4137 = vld [vmem:[#allocation7 + $0x2e0] sm:$0xff]
    %v4138 = vld [vmem:[#allocation7 + $0x2e8] sm:$0xff]
    %v4139 = vld [vmem:[#allocation7 + $0x2f0] sm:$0xff]
    %v4140 = vld [vmem:[#allocation7 + $0x2f8] sm:$0xff]
    %v4141 = vld [vmem:[#allocation7 + $0x300] sm:$0xff]
    %v4142 = vld [vmem:[#allocation7 + $0x308] sm:$0xff]
    %v4143 = vld [vmem:[#allocation7 + $0x310] sm:$0xff]
    %v4144 = vld [vmem:[#allocation7 + $0x318] sm:$0xff]
    %v4145 = vld [vmem:[#allocation7 + $0x320] sm:$0xff]
    %v4146 = vld [vmem:[#allocation7 + $0x328] sm:$0xff]
    %v4147 = vld [vmem:[#allocation7 + $0x330] sm:$0xff]
    %v4148 = vld [vmem:[#allocation7 + $0x338] sm:$0xff]
    %v4149 = vld [vmem:[#allocation7 + $0x340] sm:$0xff]
    %v4150 = vld [vmem:[#allocation7 + $0x348] sm:$0xff]
    %v4151 = vld [vmem:[#allocation7 + $0x350] sm:$0xff]
    %v4152 = vld [vmem:[#allocation7 + $0x358] sm:$0xff]
    %v4153 = vld [vmem:[#allocation7 + $0x360] sm:$0xff]
    %v4154 = vld [vmem:[#allocation7 + $0x368] sm:$0xff]
    %v4155 = vld [vmem:[#allocation7 + $0x370] sm:$0xff]
    %v4156 = vld [vmem:[#allocation7 + $0x378] sm:$0xff]
    %v4157 = vld [vmem:[#allocation7 + $0x380] sm:$0xff]
    %v4158 = vld [vmem:[#allocation7 + $0x388] sm:$0xff]
    %v4159 = vld [vmem:[#allocation7 + $0x390] sm:$0xff]
    %v4160 = vld [vmem:[#allocation7 + $0x398] sm:$0xff]
    %v4161 = vld [vmem:[#allocation7 + $0x3a0] sm:$0xff]
    %v4162 = vld [vmem:[#allocation7 + $0x3a8] sm:$0xff]
    %v4163 = vld [vmem:[#allocation7 + $0x3b0] sm:$0xff]
    %v4164 = vld [vmem:[#allocation7 + $0x3b8] sm:$0xff]
    %v4165 = vld [vmem:[#allocation7 + $0x3c0] sm:$0xff]
    %v4166 = vld [vmem:[#allocation7 + $0x3c8] sm:$0xff]
    %v4167 = vld [vmem:[#allocation7 + $0x3d0] sm:$0xff]
    %v4168 = vld [vmem:[#allocation7 + $0x3d8] sm:$0xff]
    %v4169 = vld [vmem:[#allocation7 + $0x3e0] sm:$0xff]
    %v4170 = vld [vmem:[#allocation7 + $0x3e8] sm:$0xff]
    %v4171 = vld [vmem:[#allocation7 + $0x3f0] sm:$0xff]
    %v4172 = vld [vmem:[#allocation7 + $0x3f8] sm:$0xff]
    %v4173 = vpack.c.bf16 %v4021, %v4013
    %v4174 = vpack.c.bf16 %v4022, %v4014
    %v4175 = vpack.c.bf16 %v4023, %v4015
    %v4176 = vpack.c.bf16 %v4024, %v4016
    %v4177 = vpack.c.bf16 %v4025, %v4017
    %v4178 = vpack.c.bf16 %v4026, %v4018
    %v4179 = vpack.c.bf16 %v4027, %v4019
    %v4180 = vpack.c.bf16 %v4028, %v4020
    %v4181 = vpack.c.bf16 %v4037, %v4029
    %v4182 = vpack.c.bf16 %v4038, %v4030
    %v4183 = vpack.c.bf16 %v4039, %v4031
    %v4184 = vpack.c.bf16 %v4040, %v4032
    %v4185 = vpack.c.bf16 %v4041, %v4033
    %v4186 = vpack.c.bf16 %v4042, %v4034
    %v4187 = vpack.c.bf16 %v4043, %v4035
    %v4188 = vpack.c.bf16 %v4044, %v4036
    %v4317 = vunpack.c.l.b16 %v4045
    %v4318 = vunpack.c.h.b16 %v4045
    %v4319 = vunpack.c.l.b16 %v4046
    %v4320 = vunpack.c.h.b16 %v4046
    %v4321 = vunpack.c.l.b16 %v4047
    %v4322 = vunpack.c.h.b16 %v4047
    %v4323 = vunpack.c.l.b16 %v4048
    %v4324 = vunpack.c.h.b16 %v4048
    %v4325 = vunpack.c.l.b16 %v4049
    %v4326 = vunpack.c.h.b16 %v4049
    %v4327 = vunpack.c.l.b16 %v4050
    %v4328 = vunpack.c.h.b16 %v4050
    %v4329 = vunpack.c.l.b16 %v4051
    %v4330 = vunpack.c.h.b16 %v4051
    %v4331 = vunpack.c.l.b16 %v4052
    %v4332 = vunpack.c.h.b16 %v4052
    %v4333 = vunpack.c.l.b16 %v4053
    %v4334 = vunpack.c.h.b16 %v4053
    %v4335 = vunpack.c.l.b16 %v4054
    %v4336 = vunpack.c.h.b16 %v4054
    %v4337 = vunpack.c.l.b16 %v4055
    %v4338 = vunpack.c.h.b16 %v4055
    %v4339 = vunpack.c.l.b16 %v4056
    %v4340 = vunpack.c.h.b16 %v4056
    %v4341 = vunpack.c.l.b16 %v4057
    %v4342 = vunpack.c.h.b16 %v4057
    %v4343 = vunpack.c.l.b16 %v4058
    %v4344 = vunpack.c.h.b16 %v4058
    %v4345 = vunpack.c.l.b16 %v4059
    %v4346 = vunpack.c.h.b16 %v4059
    %v4347 = vunpack.c.l.b16 %v4060
    %v4348 = vunpack.c.h.b16 %v4060
    %v4349 = vunpack.c.l.b16 %v4061
    %v4350 = vunpack.c.h.b16 %v4061
    %v4351 = vunpack.c.l.b16 %v4062
    %v4352 = vunpack.c.h.b16 %v4062
    %v4353 = vunpack.c.l.b16 %v4063
    %v4354 = vunpack.c.h.b16 %v4063
    %v4355 = vunpack.c.l.b16 %v4064
    %v4356 = vunpack.c.h.b16 %v4064
    %v4357 = vunpack.c.l.b16 %v4065
    %v4358 = vunpack.c.h.b16 %v4065
    %v4359 = vunpack.c.l.b16 %v4066
    %v4360 = vunpack.c.h.b16 %v4066
    %v4361 = vunpack.c.l.b16 %v4067
    %v4362 = vunpack.c.h.b16 %v4067
    %v4363 = vunpack.c.l.b16 %v4068
    %v4364 = vunpack.c.h.b16 %v4068
    %v4365 = vunpack.c.l.b16 %v4069
    %v4366 = vunpack.c.h.b16 %v4069
    %v4367 = vunpack.c.l.b16 %v4070
    %v4368 = vunpack.c.h.b16 %v4070
    %v4369 = vunpack.c.l.b16 %v4071
    %v4370 = vunpack.c.h.b16 %v4071
    %v4371 = vunpack.c.l.b16 %v4072
    %v4372 = vunpack.c.h.b16 %v4072
    %v4373 = vunpack.c.l.b16 %v4073
    %v4374 = vunpack.c.h.b16 %v4073
    %v4375 = vunpack.c.l.b16 %v4074
    %v4376 = vunpack.c.h.b16 %v4074
    %v4377 = vunpack.c.l.b16 %v4075
    %v4378 = vunpack.c.h.b16 %v4075
    %v4379 = vunpack.c.l.b16 %v4076
    %v4380 = vunpack.c.h.b16 %v4076
    %v4381 = vunpack.c.l.b16 %v4077
    %v4382 = vunpack.c.h.b16 %v4077
    %v4383 = vunpack.c.l.b16 %v4078
    %v4384 = vunpack.c.h.b16 %v4078
    %v4385 = vunpack.c.l.b16 %v4079
    %v4386 = vunpack.c.h.b16 %v4079
    %v4387 = vunpack.c.l.b16 %v4080
    %v4388 = vunpack.c.h.b16 %v4080
    %v4389 = vunpack.c.l.b16 %v4081
    %v4390 = vunpack.c.h.b16 %v4081
    %v4391 = vunpack.c.l.b16 %v4082
    %v4392 = vunpack.c.h.b16 %v4082
    %v4393 = vunpack.c.l.b16 %v4083
    %v4394 = vunpack.c.h.b16 %v4083
    %v4395 = vunpack.c.l.b16 %v4084
    %v4396 = vunpack.c.h.b16 %v4084
    %v4397 = vunpack.c.l.b16 %v4085
    %v4398 = vunpack.c.h.b16 %v4085
    %v4399 = vunpack.c.l.b16 %v4086
    %v4400 = vunpack.c.h.b16 %v4086
    %v4401 = vunpack.c.l.b16 %v4087
    %v4402 = vunpack.c.h.b16 %v4087
    %v4403 = vunpack.c.l.b16 %v4088
    %v4404 = vunpack.c.h.b16 %v4088
    %v4405 = vunpack.c.l.b16 %v4089
    %v4406 = vunpack.c.h.b16 %v4089
    %v4407 = vunpack.c.l.b16 %v4090
    %v4408 = vunpack.c.h.b16 %v4090
    %v4409 = vunpack.c.l.b16 %v4091
    %v4410 = vunpack.c.h.b16 %v4091
    %v4411 = vunpack.c.l.b16 %v4092
    %v4412 = vunpack.c.h.b16 %v4092
    %v4413 = vunpack.c.l.b16 %v4093
    %v4414 = vunpack.c.h.b16 %v4093
    %v4415 = vunpack.c.l.b16 %v4094
    %v4416 = vunpack.c.h.b16 %v4094
    %v4417 = vunpack.c.l.b16 %v4095
    %v4418 = vunpack.c.h.b16 %v4095
    %v4419 = vunpack.c.l.b16 %v4096
    %v4420 = vunpack.c.h.b16 %v4096
    %v4421 = vunpack.c.l.b16 %v4097
    %v4422 = vunpack.c.h.b16 %v4097
    %v4423 = vunpack.c.l.b16 %v4098
    %v4424 = vunpack.c.h.b16 %v4098
    %v4425 = vunpack.c.l.b16 %v4099
    %v4426 = vunpack.c.h.b16 %v4099
    %v4427 = vunpack.c.l.b16 %v4100
    %v4428 = vunpack.c.h.b16 %v4100
    %v4429 = vunpack.c.l.b16 %v4101
    %v4430 = vunpack.c.h.b16 %v4101
    %v4431 = vunpack.c.l.b16 %v4102
    %v4432 = vunpack.c.h.b16 %v4102
    %v4433 = vunpack.c.l.b16 %v4103
    %v4434 = vunpack.c.h.b16 %v4103
    %v4435 = vunpack.c.l.b16 %v4104
    %v4436 = vunpack.c.h.b16 %v4104
    %v4437 = vunpack.c.l.b16 %v4105
    %v4438 = vunpack.c.h.b16 %v4105
    %v4439 = vunpack.c.l.b16 %v4106
    %v4440 = vunpack.c.h.b16 %v4106
    %v4441 = vunpack.c.l.b16 %v4107
    %v4442 = vunpack.c.h.b16 %v4107
    %v4443 = vunpack.c.l.b16 %v4108
    %v4444 = vunpack.c.h.b16 %v4108
    %v4445 = vunpack.c.l.b16 %v4109
    %v4446 = vunpack.c.h.b16 %v4109
    %v4447 = vunpack.c.l.b16 %v4110
    %v4448 = vunpack.c.h.b16 %v4110
    %v4449 = vunpack.c.l.b16 %v4111
    %v4450 = vunpack.c.h.b16 %v4111
    %v4451 = vunpack.c.l.b16 %v4112
    %v4452 = vunpack.c.h.b16 %v4112
    %v4453 = vunpack.c.l.b16 %v4113
    %v4454 = vunpack.c.h.b16 %v4113
    %v4455 = vunpack.c.l.b16 %v4114
    %v4456 = vunpack.c.h.b16 %v4114
    %v4457 = vunpack.c.l.b16 %v4115
    %v4458 = vunpack.c.h.b16 %v4115
    %v4459 = vunpack.c.l.b16 %v4116
    %v4460 = vunpack.c.h.b16 %v4116
    %v4461 = vunpack.c.l.b16 %v4117
    %v4462 = vunpack.c.h.b16 %v4117
    %v4463 = vunpack.c.l.b16 %v4118
    %v4464 = vunpack.c.h.b16 %v4118
    %v4465 = vunpack.c.l.b16 %v4119
    %v4466 = vunpack.c.h.b16 %v4119
    %v4467 = vunpack.c.l.b16 %v4120
    %v4468 = vunpack.c.h.b16 %v4120
    %v4469 = vunpack.c.l.b16 %v4121
    %v4470 = vunpack.c.h.b16 %v4121
    %v4471 = vunpack.c.l.b16 %v4122
    %v4472 = vunpack.c.h.b16 %v4122
    %v4473 = vunpack.c.l.b16 %v4123
    %v4474 = vunpack.c.h.b16 %v4123
    %v4475 = vunpack.c.l.b16 %v4124
    %v4476 = vunpack.c.h.b16 %v4124
    %v4477 = vunpack.c.l.b16 %v4125
    %v4478 = vunpack.c.h.b16 %v4125
    %v4479 = vunpack.c.l.b16 %v4126
    %v4480 = vunpack.c.h.b16 %v4126
    %v4481 = vunpack.c.l.b16 %v4127
    %v4482 = vunpack.c.h.b16 %v4127
    %v4483 = vunpack.c.l.b16 %v4128
    %v4484 = vunpack.c.h.b16 %v4128
    %v4485 = vunpack.c.l.b16 %v4129
    %v4486 = vunpack.c.h.b16 %v4129
    %v4487 = vunpack.c.l.b16 %v4130
    %v4488 = vunpack.c.h.b16 %v4130
    %v4489 = vunpack.c.l.b16 %v4131
    %v4490 = vunpack.c.h.b16 %v4131
    %v4491 = vunpack.c.l.b16 %v4132
    %v4492 = vunpack.c.h.b16 %v4132
    %v4493 = vunpack.c.l.b16 %v4133
    %v4494 = vunpack.c.h.b16 %v4133
    %v4495 = vunpack.c.l.b16 %v4134
    %v4496 = vunpack.c.h.b16 %v4134
    %v4497 = vunpack.c.l.b16 %v4135
    %v4498 = vunpack.c.h.b16 %v4135
    %v4499 = vunpack.c.l.b16 %v4136
    %v4500 = vunpack.c.h.b16 %v4136
    %v4501 = vunpack.c.l.b16 %v4137
    %v4502 = vunpack.c.h.b16 %v4137
    %v4503 = vunpack.c.l.b16 %v4138
    %v4504 = vunpack.c.h.b16 %v4138
    %v4505 = vunpack.c.l.b16 %v4139
    %v4506 = vunpack.c.h.b16 %v4139
    %v4507 = vunpack.c.l.b16 %v4140
    %v4508 = vunpack.c.h.b16 %v4140
    %v4509 = vunpack.c.l.b16 %v4141
    %v4510 = vunpack.c.h.b16 %v4141
    %v4511 = vunpack.c.l.b16 %v4142
    %v4512 = vunpack.c.h.b16 %v4142
    %v4513 = vunpack.c.l.b16 %v4143
    %v4514 = vunpack.c.h.b16 %v4143
    %v4515 = vunpack.c.l.b16 %v4144
    %v4516 = vunpack.c.h.b16 %v4144
    %v4517 = vunpack.c.l.b16 %v4145
    %v4518 = vunpack.c.h.b16 %v4145
    %v4519 = vunpack.c.l.b16 %v4146
    %v4520 = vunpack.c.h.b16 %v4146
    %v4521 = vunpack.c.l.b16 %v4147
    %v4522 = vunpack.c.h.b16 %v4147
    %v4523 = vunpack.c.l.b16 %v4148
    %v4524 = vunpack.c.h.b16 %v4148
    %v4525 = vunpack.c.l.b16 %v4149
    %v4526 = vunpack.c.h.b16 %v4149
    %v4527 = vunpack.c.l.b16 %v4150
    %v4528 = vunpack.c.h.b16 %v4150
    %v4529 = vunpack.c.l.b16 %v4151
    %v4530 = vunpack.c.h.b16 %v4151
    %v4531 = vunpack.c.l.b16 %v4152
    %v4532 = vunpack.c.h.b16 %v4152
    %v4533 = vunpack.c.l.b16 %v4153
    %v4534 = vunpack.c.h.b16 %v4153
    %v4535 = vunpack.c.l.b16 %v4154
    %v4536 = vunpack.c.h.b16 %v4154
    %v4537 = vunpack.c.l.b16 %v4155
    %v4538 = vunpack.c.h.b16 %v4155
    %v4539 = vunpack.c.l.b16 %v4156
    %v4540 = vunpack.c.h.b16 %v4156
    %v4541 = vunpack.c.l.b16 %v4157
    %v4542 = vunpack.c.h.b16 %v4157
    %v4543 = vunpack.c.l.b16 %v4158
    %v4544 = vunpack.c.h.b16 %v4158
    %v4545 = vunpack.c.l.b16 %v4159
    %v4546 = vunpack.c.h.b16 %v4159
    %v4547 = vunpack.c.l.b16 %v4160
    %v4548 = vunpack.c.h.b16 %v4160
    %v4549 = vunpack.c.l.b16 %v4161
    %v4550 = vunpack.c.h.b16 %v4161
    %v4551 = vunpack.c.l.b16 %v4162
    %v4552 = vunpack.c.h.b16 %v4162
    %v4553 = vunpack.c.l.b16 %v4163
    %v4554 = vunpack.c.h.b16 %v4163
    %v4555 = vunpack.c.l.b16 %v4164
    %v4556 = vunpack.c.h.b16 %v4164
    %v4557 = vunpack.c.l.b16 %v4165
    %v4558 = vunpack.c.h.b16 %v4165
    %v4559 = vunpack.c.l.b16 %v4166
    %v4560 = vunpack.c.h.b16 %v4166
    %v4561 = vunpack.c.l.b16 %v4167
    %v4562 = vunpack.c.h.b16 %v4167
    %v4563 = vunpack.c.l.b16 %v4168
    %v4564 = vunpack.c.h.b16 %v4168
    %v4565 = vunpack.c.l.b16 %v4169
    %v4566 = vunpack.c.h.b16 %v4169
    %v4567 = vunpack.c.l.b16 %v4170
    %v4568 = vunpack.c.h.b16 %v4170
    %v4569 = vunpack.c.l.b16 %v4171
    %v4570 = vunpack.c.h.b16 %v4171
    %v4571 = vunpack.c.l.b16 %v4172
    %v4572 = vunpack.c.h.b16 %v4172
    %v4573 = vpack.c.b16 %v4319, %v4317
    %v4574 = vpack.c.b16 %v4320, %v4318
    %v4575 = vpack.c.b16 %v4323, %v4321
    %v4576 = vpack.c.b16 %v4324, %v4322
    %v4577 = vpack.c.b16 %v4327, %v4325
    %v4578 = vpack.c.b16 %v4328, %v4326
    %v4579 = vpack.c.b16 %v4331, %v4329
    %v4580 = vpack.c.b16 %v4332, %v4330
    %v4581 = vpack.c.b16 %v4335, %v4333
    %v4582 = vpack.c.b16 %v4336, %v4334
    %v4583 = vpack.c.b16 %v4339, %v4337
    %v4584 = vpack.c.b16 %v4340, %v4338
    %v4585 = vpack.c.b16 %v4343, %v4341
    %v4586 = vpack.c.b16 %v4344, %v4342
    %v4587 = vpack.c.b16 %v4347, %v4345
    %v4588 = vpack.c.b16 %v4348, %v4346
    %v4589 = vpack.c.b16 %v4351, %v4349
    %v4590 = vpack.c.b16 %v4352, %v4350
    %v4591 = vpack.c.b16 %v4355, %v4353
    %v4592 = vpack.c.b16 %v4356, %v4354
    %v4593 = vpack.c.b16 %v4359, %v4357
    %v4594 = vpack.c.b16 %v4360, %v4358
    %v4595 = vpack.c.b16 %v4363, %v4361
    %v4596 = vpack.c.b16 %v4364, %v4362
    %v4597 = vpack.c.b16 %v4367, %v4365
    %v4598 = vpack.c.b16 %v4368, %v4366
    %v4599 = vpack.c.b16 %v4371, %v4369
    %v4600 = vpack.c.b16 %v4372, %v4370
    %v4601 = vpack.c.b16 %v4375, %v4373
    %v4602 = vpack.c.b16 %v4376, %v4374
    %v4603 = vpack.c.b16 %v4379, %v4377
    %v4604 = vpack.c.b16 %v4380, %v4378
    %v4605 = vpack.c.b16 %v4383, %v4381
    %v4606 = vpack.c.b16 %v4384, %v4382
    %v4607 = vpack.c.b16 %v4387, %v4385
    %v4608 = vpack.c.b16 %v4388, %v4386
    %v4609 = vpack.c.b16 %v4391, %v4389
    %v4610 = vpack.c.b16 %v4392, %v4390
    %v4611 = vpack.c.b16 %v4395, %v4393
    %v4612 = vpack.c.b16 %v4396, %v4394
    %v4613 = vpack.c.b16 %v4399, %v4397
    %v4614 = vpack.c.b16 %v4400, %v4398
    %v4615 = vpack.c.b16 %v4403, %v4401
    %v4616 = vpack.c.b16 %v4404, %v4402
    %v4617 = vpack.c.b16 %v4407, %v4405
    %v4618 = vpack.c.b16 %v4408, %v4406
    %v4619 = vpack.c.b16 %v4411, %v4409
    %v4620 = vpack.c.b16 %v4412, %v4410
    %v4621 = vpack.c.b16 %v4415, %v4413
    %v4622 = vpack.c.b16 %v4416, %v4414
    %v4623 = vpack.c.b16 %v4419, %v4417
    %v4624 = vpack.c.b16 %v4420, %v4418
    %v4625 = vpack.c.b16 %v4423, %v4421
    %v4626 = vpack.c.b16 %v4424, %v4422
    %v4627 = vpack.c.b16 %v4427, %v4425
    %v4628 = vpack.c.b16 %v4428, %v4426
    %v4629 = vpack.c.b16 %v4431, %v4429
    %v4630 = vpack.c.b16 %v4432, %v4430
    %v4631 = vpack.c.b16 %v4435, %v4433
    %v4632 = vpack.c.b16 %v4436, %v4434
    %v4633 = vpack.c.b16 %v4439, %v4437
    %v4634 = vpack.c.b16 %v4440, %v4438
    %v4635 = vpack.c.b16 %v4443, %v4441
    %v4636 = vpack.c.b16 %v4444, %v4442
    %v4637 = vpack.c.b16 %v4447, %v4445
    %v4638 = vpack.c.b16 %v4448, %v4446
    %v4639 = vpack.c.b16 %v4451, %v4449
    %v4640 = vpack.c.b16 %v4452, %v4450
    %v4641 = vpack.c.b16 %v4455, %v4453
    %v4642 = vpack.c.b16 %v4456, %v4454
    %v4643 = vpack.c.b16 %v4459, %v4457
    %v4644 = vpack.c.b16 %v4460, %v4458
    %v4645 = vpack.c.b16 %v4463, %v4461
    %v4646 = vpack.c.b16 %v4464, %v4462
    %v4647 = vpack.c.b16 %v4467, %v4465
    %v4648 = vpack.c.b16 %v4468, %v4466
    %v4649 = vpack.c.b16 %v4471, %v4469
    %v4650 = vpack.c.b16 %v4472, %v4470
    %v4651 = vpack.c.b16 %v4475, %v4473
    %v4652 = vpack.c.b16 %v4476, %v4474
    %v4653 = vpack.c.b16 %v4479, %v4477
    %v4654 = vpack.c.b16 %v4480, %v4478
    %v4655 = vpack.c.b16 %v4483, %v4481
    %v4656 = vpack.c.b16 %v4484, %v4482
    %v4657 = vpack.c.b16 %v4487, %v4485
    %v4658 = vpack.c.b16 %v4488, %v4486
    %v4659 = vpack.c.b16 %v4491, %v4489
    %v4660 = vpack.c.b16 %v4492, %v4490
    %v4661 = vpack.c.b16 %v4495, %v4493
    %v4662 = vpack.c.b16 %v4496, %v4494
    %v4663 = vpack.c.b16 %v4499, %v4497
    %v4664 = vpack.c.b16 %v4500, %v4498
    %v4665 = vpack.c.b16 %v4503, %v4501
    %v4666 = vpack.c.b16 %v4504, %v4502
    %v4667 = vpack.c.b16 %v4507, %v4505
    %v4668 = vpack.c.b16 %v4508, %v4506
    %v4669 = vpack.c.b16 %v4511, %v4509
    %v4670 = vpack.c.b16 %v4512, %v4510
    %v4671 = vpack.c.b16 %v4515, %v4513
    %v4672 = vpack.c.b16 %v4516, %v4514
    %v4673 = vpack.c.b16 %v4519, %v4517
    %v4674 = vpack.c.b16 %v4520, %v4518
    %v4675 = vpack.c.b16 %v4523, %v4521
    %v4676 = vpack.c.b16 %v4524, %v4522
    %v4677 = vpack.c.b16 %v4527, %v4525
    %v4678 = vpack.c.b16 %v4528, %v4526
    %v4679 = vpack.c.b16 %v4531, %v4529
    %v4680 = vpack.c.b16 %v4532, %v4530
    %v4681 = vpack.c.b16 %v4535, %v4533
    %v4682 = vpack.c.b16 %v4536, %v4534
    %v4683 = vpack.c.b16 %v4539, %v4537
    %v4684 = vpack.c.b16 %v4540, %v4538
    %v4685 = vpack.c.b16 %v4543, %v4541
    %v4686 = vpack.c.b16 %v4544, %v4542
    %v4687 = vpack.c.b16 %v4547, %v4545
    %v4688 = vpack.c.b16 %v4548, %v4546
    %v4689 = vpack.c.b16 %v4551, %v4549
    %v4690 = vpack.c.b16 %v4552, %v4550
    %v4691 = vpack.c.b16 %v4555, %v4553
    %v4692 = vpack.c.b16 %v4556, %v4554
    %v4693 = vpack.c.b16 %v4559, %v4557
    %v4694 = vpack.c.b16 %v4560, %v4558
    %v4695 = vpack.c.b16 %v4563, %v4561
    %v4696 = vpack.c.b16 %v4564, %v4562
    %v4697 = vpack.c.b16 %v4567, %v4565
    %v4698 = vpack.c.b16 %v4568, %v4566
    %v4699 = vpack.c.b16 %v4571, %v4569
    %v4700 = vpack.c.b16 %v4572, %v4570
    %4829 = vmatprep.subr.bf16.mxu0 %v4588
    %4830 = vmatpush1.bf16.msra.mxu0 %v4587
    %4831 = vmatprep.subr.bf16.mxu0 %v4586
    %4832 = vmatpush1.bf16.msra.mxu0 %v4585
    %4833 = vmatprep.subr.bf16.mxu0 %v4584
    %4834 = vmatpush1.bf16.msra.mxu0 %v4583
    %4835 = vmatprep.subr.bf16.mxu0 %v4582
    %4836 = vmatpush1.bf16.msra.mxu0 %v4581
    %4837 = vmatprep.subr.bf16.mxu0 %v4580
    %4838 = vmatpush1.bf16.msra.mxu0 %v4579
    %4839 = vmatprep.subr.bf16.mxu0 %v4578
    %4840 = vmatpush1.bf16.msra.mxu0 %v4577
    %4841 = vmatprep.subr.bf16.mxu0 %v4576
    %4842 = vmatpush1.bf16.msra.mxu0 %v4575
    %4843 = vmatprep.subr.bf16.mxu0 %v4574
    %4844 = vmatpush1.bf16.msra.mxu0 %v4573
    %4845 = vmatprep.subr.bf16.mxu0 %v4604
    %4846 = vmatpush2.bf16.msra.mxu0 %v4603
    %4847 = vmatprep.subr.bf16.mxu0 %v4602
    %4848 = vmatpush2.bf16.msra.mxu0 %v4601
    %4849 = vmatprep.subr.bf16.mxu0 %v4600
    %4850 = vmatpush2.bf16.msra.mxu0 %v4599
    %4851 = vmatprep.subr.bf16.mxu0 %v4598
    %4852 = vmatpush2.bf16.msra.mxu0 %v4597
    %4853 = vmatprep.subr.bf16.mxu0 %v4596
    %4854 = vmatpush2.bf16.msra.mxu0 %v4595
    %4855 = vmatprep.subr.bf16.mxu0 %v4594
    %4856 = vmatpush2.bf16.msra.mxu0 %v4593
    %4857 = vmatprep.subr.bf16.mxu0 %v4592
    %4858 = vmatpush2.bf16.msra.mxu0 %v4591
    %4859 = vmatprep.subr.bf16.mxu0 %v4590
    %4860 = vmatpush2.bf16.msra.mxu0 %v4589
    %4861 = vmatprep.mubr.bf16.mxu0 %v4174
    %4862 = vmatmul.mubr.bf16.gmra.mxu0 %v4173
    %v4863 = vpop.f32.mrf.mxu0
    %v4864 = vadd.f32 0.0, %v4863
    %v4865 = vpop.f32.mrf.mxu0
    %v4866 = vadd.f32 0.0, %v4865
    %v4867 = vpop.f32.mrf.mxu0
    %v4868 = vadd.f32 0.0, %v4867
    %v4869 = vpop.f32.mrf.mxu0
    %v4870 = vadd.f32 0.0, %v4869
    %4871 = vmatprep.mubr.bf16.mxu0 %v4182
    %4872 = vmatmul.mubr.bf16.gmra.mxu0 %v4181
    %v4873 = vpop.f32.mrf.mxu0
    %v4874 = vadd.f32 0.0, %v4873
    %v4875 = vpop.f32.mrf.mxu0
    %v4876 = vadd.f32 0.0, %v4875
    %v4877 = vpop.f32.mrf.mxu0
    %v4878 = vadd.f32 0.0, %v4877
    %v4879 = vpop.f32.mrf.mxu0
    %v4880 = vadd.f32 0.0, %v4879
    %4881 = vdwg.mxu0
    %4882 = vmatprep.subr.bf16.mxu0 %v4620
    %4883 = vmatpush1.bf16.msra.mxu0 %v4619
    %4884 = vmatprep.subr.bf16.mxu0 %v4618
    %4885 = vmatpush1.bf16.msra.mxu0 %v4617
    %4886 = vmatprep.subr.bf16.mxu0 %v4616
    %4887 = vmatpush1.bf16.msra.mxu0 %v4615
    %4888 = vmatprep.subr.bf16.mxu0 %v4614
    %4889 = vmatpush1.bf16.msra.mxu0 %v4613
    %4890 = vmatprep.subr.bf16.mxu0 %v4612
    %4891 = vmatpush1.bf16.msra.mxu0 %v4611
    %4892 = vmatprep.subr.bf16.mxu0 %v4610
    %4893 = vmatpush1.bf16.msra.mxu0 %v4609
    %4894 = vmatprep.subr.bf16.mxu0 %v4608
    %4895 = vmatpush1.bf16.msra.mxu0 %v4607
    %4896 = vmatprep.subr.bf16.mxu0 %v4606
    %4897 = vmatpush1.bf16.msra.mxu0 %v4605
    %4898 = vmatprep.subr.bf16.mxu0 %v4636
    %4899 = vmatpush2.bf16.msra.mxu0 %v4635
    %4900 = vmatprep.subr.bf16.mxu0 %v4634
    %4901 = vmatpush2.bf16.msra.mxu0 %v4633
    %4902 = vmatprep.subr.bf16.mxu0 %v4632
    %4903 = vmatpush2.bf16.msra.mxu0 %v4631
    %4904 = vmatprep.subr.bf16.mxu0 %v4630
    %4905 = vmatpush2.bf16.msra.mxu0 %v4629
    %4906 = vmatprep.subr.bf16.mxu0 %v4628
    %4907 = vmatpush2.bf16.msra.mxu0 %v4627
    %4908 = vmatprep.subr.bf16.mxu0 %v4626
    %4909 = vmatpush2.bf16.msra.mxu0 %v4625
    %4910 = vmatprep.subr.bf16.mxu0 %v4624
    %4911 = vmatpush2.bf16.msra.mxu0 %v4623
    %4912 = vmatprep.subr.bf16.mxu0 %v4622
    %4913 = vmatpush2.bf16.msra.mxu0 %v4621
    %4914 = vmatprep.mubr.bf16.mxu0 %v4176
    %4915 = vmatmul.mubr.bf16.gmra.mxu0 %v4175
    %v4916 = vpop.f32.mrf.mxu0
    %v4917 = vadd.f32 %v4864, %v4916
    %v4918 = vpop.f32.mrf.mxu0
    %v4919 = vadd.f32 %v4866, %v4918
    %v4920 = vpop.f32.mrf.mxu0
    %v4921 = vadd.f32 %v4868, %v4920
    %v4922 = vpop.f32.mrf.mxu0
    %v4923 = vadd.f32 %v4870, %v4922
    %4924 = vmatprep.mubr.bf16.mxu0 %v4184
    %4925 = vmatmul.mubr.bf16.gmra.mxu0 %v4183
    %v4926 = vpop.f32.mrf.mxu0
    %v4927 = vadd.f32 %v4874, %v4926
    %v4928 = vpop.f32.mrf.mxu0
    %v4929 = vadd.f32 %v4876, %v4928
    %v4930 = vpop.f32.mrf.mxu0
    %v4931 = vadd.f32 %v4878, %v4930
    %v4932 = vpop.f32.mrf.mxu0
    %v4933 = vadd.f32 %v4880, %v4932
    %4934 = vdwg.mxu0
    %4935 = vmatprep.subr.bf16.mxu0 %v4652
    %4936 = vmatpush1.bf16.msra.mxu0 %v4651
    %4937 = vmatprep.subr.bf16.mxu0 %v4650
    %4938 = vmatpush1.bf16.msra.mxu0 %v4649
    %4939 = vmatprep.subr.bf16.mxu0 %v4648
    %4940 = vmatpush1.bf16.msra.mxu0 %v4647
    %4941 = vmatprep.subr.bf16.mxu0 %v4646
    %4942 = vmatpush1.bf16.msra.mxu0 %v4645
    %4943 = vmatprep.subr.bf16.mxu0 %v4644
    %4944 = vmatpush1.bf16.msra.mxu0 %v4643
    %4945 = vmatprep.subr.bf16.mxu0 %v4642
    %4946 = vmatpush1.bf16.msra.mxu0 %v4641
    %4947 = vmatprep.subr.bf16.mxu0 %v4640
    %4948 = vmatpush1.bf16.msra.mxu0 %v4639
    %4949 = vmatprep.subr.bf16.mxu0 %v4638
    %4950 = vmatpush1.bf16.msra.mxu0 %v4637
    %4951 = vmatprep.subr.bf16.mxu0 %v4668
    %4952 = vmatpush2.bf16.msra.mxu0 %v4667
    %4953 = vmatprep.subr.bf16.mxu0 %v4666
    %4954 = vmatpush2.bf16.msra.mxu0 %v4665
    %4955 = vmatprep.subr.bf16.mxu0 %v4664
    %4956 = vmatpush2.bf16.msra.mxu0 %v4663
    %4957 = vmatprep.subr.bf16.mxu0 %v4662
    %4958 = vmatpush2.bf16.msra.mxu0 %v4661
    %4959 = vmatprep.subr.bf16.mxu0 %v4660
    %4960 = vmatpush2.bf16.msra.mxu0 %v4659
    %4961 = vmatprep.subr.bf16.mxu0 %v4658
    %4962 = vmatpush2.bf16.msra.mxu0 %v4657
    %4963 = vmatprep.subr.bf16.mxu0 %v4656
    %4964 = vmatpush2.bf16.msra.mxu0 %v4655
    %4965 = vmatprep.subr.bf16.mxu0 %v4654
    %4966 = vmatpush2.bf16.msra.mxu0 %v4653
    %4967 = vmatprep.mubr.bf16.mxu0 %v4178
    %4968 = vmatmul.mubr.bf16.gmra.mxu0 %v4177
    %v4969 = vpop.f32.mrf.mxu0
    %v4970 = vadd.f32 %v4917, %v4969
    %v4971 = vpop.f32.mrf.mxu0
    %v4972 = vadd.f32 %v4919, %v4971
    %v4973 = vpop.f32.mrf.mxu0
    %v4974 = vadd.f32 %v4921, %v4973
    %v4975 = vpop.f32.mrf.mxu0
    %v4976 = vadd.f32 %v4923, %v4975
    %4977 = vmatprep.mubr.bf16.mxu0 %v4186
    %4978 = vmatmul.mubr.bf16.gmra.mxu0 %v4185
    %v4979 = vpop.f32.mrf.mxu0
    %v4980 = vadd.f32 %v4927, %v4979
    %v4981 = vpop.f32.mrf.mxu0
    %v4982 = vadd.f32 %v4929, %v4981
    %v4983 = vpop.f32.mrf.mxu0
    %v4984 = vadd.f32 %v4931, %v4983
    %v4985 = vpop.f32.mrf.mxu0
    %v4986 = vadd.f32 %v4933, %v4985
    %4987 = vdwg.mxu0
    %4988 = vmatprep.subr.bf16.mxu0 %v4684
    %4989 = vmatpush1.bf16.msra.mxu0 %v4683
    %4990 = vmatprep.subr.bf16.mxu0 %v4682
    %4991 = vmatpush1.bf16.msra.mxu0 %v4681
    %4992 = vmatprep.subr.bf16.mxu0 %v4680
    %4993 = vmatpush1.bf16.msra.mxu0 %v4679
    %4994 = vmatprep.subr.bf16.mxu0 %v4678
    %4995 = vmatpush1.bf16.msra.mxu0 %v4677
    %4996 = vmatprep.subr.bf16.mxu0 %v4676
    %4997 = vmatpush1.bf16.msra.mxu0 %v4675
    %4998 = vmatprep.subr.bf16.mxu0 %v4674
    %4999 = vmatpush1.bf16.msra.mxu0 %v4673
    %5000 = vmatprep.subr.bf16.mxu0 %v4672
    %5001 = vmatpush1.bf16.msra.mxu0 %v4671
    %5002 = vmatprep.subr.bf16.mxu0 %v4670
    %5003 = vmatpush1.bf16.msra.mxu0 %v4669
    %5004 = vmatprep.subr.bf16.mxu0 %v4700
    %5005 = vmatpush2.bf16.msra.mxu0 %v4699
    %5006 = vmatprep.subr.bf16.mxu0 %v4698
    %5007 = vmatpush2.bf16.msra.mxu0 %v4697
    %5008 = vmatprep.subr.bf16.mxu0 %v4696
    %5009 = vmatpush2.bf16.msra.mxu0 %v4695
    %5010 = vmatprep.subr.bf16.mxu0 %v4694
    %5011 = vmatpush2.bf16.msra.mxu0 %v4693
    %5012 = vmatprep.subr.bf16.mxu0 %v4692
    %5013 = vmatpush2.bf16.msra.mxu0 %v4691
    %5014 = vmatprep.subr.bf16.mxu0 %v4690
    %5015 = vmatpush2.bf16.msra.mxu0 %v4689
    %5016 = vmatprep.subr.bf16.mxu0 %v4688
    %5017 = vmatpush2.bf16.msra.mxu0 %v4687
    %5018 = vmatprep.subr.bf16.mxu0 %v4686
    %5019 = vmatpush2.bf16.msra.mxu0 %v4685
    %5020 = vmatprep.mubr.bf16.mxu0 %v4180
    %5021 = vmatmul.mubr.bf16.gmra.mxu0 %v4179
    %v5022 = vpop.f32.mrf.mxu0
    %v5023 = vadd.f32 %v4970, %v5022
    %v5024 = vpop.f32.mrf.mxu0
    %v5025 = vadd.f32 %v4972, %v5024
    %v5026 = vpop.f32.mrf.mxu0
    %v5027 = vadd.f32 %v4974, %v5026
    %v5028 = vpop.f32.mrf.mxu0
    %v5029 = vadd.f32 %v4976, %v5028
    %5030 = vmatprep.mubr.bf16.mxu0 %v4188
    %5031 = vmatmul.mubr.bf16.gmra.mxu0 %v4187
    %v5032 = vpop.f32.mrf.mxu0
    %v5033 = vadd.f32 %v4980, %v5032
    %v5034 = vpop.f32.mrf.mxu0
    %v5035 = vadd.f32 %v4982, %v5034
    %v5036 = vpop.f32.mrf.mxu0
    %v5037 = vadd.f32 %v4984, %v5036
    %v5038 = vpop.f32.mrf.mxu0
    %v5039 = vadd.f32 %v4986, %v5038
    %5040 = vdwg.mxu0
    %v5041 = vadd.f32 %v2043, %v5023
    %v5042 = vadd.f32 %v2044, %v5025
    %v5043 = vadd.f32 %v2045, %v5027
    %v5044 = vadd.f32 %v2046, %v5029
    %v5045 = vadd.f32 %v2047, %v5033
    %v5046 = vadd.f32 %v2048, %v5035
    %v5047 = vadd.f32 %v2049, %v5037
    %v5048 = vadd.f32 %v2050, %v5039
    %v5049 = vld [vmem:[%s16] sm:$0x3]
    %v5051 = vlaneseq
    %v5052 = vshrl.u32 %v5051, 7
    %v5053 = vsub.s32 0, %v5052
    %v5054 = vrot.slane %v5049, %v5053
    %v5055 = vlaneseq
    %v5056 = vshrl.u32 %v5055, 7
    %v5057 = vsub.s32 1, %v5056
    %v5058 = vrot.slane %v5049, %v5057
    %v5061 = vadd.f32 %v5041, %v5054
    %v5062 = vadd.f32 %v5042, %v5058
    %v5063 = vadd.f32 %v5043, %v5054
    %v5064 = vadd.f32 %v5044, %v5058
    %v5065 = vadd.f32 %v5045, %v5054
    %v5066 = vadd.f32 %v5046, %v5058
    %v5067 = vadd.f32 %v5047, %v5054
    %v5068 = vadd.f32 %v5048, %v5058
    %s5069 = scalar_lea.vmem %s5, 2
    %v5070 = vld [vmem:[%s5069] sm:$0x3]
    %s5071 = scalar_lea.vmem %s6, 2
    %v5072 = vld [vmem:[%s5071] sm:$0x3]
    %v5073 = vadd.f32 %v5061, %v5062
    %5074 = vadd.xlane.f32.xlu0 %v5073
    %v5075 = vpop.xlane.xlu0 %5074
    %v5076 = vadd.f32 %v5063, %v5064
    %5077 = vadd.xlane.f32.xlu0 %v5076
    %v5078 = vpop.xlane.xlu0 %5077
    %v5079 = vadd.f32 %v5065, %v5066
    %5080 = vadd.xlane.f32.xlu0 %v5079
    %v5081 = vpop.xlane.xlu0 %5080
    %v5082 = vadd.f32 %v5067, %v5068
    %5083 = vadd.xlane.f32.xlu0 %v5082
    %v5084 = vpop.xlane.xlu0 %5083
    %v5085 = vmul.f32 %v5075, %v302
    %v5086 = vmul.f32 %v5078, %v302
    %v5087 = vmul.f32 %v5081, %v302
    %v5088 = vmul.f32 %v5084, %v302
    %v5089 = vsub.f32 %v5061, %v5085
    %v5090 = vsub.f32 %v5062, %v5085
    %v5091 = vsub.f32 %v5063, %v5086
    %v5092 = vsub.f32 %v5064, %v5086
    %v5093 = vsub.f32 %v5065, %v5087
    %v5094 = vsub.f32 %v5066, %v5087
    %v5095 = vsub.f32 %v5067, %v5088
    %v5096 = vsub.f32 %v5068, %v5088
    %v5097 = vmul.f32 %v5089, %v5089
    %v5098 = vmul.f32 %v5090, %v5090
    %v5099 = vmul.f32 %v5091, %v5091
    %v5100 = vmul.f32 %v5092, %v5092
    %v5101 = vmul.f32 %v5093, %v5093
    %v5102 = vmul.f32 %v5094, %v5094
    %v5103 = vmul.f32 %v5095, %v5095
    %v5104 = vmul.f32 %v5096, %v5096
    %v5105 = vadd.f32 %v5097, %v5098
    %5106 = vadd.xlane.f32.xlu0 %v5105
    %v5107 = vpop.xlane.xlu0 %5106
    %v5108 = vadd.f32 %v5099, %v5100
    %5109 = vadd.xlane.f32.xlu0 %v5108
    %v5110 = vpop.xlane.xlu0 %5109
    %v5111 = vadd.f32 %v5101, %v5102
    %5112 = vadd.xlane.f32.xlu0 %v5111
    %v5113 = vpop.xlane.xlu0 %5112
    %v5114 = vadd.f32 %v5103, %v5104
    %5115 = vadd.xlane.f32.xlu0 %v5114
    %v5116 = vpop.xlane.xlu0 %5115
    %v5117 = vmul.f32 %v5107, %v302
    %v5118 = vmul.f32 %v5110, %v302
    %v5119 = vmul.f32 %v5113, %v302
    %v5120 = vmul.f32 %v5116, %v302
    %v5121 = vadd.f32 %v5117, 1e-05
    %v5122 = vadd.f32 %v5118, 1e-05
    %v5123 = vadd.f32 %v5119, 1e-05
    %v5124 = vadd.f32 %v5120, 1e-05
    %v5125 = vrsqrt.pop %v5121
    %v5126 = vrsqrt.pop %v5122
    %v5127 = vrsqrt.pop %v5123
    %v5128 = vrsqrt.pop %v5124
    %v5129 = vmul.f32 %v5089, %v5125
    %v5130 = vmul.f32 %v5090, %v5125
    %v5131 = vmul.f32 %v5091, %v5126
    %v5132 = vmul.f32 %v5092, %v5126
    %v5133 = vmul.f32 %v5093, %v5127
    %v5134 = vmul.f32 %v5094, %v5127
    %v5135 = vmul.f32 %v5095, %v5128
    %v5136 = vmul.f32 %v5096, %v5128
    %v5138 = vlaneseq
    %v5139 = vshrl.u32 %v5138, 7
    %v5140 = vsub.s32 0, %v5139
    %v5141 = vrot.slane %v5070, %v5140
    %v5142 = vlaneseq
    %v5143 = vshrl.u32 %v5142, 7
    %v5144 = vsub.s32 1, %v5143
    %v5145 = vrot.slane %v5070, %v5144
    %v5148 = vmul.f32 %v5129, %v5141
    %v5149 = vmul.f32 %v5130, %v5145
    %v5150 = vmul.f32 %v5131, %v5141
    %v5151 = vmul.f32 %v5132, %v5145
    %v5152 = vmul.f32 %v5133, %v5141
    %v5153 = vmul.f32 %v5134, %v5145
    %v5154 = vmul.f32 %v5135, %v5141
    %v5155 = vmul.f32 %v5136, %v5145
    %v5157 = vlaneseq
    %v5158 = vshrl.u32 %v5157, 7
    %v5159 = vsub.s32 0, %v5158
    %v5160 = vrot.slane %v5072, %v5159
    %v5161 = vlaneseq
    %v5162 = vshrl.u32 %v5161, 7
    %v5163 = vsub.s32 1, %v5162
    %v5164 = vrot.slane %v5072, %v5163
    %v5167 = vadd.f32 %v5148, %v5160
    %v5168 = vadd.f32 %v5149, %v5164
    %v5169 = vadd.f32 %v5150, %v5160
    %v5170 = vadd.f32 %v5151, %v5164
    %v5171 = vadd.f32 %v5152, %v5160
    %v5172 = vadd.f32 %v5153, %v5164
    %v5173 = vadd.f32 %v5154, %v5160
    %v5174 = vadd.f32 %v5155, %v5164
    %s5175 = scalar_lea.vmem [#allocation2], 768
    %v5176 = vld [vmem:[%s5175] sm:$0xff]
    %v5177 = vld [vmem:[%s5175 + $0x8] sm:$0xff]
    %v5178 = vld [vmem:[%s5175 + $0x10] sm:$0xff]
    %v5179 = vld [vmem:[%s5175 + $0x18] sm:$0xff]
    %v5180 = vld [vmem:[%s5175 + $0x20] sm:$0xff]
    %v5181 = vld [vmem:[%s5175 + $0x28] sm:$0xff]
    %v5182 = vld [vmem:[%s5175 + $0x30] sm:$0xff]
    %v5183 = vld [vmem:[%s5175 + $0x38] sm:$0xff]
    %v5184 = vld [vmem:[%s5175 + $0x40] sm:$0xff]
    %v5185 = vld [vmem:[%s5175 + $0x48] sm:$0xff]
    %v5186 = vld [vmem:[%s5175 + $0x50] sm:$0xff]
    %v5187 = vld [vmem:[%s5175 + $0x58] sm:$0xff]
    %v5188 = vld [vmem:[%s5175 + $0x60] sm:$0xff]
    %v5189 = vld [vmem:[%s5175 + $0x68] sm:$0xff]
    %v5190 = vld [vmem:[%s5175 + $0x70] sm:$0xff]
    %v5191 = vld [vmem:[%s5175 + $0x78] sm:$0xff]
    %v5192 = vld [vmem:[%s5175 + $0x80] sm:$0xff]
    %v5193 = vld [vmem:[%s5175 + $0x88] sm:$0xff]
    %v5194 = vld [vmem:[%s5175 + $0x90] sm:$0xff]
    %v5195 = vld [vmem:[%s5175 + $0x98] sm:$0xff]
    %v5196 = vld [vmem:[%s5175 + $0xa0] sm:$0xff]
    %v5197 = vld [vmem:[%s5175 + $0xa8] sm:$0xff]
    %v5198 = vld [vmem:[%s5175 + $0xb0] sm:$0xff]
    %v5199 = vld [vmem:[%s5175 + $0xb8] sm:$0xff]
    %v5200 = vld [vmem:[%s5175 + $0xc0] sm:$0xff]
    %v5201 = vld [vmem:[%s5175 + $0xc8] sm:$0xff]
    %v5202 = vld [vmem:[%s5175 + $0xd0] sm:$0xff]
    %v5203 = vld [vmem:[%s5175 + $0xd8] sm:$0xff]
    %v5204 = vld [vmem:[%s5175 + $0xe0] sm:$0xff]
    %v5205 = vld [vmem:[%s5175 + $0xe8] sm:$0xff]
    %v5206 = vld [vmem:[%s5175 + $0xf0] sm:$0xff]
    %v5207 = vld [vmem:[%s5175 + $0xf8] sm:$0xff]
    %v5208 = vld [vmem:[%s5175 + $0x100] sm:$0xff]
    %v5209 = vld [vmem:[%s5175 + $0x108] sm:$0xff]
    %v5210 = vld [vmem:[%s5175 + $0x110] sm:$0xff]
    %v5211 = vld [vmem:[%s5175 + $0x118] sm:$0xff]
    %v5212 = vld [vmem:[%s5175 + $0x120] sm:$0xff]
    %v5213 = vld [vmem:[%s5175 + $0x128] sm:$0xff]
    %v5214 = vld [vmem:[%s5175 + $0x130] sm:$0xff]
    %v5215 = vld [vmem:[%s5175 + $0x138] sm:$0xff]
    %v5216 = vld [vmem:[%s5175 + $0x140] sm:$0xff]
    %v5217 = vld [vmem:[%s5175 + $0x148] sm:$0xff]
    %v5218 = vld [vmem:[%s5175 + $0x150] sm:$0xff]
    %v5219 = vld [vmem:[%s5175 + $0x158] sm:$0xff]
    %v5220 = vld [vmem:[%s5175 + $0x160] sm:$0xff]
    %v5221 = vld [vmem:[%s5175 + $0x168] sm:$0xff]
    %v5222 = vld [vmem:[%s5175 + $0x170] sm:$0xff]
    %v5223 = vld [vmem:[%s5175 + $0x178] sm:$0xff]
    %v5224 = vld [vmem:[%s5175 + $0x180] sm:$0xff]
    %v5225 = vld [vmem:[%s5175 + $0x188] sm:$0xff]
    %v5226 = vld [vmem:[%s5175 + $0x190] sm:$0xff]
    %v5227 = vld [vmem:[%s5175 + $0x198] sm:$0xff]
    %v5228 = vld [vmem:[%s5175 + $0x1a0] sm:$0xff]
    %v5229 = vld [vmem:[%s5175 + $0x1a8] sm:$0xff]
    %v5230 = vld [vmem:[%s5175 + $0x1b0] sm:$0xff]
    %v5231 = vld [vmem:[%s5175 + $0x1b8] sm:$0xff]
    %v5232 = vld [vmem:[%s5175 + $0x1c0] sm:$0xff]
    %v5233 = vld [vmem:[%s5175 + $0x1c8] sm:$0xff]
    %v5234 = vld [vmem:[%s5175 + $0x1d0] sm:$0xff]
    %v5235 = vld [vmem:[%s5175 + $0x1d8] sm:$0xff]
    %v5236 = vld [vmem:[%s5175 + $0x1e0] sm:$0xff]
    %v5237 = vld [vmem:[%s5175 + $0x1e8] sm:$0xff]
    %v5238 = vld [vmem:[%s5175 + $0x1f0] sm:$0xff]
    %v5239 = vld [vmem:[%s5175 + $0x1f8] sm:$0xff]
    %v5240 = vld [vmem:[%s5175 + $0x200] sm:$0xff]
    %v5241 = vld [vmem:[%s5175 + $0x208] sm:$0xff]
    %v5242 = vld [vmem:[%s5175 + $0x210] sm:$0xff]
    %v5243 = vld [vmem:[%s5175 + $0x218] sm:$0xff]
    %v5244 = vld [vmem:[%s5175 + $0x220] sm:$0xff]
    %v5245 = vld [vmem:[%s5175 + $0x228] sm:$0xff]
    %v5246 = vld [vmem:[%s5175 + $0x230] sm:$0xff]
    %v5247 = vld [vmem:[%s5175 + $0x238] sm:$0xff]
    %v5248 = vld [vmem:[%s5175 + $0x240] sm:$0xff]
    %v5249 = vld [vmem:[%s5175 + $0x248] sm:$0xff]
    %v5250 = vld [vmem:[%s5175 + $0x250] sm:$0xff]
    %v5251 = vld [vmem:[%s5175 + $0x258] sm:$0xff]
    %v5252 = vld [vmem:[%s5175 + $0x260] sm:$0xff]
    %v5253 = vld [vmem:[%s5175 + $0x268] sm:$0xff]
    %v5254 = vld [vmem:[%s5175 + $0x270] sm:$0xff]
    %v5255 = vld [vmem:[%s5175 + $0x278] sm:$0xff]
    %v5256 = vld [vmem:[%s5175 + $0x280] sm:$0xff]
    %v5257 = vld [vmem:[%s5175 + $0x288] sm:$0xff]
    %v5258 = vld [vmem:[%s5175 + $0x290] sm:$0xff]
    %v5259 = vld [vmem:[%s5175 + $0x298] sm:$0xff]
    %v5260 = vld [vmem:[%s5175 + $0x2a0] sm:$0xff]
    %v5261 = vld [vmem:[%s5175 + $0x2a8] sm:$0xff]
    %v5262 = vld [vmem:[%s5175 + $0x2b0] sm:$0xff]
    %v5263 = vld [vmem:[%s5175 + $0x2b8] sm:$0xff]
    %v5264 = vld [vmem:[%s5175 + $0x2c0] sm:$0xff]
    %v5265 = vld [vmem:[%s5175 + $0x2c8] sm:$0xff]
    %v5266 = vld [vmem:[%s5175 + $0x2d0] sm:$0xff]
    %v5267 = vld [vmem:[%s5175 + $0x2d8] sm:$0xff]
    %v5268 = vld [vmem:[%s5175 + $0x2e0] sm:$0xff]
    %v5269 = vld [vmem:[%s5175 + $0x2e8] sm:$0xff]
    %v5270 = vld [vmem:[%s5175 + $0x2f0] sm:$0xff]
    %v5271 = vld [vmem:[%s5175 + $0x2f8] sm:$0xff]
    %v5272 = vpack.c.bf16 %v5169, %v5167
    %v5273 = vpack.c.bf16 %v5170, %v5168
    %v5274 = vpack.c.bf16 %v5173, %v5171
    %v5275 = vpack.c.bf16 %v5174, %v5172
    %s5276 = scalar_lea.vmem %s8, 6
    %v5277 = vld [vmem:[%s5276] sm:$0x3f]
    %v5279 = vlaneseq
    %v5280 = vshrl.u32 %v5279, 7
    %v5281 = vsub.s32 0, %v5280
    %v5282 = vrot.slane %v5277, %v5281
    %v5283 = vlaneseq
    %v5284 = vshrl.u32 %v5283, 7
    %v5285 = vsub.s32 1, %v5284
    %v5286 = vrot.slane %v5277, %v5285
    %v5287 = vlaneseq
    %v5288 = vshrl.u32 %v5287, 7
    %v5289 = vsub.s32 2, %v5288
    %v5290 = vrot.slane %v5277, %v5289
    %v5291 = vlaneseq
    %v5292 = vshrl.u32 %v5291, 7
    %v5293 = vsub.s32 3, %v5292
    %v5294 = vrot.slane %v5277, %v5293
    %v5295 = vlaneseq
    %v5296 = vshrl.u32 %v5295, 7
    %v5297 = vsub.s32 4, %v5296
    %v5298 = vrot.slane %v5277, %v5297
    %v5299 = vlaneseq
    %v5300 = vshrl.u32 %v5299, 7
    %v5301 = vsub.s32 5, %v5300
    %v5302 = vrot.slane %v5277, %v5301
    %v5405 = vunpack.c.l.b16 %v5176
    %v5406 = vunpack.c.h.b16 %v5176
    %v5407 = vunpack.c.l.b16 %v5177
    %v5408 = vunpack.c.h.b16 %v5177
    %v5409 = vunpack.c.l.b16 %v5178
    %v5410 = vunpack.c.h.b16 %v5178
    %v5411 = vunpack.c.l.b16 %v5179
    %v5412 = vunpack.c.h.b16 %v5179
    %v5413 = vunpack.c.l.b16 %v5180
    %v5414 = vunpack.c.h.b16 %v5180
    %v5415 = vunpack.c.l.b16 %v5181
    %v5416 = vunpack.c.h.b16 %v5181
    %v5417 = vunpack.c.l.b16 %v5182
    %v5418 = vunpack.c.h.b16 %v5182
    %v5419 = vunpack.c.l.b16 %v5183
    %v5420 = vunpack.c.h.b16 %v5183
    %v5421 = vunpack.c.l.b16 %v5184
    %v5422 = vunpack.c.h.b16 %v5184
    %v5423 = vunpack.c.l.b16 %v5185
    %v5424 = vunpack.c.h.b16 %v5185
    %v5425 = vunpack.c.l.b16 %v5186
    %v5426 = vunpack.c.h.b16 %v5186
    %v5427 = vunpack.c.l.b16 %v5187
    %v5428 = vunpack.c.h.b16 %v5187
    %v5429 = vunpack.c.l.b16 %v5188
    %v5430 = vunpack.c.h.b16 %v5188
    %v5431 = vunpack.c.l.b16 %v5189
    %v5432 = vunpack.c.h.b16 %v5189
    %v5433 = vunpack.c.l.b16 %v5190
    %v5434 = vunpack.c.h.b16 %v5190
    %v5435 = vunpack.c.l.b16 %v5191
    %v5436 = vunpack.c.h.b16 %v5191
    %v5437 = vunpack.c.l.b16 %v5192
    %v5438 = vunpack.c.h.b16 %v5192
    %v5439 = vunpack.c.l.b16 %v5193
    %v5440 = vunpack.c.h.b16 %v5193
    %v5441 = vunpack.c.l.b16 %v5194
    %v5442 = vunpack.c.h.b16 %v5194
    %v5443 = vunpack.c.l.b16 %v5195
    %v5444 = vunpack.c.h.b16 %v5195
    %v5445 = vunpack.c.l.b16 %v5196
    %v5446 = vunpack.c.h.b16 %v5196
    %v5447 = vunpack.c.l.b16 %v5197
    %v5448 = vunpack.c.h.b16 %v5197
    %v5449 = vunpack.c.l.b16 %v5198
    %v5450 = vunpack.c.h.b16 %v5198
    %v5451 = vunpack.c.l.b16 %v5199
    %v5452 = vunpack.c.h.b16 %v5199
    %v5453 = vunpack.c.l.b16 %v5200
    %v5454 = vunpack.c.h.b16 %v5200
    %v5455 = vunpack.c.l.b16 %v5201
    %v5456 = vunpack.c.h.b16 %v5201
    %v5457 = vunpack.c.l.b16 %v5202
    %v5458 = vunpack.c.h.b16 %v5202
    %v5459 = vunpack.c.l.b16 %v5203
    %v5460 = vunpack.c.h.b16 %v5203
    %v5461 = vunpack.c.l.b16 %v5204
    %v5462 = vunpack.c.h.b16 %v5204
    %v5463 = vunpack.c.l.b16 %v5205
    %v5464 = vunpack.c.h.b16 %v5205
    %v5465 = vunpack.c.l.b16 %v5206
    %v5466 = vunpack.c.h.b16 %v5206
    %v5467 = vunpack.c.l.b16 %v5207
    %v5468 = vunpack.c.h.b16 %v5207
    %v5469 = vunpack.c.l.b16 %v5208
    %v5470 = vunpack.c.h.b16 %v5208
    %v5471 = vunpack.c.l.b16 %v5209
    %v5472 = vunpack.c.h.b16 %v5209
    %v5473 = vunpack.c.l.b16 %v5210
    %v5474 = vunpack.c.h.b16 %v5210
    %v5475 = vunpack.c.l.b16 %v5211
    %v5476 = vunpack.c.h.b16 %v5211
    %v5477 = vunpack.c.l.b16 %v5212
    %v5478 = vunpack.c.h.b16 %v5212
    %v5479 = vunpack.c.l.b16 %v5213
    %v5480 = vunpack.c.h.b16 %v5213
    %v5481 = vunpack.c.l.b16 %v5214
    %v5482 = vunpack.c.h.b16 %v5214
    %v5483 = vunpack.c.l.b16 %v5215
    %v5484 = vunpack.c.h.b16 %v5215
    %v5485 = vunpack.c.l.b16 %v5216
    %v5486 = vunpack.c.h.b16 %v5216
    %v5487 = vunpack.c.l.b16 %v5217
    %v5488 = vunpack.c.h.b16 %v5217
    %v5489 = vunpack.c.l.b16 %v5218
    %v5490 = vunpack.c.h.b16 %v5218
    %v5491 = vunpack.c.l.b16 %v5219
    %v5492 = vunpack.c.h.b16 %v5219
    %v5493 = vunpack.c.l.b16 %v5220
    %v5494 = vunpack.c.h.b16 %v5220
    %v5495 = vunpack.c.l.b16 %v5221
    %v5496 = vunpack.c.h.b16 %v5221
    %v5497 = vunpack.c.l.b16 %v5222
    %v5498 = vunpack.c.h.b16 %v5222
    %v5499 = vunpack.c.l.b16 %v5223
    %v5500 = vunpack.c.h.b16 %v5223
    %v5501 = vunpack.c.l.b16 %v5224
    %v5502 = vunpack.c.h.b16 %v5224
    %v5503 = vunpack.c.l.b16 %v5225
    %v5504 = vunpack.c.h.b16 %v5225
    %v5505 = vunpack.c.l.b16 %v5226
    %v5506 = vunpack.c.h.b16 %v5226
    %v5507 = vunpack.c.l.b16 %v5227
    %v5508 = vunpack.c.h.b16 %v5227
    %v5509 = vunpack.c.l.b16 %v5228
    %v5510 = vunpack.c.h.b16 %v5228
    %v5511 = vunpack.c.l.b16 %v5229
    %v5512 = vunpack.c.h.b16 %v5229
    %v5513 = vunpack.c.l.b16 %v5230
    %v5514 = vunpack.c.h.b16 %v5230
    %v5515 = vunpack.c.l.b16 %v5231
    %v5516 = vunpack.c.h.b16 %v5231
    %v5517 = vunpack.c.l.b16 %v5232
    %v5518 = vunpack.c.h.b16 %v5232
    %v5519 = vunpack.c.l.b16 %v5233
    %v5520 = vunpack.c.h.b16 %v5233
    %v5521 = vunpack.c.l.b16 %v5234
    %v5522 = vunpack.c.h.b16 %v5234
    %v5523 = vunpack.c.l.b16 %v5235
    %v5524 = vunpack.c.h.b16 %v5235
    %v5525 = vunpack.c.l.b16 %v5236
    %v5526 = vunpack.c.h.b16 %v5236
    %v5527 = vunpack.c.l.b16 %v5237
    %v5528 = vunpack.c.h.b16 %v5237
    %v5529 = vunpack.c.l.b16 %v5238
    %v5530 = vunpack.c.h.b16 %v5238
    %v5531 = vunpack.c.l.b16 %v5239
    %v5532 = vunpack.c.h.b16 %v5239
    %v5533 = vunpack.c.l.b16 %v5240
    %v5534 = vunpack.c.h.b16 %v5240
    %v5535 = vunpack.c.l.b16 %v5241
    %v5536 = vunpack.c.h.b16 %v5241
    %v5537 = vunpack.c.l.b16 %v5242
    %v5538 = vunpack.c.h.b16 %v5242
    %v5539 = vunpack.c.l.b16 %v5243
    %v5540 = vunpack.c.h.b16 %v5243
    %v5541 = vunpack.c.l.b16 %v5244
    %v5542 = vunpack.c.h.b16 %v5244
    %v5543 = vunpack.c.l.b16 %v5245
    %v5544 = vunpack.c.h.b16 %v5245
    %v5545 = vunpack.c.l.b16 %v5246
    %v5546 = vunpack.c.h.b16 %v5246
    %v5547 = vunpack.c.l.b16 %v5247
    %v5548 = vunpack.c.h.b16 %v5247
    %v5549 = vunpack.c.l.b16 %v5248
    %v5550 = vunpack.c.h.b16 %v5248
    %v5551 = vunpack.c.l.b16 %v5249
    %v5552 = vunpack.c.h.b16 %v5249
    %v5553 = vunpack.c.l.b16 %v5250
    %v5554 = vunpack.c.h.b16 %v5250
    %v5555 = vunpack.c.l.b16 %v5251
    %v5556 = vunpack.c.h.b16 %v5251
    %v5557 = vunpack.c.l.b16 %v5252
    %v5558 = vunpack.c.h.b16 %v5252
    %v5559 = vunpack.c.l.b16 %v5253
    %v5560 = vunpack.c.h.b16 %v5253
    %v5561 = vunpack.c.l.b16 %v5254
    %v5562 = vunpack.c.h.b16 %v5254
    %v5563 = vunpack.c.l.b16 %v5255
    %v5564 = vunpack.c.h.b16 %v5255
    %v5565 = vunpack.c.l.b16 %v5256
    %v5566 = vunpack.c.h.b16 %v5256
    %v5567 = vunpack.c.l.b16 %v5257
    %v5568 = vunpack.c.h.b16 %v5257
    %v5569 = vunpack.c.l.b16 %v5258
    %v5570 = vunpack.c.h.b16 %v5258
    %v5571 = vunpack.c.l.b16 %v5259
    %v5572 = vunpack.c.h.b16 %v5259
    %v5573 = vunpack.c.l.b16 %v5260
    %v5574 = vunpack.c.h.b16 %v5260
    %v5575 = vunpack.c.l.b16 %v5261
    %v5576 = vunpack.c.h.b16 %v5261
    %v5577 = vunpack.c.l.b16 %v5262
    %v5578 = vunpack.c.h.b16 %v5262
    %v5579 = vunpack.c.l.b16 %v5263
    %v5580 = vunpack.c.h.b16 %v5263
    %v5581 = vunpack.c.l.b16 %v5264
    %v5582 = vunpack.c.h.b16 %v5264
    %v5583 = vunpack.c.l.b16 %v5265
    %v5584 = vunpack.c.h.b16 %v5265
    %v5585 = vunpack.c.l.b16 %v5266
    %v5586 = vunpack.c.h.b16 %v5266
    %v5587 = vunpack.c.l.b16 %v5267
    %v5588 = vunpack.c.h.b16 %v5267
    %v5589 = vunpack.c.l.b16 %v5268
    %v5590 = vunpack.c.h.b16 %v5268
    %v5591 = vunpack.c.l.b16 %v5269
    %v5592 = vunpack.c.h.b16 %v5269
    %v5593 = vunpack.c.l.b16 %v5270
    %v5594 = vunpack.c.h.b16 %v5270
    %v5595 = vunpack.c.l.b16 %v5271
    %v5596 = vunpack.c.h.b16 %v5271
    %v5597 = vpack.c.b16 %v5411, %v5405
    %v5598 = vpack.c.b16 %v5412, %v5406
    %v5599 = vpack.c.b16 %v5413, %v5407
    %v5600 = vpack.c.b16 %v5414, %v5408
    %v5601 = vpack.c.b16 %v5415, %v5409
    %v5602 = vpack.c.b16 %v5416, %v5410
    %v5603 = vpack.c.b16 %v5423, %v5417
    %v5604 = vpack.c.b16 %v5424, %v5418
    %v5605 = vpack.c.b16 %v5425, %v5419
    %v5606 = vpack.c.b16 %v5426, %v5420
    %v5607 = vpack.c.b16 %v5427, %v5421
    %v5608 = vpack.c.b16 %v5428, %v5422
    %v5609 = vpack.c.b16 %v5435, %v5429
    %v5610 = vpack.c.b16 %v5436, %v5430
    %v5611 = vpack.c.b16 %v5437, %v5431
    %v5612 = vpack.c.b16 %v5438, %v5432
    %v5613 = vpack.c.b16 %v5439, %v5433
    %v5614 = vpack.c.b16 %v5440, %v5434
    %v5615 = vpack.c.b16 %v5447, %v5441
    %v5616 = vpack.c.b16 %v5448, %v5442
    %v5617 = vpack.c.b16 %v5449, %v5443
    %v5618 = vpack.c.b16 %v5450, %v5444
    %v5619 = vpack.c.b16 %v5451, %v5445
    %v5620 = vpack.c.b16 %v5452, %v5446
    %v5621 = vpack.c.b16 %v5459, %v5453
    %v5622 = vpack.c.b16 %v5460, %v5454
    %v5623 = vpack.c.b16 %v5461, %v5455
    %v5624 = vpack.c.b16 %v5462, %v5456
    %v5625 = vpack.c.b16 %v5463, %v5457
    %v5626 = vpack.c.b16 %v5464, %v5458
    %v5627 = vpack.c.b16 %v5471, %v5465
    %v5628 = vpack.c.b16 %v5472, %v5466
    %v5629 = vpack.c.b16 %v5473, %v5467
    %v5630 = vpack.c.b16 %v5474, %v5468
    %v5631 = vpack.c.b16 %v5475, %v5469
    %v5632 = vpack.c.b16 %v5476, %v5470
    %v5633 = vpack.c.b16 %v5483, %v5477
    %v5634 = vpack.c.b16 %v5484, %v5478
    %v5635 = vpack.c.b16 %v5485, %v5479
    %v5636 = vpack.c.b16 %v5486, %v5480
    %v5637 = vpack.c.b16 %v5487, %v5481
    %v5638 = vpack.c.b16 %v5488, %v5482
    %v5639 = vpack.c.b16 %v5495, %v5489
    %v5640 = vpack.c.b16 %v5496, %v5490
    %v5641 = vpack.c.b16 %v5497, %v5491
    %v5642 = vpack.c.b16 %v5498, %v5492
    %v5643 = vpack.c.b16 %v5499, %v5493
    %v5644 = vpack.c.b16 %v5500, %v5494
    %v5645 = vpack.c.b16 %v5507, %v5501
    %v5646 = vpack.c.b16 %v5508, %v5502
    %v5647 = vpack.c.b16 %v5509, %v5503
    %v5648 = vpack.c.b16 %v5510, %v5504
    %v5649 = vpack.c.b16 %v5511, %v5505
    %v5650 = vpack.c.b16 %v5512, %v5506
    %v5651 = vpack.c.b16 %v5519, %v5513
    %v5652 = vpack.c.b16 %v5520, %v5514
    %v5653 = vpack.c.b16 %v5521, %v5515
    %v5654 = vpack.c.b16 %v5522, %v5516
    %v5655 = vpack.c.b16 %v5523, %v5517
    %v5656 = vpack.c.b16 %v5524, %v5518
    %v5657 = vpack.c.b16 %v5531, %v5525
    %v5658 = vpack.c.b16 %v5532, %v5526
    %v5659 = vpack.c.b16 %v5533, %v5527
    %v5660 = vpack.c.b16 %v5534, %v5528
    %v5661 = vpack.c.b16 %v5535, %v5529
    %v5662 = vpack.c.b16 %v5536, %v5530
    %v5663 = vpack.c.b16 %v5543, %v5537
    %v5664 = vpack.c.b16 %v5544, %v5538
    %v5665 = vpack.c.b16 %v5545, %v5539
    %v5666 = vpack.c.b16 %v5546, %v5540
    %v5667 = vpack.c.b16 %v5547, %v5541
    %v5668 = vpack.c.b16 %v5548, %v5542
    %v5669 = vpack.c.b16 %v5555, %v5549
    %v5670 = vpack.c.b16 %v5556, %v5550
    %v5671 = vpack.c.b16 %v5557, %v5551
    %v5672 = vpack.c.b16 %v5558, %v5552
    %v5673 = vpack.c.b16 %v5559, %v5553
    %v5674 = vpack.c.b16 %v5560, %v5554
    %v5675 = vpack.c.b16 %v5567, %v5561
    %v5676 = vpack.c.b16 %v5568, %v5562
    %v5677 = vpack.c.b16 %v5569, %v5563
    %v5678 = vpack.c.b16 %v5570, %v5564
    %v5679 = vpack.c.b16 %v5571, %v5565
    %v5680 = vpack.c.b16 %v5572, %v5566
    %v5681 = vpack.c.b16 %v5579, %v5573
    %v5682 = vpack.c.b16 %v5580, %v5574
    %v5683 = vpack.c.b16 %v5581, %v5575
    %v5684 = vpack.c.b16 %v5582, %v5576
    %v5685 = vpack.c.b16 %v5583, %v5577
    %v5686 = vpack.c.b16 %v5584, %v5578
    %v5687 = vpack.c.b16 %v5591, %v5585
    %v5688 = vpack.c.b16 %v5592, %v5586
    %v5689 = vpack.c.b16 %v5593, %v5587
    %v5690 = vpack.c.b16 %v5594, %v5588
    %v5691 = vpack.c.b16 %v5595, %v5589
    %v5692 = vpack.c.b16 %v5596, %v5590
    %5789 = vmatprep.subr.bf16.mxu0 %v5640
    %5790 = vmatpush1.bf16.msra.mxu0 %v5639
    %5791 = vmatprep.subr.bf16.mxu0 %v5634
    %5792 = vmatpush1.bf16.msra.mxu0 %v5633
    %5793 = vmatprep.subr.bf16.mxu0 %v5628
    %5794 = vmatpush1.bf16.msra.mxu0 %v5627
    %5795 = vmatprep.subr.bf16.mxu0 %v5622
    %5796 = vmatpush1.bf16.msra.mxu0 %v5621
    %5797 = vmatprep.subr.bf16.mxu0 %v5616
    %5798 = vmatpush1.bf16.msra.mxu0 %v5615
    %5799 = vmatprep.subr.bf16.mxu0 %v5610
    %5800 = vmatpush1.bf16.msra.mxu0 %v5609
    %5801 = vmatprep.subr.bf16.mxu0 %v5604
    %5802 = vmatpush1.bf16.msra.mxu0 %v5603
    %5803 = vmatprep.subr.bf16.mxu0 %v5598
    %5804 = vmatpush1.bf16.msra.mxu0 %v5597
    %5805 = vmatprep.subr.bf16.mxu0 %v5688
    %5806 = vmatpush2.bf16.msra.mxu0 %v5687
    %5807 = vmatprep.subr.bf16.mxu0 %v5682
    %5808 = vmatpush2.bf16.msra.mxu0 %v5681
    %5809 = vmatprep.subr.bf16.mxu0 %v5676
    %5810 = vmatpush2.bf16.msra.mxu0 %v5675
    %5811 = vmatprep.subr.bf16.mxu0 %v5670
    %5812 = vmatpush2.bf16.msra.mxu0 %v5669
    %5813 = vmatprep.subr.bf16.mxu0 %v5664
    %5814 = vmatpush2.bf16.msra.mxu0 %v5663
    %5815 = vmatprep.subr.bf16.mxu0 %v5658
    %5816 = vmatpush2.bf16.msra.mxu0 %v5657
    %5817 = vmatprep.subr.bf16.mxu0 %v5652
    %5818 = vmatpush2.bf16.msra.mxu0 %v5651
    %5819 = vmatprep.subr.bf16.mxu0 %v5646
    %5820 = vmatpush2.bf16.msra.mxu0 %v5645
    %5821 = vmatprep.mubr.bf16.mxu0 %v5273
    %5822 = vmatmul.mubr.bf16.gmra.mxu0 %v5272
    %v5823 = vpop.f32.mrf.mxu0
    %v5824 = vadd.f32 %v5282, %v5823
    %v5825 = vpop.f32.mrf.mxu0
    %v5826 = vadd.f32 %v5286, %v5825
    %v5827 = vpop.f32.mrf.mxu0
    %v5828 = vadd.f32 %v5282, %v5827
    %v5829 = vpop.f32.mrf.mxu0
    %v5830 = vadd.f32 %v5286, %v5829
    %5831 = vmatprep.mubr.bf16.mxu0 %v5275
    %5832 = vmatmul.mubr.bf16.gmra.mxu0 %v5274
    %v5833 = vpop.f32.mrf.mxu0
    %v5834 = vadd.f32 %v5282, %v5833
    %v5835 = vpop.f32.mrf.mxu0
    %v5836 = vadd.f32 %v5286, %v5835
    %v5837 = vpop.f32.mrf.mxu0
    %v5838 = vadd.f32 %v5282, %v5837
    %v5839 = vpop.f32.mrf.mxu0
    %v5840 = vadd.f32 %v5286, %v5839
    %5841 = vdwg.mxu0
    %5842 = vmatprep.subr.bf16.mxu0 %v5642
    %5843 = vmatpush1.bf16.msra.mxu0 %v5641
    %5844 = vmatprep.subr.bf16.mxu0 %v5636
    %5845 = vmatpush1.bf16.msra.mxu0 %v5635
    %5846 = vmatprep.subr.bf16.mxu0 %v5630
    %5847 = vmatpush1.bf16.msra.mxu0 %v5629
    %5848 = vmatprep.subr.bf16.mxu0 %v5624
    %5849 = vmatpush1.bf16.msra.mxu0 %v5623
    %5850 = vmatprep.subr.bf16.mxu0 %v5618
    %5851 = vmatpush1.bf16.msra.mxu0 %v5617
    %5852 = vmatprep.subr.bf16.mxu0 %v5612
    %5853 = vmatpush1.bf16.msra.mxu0 %v5611
    %5854 = vmatprep.subr.bf16.mxu0 %v5606
    %5855 = vmatpush1.bf16.msra.mxu0 %v5605
    %5856 = vmatprep.subr.bf16.mxu0 %v5600
    %5857 = vmatpush1.bf16.msra.mxu0 %v5599
    %5858 = vmatprep.subr.bf16.mxu0 %v5690
    %5859 = vmatpush2.bf16.msra.mxu0 %v5689
    %5860 = vmatprep.subr.bf16.mxu0 %v5684
    %5861 = vmatpush2.bf16.msra.mxu0 %v5683
    %5862 = vmatprep.subr.bf16.mxu0 %v5678
    %5863 = vmatpush2.bf16.msra.mxu0 %v5677
    %5864 = vmatprep.subr.bf16.mxu0 %v5672
    %5865 = vmatpush2.bf16.msra.mxu0 %v5671
    %5866 = vmatprep.subr.bf16.mxu0 %v5666
    %5867 = vmatpush2.bf16.msra.mxu0 %v5665
    %5868 = vmatprep.subr.bf16.mxu0 %v5660
    %5869 = vmatpush2.bf16.msra.mxu0 %v5659
    %5870 = vmatprep.subr.bf16.mxu0 %v5654
    %5871 = vmatpush2.bf16.msra.mxu0 %v5653
    %5872 = vmatprep.subr.bf16.mxu0 %v5648
    %5873 = vmatpush2.bf16.msra.mxu0 %v5647
    %5874 = vmatprep.mubr.bf16.mxu0 %v5273
    %5875 = vmatmul.mubr.bf16.gmra.mxu0 %v5272
    %v5876 = vpop.f32.mrf.mxu0
    %v5877 = vadd.f32 %v5290, %v5876
    %v5878 = vpop.f32.mrf.mxu0
    %v5879 = vadd.f32 %v5294, %v5878
    %v5880 = vpop.f32.mrf.mxu0
    %v5881 = vadd.f32 %v5290, %v5880
    %v5882 = vpop.f32.mrf.mxu0
    %v5883 = vadd.f32 %v5294, %v5882
    %5884 = vmatprep.mubr.bf16.mxu0 %v5275
    %5885 = vmatmul.mubr.bf16.gmra.mxu0 %v5274
    %v5886 = vpop.f32.mrf.mxu0
    %v5887 = vadd.f32 %v5290, %v5886
    %v5888 = vpop.f32.mrf.mxu0
    %v5889 = vadd.f32 %v5294, %v5888
    %v5890 = vpop.f32.mrf.mxu0
    %v5891 = vadd.f32 %v5290, %v5890
    %v5892 = vpop.f32.mrf.mxu0
    %v5893 = vadd.f32 %v5294, %v5892
    %5894 = vdwg.mxu0
    %5895 = vmatprep.subr.bf16.mxu0 %v5644
    %5896 = vmatpush1.bf16.msra.mxu0 %v5643
    %5897 = vmatprep.subr.bf16.mxu0 %v5638
    %5898 = vmatpush1.bf16.msra.mxu0 %v5637
    %5899 = vmatprep.subr.bf16.mxu0 %v5632
    %5900 = vmatpush1.bf16.msra.mxu0 %v5631
    %5901 = vmatprep.subr.bf16.mxu0 %v5626
    %5902 = vmatpush1.bf16.msra.mxu0 %v5625
    %5903 = vmatprep.subr.bf16.mxu0 %v5620
    %5904 = vmatpush1.bf16.msra.mxu0 %v5619
    %5905 = vmatprep.subr.bf16.mxu0 %v5614
    %5906 = vmatpush1.bf16.msra.mxu0 %v5613
    %5907 = vmatprep.subr.bf16.mxu0 %v5608
    %5908 = vmatpush1.bf16.msra.mxu0 %v5607
    %5909 = vmatprep.subr.bf16.mxu0 %v5602
    %5910 = vmatpush1.bf16.msra.mxu0 %v5601
    %5911 = vmatprep.subr.bf16.mxu0 %v5692
    %5912 = vmatpush2.bf16.msra.mxu0 %v5691
    %5913 = vmatprep.subr.bf16.mxu0 %v5686
    %5914 = vmatpush2.bf16.msra.mxu0 %v5685
    %5915 = vmatprep.subr.bf16.mxu0 %v5680
    %5916 = vmatpush2.bf16.msra.mxu0 %v5679
    %5917 = vmatprep.subr.bf16.mxu0 %v5674
    %5918 = vmatpush2.bf16.msra.mxu0 %v5673
    %5919 = vmatprep.subr.bf16.mxu0 %v5668
    %5920 = vmatpush2.bf16.msra.mxu0 %v5667
    %5921 = vmatprep.subr.bf16.mxu0 %v5662
    %5922 = vmatpush2.bf16.msra.mxu0 %v5661
    %5923 = vmatprep.subr.bf16.mxu0 %v5656
    %5924 = vmatpush2.bf16.msra.mxu0 %v5655
    %5925 = vmatprep.subr.bf16.mxu0 %v5650
    %5926 = vmatpush2.bf16.msra.mxu0 %v5649
    %5927 = vmatprep.mubr.bf16.mxu0 %v5273
    %5928 = vmatmul.mubr.bf16.gmra.mxu0 %v5272
    %v5929 = vpop.f32.mrf.mxu0
    %v5930 = vadd.f32 %v5298, %v5929
    %v5931 = vpop.f32.mrf.mxu0
    %v5932 = vadd.f32 %v5302, %v5931
    %v5933 = vpop.f32.mrf.mxu0
    %v5934 = vadd.f32 %v5298, %v5933
    %v5935 = vpop.f32.mrf.mxu0
    %v5936 = vadd.f32 %v5302, %v5935
    %5937 = vmatprep.mubr.bf16.mxu0 %v5275
    %5938 = vmatmul.mubr.bf16.gmra.mxu0 %v5274
    %v5939 = vpop.f32.mrf.mxu0
    %v5940 = vadd.f32 %v5298, %v5939
    %v5941 = vpop.f32.mrf.mxu0
    %v5942 = vadd.f32 %v5302, %v5941
    %v5943 = vpop.f32.mrf.mxu0
    %v5944 = vadd.f32 %v5298, %v5943
    %v5945 = vpop.f32.mrf.mxu0
    %v5946 = vadd.f32 %v5302, %v5945
    %5947 = vdwg.mxu0
    %v5948 = vpack.c.bf16 %v5828, %v5824
    %v5949 = vpack.c.bf16 %v5838, %v5834
    %v5950 = vpack.c.bf16 %v5881, %v5877
    %v5951 = vpack.c.bf16 %v5891, %v5887
    %5952 = vmatprep.subr.bf16.mxu0 0
    %5953 = vmatpush1.bf16.xpose.msra.mxu0 0
    %5954 = vmatprep.subr.bf16.mxu0 0
    %5955 = vmatpush1.bf16.xpose.msra.mxu0 0
    %5956 = vmatprep.subr.bf16.mxu0 0
    %5957 = vmatpush1.bf16.xpose.msra.mxu0 0
    %5958 = vmatprep.subr.bf16.mxu0 0
    %5959 = vmatpush1.bf16.xpose.msra.mxu0 0
    %5960 = vmatprep.subr.bf16.mxu0 0
    %5961 = vmatpush1.bf16.xpose.msra.mxu0 0
    %5962 = vmatprep.subr.bf16.mxu0 0
    %5963 = vmatpush1.bf16.xpose.msra.mxu0 0
    %5964 = vmatprep.subr.bf16.mxu0 0
    %5965 = vmatpush1.bf16.xpose.msra.mxu0 0
    %5966 = vmatprep.subr.bf16.mxu0 0
    %5967 = vmatpush1.bf16.xpose.msra.mxu0 %v5950
    %5968 = vmatprep.subr.bf16.mxu0 0
    %5969 = vmatpush2.bf16.xpose.msra.mxu0 0
    %5970 = vmatprep.subr.bf16.mxu0 0
    %5971 = vmatpush2.bf16.xpose.msra.mxu0 0
    %5972 = vmatprep.subr.bf16.mxu0 0
    %5973 = vmatpush2.bf16.xpose.msra.mxu0 0
    %5974 = vmatprep.subr.bf16.mxu0 0
    %5975 = vmatpush2.bf16.xpose.msra.mxu0 0
    %5976 = vmatprep.subr.bf16.mxu0 0
    %5977 = vmatpush2.bf16.xpose.msra.mxu0 0
    %5978 = vmatprep.subr.bf16.mxu0 0
    %5979 = vmatpush2.bf16.xpose.msra.mxu0 0
    %5980 = vmatprep.subr.bf16.mxu0 0
    %5981 = vmatpush2.bf16.xpose.msra.mxu0 0
    %5982 = vmatprep.subr.bf16.mxu0 0
    %5983 = vmatpush2.bf16.xpose.msra.mxu0 0
    %5984 = vmatprep.mubr.bf16.mxu0 0
    %5985 = vmatmul.mubr.bf16.gmra.mxu0 %v5948
    %v5986 = vpop.f32.mrf.mxu0
    %v5987 = vadd.f32 0.0, %v5986
    %v5988 = vpop.f32.mrf.mxu0
    %v5989 = vpop.f32.mrf.mxu0
    %v5990 = vadd.f32 0.0, %v5989
    %v5991 = vpop.f32.mrf.mxu0
    %5992 = vdwg.mxu0
    %5993 = vmatprep.subr.bf16.mxu0 0
    %5994 = vmatpush1.bf16.xpose.msra.mxu0 0
    %5995 = vmatprep.subr.bf16.mxu0 0
    %5996 = vmatpush1.bf16.xpose.msra.mxu0 0
    %5997 = vmatprep.subr.bf16.mxu0 0
    %5998 = vmatpush1.bf16.xpose.msra.mxu0 0
    %5999 = vmatprep.subr.bf16.mxu0 0
    %6000 = vmatpush1.bf16.xpose.msra.mxu0 0
    %6001 = vmatprep.subr.bf16.mxu0 0
    %6002 = vmatpush1.bf16.xpose.msra.mxu0 0
    %6003 = vmatprep.subr.bf16.mxu0 0
    %6004 = vmatpush1.bf16.xpose.msra.mxu0 0
    %6005 = vmatprep.subr.bf16.mxu0 0
    %6006 = vmatpush1.bf16.xpose.msra.mxu0 0
    %6007 = vmatprep.subr.bf16.mxu0 0
    %6008 = vmatpush1.bf16.xpose.msra.mxu0 %v5951
    %6009 = vmatprep.subr.bf16.mxu0 0
    %6010 = vmatpush2.bf16.xpose.msra.mxu0 0
    %6011 = vmatprep.subr.bf16.mxu0 0
    %6012 = vmatpush2.bf16.xpose.msra.mxu0 0
    %6013 = vmatprep.subr.bf16.mxu0 0
    %6014 = vmatpush2.bf16.xpose.msra.mxu0 0
    %6015 = vmatprep.subr.bf16.mxu0 0
    %6016 = vmatpush2.bf16.xpose.msra.mxu0 0
    %6017 = vmatprep.subr.bf16.mxu0 0
    %6018 = vmatpush2.bf16.xpose.msra.mxu0 0
    %6019 = vmatprep.subr.bf16.mxu0 0
    %6020 = vmatpush2.bf16.xpose.msra.mxu0 0
    %6021 = vmatprep.subr.bf16.mxu0 0
    %6022 = vmatpush2.bf16.xpose.msra.mxu0 0
    %6023 = vmatprep.subr.bf16.mxu0 0
    %6024 = vmatpush2.bf16.xpose.msra.mxu0 0
    %6025 = vmatprep.mubr.bf16.mxu0 0
    %6026 = vmatmul.mubr.bf16.gmra.mxu0 %v5949
    %v6027 = vpop.f32.mrf.mxu0
    %v6028 = vadd.f32 0.0, %v6027
    %v6029 = vpop.f32.mrf.mxu0
    %v6030 = vpop.f32.mrf.mxu0
    %v6031 = vadd.f32 0.0, %v6030
    %v6032 = vpop.f32.mrf.mxu0
    %6033 = vdwg.mxu0
    %v6034 = vmul.f32 %v5987, 0.088388346
    %v6035 = vmul.f32 %v5990, 0.088388346
    %v6036 = vmul.f32 %v6028, 0.088388346
    %v6037 = vmul.f32 %v6031, 0.088388346
    %v6038 = vsel %vm1358, %v6034, -inf
    %6039 = vmax.xlane.f32.xlu0 %v6038
    %v6040 = vpop.xlane.xlu0 %6039
    %v6041 = vsel %vm1358, %v6035, -inf
    %6042 = vmax.xlane.f32.xlu0 %v6041
    %v6043 = vpop.xlane.xlu0 %6042
    %v6044 = vsel %vm1358, %v6036, -inf
    %6045 = vmax.xlane.f32.xlu0 %v6044
    %v6046 = vpop.xlane.xlu0 %6045
    %v6047 = vsel %vm1358, %v6037, -inf
    %6048 = vmax.xlane.f32.xlu0 %v6047
    %v6049 = vpop.xlane.xlu0 %6048
    %v6050 = vsub.f32 %v6034, %v6040
    %v6051 = vsub.f32 %v6035, %v6043
    %v6052 = vsub.f32 %v6036, %v6046
    %v6053 = vsub.f32 %v6037, %v6049
    %v6054 = vmul.f32 %v6050, 1.442695
    %v6055 = vpow.pop %v6054
    %v6056 = vmul.f32 %v6051, 1.442695
    %v6057 = vpow.pop %v6056
    %v6058 = vmul.f32 %v6052, 1.442695
    %v6059 = vpow.pop %v6058
    %v6060 = vmul.f32 %v6053, 1.442695
    %v6061 = vpow.pop %v6060
    %v6062 = vsel %vm1358, %v6055, 0.0
    %6063 = vadd.xlane.f32.xlu0 %v6062
    %v6064 = vpop.xlane.xlu0 %6063
    %v6065 = vsel %vm1358, %v6057, 0.0
    %6066 = vadd.xlane.f32.xlu0 %v6065
    %v6067 = vpop.xlane.xlu0 %6066
    %v6068 = vsel %vm1358, %v6059, 0.0
    %6069 = vadd.xlane.f32.xlu0 %v6068
    %v6070 = vpop.xlane.xlu0 %6069
    %v6071 = vsel %vm1358, %v6061, 0.0
    %6072 = vadd.xlane.f32.xlu0 %v6071
    %v6073 = vpop.xlane.xlu0 %6072
    %v6074 = vrcp.pop %v6064
    %v6075 = vrcp.pop %v6067
    %v6076 = vrcp.pop %v6070
    %v6077 = vrcp.pop %v6073
    %v6078 = vmul.f32 %v6055, %v6074
    %v6079 = vmul.f32 %v6057, %v6075
    %v6080 = vmul.f32 %v6059, %v6076
    %v6081 = vmul.f32 %v6061, %v6077
    %v6082 = vpack.c.bf16 %v6079, %v6078
    %v6083 = vpack.c.bf16 %v6081, %v6080
    %v6084 = vpack.c.bf16 %v5934, %v5930
    %v6085 = vpack.c.bf16 %v5944, %v5940
    %v6087 = vsel %vm1358, %v6082, 0
    %6089 = vmatprep.subr.bf16.mxu0 0
    %6090 = vmatpush1.bf16.msra.mxu0 0
    %6091 = vmatprep.subr.bf16.mxu0 0
    %6092 = vmatpush1.bf16.msra.mxu0 0
    %6093 = vmatprep.subr.bf16.mxu0 0
    %6094 = vmatpush1.bf16.msra.mxu0 0
    %6095 = vmatprep.subr.bf16.mxu0 0
    %6096 = vmatpush1.bf16.msra.mxu0 0
    %6097 = vmatprep.subr.bf16.mxu0 0
    %6098 = vmatpush1.bf16.msra.mxu0 0
    %6099 = vmatprep.subr.bf16.mxu0 0
    %6100 = vmatpush1.bf16.msra.mxu0 0
    %6101 = vmatprep.subr.bf16.mxu0 0
    %6102 = vmatpush1.bf16.msra.mxu0 0
    %6103 = vmatprep.subr.bf16.mxu0 0
    %6104 = vmatpush1.bf16.msra.mxu0 %v6084
    %6105 = vmatprep.subr.bf16.mxu0 0
    %6106 = vmatpush2.bf16.msra.mxu0 0
    %6107 = vmatprep.subr.bf16.mxu0 0
    %6108 = vmatpush2.bf16.msra.mxu0 0
    %6109 = vmatprep.subr.bf16.mxu0 0
    %6110 = vmatpush2.bf16.msra.mxu0 0
    %6111 = vmatprep.subr.bf16.mxu0 0
    %6112 = vmatpush2.bf16.msra.mxu0 0
    %6113 = vmatprep.subr.bf16.mxu0 0
    %6114 = vmatpush2.bf16.msra.mxu0 0
    %6115 = vmatprep.subr.bf16.mxu0 0
    %6116 = vmatpush2.bf16.msra.mxu0 0
    %6117 = vmatprep.subr.bf16.mxu0 0
    %6118 = vmatpush2.bf16.msra.mxu0 0
    %6119 = vmatprep.subr.bf16.mxu0 0
    %6120 = vmatpush2.bf16.msra.mxu0 0
    %6121 = vmatprep.mubr.bf16.mxu0 0
    %6122 = vmatmul.mubr.bf16.gmra.mxu0 %v6087
    %v6123 = vpop.f32.mrf.mxu0
    %v6124 = vadd.f32 0.0, %v6123
    %v6125 = vpop.f32.mrf.mxu0
    %v6126 = vpop.f32.mrf.mxu0
    %v6127 = vadd.f32 0.0, %v6126
    %v6128 = vpop.f32.mrf.mxu0
    %6129 = vdwg.mxu0
    %v6131 = vsel %vm1358, %v6083, 0
    %6133 = vmatprep.subr.bf16.mxu0 0
    %6134 = vmatpush1.bf16.msra.mxu0 0
    %6135 = vmatprep.subr.bf16.mxu0 0
    %6136 = vmatpush1.bf16.msra.mxu0 0
    %6137 = vmatprep.subr.bf16.mxu0 0
    %6138 = vmatpush1.bf16.msra.mxu0 0
    %6139 = vmatprep.subr.bf16.mxu0 0
    %6140 = vmatpush1.bf16.msra.mxu0 0
    %6141 = vmatprep.subr.bf16.mxu0 0
    %6142 = vmatpush1.bf16.msra.mxu0 0
    %6143 = vmatprep.subr.bf16.mxu0 0
    %6144 = vmatpush1.bf16.msra.mxu0 0
    %6145 = vmatprep.subr.bf16.mxu0 0
    %6146 = vmatpush1.bf16.msra.mxu0 0
    %6147 = vmatprep.subr.bf16.mxu0 0
    %6148 = vmatpush1.bf16.msra.mxu0 %v6085
    %6149 = vmatprep.subr.bf16.mxu0 0
    %6150 = vmatpush2.bf16.msra.mxu0 0
    %6151 = vmatprep.subr.bf16.mxu0 0
    %6152 = vmatpush2.bf16.msra.mxu0 0
    %6153 = vmatprep.subr.bf16.mxu0 0
    %6154 = vmatpush2.bf16.msra.mxu0 0
    %6155 = vmatprep.subr.bf16.mxu0 0
    %6156 = vmatpush2.bf16.msra.mxu0 0
    %6157 = vmatprep.subr.bf16.mxu0 0
    %6158 = vmatpush2.bf16.msra.mxu0 0
    %6159 = vmatprep.subr.bf16.mxu0 0
    %6160 = vmatpush2.bf16.msra.mxu0 0
    %6161 = vmatprep.subr.bf16.mxu0 0
    %6162 = vmatpush2.bf16.msra.mxu0 0
    %6163 = vmatprep.subr.bf16.mxu0 0
    %6164 = vmatpush2.bf16.msra.mxu0 0
    %6165 = vmatprep.mubr.bf16.mxu0 0
    %6166 = vmatmul.mubr.bf16.gmra.mxu0 %v6131
    %v6167 = vpop.f32.mrf.mxu0
    %v6168 = vadd.f32 0.0, %v6167
    %v6169 = vpop.f32.mrf.mxu0
    %v6170 = vpop.f32.mrf.mxu0
    %v6171 = vadd.f32 0.0, %v6170
    %v6172 = vpop.f32.mrf.mxu0
    %6173 = vdwg.mxu0
    %s6174 = scalar_lea.vmem %s9, 256
    %v6175 = vld [vmem:[%s6174] sm:$0xff]
    %v6176 = vld [vmem:[%s6174 + $0x8] sm:$0xff]
    %v6177 = vld [vmem:[%s6174 + $0x10] sm:$0xff]
    %v6178 = vld [vmem:[%s6174 + $0x18] sm:$0xff]
    %v6179 = vld [vmem:[%s6174 + $0x20] sm:$0xff]
    %v6180 = vld [vmem:[%s6174 + $0x28] sm:$0xff]
    %v6181 = vld [vmem:[%s6174 + $0x30] sm:$0xff]
    %v6182 = vld [vmem:[%s6174 + $0x38] sm:$0xff]
    %v6183 = vld [vmem:[%s6174 + $0x40] sm:$0xff]
    %v6184 = vld [vmem:[%s6174 + $0x48] sm:$0xff]
    %v6185 = vld [vmem:[%s6174 + $0x50] sm:$0xff]
    %v6186 = vld [vmem:[%s6174 + $0x58] sm:$0xff]
    %v6187 = vld [vmem:[%s6174 + $0x60] sm:$0xff]
    %v6188 = vld [vmem:[%s6174 + $0x68] sm:$0xff]
    %v6189 = vld [vmem:[%s6174 + $0x70] sm:$0xff]
    %v6190 = vld [vmem:[%s6174 + $0x78] sm:$0xff]
    %v6191 = vpack.c.bf16 %v6127, %v6124
    %v6192 = vpack.c.bf16 %v6171, %v6168
    %v6193 = vpack.c.bf16 %v5830, %v5826
    %v6194 = vpack.c.bf16 %v5840, %v5836
    %v6195 = vpack.c.bf16 %v5883, %v5879
    %v6196 = vpack.c.bf16 %v5893, %v5889
    %6197 = vmatprep.subr.bf16.mxu0 0
    %6198 = vmatpush1.bf16.xpose.msra.mxu0 0
    %6199 = vmatprep.subr.bf16.mxu0 0
    %6200 = vmatpush1.bf16.xpose.msra.mxu0 0
    %6201 = vmatprep.subr.bf16.mxu0 0
    %6202 = vmatpush1.bf16.xpose.msra.mxu0 0
    %6203 = vmatprep.subr.bf16.mxu0 0
    %6204 = vmatpush1.bf16.xpose.msra.mxu0 0
    %6205 = vmatprep.subr.bf16.mxu0 0
    %6206 = vmatpush1.bf16.xpose.msra.mxu0 0
    %6207 = vmatprep.subr.bf16.mxu0 0
    %6208 = vmatpush1.bf16.xpose.msra.mxu0 0
    %6209 = vmatprep.subr.bf16.mxu0 0
    %6210 = vmatpush1.bf16.xpose.msra.mxu0 0
    %6211 = vmatprep.subr.bf16.mxu0 0
    %6212 = vmatpush1.bf16.xpose.msra.mxu0 %v6195
    %6213 = vmatprep.subr.bf16.mxu0 0
    %6214 = vmatpush2.bf16.xpose.msra.mxu0 0
    %6215 = vmatprep.subr.bf16.mxu0 0
    %6216 = vmatpush2.bf16.xpose.msra.mxu0 0
    %6217 = vmatprep.subr.bf16.mxu0 0
    %6218 = vmatpush2.bf16.xpose.msra.mxu0 0
    %6219 = vmatprep.subr.bf16.mxu0 0
    %6220 = vmatpush2.bf16.xpose.msra.mxu0 0
    %6221 = vmatprep.subr.bf16.mxu0 0
    %6222 = vmatpush2.bf16.xpose.msra.mxu0 0
    %6223 = vmatprep.subr.bf16.mxu0 0
    %6224 = vmatpush2.bf16.xpose.msra.mxu0 0
    %6225 = vmatprep.subr.bf16.mxu0 0
    %6226 = vmatpush2.bf16.xpose.msra.mxu0 0
    %6227 = vmatprep.subr.bf16.mxu0 0
    %6228 = vmatpush2.bf16.xpose.msra.mxu0 0
    %6229 = vmatprep.mubr.bf16.mxu0 0
    %6230 = vmatmul.mubr.bf16.gmra.mxu0 %v6193
    %v6231 = vpop.f32.mrf.mxu0
    %v6232 = vadd.f32 0.0, %v6231
    %v6233 = vpop.f32.mrf.mxu0
    %v6234 = vpop.f32.mrf.mxu0
    %v6235 = vadd.f32 0.0, %v6234
    %v6236 = vpop.f32.mrf.mxu0
    %6237 = vdwg.mxu0
    %6238 = vmatprep.subr.bf16.mxu0 0
    %6239 = vmatpush1.bf16.xpose.msra.mxu0 0
    %6240 = vmatprep.subr.bf16.mxu0 0
    %6241 = vmatpush1.bf16.xpose.msra.mxu0 0
    %6242 = vmatprep.subr.bf16.mxu0 0
    %6243 = vmatpush1.bf16.xpose.msra.mxu0 0
    %6244 = vmatprep.subr.bf16.mxu0 0
    %6245 = vmatpush1.bf16.xpose.msra.mxu0 0
    %6246 = vmatprep.subr.bf16.mxu0 0
    %6247 = vmatpush1.bf16.xpose.msra.mxu0 0
    %6248 = vmatprep.subr.bf16.mxu0 0
    %6249 = vmatpush1.bf16.xpose.msra.mxu0 0
    %6250 = vmatprep.subr.bf16.mxu0 0
    %6251 = vmatpush1.bf16.xpose.msra.mxu0 0
    %6252 = vmatprep.subr.bf16.mxu0 0
    %6253 = vmatpush1.bf16.xpose.msra.mxu0 %v6196
    %6254 = vmatprep.subr.bf16.mxu0 0
    %6255 = vmatpush2.bf16.xpose.msra.mxu0 0
    %6256 = vmatprep.subr.bf16.mxu0 0
    %6257 = vmatpush2.bf16.xpose.msra.mxu0 0
    %6258 = vmatprep.subr.bf16.mxu0 0
    %6259 = vmatpush2.bf16.xpose.msra.mxu0 0
    %6260 = vmatprep.subr.bf16.mxu0 0
    %6261 = vmatpush2.bf16.xpose.msra.mxu0 0
    %6262 = vmatprep.subr.bf16.mxu0 0
    %6263 = vmatpush2.bf16.xpose.msra.mxu0 0
    %6264 = vmatprep.subr.bf16.mxu0 0
    %6265 = vmatpush2.bf16.xpose.msra.mxu0 0
    %6266 = vmatprep.subr.bf16.mxu0 0
    %6267 = vmatpush2.bf16.xpose.msra.mxu0 0
    %6268 = vmatprep.subr.bf16.mxu0 0
    %6269 = vmatpush2.bf16.xpose.msra.mxu0 0
    %6270 = vmatprep.mubr.bf16.mxu0 0
    %6271 = vmatmul.mubr.bf16.gmra.mxu0 %v6194
    %v6272 = vpop.f32.mrf.mxu0
    %v6273 = vadd.f32 0.0, %v6272
    %v6274 = vpop.f32.mrf.mxu0
    %v6275 = vpop.f32.mrf.mxu0
    %v6276 = vadd.f32 0.0, %v6275
    %v6277 = vpop.f32.mrf.mxu0
    %6278 = vdwg.mxu0
    %v6279 = vmul.f32 %v6232, 0.088388346
    %v6280 = vmul.f32 %v6235, 0.088388346
    %v6281 = vmul.f32 %v6273, 0.088388346
    %v6282 = vmul.f32 %v6276, 0.088388346
    %v6283 = vsel %vm1358, %v6279, -inf
    %6284 = vmax.xlane.f32.xlu0 %v6283
    %v6285 = vpop.xlane.xlu0 %6284
    %v6286 = vsel %vm1358, %v6280, -inf
    %6287 = vmax.xlane.f32.xlu0 %v6286
    %v6288 = vpop.xlane.xlu0 %6287
    %v6289 = vsel %vm1358, %v6281, -inf
    %6290 = vmax.xlane.f32.xlu0 %v6289
    %v6291 = vpop.xlane.xlu0 %6290
    %v6292 = vsel %vm1358, %v6282, -inf
    %6293 = vmax.xlane.f32.xlu0 %v6292
    %v6294 = vpop.xlane.xlu0 %6293
    %v6295 = vsub.f32 %v6279, %v6285
    %v6296 = vsub.f32 %v6280, %v6288
    %v6297 = vsub.f32 %v6281, %v6291
    %v6298 = vsub.f32 %v6282, %v6294
    %v6299 = vmul.f32 %v6295, 1.442695
    %v6300 = vpow.pop %v6299
    %v6301 = vmul.f32 %v6296, 1.442695
    %v6302 = vpow.pop %v6301
    %v6303 = vmul.f32 %v6297, 1.442695
    %v6304 = vpow.pop %v6303
    %v6305 = vmul.f32 %v6298, 1.442695
    %v6306 = vpow.pop %v6305
    %v6307 = vsel %vm1358, %v6300, 0.0
    %6308 = vadd.xlane.f32.xlu0 %v6307
    %v6309 = vpop.xlane.xlu0 %6308
    %v6310 = vsel %vm1358, %v6302, 0.0
    %6311 = vadd.xlane.f32.xlu0 %v6310
    %v6312 = vpop.xlane.xlu0 %6311
    %v6313 = vsel %vm1358, %v6304, 0.0
    %6314 = vadd.xlane.f32.xlu0 %v6313
    %v6315 = vpop.xlane.xlu0 %6314
    %v6316 = vsel %vm1358, %v6306, 0.0
    %6317 = vadd.xlane.f32.xlu0 %v6316
    %v6318 = vpop.xlane.xlu0 %6317
    %v6319 = vrcp.pop %v6309
    %v6320 = vrcp.pop %v6312
    %v6321 = vrcp.pop %v6315
    %v6322 = vrcp.pop %v6318
    %v6323 = vmul.f32 %v6300, %v6319
    %v6324 = vmul.f32 %v6302, %v6320
    %v6325 = vmul.f32 %v6304, %v6321
    %v6326 = vmul.f32 %v6306, %v6322
    %v6327 = vpack.c.bf16 %v6324, %v6323
    %v6328 = vpack.c.bf16 %v6326, %v6325
    %v6329 = vpack.c.bf16 %v5936, %v5932
    %v6330 = vpack.c.bf16 %v5946, %v5942
    %v6332 = vsel %vm1358, %v6327, 0
    %6334 = vmatprep.subr.bf16.mxu0 0
    %6335 = vmatpush1.bf16.msra.mxu0 0
    %6336 = vmatprep.subr.bf16.mxu0 0
    %6337 = vmatpush1.bf16.msra.mxu0 0
    %6338 = vmatprep.subr.bf16.mxu0 0
    %6339 = vmatpush1.bf16.msra.mxu0 0
    %6340 = vmatprep.subr.bf16.mxu0 0
    %6341 = vmatpush1.bf16.msra.mxu0 0
    %6342 = vmatprep.subr.bf16.mxu0 0
    %6343 = vmatpush1.bf16.msra.mxu0 0
    %6344 = vmatprep.subr.bf16.mxu0 0
    %6345 = vmatpush1.bf16.msra.mxu0 0
    %6346 = vmatprep.subr.bf16.mxu0 0
    %6347 = vmatpush1.bf16.msra.mxu0 0
    %6348 = vmatprep.subr.bf16.mxu0 0
    %6349 = vmatpush1.bf16.msra.mxu0 %v6329
    %6350 = vmatprep.subr.bf16.mxu0 0
    %6351 = vmatpush2.bf16.msra.mxu0 0
    %6352 = vmatprep.subr.bf16.mxu0 0
    %6353 = vmatpush2.bf16.msra.mxu0 0
    %6354 = vmatprep.subr.bf16.mxu0 0
    %6355 = vmatpush2.bf16.msra.mxu0 0
    %6356 = vmatprep.subr.bf16.mxu0 0
    %6357 = vmatpush2.bf16.msra.mxu0 0
    %6358 = vmatprep.subr.bf16.mxu0 0
    %6359 = vmatpush2.bf16.msra.mxu0 0
    %6360 = vmatprep.subr.bf16.mxu0 0
    %6361 = vmatpush2.bf16.msra.mxu0 0
    %6362 = vmatprep.subr.bf16.mxu0 0
    %6363 = vmatpush2.bf16.msra.mxu0 0
    %6364 = vmatprep.subr.bf16.mxu0 0
    %6365 = vmatpush2.bf16.msra.mxu0 0
    %6366 = vmatprep.mubr.bf16.mxu0 0
    %6367 = vmatmul.mubr.bf16.gmra.mxu0 %v6332
    %v6368 = vpop.f32.mrf.mxu0
    %v6369 = vadd.f32 0.0, %v6368
    %v6370 = vpop.f32.mrf.mxu0
    %v6371 = vpop.f32.mrf.mxu0
    %v6372 = vadd.f32 0.0, %v6371
    %v6373 = vpop.f32.mrf.mxu0
    %6374 = vdwg.mxu0
    %v6376 = vsel %vm1358, %v6328, 0
    %6378 = vmatprep.subr.bf16.mxu0 0
    %6379 = vmatpush1.bf16.msra.mxu0 0
    %6380 = vmatprep.subr.bf16.mxu0 0
    %6381 = vmatpush1.bf16.msra.mxu0 0
    %6382 = vmatprep.subr.bf16.mxu0 0
    %6383 = vmatpush1.bf16.msra.mxu0 0
    %6384 = vmatprep.subr.bf16.mxu0 0
    %6385 = vmatpush1.bf16.msra.mxu0 0
    %6386 = vmatprep.subr.bf16.mxu0 0
    %6387 = vmatpush1.bf16.msra.mxu0 0
    %6388 = vmatprep.subr.bf16.mxu0 0
    %6389 = vmatpush1.bf16.msra.mxu0 0
    %6390 = vmatprep.subr.bf16.mxu0 0
    %6391 = vmatpush1.bf16.msra.mxu0 0
    %6392 = vmatprep.subr.bf16.mxu0 0
    %6393 = vmatpush1.bf16.msra.mxu0 %v6330
    %6394 = vmatprep.subr.bf16.mxu0 0
    %6395 = vmatpush2.bf16.msra.mxu0 0
    %6396 = vmatprep.subr.bf16.mxu0 0
    %6397 = vmatpush2.bf16.msra.mxu0 0
    %6398 = vmatprep.subr.bf16.mxu0 0
    %6399 = vmatpush2.bf16.msra.mxu0 0
    %6400 = vmatprep.subr.bf16.mxu0 0
    %6401 = vmatpush2.bf16.msra.mxu0 0
    %6402 = vmatprep.subr.bf16.mxu0 0
    %6403 = vmatpush2.bf16.msra.mxu0 0
    %6404 = vmatprep.subr.bf16.mxu0 0
    %6405 = vmatpush2.bf16.msra.mxu0 0
    %6406 = vmatprep.subr.bf16.mxu0 0
    %6407 = vmatpush2.bf16.msra.mxu0 0
    %6408 = vmatprep.subr.bf16.mxu0 0
    %6409 = vmatpush2.bf16.msra.mxu0 0
    %6410 = vmatprep.mubr.bf16.mxu0 0
    %6411 = vmatmul.mubr.bf16.gmra.mxu0 %v6376
    %v6412 = vpop.f32.mrf.mxu0
    %v6413 = vadd.f32 0.0, %v6412
    %v6414 = vpop.f32.mrf.mxu0
    %v6415 = vpop.f32.mrf.mxu0
    %v6416 = vadd.f32 0.0, %v6415
    %v6417 = vpop.f32.mrf.mxu0
    %6418 = vdwg.mxu0
    %v6419 = vld [vmem:[%s6174 + $0x80] sm:$0xff]
    %v6420 = vld [vmem:[%s6174 + $0x88] sm:$0xff]
    %v6421 = vld [vmem:[%s6174 + $0x90] sm:$0xff]
    %v6422 = vld [vmem:[%s6174 + $0x98] sm:$0xff]
    %v6423 = vld [vmem:[%s6174 + $0xa0] sm:$0xff]
    %v6424 = vld [vmem:[%s6174 + $0xa8] sm:$0xff]
    %v6425 = vld [vmem:[%s6174 + $0xb0] sm:$0xff]
    %v6426 = vld [vmem:[%s6174 + $0xb8] sm:$0xff]
    %v6427 = vld [vmem:[%s6174 + $0xc0] sm:$0xff]
    %v6428 = vld [vmem:[%s6174 + $0xc8] sm:$0xff]
    %v6429 = vld [vmem:[%s6174 + $0xd0] sm:$0xff]
    %v6430 = vld [vmem:[%s6174 + $0xd8] sm:$0xff]
    %v6431 = vld [vmem:[%s6174 + $0xe0] sm:$0xff]
    %v6432 = vld [vmem:[%s6174 + $0xe8] sm:$0xff]
    %v6433 = vld [vmem:[%s6174 + $0xf0] sm:$0xff]
    %v6434 = vld [vmem:[%s6174 + $0xf8] sm:$0xff]
    %v6435 = vpack.c.bf16 %v6372, %v6369
    %v6436 = vpack.c.bf16 %v6416, %v6413
    %v6453 = vunpack.c.l.b16 %v6419
    %v6454 = vunpack.c.h.b16 %v6419
    %v6455 = vunpack.c.l.b16 %v6420
    %v6456 = vunpack.c.h.b16 %v6420
    %v6457 = vunpack.c.l.b16 %v6421
    %v6458 = vunpack.c.h.b16 %v6421
    %v6459 = vunpack.c.l.b16 %v6422
    %v6460 = vunpack.c.h.b16 %v6422
    %v6461 = vunpack.c.l.b16 %v6423
    %v6462 = vunpack.c.h.b16 %v6423
    %v6463 = vunpack.c.l.b16 %v6424
    %v6464 = vunpack.c.h.b16 %v6424
    %v6465 = vunpack.c.l.b16 %v6425
    %v6466 = vunpack.c.h.b16 %v6425
    %v6467 = vunpack.c.l.b16 %v6426
    %v6468 = vunpack.c.h.b16 %v6426
    %v6469 = vunpack.c.l.b16 %v6427
    %v6470 = vunpack.c.h.b16 %v6427
    %v6471 = vunpack.c.l.b16 %v6428
    %v6472 = vunpack.c.h.b16 %v6428
    %v6473 = vunpack.c.l.b16 %v6429
    %v6474 = vunpack.c.h.b16 %v6429
    %v6475 = vunpack.c.l.b16 %v6430
    %v6476 = vunpack.c.h.b16 %v6430
    %v6477 = vunpack.c.l.b16 %v6431
    %v6478 = vunpack.c.h.b16 %v6431
    %v6479 = vunpack.c.l.b16 %v6432
    %v6480 = vunpack.c.h.b16 %v6432
    %v6481 = vunpack.c.l.b16 %v6433
    %v6482 = vunpack.c.h.b16 %v6433
    %v6483 = vunpack.c.l.b16 %v6434
    %v6484 = vunpack.c.h.b16 %v6434
    %v6485 = vpack.c.b16 %v6455, %v6453
    %v6486 = vpack.c.b16 %v6456, %v6454
    %v6487 = vpack.c.b16 %v6459, %v6457
    %v6488 = vpack.c.b16 %v6460, %v6458
    %v6489 = vpack.c.b16 %v6463, %v6461
    %v6490 = vpack.c.b16 %v6464, %v6462
    %v6491 = vpack.c.b16 %v6467, %v6465
    %v6492 = vpack.c.b16 %v6468, %v6466
    %v6493 = vpack.c.b16 %v6471, %v6469
    %v6494 = vpack.c.b16 %v6472, %v6470
    %v6495 = vpack.c.b16 %v6475, %v6473
    %v6496 = vpack.c.b16 %v6476, %v6474
    %v6497 = vpack.c.b16 %v6479, %v6477
    %v6498 = vpack.c.b16 %v6480, %v6478
    %v6499 = vpack.c.b16 %v6483, %v6481
    %v6500 = vpack.c.b16 %v6484, %v6482
    %6517 = vmatprep.subr.bf16.mxu0 %v6500
    %6518 = vmatpush1.bf16.msra.mxu0 %v6499
    %6519 = vmatprep.subr.bf16.mxu0 %v6498
    %6520 = vmatpush1.bf16.msra.mxu0 %v6497
    %6521 = vmatprep.subr.bf16.mxu0 %v6496
    %6522 = vmatpush1.bf16.msra.mxu0 %v6495
    %6523 = vmatprep.subr.bf16.mxu0 %v6494
    %6524 = vmatpush1.bf16.msra.mxu0 %v6493
    %6525 = vmatprep.subr.bf16.mxu0 %v6492
    %6526 = vmatpush1.bf16.msra.mxu0 %v6491
    %6527 = vmatprep.subr.bf16.mxu0 %v6490
    %6528 = vmatpush1.bf16.msra.mxu0 %v6489
    %6529 = vmatprep.subr.bf16.mxu0 %v6488
    %6530 = vmatpush1.bf16.msra.mxu0 %v6487
    %6531 = vmatprep.subr.bf16.mxu0 %v6486
    %6532 = vmatpush1.bf16.msra.mxu0 %v6485
    %6533 = vmatprep.subr.bf16.mxu0 0
    %6534 = vmatpush2.bf16.msra.mxu0 0
    %6535 = vmatprep.subr.bf16.mxu0 0
    %6536 = vmatpush2.bf16.msra.mxu0 0
    %6537 = vmatprep.subr.bf16.mxu0 0
    %6538 = vmatpush2.bf16.msra.mxu0 0
    %6539 = vmatprep.subr.bf16.mxu0 0
    %6540 = vmatpush2.bf16.msra.mxu0 0
    %6541 = vmatprep.subr.bf16.mxu0 0
    %6542 = vmatpush2.bf16.msra.mxu0 0
    %6543 = vmatprep.subr.bf16.mxu0 0
    %6544 = vmatpush2.bf16.msra.mxu0 0
    %6545 = vmatprep.subr.bf16.mxu0 0
    %6546 = vmatpush2.bf16.msra.mxu0 0
    %6547 = vmatprep.subr.bf16.mxu0 0
    %6548 = vmatpush2.bf16.msra.mxu0 0
    %6549 = vmatprep.mubr.bf16.mxu0 0
    %6550 = vmatmul.mubr.bf16.gmra.mxu0 %v6435
    %v6551 = vpop.f32.mrf.mxu0
    %v6552 = vadd.f32 0.0, %v6551
    %v6553 = vpop.f32.mrf.mxu0
    %v6554 = vadd.f32 0.0, %v6553
    %v6555 = vpop.f32.mrf.mxu0
    %v6556 = vadd.f32 0.0, %v6555
    %v6557 = vpop.f32.mrf.mxu0
    %v6558 = vadd.f32 0.0, %v6557
    %6559 = vmatprep.mubr.bf16.mxu0 0
    %6560 = vmatmul.mubr.bf16.gmra.mxu0 %v6436
    %v6561 = vpop.f32.mrf.mxu0
    %v6562 = vadd.f32 0.0, %v6561
    %v6563 = vpop.f32.mrf.mxu0
    %v6564 = vadd.f32 0.0, %v6563
    %v6565 = vpop.f32.mrf.mxu0
    %v6566 = vadd.f32 0.0, %v6565
    %v6567 = vpop.f32.mrf.mxu0
    %v6568 = vadd.f32 0.0, %v6567
    %6569 = vdwg.mxu0
    %v6586 = vunpack.c.l.b16 %v6175
    %v6587 = vunpack.c.h.b16 %v6175
    %v6588 = vunpack.c.l.b16 %v6176
    %v6589 = vunpack.c.h.b16 %v6176
    %v6590 = vunpack.c.l.b16 %v6177
    %v6591 = vunpack.c.h.b16 %v6177
    %v6592 = vunpack.c.l.b16 %v6178
    %v6593 = vunpack.c.h.b16 %v6178
    %v6594 = vunpack.c.l.b16 %v6179
    %v6595 = vunpack.c.h.b16 %v6179
    %v6596 = vunpack.c.l.b16 %v6180
    %v6597 = vunpack.c.h.b16 %v6180
    %v6598 = vunpack.c.l.b16 %v6181
    %v6599 = vunpack.c.h.b16 %v6181
    %v6600 = vunpack.c.l.b16 %v6182
    %v6601 = vunpack.c.h.b16 %v6182
    %v6602 = vunpack.c.l.b16 %v6183
    %v6603 = vunpack.c.h.b16 %v6183
    %v6604 = vunpack.c.l.b16 %v6184
    %v6605 = vunpack.c.h.b16 %v6184
    %v6606 = vunpack.c.l.b16 %v6185
    %v6607 = vunpack.c.h.b16 %v6185
    %v6608 = vunpack.c.l.b16 %v6186
    %v6609 = vunpack.c.h.b16 %v6186
    %v6610 = vunpack.c.l.b16 %v6187
    %v6611 = vunpack.c.h.b16 %v6187
    %v6612 = vunpack.c.l.b16 %v6188
    %v6613 = vunpack.c.h.b16 %v6188
    %v6614 = vunpack.c.l.b16 %v6189
    %v6615 = vunpack.c.h.b16 %v6189
    %v6616 = vunpack.c.l.b16 %v6190
    %v6617 = vunpack.c.h.b16 %v6190
    %v6618 = vpack.c.b16 %v6588, %v6586
    %v6619 = vpack.c.b16 %v6589, %v6587
    %v6620 = vpack.c.b16 %v6592, %v6590
    %v6621 = vpack.c.b16 %v6593, %v6591
    %v6622 = vpack.c.b16 %v6596, %v6594
    %v6623 = vpack.c.b16 %v6597, %v6595
    %v6624 = vpack.c.b16 %v6600, %v6598
    %v6625 = vpack.c.b16 %v6601, %v6599
    %v6626 = vpack.c.b16 %v6604, %v6602
    %v6627 = vpack.c.b16 %v6605, %v6603
    %v6628 = vpack.c.b16 %v6608, %v6606
    %v6629 = vpack.c.b16 %v6609, %v6607
    %v6630 = vpack.c.b16 %v6612, %v6610
    %v6631 = vpack.c.b16 %v6613, %v6611
    %v6632 = vpack.c.b16 %v6616, %v6614
    %v6633 = vpack.c.b16 %v6617, %v6615
    %6650 = vmatprep.subr.bf16.mxu0 %v6633
    %6651 = vmatpush1.bf16.msra.mxu0 %v6632
    %6652 = vmatprep.subr.bf16.mxu0 %v6631
    %6653 = vmatpush1.bf16.msra.mxu0 %v6630
    %6654 = vmatprep.subr.bf16.mxu0 %v6629
    %6655 = vmatpush1.bf16.msra.mxu0 %v6628
    %6656 = vmatprep.subr.bf16.mxu0 %v6627
    %6657 = vmatpush1.bf16.msra.mxu0 %v6626
    %6658 = vmatprep.subr.bf16.mxu0 %v6625
    %6659 = vmatpush1.bf16.msra.mxu0 %v6624
    %6660 = vmatprep.subr.bf16.mxu0 %v6623
    %6661 = vmatpush1.bf16.msra.mxu0 %v6622
    %6662 = vmatprep.subr.bf16.mxu0 %v6621
    %6663 = vmatpush1.bf16.msra.mxu0 %v6620
    %6664 = vmatprep.subr.bf16.mxu0 %v6619
    %6665 = vmatpush1.bf16.msra.mxu0 %v6618
    %6666 = vmatprep.subr.bf16.mxu0 0
    %6667 = vmatpush2.bf16.msra.mxu0 0
    %6668 = vmatprep.subr.bf16.mxu0 0
    %6669 = vmatpush2.bf16.msra.mxu0 0
    %6670 = vmatprep.subr.bf16.mxu0 0
    %6671 = vmatpush2.bf16.msra.mxu0 0
    %6672 = vmatprep.subr.bf16.mxu0 0
    %6673 = vmatpush2.bf16.msra.mxu0 0
    %6674 = vmatprep.subr.bf16.mxu0 0
    %6675 = vmatpush2.bf16.msra.mxu0 0
    %6676 = vmatprep.subr.bf16.mxu0 0
    %6677 = vmatpush2.bf16.msra.mxu0 0
    %6678 = vmatprep.subr.bf16.mxu0 0
    %6679 = vmatpush2.bf16.msra.mxu0 0
    %6680 = vmatprep.subr.bf16.mxu0 0
    %6681 = vmatpush2.bf16.msra.mxu0 0
    %6682 = vmatprep.mubr.bf16.mxu0 0
    %6683 = vmatmul.mubr.bf16.gmra.mxu0 %v6191
    %v6684 = vpop.f32.mrf.mxu0
    %v6685 = vadd.f32 %v6552, %v6684
    %v6686 = vpop.f32.mrf.mxu0
    %v6687 = vadd.f32 %v6554, %v6686
    %v6688 = vpop.f32.mrf.mxu0
    %v6689 = vadd.f32 %v6556, %v6688
    %v6690 = vpop.f32.mrf.mxu0
    %v6691 = vadd.f32 %v6558, %v6690
    %6692 = vmatprep.mubr.bf16.mxu0 0
    %6693 = vmatmul.mubr.bf16.gmra.mxu0 %v6192
    %v6694 = vpop.f32.mrf.mxu0
    %v6695 = vadd.f32 %v6562, %v6694
    %v6696 = vpop.f32.mrf.mxu0
    %v6697 = vadd.f32 %v6564, %v6696
    %v6698 = vpop.f32.mrf.mxu0
    %v6699 = vadd.f32 %v6566, %v6698
    %v6700 = vpop.f32.mrf.mxu0
    %v6701 = vadd.f32 %v6568, %v6700
    %6702 = vdwg.mxu0
    %v6703 = vadd.f32 %v5061, %v6685
    %v6704 = vadd.f32 %v5062, %v6687
    %v6705 = vadd.f32 %v5063, %v6689
    %v6706 = vadd.f32 %v5064, %v6691
    %v6707 = vadd.f32 %v5065, %v6695
    %v6708 = vadd.f32 %v5066, %v6697
    %v6709 = vadd.f32 %v5067, %v6699
    %v6710 = vadd.f32 %v5068, %v6701
    %s6711 = scalar_lea.vmem %s10, 2
    %v6712 = vld [vmem:[%s6711] sm:$0x3]
    %v6714 = vlaneseq
    %v6715 = vshrl.u32 %v6714, 7
    %v6716 = vsub.s32 0, %v6715
    %v6717 = vrot.slane %v6712, %v6716
    %v6718 = vlaneseq
    %v6719 = vshrl.u32 %v6718, 7
    %v6720 = vsub.s32 1, %v6719
    %v6721 = vrot.slane %v6712, %v6720
    %v6724 = vadd.f32 %v6703, %v6717
    %v6725 = vadd.f32 %v6704, %v6721
    %v6726 = vadd.f32 %v6705, %v6717
    %v6727 = vadd.f32 %v6706, %v6721
    %v6728 = vadd.f32 %v6707, %v6717
    %v6729 = vadd.f32 %v6708, %v6721
    %v6730 = vadd.f32 %v6709, %v6717
    %v6731 = vadd.f32 %v6710, %v6721
    %s6732 = scalar_lea.vmem %s11, 2
    %v6733 = vld [vmem:[%s6732] sm:$0x3]
    %s6734 = scalar_lea.vmem %s12, 2
    %v6735 = vld [vmem:[%s6734] sm:$0x3]
    %v6736 = vadd.f32 %v6724, %v6725
    %6737 = vadd.xlane.f32.xlu0 %v6736
    %v6738 = vpop.xlane.xlu0 %6737
    %v6739 = vadd.f32 %v6726, %v6727
    %6740 = vadd.xlane.f32.xlu0 %v6739
    %v6741 = vpop.xlane.xlu0 %6740
    %v6742 = vadd.f32 %v6728, %v6729
    %6743 = vadd.xlane.f32.xlu0 %v6742
    %v6744 = vpop.xlane.xlu0 %6743
    %v6745 = vadd.f32 %v6730, %v6731
    %6746 = vadd.xlane.f32.xlu0 %v6745
    %v6747 = vpop.xlane.xlu0 %6746
    %v6748 = vmul.f32 %v6738, %v302
    %v6749 = vmul.f32 %v6741, %v302
    %v6750 = vmul.f32 %v6744, %v302
    %v6751 = vmul.f32 %v6747, %v302
    %v6752 = vsub.f32 %v6724, %v6748
    %v6753 = vsub.f32 %v6725, %v6748
    %v6754 = vsub.f32 %v6726, %v6749
    %v6755 = vsub.f32 %v6727, %v6749
    %v6756 = vsub.f32 %v6728, %v6750
    %v6757 = vsub.f32 %v6729, %v6750
    %v6758 = vsub.f32 %v6730, %v6751
    %v6759 = vsub.f32 %v6731, %v6751
    %v6760 = vmul.f32 %v6752, %v6752
    %v6761 = vmul.f32 %v6753, %v6753
    %v6762 = vmul.f32 %v6754, %v6754
    %v6763 = vmul.f32 %v6755, %v6755
    %v6764 = vmul.f32 %v6756, %v6756
    %v6765 = vmul.f32 %v6757, %v6757
    %v6766 = vmul.f32 %v6758, %v6758
    %v6767 = vmul.f32 %v6759, %v6759
    %v6768 = vadd.f32 %v6760, %v6761
    %6769 = vadd.xlane.f32.xlu0 %v6768
    %v6770 = vpop.xlane.xlu0 %6769
    %v6771 = vadd.f32 %v6762, %v6763
    %6772 = vadd.xlane.f32.xlu0 %v6771
    %v6773 = vpop.xlane.xlu0 %6772
    %v6774 = vadd.f32 %v6764, %v6765
    %6775 = vadd.xlane.f32.xlu0 %v6774
    %v6776 = vpop.xlane.xlu0 %6775
    %v6777 = vadd.f32 %v6766, %v6767
    %6778 = vadd.xlane.f32.xlu0 %v6777
    %v6779 = vpop.xlane.xlu0 %6778
    %v6780 = vmul.f32 %v6770, %v302
    %v6781 = vmul.f32 %v6773, %v302
    %v6782 = vmul.f32 %v6776, %v302
    %v6783 = vmul.f32 %v6779, %v302
    %v6784 = vadd.f32 %v6780, 1e-05
    %v6785 = vadd.f32 %v6781, 1e-05
    %v6786 = vadd.f32 %v6782, 1e-05
    %v6787 = vadd.f32 %v6783, 1e-05
    %v6788 = vrsqrt.pop %v6784
    %v6789 = vrsqrt.pop %v6785
    %v6790 = vrsqrt.pop %v6786
    %v6791 = vrsqrt.pop %v6787
    %v6792 = vmul.f32 %v6752, %v6788
    %v6793 = vmul.f32 %v6753, %v6788
    %v6794 = vmul.f32 %v6754, %v6789
    %v6795 = vmul.f32 %v6755, %v6789
    %v6796 = vmul.f32 %v6756, %v6790
    %v6797 = vmul.f32 %v6757, %v6790
    %v6798 = vmul.f32 %v6758, %v6791
    %v6799 = vmul.f32 %v6759, %v6791
    %v6801 = vlaneseq
    %v6802 = vshrl.u32 %v6801, 7
    %v6803 = vsub.s32 0, %v6802
    %v6804 = vrot.slane %v6733, %v6803
    %v6805 = vlaneseq
    %v6806 = vshrl.u32 %v6805, 7
    %v6807 = vsub.s32 1, %v6806
    %v6808 = vrot.slane %v6733, %v6807
    %v6811 = vmul.f32 %v6792, %v6804
    %v6812 = vmul.f32 %v6793, %v6808
    %v6813 = vmul.f32 %v6794, %v6804
    %v6814 = vmul.f32 %v6795, %v6808
    %v6815 = vmul.f32 %v6796, %v6804
    %v6816 = vmul.f32 %v6797, %v6808
    %v6817 = vmul.f32 %v6798, %v6804
    %v6818 = vmul.f32 %v6799, %v6808
    %v6820 = vlaneseq
    %v6821 = vshrl.u32 %v6820, 7
    %v6822 = vsub.s32 0, %v6821
    %v6823 = vrot.slane %v6735, %v6822
    %v6824 = vlaneseq
    %v6825 = vshrl.u32 %v6824, 7
    %v6826 = vsub.s32 1, %v6825
    %v6827 = vrot.slane %v6735, %v6826
    %v6830 = vadd.f32 %v6811, %v6823
    %v6831 = vadd.f32 %v6812, %v6827
    %v6832 = vadd.f32 %v6813, %v6823
    %v6833 = vadd.f32 %v6814, %v6827
    %v6834 = vadd.f32 %v6815, %v6823
    %v6835 = vadd.f32 %v6816, %v6827
    %v6836 = vadd.f32 %v6817, %v6823
    %v6837 = vadd.f32 %v6818, %v6827
    %s6838 = scalar_lea.vmem [#allocation5], 1024
    %v6839 = vld [vmem:[%s6838] sm:$0xff]
    %v6840 = vld [vmem:[%s6838 + $0x8] sm:$0xff]
    %v6841 = vld [vmem:[%s6838 + $0x10] sm:$0xff]
    %v6842 = vld [vmem:[%s6838 + $0x18] sm:$0xff]
    %v6843 = vld [vmem:[%s6838 + $0x20] sm:$0xff]
    %v6844 = vld [vmem:[%s6838 + $0x28] sm:$0xff]
    %v6845 = vld [vmem:[%s6838 + $0x30] sm:$0xff]
    %v6846 = vld [vmem:[%s6838 + $0x38] sm:$0xff]
    %v6847 = vld [vmem:[%s6838 + $0x40] sm:$0xff]
    %v6848 = vld [vmem:[%s6838 + $0x48] sm:$0xff]
    %v6849 = vld [vmem:[%s6838 + $0x50] sm:$0xff]
    %v6850 = vld [vmem:[%s6838 + $0x58] sm:$0xff]
    %v6851 = vld [vmem:[%s6838 + $0x60] sm:$0xff]
    %v6852 = vld [vmem:[%s6838 + $0x68] sm:$0xff]
    %v6853 = vld [vmem:[%s6838 + $0x70] sm:$0xff]
    %v6854 = vld [vmem:[%s6838 + $0x78] sm:$0xff]
    %v6855 = vld [vmem:[%s6838 + $0x80] sm:$0xff]
    %v6856 = vld [vmem:[%s6838 + $0x88] sm:$0xff]
    %v6857 = vld [vmem:[%s6838 + $0x90] sm:$0xff]
    %v6858 = vld [vmem:[%s6838 + $0x98] sm:$0xff]
    %v6859 = vld [vmem:[%s6838 + $0xa0] sm:$0xff]
    %v6860 = vld [vmem:[%s6838 + $0xa8] sm:$0xff]
    %v6861 = vld [vmem:[%s6838 + $0xb0] sm:$0xff]
    %v6862 = vld [vmem:[%s6838 + $0xb8] sm:$0xff]
    %v6863 = vld [vmem:[%s6838 + $0xc0] sm:$0xff]
    %v6864 = vld [vmem:[%s6838 + $0xc8] sm:$0xff]
    %v6865 = vld [vmem:[%s6838 + $0xd0] sm:$0xff]
    %v6866 = vld [vmem:[%s6838 + $0xd8] sm:$0xff]
    %v6867 = vld [vmem:[%s6838 + $0xe0] sm:$0xff]
    %v6868 = vld [vmem:[%s6838 + $0xe8] sm:$0xff]
    %v6869 = vld [vmem:[%s6838 + $0xf0] sm:$0xff]
    %v6870 = vld [vmem:[%s6838 + $0xf8] sm:$0xff]
    %v6871 = vld [vmem:[%s6838 + $0x100] sm:$0xff]
    %v6872 = vld [vmem:[%s6838 + $0x108] sm:$0xff]
    %v6873 = vld [vmem:[%s6838 + $0x110] sm:$0xff]
    %v6874 = vld [vmem:[%s6838 + $0x118] sm:$0xff]
    %v6875 = vld [vmem:[%s6838 + $0x120] sm:$0xff]
    %v6876 = vld [vmem:[%s6838 + $0x128] sm:$0xff]
    %v6877 = vld [vmem:[%s6838 + $0x130] sm:$0xff]
    %v6878 = vld [vmem:[%s6838 + $0x138] sm:$0xff]
    %v6879 = vld [vmem:[%s6838 + $0x140] sm:$0xff]
    %v6880 = vld [vmem:[%s6838 + $0x148] sm:$0xff]
    %v6881 = vld [vmem:[%s6838 + $0x150] sm:$0xff]
    %v6882 = vld [vmem:[%s6838 + $0x158] sm:$0xff]
    %v6883 = vld [vmem:[%s6838 + $0x160] sm:$0xff]
    %v6884 = vld [vmem:[%s6838 + $0x168] sm:$0xff]
    %v6885 = vld [vmem:[%s6838 + $0x170] sm:$0xff]
    %v6886 = vld [vmem:[%s6838 + $0x178] sm:$0xff]
    %v6887 = vld [vmem:[%s6838 + $0x180] sm:$0xff]
    %v6888 = vld [vmem:[%s6838 + $0x188] sm:$0xff]
    %v6889 = vld [vmem:[%s6838 + $0x190] sm:$0xff]
    %v6890 = vld [vmem:[%s6838 + $0x198] sm:$0xff]
    %v6891 = vld [vmem:[%s6838 + $0x1a0] sm:$0xff]
    %v6892 = vld [vmem:[%s6838 + $0x1a8] sm:$0xff]
    %v6893 = vld [vmem:[%s6838 + $0x1b0] sm:$0xff]
    %v6894 = vld [vmem:[%s6838 + $0x1b8] sm:$0xff]
    %v6895 = vld [vmem:[%s6838 + $0x1c0] sm:$0xff]
    %v6896 = vld [vmem:[%s6838 + $0x1c8] sm:$0xff]
    %v6897 = vld [vmem:[%s6838 + $0x1d0] sm:$0xff]
    %v6898 = vld [vmem:[%s6838 + $0x1d8] sm:$0xff]
    %v6899 = vld [vmem:[%s6838 + $0x1e0] sm:$0xff]
    %v6900 = vld [vmem:[%s6838 + $0x1e8] sm:$0xff]
    %v6901 = vld [vmem:[%s6838 + $0x1f0] sm:$0xff]
    %v6902 = vld [vmem:[%s6838 + $0x1f8] sm:$0xff]
    %v6903 = vld [vmem:[%s6838 + $0x200] sm:$0xff]
    %v6904 = vld [vmem:[%s6838 + $0x208] sm:$0xff]
    %v6905 = vld [vmem:[%s6838 + $0x210] sm:$0xff]
    %v6906 = vld [vmem:[%s6838 + $0x218] sm:$0xff]
    %v6907 = vld [vmem:[%s6838 + $0x220] sm:$0xff]
    %v6908 = vld [vmem:[%s6838 + $0x228] sm:$0xff]
    %v6909 = vld [vmem:[%s6838 + $0x230] sm:$0xff]
    %v6910 = vld [vmem:[%s6838 + $0x238] sm:$0xff]
    %v6911 = vld [vmem:[%s6838 + $0x240] sm:$0xff]
    %v6912 = vld [vmem:[%s6838 + $0x248] sm:$0xff]
    %v6913 = vld [vmem:[%s6838 + $0x250] sm:$0xff]
    %v6914 = vld [vmem:[%s6838 + $0x258] sm:$0xff]
    %v6915 = vld [vmem:[%s6838 + $0x260] sm:$0xff]
    %v6916 = vld [vmem:[%s6838 + $0x268] sm:$0xff]
    %v6917 = vld [vmem:[%s6838 + $0x270] sm:$0xff]
    %v6918 = vld [vmem:[%s6838 + $0x278] sm:$0xff]
    %v6919 = vld [vmem:[%s6838 + $0x280] sm:$0xff]
    %v6920 = vld [vmem:[%s6838 + $0x288] sm:$0xff]
    %v6921 = vld [vmem:[%s6838 + $0x290] sm:$0xff]
    %v6922 = vld [vmem:[%s6838 + $0x298] sm:$0xff]
    %v6923 = vld [vmem:[%s6838 + $0x2a0] sm:$0xff]
    %v6924 = vld [vmem:[%s6838 + $0x2a8] sm:$0xff]
    %v6925 = vld [vmem:[%s6838 + $0x2b0] sm:$0xff]
    %v6926 = vld [vmem:[%s6838 + $0x2b8] sm:$0xff]
    %v6927 = vld [vmem:[%s6838 + $0x2c0] sm:$0xff]
    %v6928 = vld [vmem:[%s6838 + $0x2c8] sm:$0xff]
    %v6929 = vld [vmem:[%s6838 + $0x2d0] sm:$0xff]
    %v6930 = vld [vmem:[%s6838 + $0x2d8] sm:$0xff]
    %v6931 = vld [vmem:[%s6838 + $0x2e0] sm:$0xff]
    %v6932 = vld [vmem:[%s6838 + $0x2e8] sm:$0xff]
    %v6933 = vld [vmem:[%s6838 + $0x2f0] sm:$0xff]
    %v6934 = vld [vmem:[%s6838 + $0x2f8] sm:$0xff]
    %v6935 = vld [vmem:[%s6838 + $0x300] sm:$0xff]
    %v6936 = vld [vmem:[%s6838 + $0x308] sm:$0xff]
    %v6937 = vld [vmem:[%s6838 + $0x310] sm:$0xff]
    %v6938 = vld [vmem:[%s6838 + $0x318] sm:$0xff]
    %v6939 = vld [vmem:[%s6838 + $0x320] sm:$0xff]
    %v6940 = vld [vmem:[%s6838 + $0x328] sm:$0xff]
    %v6941 = vld [vmem:[%s6838 + $0x330] sm:$0xff]
    %v6942 = vld [vmem:[%s6838 + $0x338] sm:$0xff]
    %v6943 = vld [vmem:[%s6838 + $0x340] sm:$0xff]
    %v6944 = vld [vmem:[%s6838 + $0x348] sm:$0xff]
    %v6945 = vld [vmem:[%s6838 + $0x350] sm:$0xff]
    %v6946 = vld [vmem:[%s6838 + $0x358] sm:$0xff]
    %v6947 = vld [vmem:[%s6838 + $0x360] sm:$0xff]
    %v6948 = vld [vmem:[%s6838 + $0x368] sm:$0xff]
    %v6949 = vld [vmem:[%s6838 + $0x370] sm:$0xff]
    %v6950 = vld [vmem:[%s6838 + $0x378] sm:$0xff]
    %v6951 = vld [vmem:[%s6838 + $0x380] sm:$0xff]
    %v6952 = vld [vmem:[%s6838 + $0x388] sm:$0xff]
    %v6953 = vld [vmem:[%s6838 + $0x390] sm:$0xff]
    %v6954 = vld [vmem:[%s6838 + $0x398] sm:$0xff]
    %v6955 = vld [vmem:[%s6838 + $0x3a0] sm:$0xff]
    %v6956 = vld [vmem:[%s6838 + $0x3a8] sm:$0xff]
    %v6957 = vld [vmem:[%s6838 + $0x3b0] sm:$0xff]
    %v6958 = vld [vmem:[%s6838 + $0x3b8] sm:$0xff]
    %v6959 = vld [vmem:[%s6838 + $0x3c0] sm:$0xff]
    %v6960 = vld [vmem:[%s6838 + $0x3c8] sm:$0xff]
    %v6961 = vld [vmem:[%s6838 + $0x3d0] sm:$0xff]
    %v6962 = vld [vmem:[%s6838 + $0x3d8] sm:$0xff]
    %v6963 = vld [vmem:[%s6838 + $0x3e0] sm:$0xff]
    %v6964 = vld [vmem:[%s6838 + $0x3e8] sm:$0xff]
    %v6965 = vld [vmem:[%s6838 + $0x3f0] sm:$0xff]
    %v6966 = vld [vmem:[%s6838 + $0x3f8] sm:$0xff]
    %v6967 = vpack.c.bf16 %v6832, %v6830
    %v6968 = vpack.c.bf16 %v6833, %v6831
    %v6969 = vpack.c.bf16 %v6836, %v6834
    %v6970 = vpack.c.bf16 %v6837, %v6835
    %s6971 = scalar_lea.vmem %s14, 8
    %v6972 = vld [vmem:[%s6971] sm:$0xff]
    %v6974 = vlaneseq
    %v6975 = vshrl.u32 %v6974, 7
    %v6976 = vsub.s32 0, %v6975
    %v6977 = vrot.slane %v6972, %v6976
    %v6978 = vlaneseq
    %v6979 = vshrl.u32 %v6978, 7
    %v6980 = vsub.s32 1, %v6979
    %v6981 = vrot.slane %v6972, %v6980
    %v6982 = vlaneseq
    %v6983 = vshrl.u32 %v6982, 7
    %v6984 = vsub.s32 2, %v6983
    %v6985 = vrot.slane %v6972, %v6984
    %v6986 = vlaneseq
    %v6987 = vshrl.u32 %v6986, 7
    %v6988 = vsub.s32 3, %v6987
    %v6989 = vrot.slane %v6972, %v6988
    %v6990 = vlaneseq
    %v6991 = vshrl.u32 %v6990, 7
    %v6992 = vsub.s32 4, %v6991
    %v6993 = vrot.slane %v6972, %v6992
    %v6994 = vlaneseq
    %v6995 = vshrl.u32 %v6994, 7
    %v6996 = vsub.s32 5, %v6995
    %v6997 = vrot.slane %v6972, %v6996
    %v6998 = vlaneseq
    %v6999 = vshrl.u32 %v6998, 7
    %v7000 = vsub.s32 6, %v6999
    %v7001 = vrot.slane %v6972, %v7000
    %v7002 = vlaneseq
    %v7003 = vshrl.u32 %v7002, 7
    %v7004 = vsub.s32 7, %v7003
    %v7005 = vrot.slane %v6972, %v7004
    %v7142 = vunpack.c.l.b16 %v6839
    %v7143 = vunpack.c.h.b16 %v6839
    %v7144 = vunpack.c.l.b16 %v6840
    %v7145 = vunpack.c.h.b16 %v6840
    %v7146 = vunpack.c.l.b16 %v6841
    %v7147 = vunpack.c.h.b16 %v6841
    %v7148 = vunpack.c.l.b16 %v6842
    %v7149 = vunpack.c.h.b16 %v6842
    %v7150 = vunpack.c.l.b16 %v6843
    %v7151 = vunpack.c.h.b16 %v6843
    %v7152 = vunpack.c.l.b16 %v6844
    %v7153 = vunpack.c.h.b16 %v6844
    %v7154 = vunpack.c.l.b16 %v6845
    %v7155 = vunpack.c.h.b16 %v6845
    %v7156 = vunpack.c.l.b16 %v6846
    %v7157 = vunpack.c.h.b16 %v6846
    %v7158 = vunpack.c.l.b16 %v6847
    %v7159 = vunpack.c.h.b16 %v6847
    %v7160 = vunpack.c.l.b16 %v6848
    %v7161 = vunpack.c.h.b16 %v6848
    %v7162 = vunpack.c.l.b16 %v6849
    %v7163 = vunpack.c.h.b16 %v6849
    %v7164 = vunpack.c.l.b16 %v6850
    %v7165 = vunpack.c.h.b16 %v6850
    %v7166 = vunpack.c.l.b16 %v6851
    %v7167 = vunpack.c.h.b16 %v6851
    %v7168 = vunpack.c.l.b16 %v6852
    %v7169 = vunpack.c.h.b16 %v6852
    %v7170 = vunpack.c.l.b16 %v6853
    %v7171 = vunpack.c.h.b16 %v6853
    %v7172 = vunpack.c.l.b16 %v6854
    %v7173 = vunpack.c.h.b16 %v6854
    %v7174 = vunpack.c.l.b16 %v6855
    %v7175 = vunpack.c.h.b16 %v6855
    %v7176 = vunpack.c.l.b16 %v6856
    %v7177 = vunpack.c.h.b16 %v6856
    %v7178 = vunpack.c.l.b16 %v6857
    %v7179 = vunpack.c.h.b16 %v6857
    %v7180 = vunpack.c.l.b16 %v6858
    %v7181 = vunpack.c.h.b16 %v6858
    %v7182 = vunpack.c.l.b16 %v6859
    %v7183 = vunpack.c.h.b16 %v6859
    %v7184 = vunpack.c.l.b16 %v6860
    %v7185 = vunpack.c.h.b16 %v6860
    %v7186 = vunpack.c.l.b16 %v6861
    %v7187 = vunpack.c.h.b16 %v6861
    %v7188 = vunpack.c.l.b16 %v6862
    %v7189 = vunpack.c.h.b16 %v6862
    %v7190 = vunpack.c.l.b16 %v6863
    %v7191 = vunpack.c.h.b16 %v6863
    %v7192 = vunpack.c.l.b16 %v6864
    %v7193 = vunpack.c.h.b16 %v6864
    %v7194 = vunpack.c.l.b16 %v6865
    %v7195 = vunpack.c.h.b16 %v6865
    %v7196 = vunpack.c.l.b16 %v6866
    %v7197 = vunpack.c.h.b16 %v6866
    %v7198 = vunpack.c.l.b16 %v6867
    %v7199 = vunpack.c.h.b16 %v6867
    %v7200 = vunpack.c.l.b16 %v6868
    %v7201 = vunpack.c.h.b16 %v6868
    %v7202 = vunpack.c.l.b16 %v6869
    %v7203 = vunpack.c.h.b16 %v6869
    %v7204 = vunpack.c.l.b16 %v6870
    %v7205 = vunpack.c.h.b16 %v6870
    %v7206 = vunpack.c.l.b16 %v6871
    %v7207 = vunpack.c.h.b16 %v6871
    %v7208 = vunpack.c.l.b16 %v6872
    %v7209 = vunpack.c.h.b16 %v6872
    %v7210 = vunpack.c.l.b16 %v6873
    %v7211 = vunpack.c.h.b16 %v6873
    %v7212 = vunpack.c.l.b16 %v6874
    %v7213 = vunpack.c.h.b16 %v6874
    %v7214 = vunpack.c.l.b16 %v6875
    %v7215 = vunpack.c.h.b16 %v6875
    %v7216 = vunpack.c.l.b16 %v6876
    %v7217 = vunpack.c.h.b16 %v6876
    %v7218 = vunpack.c.l.b16 %v6877
    %v7219 = vunpack.c.h.b16 %v6877
    %v7220 = vunpack.c.l.b16 %v6878
    %v7221 = vunpack.c.h.b16 %v6878
    %v7222 = vunpack.c.l.b16 %v6879
    %v7223 = vunpack.c.h.b16 %v6879
    %v7224 = vunpack.c.l.b16 %v6880
    %v7225 = vunpack.c.h.b16 %v6880
    %v7226 = vunpack.c.l.b16 %v6881
    %v7227 = vunpack.c.h.b16 %v6881
    %v7228 = vunpack.c.l.b16 %v6882
    %v7229 = vunpack.c.h.b16 %v6882
    %v7230 = vunpack.c.l.b16 %v6883
    %v7231 = vunpack.c.h.b16 %v6883
    %v7232 = vunpack.c.l.b16 %v6884
    %v7233 = vunpack.c.h.b16 %v6884
    %v7234 = vunpack.c.l.b16 %v6885
    %v7235 = vunpack.c.h.b16 %v6885
    %v7236 = vunpack.c.l.b16 %v6886
    %v7237 = vunpack.c.h.b16 %v6886
    %v7238 = vunpack.c.l.b16 %v6887
    %v7239 = vunpack.c.h.b16 %v6887
    %v7240 = vunpack.c.l.b16 %v6888
    %v7241 = vunpack.c.h.b16 %v6888
    %v7242 = vunpack.c.l.b16 %v6889
    %v7243 = vunpack.c.h.b16 %v6889
    %v7244 = vunpack.c.l.b16 %v6890
    %v7245 = vunpack.c.h.b16 %v6890
    %v7246 = vunpack.c.l.b16 %v6891
    %v7247 = vunpack.c.h.b16 %v6891
    %v7248 = vunpack.c.l.b16 %v6892
    %v7249 = vunpack.c.h.b16 %v6892
    %v7250 = vunpack.c.l.b16 %v6893
    %v7251 = vunpack.c.h.b16 %v6893
    %v7252 = vunpack.c.l.b16 %v6894
    %v7253 = vunpack.c.h.b16 %v6894
    %v7254 = vunpack.c.l.b16 %v6895
    %v7255 = vunpack.c.h.b16 %v6895
    %v7256 = vunpack.c.l.b16 %v6896
    %v7257 = vunpack.c.h.b16 %v6896
    %v7258 = vunpack.c.l.b16 %v6897
    %v7259 = vunpack.c.h.b16 %v6897
    %v7260 = vunpack.c.l.b16 %v6898
    %v7261 = vunpack.c.h.b16 %v6898
    %v7262 = vunpack.c.l.b16 %v6899
    %v7263 = vunpack.c.h.b16 %v6899
    %v7264 = vunpack.c.l.b16 %v6900
    %v7265 = vunpack.c.h.b16 %v6900
    %v7266 = vunpack.c.l.b16 %v6901
    %v7267 = vunpack.c.h.b16 %v6901
    %v7268 = vunpack.c.l.b16 %v6902
    %v7269 = vunpack.c.h.b16 %v6902
    %v7270 = vunpack.c.l.b16 %v6903
    %v7271 = vunpack.c.h.b16 %v6903
    %v7272 = vunpack.c.l.b16 %v6904
    %v7273 = vunpack.c.h.b16 %v6904
    %v7274 = vunpack.c.l.b16 %v6905
    %v7275 = vunpack.c.h.b16 %v6905
    %v7276 = vunpack.c.l.b16 %v6906
    %v7277 = vunpack.c.h.b16 %v6906
    %v7278 = vunpack.c.l.b16 %v6907
    %v7279 = vunpack.c.h.b16 %v6907
    %v7280 = vunpack.c.l.b16 %v6908
    %v7281 = vunpack.c.h.b16 %v6908
    %v7282 = vunpack.c.l.b16 %v6909
    %v7283 = vunpack.c.h.b16 %v6909
    %v7284 = vunpack.c.l.b16 %v6910
    %v7285 = vunpack.c.h.b16 %v6910
    %v7286 = vunpack.c.l.b16 %v6911
    %v7287 = vunpack.c.h.b16 %v6911
    %v7288 = vunpack.c.l.b16 %v6912
    %v7289 = vunpack.c.h.b16 %v6912
    %v7290 = vunpack.c.l.b16 %v6913
    %v7291 = vunpack.c.h.b16 %v6913
    %v7292 = vunpack.c.l.b16 %v6914
    %v7293 = vunpack.c.h.b16 %v6914
    %v7294 = vunpack.c.l.b16 %v6915
    %v7295 = vunpack.c.h.b16 %v6915
    %v7296 = vunpack.c.l.b16 %v6916
    %v7297 = vunpack.c.h.b16 %v6916
    %v7298 = vunpack.c.l.b16 %v6917
    %v7299 = vunpack.c.h.b16 %v6917
    %v7300 = vunpack.c.l.b16 %v6918
    %v7301 = vunpack.c.h.b16 %v6918
    %v7302 = vunpack.c.l.b16 %v6919
    %v7303 = vunpack.c.h.b16 %v6919
    %v7304 = vunpack.c.l.b16 %v6920
    %v7305 = vunpack.c.h.b16 %v6920
    %v7306 = vunpack.c.l.b16 %v6921
    %v7307 = vunpack.c.h.b16 %v6921
    %v7308 = vunpack.c.l.b16 %v6922
    %v7309 = vunpack.c.h.b16 %v6922
    %v7310 = vunpack.c.l.b16 %v6923
    %v7311 = vunpack.c.h.b16 %v6923
    %v7312 = vunpack.c.l.b16 %v6924
    %v7313 = vunpack.c.h.b16 %v6924
    %v7314 = vunpack.c.l.b16 %v6925
    %v7315 = vunpack.c.h.b16 %v6925
    %v7316 = vunpack.c.l.b16 %v6926
    %v7317 = vunpack.c.h.b16 %v6926
    %v7318 = vunpack.c.l.b16 %v6927
    %v7319 = vunpack.c.h.b16 %v6927
    %v7320 = vunpack.c.l.b16 %v6928
    %v7321 = vunpack.c.h.b16 %v6928
    %v7322 = vunpack.c.l.b16 %v6929
    %v7323 = vunpack.c.h.b16 %v6929
    %v7324 = vunpack.c.l.b16 %v6930
    %v7325 = vunpack.c.h.b16 %v6930
    %v7326 = vunpack.c.l.b16 %v6931
    %v7327 = vunpack.c.h.b16 %v6931
    %v7328 = vunpack.c.l.b16 %v6932
    %v7329 = vunpack.c.h.b16 %v6932
    %v7330 = vunpack.c.l.b16 %v6933
    %v7331 = vunpack.c.h.b16 %v6933
    %v7332 = vunpack.c.l.b16 %v6934
    %v7333 = vunpack.c.h.b16 %v6934
    %v7334 = vunpack.c.l.b16 %v6935
    %v7335 = vunpack.c.h.b16 %v6935
    %v7336 = vunpack.c.l.b16 %v6936
    %v7337 = vunpack.c.h.b16 %v6936
    %v7338 = vunpack.c.l.b16 %v6937
    %v7339 = vunpack.c.h.b16 %v6937
    %v7340 = vunpack.c.l.b16 %v6938
    %v7341 = vunpack.c.h.b16 %v6938
    %v7342 = vunpack.c.l.b16 %v6939
    %v7343 = vunpack.c.h.b16 %v6939
    %v7344 = vunpack.c.l.b16 %v6940
    %v7345 = vunpack.c.h.b16 %v6940
    %v7346 = vunpack.c.l.b16 %v6941
    %v7347 = vunpack.c.h.b16 %v6941
    %v7348 = vunpack.c.l.b16 %v6942
    %v7349 = vunpack.c.h.b16 %v6942
    %v7350 = vunpack.c.l.b16 %v6943
    %v7351 = vunpack.c.h.b16 %v6943
    %v7352 = vunpack.c.l.b16 %v6944
    %v7353 = vunpack.c.h.b16 %v6944
    %v7354 = vunpack.c.l.b16 %v6945
    %v7355 = vunpack.c.h.b16 %v6945
    %v7356 = vunpack.c.l.b16 %v6946
    %v7357 = vunpack.c.h.b16 %v6946
    %v7358 = vunpack.c.l.b16 %v6947
    %v7359 = vunpack.c.h.b16 %v6947
    %v7360 = vunpack.c.l.b16 %v6948
    %v7361 = vunpack.c.h.b16 %v6948
    %v7362 = vunpack.c.l.b16 %v6949
    %v7363 = vunpack.c.h.b16 %v6949
    %v7364 = vunpack.c.l.b16 %v6950
    %v7365 = vunpack.c.h.b16 %v6950
    %v7366 = vunpack.c.l.b16 %v6951
    %v7367 = vunpack.c.h.b16 %v6951
    %v7368 = vunpack.c.l.b16 %v6952
    %v7369 = vunpack.c.h.b16 %v6952
    %v7370 = vunpack.c.l.b16 %v6953
    %v7371 = vunpack.c.h.b16 %v6953
    %v7372 = vunpack.c.l.b16 %v6954
    %v7373 = vunpack.c.h.b16 %v6954
    %v7374 = vunpack.c.l.b16 %v6955
    %v7375 = vunpack.c.h.b16 %v6955
    %v7376 = vunpack.c.l.b16 %v6956
    %v7377 = vunpack.c.h.b16 %v6956
    %v7378 = vunpack.c.l.b16 %v6957
    %v7379 = vunpack.c.h.b16 %v6957
    %v7380 = vunpack.c.l.b16 %v6958
    %v7381 = vunpack.c.h.b16 %v6958
    %v7382 = vunpack.c.l.b16 %v6959
    %v7383 = vunpack.c.h.b16 %v6959
    %v7384 = vunpack.c.l.b16 %v6960
    %v7385 = vunpack.c.h.b16 %v6960
    %v7386 = vunpack.c.l.b16 %v6961
    %v7387 = vunpack.c.h.b16 %v6961
    %v7388 = vunpack.c.l.b16 %v6962
    %v7389 = vunpack.c.h.b16 %v6962
    %v7390 = vunpack.c.l.b16 %v6963
    %v7391 = vunpack.c.h.b16 %v6963
    %v7392 = vunpack.c.l.b16 %v6964
    %v7393 = vunpack.c.h.b16 %v6964
    %v7394 = vunpack.c.l.b16 %v6965
    %v7395 = vunpack.c.h.b16 %v6965
    %v7396 = vunpack.c.l.b16 %v6966
    %v7397 = vunpack.c.h.b16 %v6966
    %v7398 = vpack.c.b16 %v7150, %v7142
    %v7399 = vpack.c.b16 %v7151, %v7143
    %v7400 = vpack.c.b16 %v7152, %v7144
    %v7401 = vpack.c.b16 %v7153, %v7145
    %v7402 = vpack.c.b16 %v7154, %v7146
    %v7403 = vpack.c.b16 %v7155, %v7147
    %v7404 = vpack.c.b16 %v7156, %v7148
    %v7405 = vpack.c.b16 %v7157, %v7149
    %v7406 = vpack.c.b16 %v7166, %v7158
    %v7407 = vpack.c.b16 %v7167, %v7159
    %v7408 = vpack.c.b16 %v7168, %v7160
    %v7409 = vpack.c.b16 %v7169, %v7161
    %v7410 = vpack.c.b16 %v7170, %v7162
    %v7411 = vpack.c.b16 %v7171, %v7163
    %v7412 = vpack.c.b16 %v7172, %v7164
    %v7413 = vpack.c.b16 %v7173, %v7165
    %v7414 = vpack.c.b16 %v7182, %v7174
    %v7415 = vpack.c.b16 %v7183, %v7175
    %v7416 = vpack.c.b16 %v7184, %v7176
    %v7417 = vpack.c.b16 %v7185, %v7177
    %v7418 = vpack.c.b16 %v7186, %v7178
    %v7419 = vpack.c.b16 %v7187, %v7179
    %v7420 = vpack.c.b16 %v7188, %v7180
    %v7421 = vpack.c.b16 %v7189, %v7181
    %v7422 = vpack.c.b16 %v7198, %v7190
    %v7423 = vpack.c.b16 %v7199, %v7191
    %v7424 = vpack.c.b16 %v7200, %v7192
    %v7425 = vpack.c.b16 %v7201, %v7193
    %v7426 = vpack.c.b16 %v7202, %v7194
    %v7427 = vpack.c.b16 %v7203, %v7195
    %v7428 = vpack.c.b16 %v7204, %v7196
    %v7429 = vpack.c.b16 %v7205, %v7197
    %v7430 = vpack.c.b16 %v7214, %v7206
    %v7431 = vpack.c.b16 %v7215, %v7207
    %v7432 = vpack.c.b16 %v7216, %v7208
    %v7433 = vpack.c.b16 %v7217, %v7209
    %v7434 = vpack.c.b16 %v7218, %v7210
    %v7435 = vpack.c.b16 %v7219, %v7211
    %v7436 = vpack.c.b16 %v7220, %v7212
    %v7437 = vpack.c.b16 %v7221, %v7213
    %v7438 = vpack.c.b16 %v7230, %v7222
    %v7439 = vpack.c.b16 %v7231, %v7223
    %v7440 = vpack.c.b16 %v7232, %v7224
    %v7441 = vpack.c.b16 %v7233, %v7225
    %v7442 = vpack.c.b16 %v7234, %v7226
    %v7443 = vpack.c.b16 %v7235, %v7227
    %v7444 = vpack.c.b16 %v7236, %v7228
    %v7445 = vpack.c.b16 %v7237, %v7229
    %v7446 = vpack.c.b16 %v7246, %v7238
    %v7447 = vpack.c.b16 %v7247, %v7239
    %v7448 = vpack.c.b16 %v7248, %v7240
    %v7449 = vpack.c.b16 %v7249, %v7241
    %v7450 = vpack.c.b16 %v7250, %v7242
    %v7451 = vpack.c.b16 %v7251, %v7243
    %v7452 = vpack.c.b16 %v7252, %v7244
    %v7453 = vpack.c.b16 %v7253, %v7245
    %v7454 = vpack.c.b16 %v7262, %v7254
    %v7455 = vpack.c.b16 %v7263, %v7255
    %v7456 = vpack.c.b16 %v7264, %v7256
    %v7457 = vpack.c.b16 %v7265, %v7257
    %v7458 = vpack.c.b16 %v7266, %v7258
    %v7459 = vpack.c.b16 %v7267, %v7259
    %v7460 = vpack.c.b16 %v7268, %v7260
    %v7461 = vpack.c.b16 %v7269, %v7261
    %v7462 = vpack.c.b16 %v7278, %v7270
    %v7463 = vpack.c.b16 %v7279, %v7271
    %v7464 = vpack.c.b16 %v7280, %v7272
    %v7465 = vpack.c.b16 %v7281, %v7273
    %v7466 = vpack.c.b16 %v7282, %v7274
    %v7467 = vpack.c.b16 %v7283, %v7275
    %v7468 = vpack.c.b16 %v7284, %v7276
    %v7469 = vpack.c.b16 %v7285, %v7277
    %v7470 = vpack.c.b16 %v7294, %v7286
    %v7471 = vpack.c.b16 %v7295, %v7287
    %v7472 = vpack.c.b16 %v7296, %v7288
    %v7473 = vpack.c.b16 %v7297, %v7289
    %v7474 = vpack.c.b16 %v7298, %v7290
    %v7475 = vpack.c.b16 %v7299, %v7291
    %v7476 = vpack.c.b16 %v7300, %v7292
    %v7477 = vpack.c.b16 %v7301, %v7293
    %v7478 = vpack.c.b16 %v7310, %v7302
    %v7479 = vpack.c.b16 %v7311, %v7303
    %v7480 = vpack.c.b16 %v7312, %v7304
    %v7481 = vpack.c.b16 %v7313, %v7305
    %v7482 = vpack.c.b16 %v7314, %v7306
    %v7483 = vpack.c.b16 %v7315, %v7307
    %v7484 = vpack.c.b16 %v7316, %v7308
    %v7485 = vpack.c.b16 %v7317, %v7309
    %v7486 = vpack.c.b16 %v7326, %v7318
    %v7487 = vpack.c.b16 %v7327, %v7319
    %v7488 = vpack.c.b16 %v7328, %v7320
    %v7489 = vpack.c.b16 %v7329, %v7321
    %v7490 = vpack.c.b16 %v7330, %v7322
    %v7491 = vpack.c.b16 %v7331, %v7323
    %v7492 = vpack.c.b16 %v7332, %v7324
    %v7493 = vpack.c.b16 %v7333, %v7325
    %v7494 = vpack.c.b16 %v7342, %v7334
    %v7495 = vpack.c.b16 %v7343, %v7335
    %v7496 = vpack.c.b16 %v7344, %v7336
    %v7497 = vpack.c.b16 %v7345, %v7337
    %v7498 = vpack.c.b16 %v7346, %v7338
    %v7499 = vpack.c.b16 %v7347, %v7339
    %v7500 = vpack.c.b16 %v7348, %v7340
    %v7501 = vpack.c.b16 %v7349, %v7341
    %v7502 = vpack.c.b16 %v7358, %v7350
    %v7503 = vpack.c.b16 %v7359, %v7351
    %v7504 = vpack.c.b16 %v7360, %v7352
    %v7505 = vpack.c.b16 %v7361, %v7353
    %v7506 = vpack.c.b16 %v7362, %v7354
    %v7507 = vpack.c.b16 %v7363, %v7355
    %v7508 = vpack.c.b16 %v7364, %v7356
    %v7509 = vpack.c.b16 %v7365, %v7357
    %v7510 = vpack.c.b16 %v7374, %v7366
    %v7511 = vpack.c.b16 %v7375, %v7367
    %v7512 = vpack.c.b16 %v7376, %v7368
    %v7513 = vpack.c.b16 %v7377, %v7369
    %v7514 = vpack.c.b16 %v7378, %v7370
    %v7515 = vpack.c.b16 %v7379, %v7371
    %v7516 = vpack.c.b16 %v7380, %v7372
    %v7517 = vpack.c.b16 %v7381, %v7373
    %v7518 = vpack.c.b16 %v7390, %v7382
    %v7519 = vpack.c.b16 %v7391, %v7383
    %v7520 = vpack.c.b16 %v7392, %v7384
    %v7521 = vpack.c.b16 %v7393, %v7385
    %v7522 = vpack.c.b16 %v7394, %v7386
    %v7523 = vpack.c.b16 %v7395, %v7387
    %v7524 = vpack.c.b16 %v7396, %v7388
    %v7525 = vpack.c.b16 %v7397, %v7389
    %7654 = vmatprep.subr.bf16.mxu0 %v7455
    %7655 = vmatpush1.bf16.msra.mxu0 %v7454
    %7656 = vmatprep.subr.bf16.mxu0 %v7447
    %7657 = vmatpush1.bf16.msra.mxu0 %v7446
    %7658 = vmatprep.subr.bf16.mxu0 %v7439
    %7659 = vmatpush1.bf16.msra.mxu0 %v7438
    %7660 = vmatprep.subr.bf16.mxu0 %v7431
    %7661 = vmatpush1.bf16.msra.mxu0 %v7430
    %7662 = vmatprep.subr.bf16.mxu0 %v7423
    %7663 = vmatpush1.bf16.msra.mxu0 %v7422
    %7664 = vmatprep.subr.bf16.mxu0 %v7415
    %7665 = vmatpush1.bf16.msra.mxu0 %v7414
    %7666 = vmatprep.subr.bf16.mxu0 %v7407
    %7667 = vmatpush1.bf16.msra.mxu0 %v7406
    %7668 = vmatprep.subr.bf16.mxu0 %v7399
    %7669 = vmatpush1.bf16.msra.mxu0 %v7398
    %7670 = vmatprep.subr.bf16.mxu0 %v7519
    %7671 = vmatpush2.bf16.msra.mxu0 %v7518
    %7672 = vmatprep.subr.bf16.mxu0 %v7511
    %7673 = vmatpush2.bf16.msra.mxu0 %v7510
    %7674 = vmatprep.subr.bf16.mxu0 %v7503
    %7675 = vmatpush2.bf16.msra.mxu0 %v7502
    %7676 = vmatprep.subr.bf16.mxu0 %v7495
    %7677 = vmatpush2.bf16.msra.mxu0 %v7494
    %7678 = vmatprep.subr.bf16.mxu0 %v7487
    %7679 = vmatpush2.bf16.msra.mxu0 %v7486
    %7680 = vmatprep.subr.bf16.mxu0 %v7479
    %7681 = vmatpush2.bf16.msra.mxu0 %v7478
    %7682 = vmatprep.subr.bf16.mxu0 %v7471
    %7683 = vmatpush2.bf16.msra.mxu0 %v7470
    %7684 = vmatprep.subr.bf16.mxu0 %v7463
    %7685 = vmatpush2.bf16.msra.mxu0 %v7462
    %7686 = vmatprep.mubr.bf16.mxu0 %v6968
    %7687 = vmatmul.mubr.bf16.gmra.mxu0 %v6967
    %v7688 = vpop.f32.mrf.mxu0
    %v7689 = vadd.f32 %v6977, %v7688
    %v7690 = vpop.f32.mrf.mxu0
    %v7691 = vadd.f32 %v6981, %v7690
    %v7692 = vpop.f32.mrf.mxu0
    %v7693 = vadd.f32 %v6977, %v7692
    %v7694 = vpop.f32.mrf.mxu0
    %v7695 = vadd.f32 %v6981, %v7694
    %7696 = vmatprep.mubr.bf16.mxu0 %v6970
    %7697 = vmatmul.mubr.bf16.gmra.mxu0 %v6969
    %v7698 = vpop.f32.mrf.mxu0
    %v7699 = vadd.f32 %v6977, %v7698
    %v7700 = vpop.f32.mrf.mxu0
    %v7701 = vadd.f32 %v6981, %v7700
    %v7702 = vpop.f32.mrf.mxu0
    %v7703 = vadd.f32 %v6977, %v7702
    %v7704 = vpop.f32.mrf.mxu0
    %v7705 = vadd.f32 %v6981, %v7704
    %7706 = vdwg.mxu0
    %7707 = vmatprep.subr.bf16.mxu0 %v7457
    %7708 = vmatpush1.bf16.msra.mxu0 %v7456
    %7709 = vmatprep.subr.bf16.mxu0 %v7449
    %7710 = vmatpush1.bf16.msra.mxu0 %v7448
    %7711 = vmatprep.subr.bf16.mxu0 %v7441
    %7712 = vmatpush1.bf16.msra.mxu0 %v7440
    %7713 = vmatprep.subr.bf16.mxu0 %v7433
    %7714 = vmatpush1.bf16.msra.mxu0 %v7432
    %7715 = vmatprep.subr.bf16.mxu0 %v7425
    %7716 = vmatpush1.bf16.msra.mxu0 %v7424
    %7717 = vmatprep.subr.bf16.mxu0 %v7417
    %7718 = vmatpush1.bf16.msra.mxu0 %v7416
    %7719 = vmatprep.subr.bf16.mxu0 %v7409
    %7720 = vmatpush1.bf16.msra.mxu0 %v7408
    %7721 = vmatprep.subr.bf16.mxu0 %v7401
    %7722 = vmatpush1.bf16.msra.mxu0 %v7400
    %7723 = vmatprep.subr.bf16.mxu0 %v7521
    %7724 = vmatpush2.bf16.msra.mxu0 %v7520
    %7725 = vmatprep.subr.bf16.mxu0 %v7513
    %7726 = vmatpush2.bf16.msra.mxu0 %v7512
    %7727 = vmatprep.subr.bf16.mxu0 %v7505
    %7728 = vmatpush2.bf16.msra.mxu0 %v7504
    %7729 = vmatprep.subr.bf16.mxu0 %v7497
    %7730 = vmatpush2.bf16.msra.mxu0 %v7496
    %7731 = vmatprep.subr.bf16.mxu0 %v7489
    %7732 = vmatpush2.bf16.msra.mxu0 %v7488
    %7733 = vmatprep.subr.bf16.mxu0 %v7481
    %7734 = vmatpush2.bf16.msra.mxu0 %v7480
    %7735 = vmatprep.subr.bf16.mxu0 %v7473
    %7736 = vmatpush2.bf16.msra.mxu0 %v7472
    %7737 = vmatprep.subr.bf16.mxu0 %v7465
    %7738 = vmatpush2.bf16.msra.mxu0 %v7464
    %7739 = vmatprep.mubr.bf16.mxu0 %v6968
    %7740 = vmatmul.mubr.bf16.gmra.mxu0 %v6967
    %v7741 = vpop.f32.mrf.mxu0
    %v7742 = vadd.f32 %v6985, %v7741
    %v7743 = vpop.f32.mrf.mxu0
    %v7744 = vadd.f32 %v6989, %v7743
    %v7745 = vpop.f32.mrf.mxu0
    %v7746 = vadd.f32 %v6985, %v7745
    %v7747 = vpop.f32.mrf.mxu0
    %v7748 = vadd.f32 %v6989, %v7747
    %7749 = vmatprep.mubr.bf16.mxu0 %v6970
    %7750 = vmatmul.mubr.bf16.gmra.mxu0 %v6969
    %v7751 = vpop.f32.mrf.mxu0
    %v7752 = vadd.f32 %v6985, %v7751
    %v7753 = vpop.f32.mrf.mxu0
    %v7754 = vadd.f32 %v6989, %v7753
    %v7755 = vpop.f32.mrf.mxu0
    %v7756 = vadd.f32 %v6985, %v7755
    %v7757 = vpop.f32.mrf.mxu0
    %v7758 = vadd.f32 %v6989, %v7757
    %7759 = vdwg.mxu0
    %7760 = vmatprep.subr.bf16.mxu0 %v7459
    %7761 = vmatpush1.bf16.msra.mxu0 %v7458
    %7762 = vmatprep.subr.bf16.mxu0 %v7451
    %7763 = vmatpush1.bf16.msra.mxu0 %v7450
    %7764 = vmatprep.subr.bf16.mxu0 %v7443
    %7765 = vmatpush1.bf16.msra.mxu0 %v7442
    %7766 = vmatprep.subr.bf16.mxu0 %v7435
    %7767 = vmatpush1.bf16.msra.mxu0 %v7434
    %7768 = vmatprep.subr.bf16.mxu0 %v7427
    %7769 = vmatpush1.bf16.msra.mxu0 %v7426
    %7770 = vmatprep.subr.bf16.mxu0 %v7419
    %7771 = vmatpush1.bf16.msra.mxu0 %v7418
    %7772 = vmatprep.subr.bf16.mxu0 %v7411
    %7773 = vmatpush1.bf16.msra.mxu0 %v7410
    %7774 = vmatprep.subr.bf16.mxu0 %v7403
    %7775 = vmatpush1.bf16.msra.mxu0 %v7402
    %7776 = vmatprep.subr.bf16.mxu0 %v7523
    %7777 = vmatpush2.bf16.msra.mxu0 %v7522
    %7778 = vmatprep.subr.bf16.mxu0 %v7515
    %7779 = vmatpush2.bf16.msra.mxu0 %v7514
    %7780 = vmatprep.subr.bf16.mxu0 %v7507
    %7781 = vmatpush2.bf16.msra.mxu0 %v7506
    %7782 = vmatprep.subr.bf16.mxu0 %v7499
    %7783 = vmatpush2.bf16.msra.mxu0 %v7498
    %7784 = vmatprep.subr.bf16.mxu0 %v7491
    %7785 = vmatpush2.bf16.msra.mxu0 %v7490
    %7786 = vmatprep.subr.bf16.mxu0 %v7483
    %7787 = vmatpush2.bf16.msra.mxu0 %v7482
    %7788 = vmatprep.subr.bf16.mxu0 %v7475
    %7789 = vmatpush2.bf16.msra.mxu0 %v7474
    %7790 = vmatprep.subr.bf16.mxu0 %v7467
    %7791 = vmatpush2.bf16.msra.mxu0 %v7466
    %7792 = vmatprep.mubr.bf16.mxu0 %v6968
    %7793 = vmatmul.mubr.bf16.gmra.mxu0 %v6967
    %v7794 = vpop.f32.mrf.mxu0
    %v7795 = vadd.f32 %v6993, %v7794
    %v7796 = vpop.f32.mrf.mxu0
    %v7797 = vadd.f32 %v6997, %v7796
    %v7798 = vpop.f32.mrf.mxu0
    %v7799 = vadd.f32 %v6993, %v7798
    %v7800 = vpop.f32.mrf.mxu0
    %v7801 = vadd.f32 %v6997, %v7800
    %7802 = vmatprep.mubr.bf16.mxu0 %v6970
    %7803 = vmatmul.mubr.bf16.gmra.mxu0 %v6969
    %v7804 = vpop.f32.mrf.mxu0
    %v7805 = vadd.f32 %v6993, %v7804
    %v7806 = vpop.f32.mrf.mxu0
    %v7807 = vadd.f32 %v6997, %v7806
    %v7808 = vpop.f32.mrf.mxu0
    %v7809 = vadd.f32 %v6993, %v7808
    %v7810 = vpop.f32.mrf.mxu0
    %v7811 = vadd.f32 %v6997, %v7810
    %7812 = vdwg.mxu0
    %7813 = vmatprep.subr.bf16.mxu0 %v7461
    %7814 = vmatpush1.bf16.msra.mxu0 %v7460
    %7815 = vmatprep.subr.bf16.mxu0 %v7453
    %7816 = vmatpush1.bf16.msra.mxu0 %v7452
    %7817 = vmatprep.subr.bf16.mxu0 %v7445
    %7818 = vmatpush1.bf16.msra.mxu0 %v7444
    %7819 = vmatprep.subr.bf16.mxu0 %v7437
    %7820 = vmatpush1.bf16.msra.mxu0 %v7436
    %7821 = vmatprep.subr.bf16.mxu0 %v7429
    %7822 = vmatpush1.bf16.msra.mxu0 %v7428
    %7823 = vmatprep.subr.bf16.mxu0 %v7421
    %7824 = vmatpush1.bf16.msra.mxu0 %v7420
    %7825 = vmatprep.subr.bf16.mxu0 %v7413
    %7826 = vmatpush1.bf16.msra.mxu0 %v7412
    %7827 = vmatprep.subr.bf16.mxu0 %v7405
    %7828 = vmatpush1.bf16.msra.mxu0 %v7404
    %7829 = vmatprep.subr.bf16.mxu0 %v7525
    %7830 = vmatpush2.bf16.msra.mxu0 %v7524
    %7831 = vmatprep.subr.bf16.mxu0 %v7517
    %7832 = vmatpush2.bf16.msra.mxu0 %v7516
    %7833 = vmatprep.subr.bf16.mxu0 %v7509
    %7834 = vmatpush2.bf16.msra.mxu0 %v7508
    %7835 = vmatprep.subr.bf16.mxu0 %v7501
    %7836 = vmatpush2.bf16.msra.mxu0 %v7500
    %7837 = vmatprep.subr.bf16.mxu0 %v7493
    %7838 = vmatpush2.bf16.msra.mxu0 %v7492
    %7839 = vmatprep.subr.bf16.mxu0 %v7485
    %7840 = vmatpush2.bf16.msra.mxu0 %v7484
    %7841 = vmatprep.subr.bf16.mxu0 %v7477
    %7842 = vmatpush2.bf16.msra.mxu0 %v7476
    %7843 = vmatprep.subr.bf16.mxu0 %v7469
    %7844 = vmatpush2.bf16.msra.mxu0 %v7468
    %7845 = vmatprep.mubr.bf16.mxu0 %v6968
    %7846 = vmatmul.mubr.bf16.gmra.mxu0 %v6967
    %v7847 = vpop.f32.mrf.mxu0
    %v7848 = vadd.f32 %v7001, %v7847
    %v7849 = vpop.f32.mrf.mxu0
    %v7850 = vadd.f32 %v7005, %v7849
    %v7851 = vpop.f32.mrf.mxu0
    %v7852 = vadd.f32 %v7001, %v7851
    %v7853 = vpop.f32.mrf.mxu0
    %v7854 = vadd.f32 %v7005, %v7853
    %7855 = vmatprep.mubr.bf16.mxu0 %v6970
    %7856 = vmatmul.mubr.bf16.gmra.mxu0 %v6969
    %v7857 = vpop.f32.mrf.mxu0
    %v7858 = vadd.f32 %v7001, %v7857
    %v7859 = vpop.f32.mrf.mxu0
    %v7860 = vadd.f32 %v7005, %v7859
    %v7861 = vpop.f32.mrf.mxu0
    %v7862 = vadd.f32 %v7001, %v7861
    %v7863 = vpop.f32.mrf.mxu0
    %v7864 = vadd.f32 %v7005, %v7863
    %7865 = vdwg.mxu0
    %v7866 = vmul.f32 %v7689, 0.5
    %v7867 = vmul.f32 %v7691, 0.5
    %v7868 = vmul.f32 %v7742, 0.5
    %v7869 = vmul.f32 %v7744, 0.5
    %v7870 = vmul.f32 %v7795, 0.5
    %v7871 = vmul.f32 %v7797, 0.5
    %v7872 = vmul.f32 %v7848, 0.5
    %v7873 = vmul.f32 %v7850, 0.5
    %v7874 = vmul.f32 %v7693, 0.5
    %v7875 = vmul.f32 %v7695, 0.5
    %v7876 = vmul.f32 %v7746, 0.5
    %v7877 = vmul.f32 %v7748, 0.5
    %v7878 = vmul.f32 %v7799, 0.5
    %v7879 = vmul.f32 %v7801, 0.5
    %v7880 = vmul.f32 %v7852, 0.5
    %v7881 = vmul.f32 %v7854, 0.5
    %v7882 = vmul.f32 %v7699, 0.5
    %v7883 = vmul.f32 %v7701, 0.5
    %v7884 = vmul.f32 %v7752, 0.5
    %v7885 = vmul.f32 %v7754, 0.5
    %v7886 = vmul.f32 %v7805, 0.5
    %v7887 = vmul.f32 %v7807, 0.5
    %v7888 = vmul.f32 %v7858, 0.5
    %v7889 = vmul.f32 %v7860, 0.5
    %v7890 = vmul.f32 %v7703, 0.5
    %v7891 = vmul.f32 %v7705, 0.5
    %v7892 = vmul.f32 %v7756, 0.5
    %v7893 = vmul.f32 %v7758, 0.5
    %v7894 = vmul.f32 %v7809, 0.5
    %v7895 = vmul.f32 %v7811, 0.5
    %v7896 = vmul.f32 %v7862, 0.5
    %v7897 = vmul.f32 %v7864, 0.5
    %v7898 = vmul.f32 %v7689, 0.70710677
    %v7899 = vmul.f32 %v7691, 0.70710677
    %v7900 = vmul.f32 %v7742, 0.70710677
    %v7901 = vmul.f32 %v7744, 0.70710677
    %v7902 = vmul.f32 %v7795, 0.70710677
    %v7903 = vmul.f32 %v7797, 0.70710677
    %v7904 = vmul.f32 %v7848, 0.70710677
    %v7905 = vmul.f32 %v7850, 0.70710677
    %v7906 = vmul.f32 %v7693, 0.70710677
    %v7907 = vmul.f32 %v7695, 0.70710677
    %v7908 = vmul.f32 %v7746, 0.70710677
    %v7909 = vmul.f32 %v7748, 0.70710677
    %v7910 = vmul.f32 %v7799, 0.70710677
    %v7911 = vmul.f32 %v7801, 0.70710677
    %v7912 = vmul.f32 %v7852, 0.70710677
    %v7913 = vmul.f32 %v7854, 0.70710677
    %v7914 = vmul.f32 %v7699, 0.70710677
    %v7915 = vmul.f32 %v7701, 0.70710677
    %v7916 = vmul.f32 %v7752, 0.70710677
    %v7917 = vmul.f32 %v7754, 0.70710677
    %v7918 = vmul.f32 %v7805, 0.70710677
    %v7919 = vmul.f32 %v7807, 0.70710677
    %v7920 = vmul.f32 %v7858, 0.70710677
    %v7921 = vmul.f32 %v7860, 0.70710677
    %v7922 = vmul.f32 %v7703, 0.70710677
    %v7923 = vmul.f32 %v7705, 0.70710677
    %v7924 = vmul.f32 %v7756, 0.70710677
    %v7925 = vmul.f32 %v7758, 0.70710677
    %v7926 = vmul.f32 %v7809, 0.70710677
    %v7927 = vmul.f32 %v7811, 0.70710677
    %v7928 = vmul.f32 %v7862, 0.70710677
    %v7929 = vmul.f32 %v7864, 0.70710677
    %vm7930 = vcmp.lt.f32.partialorder %v7898, 0.0
    %vm7931 = vcmp.lt.f32.partialorder %v7899, 0.0
    %vm7932 = vcmp.lt.f32.partialorder %v7900, 0.0
    %vm7933 = vcmp.lt.f32.partialorder %v7901, 0.0
    %vm7934 = vcmp.lt.f32.partialorder %v7902, 0.0
    %vm7935 = vcmp.lt.f32.partialorder %v7903, 0.0
    %vm7936 = vcmp.lt.f32.partialorder %v7904, 0.0
    %vm7937 = vcmp.lt.f32.partialorder %v7905, 0.0
    %vm7938 = vcmp.lt.f32.partialorder %v7906, 0.0
    %vm7939 = vcmp.lt.f32.partialorder %v7907, 0.0
    %vm7940 = vcmp.lt.f32.partialorder %v7908, 0.0
    %vm7941 = vcmp.lt.f32.partialorder %v7909, 0.0
    %vm7942 = vcmp.lt.f32.partialorder %v7910, 0.0
    %vm7943 = vcmp.lt.f32.partialorder %v7911, 0.0
    %vm7944 = vcmp.lt.f32.partialorder %v7912, 0.0
    %vm7945 = vcmp.lt.f32.partialorder %v7913, 0.0
    %vm7946 = vcmp.lt.f32.partialorder %v7914, 0.0
    %vm7947 = vcmp.lt.f32.partialorder %v7915, 0.0
    %vm7948 = vcmp.lt.f32.partialorder %v7916, 0.0
    %vm7949 = vcmp.lt.f32.partialorder %v7917, 0.0
    %vm7950 = vcmp.lt.f32.partialorder %v7918, 0.0
    %vm7951 = vcmp.lt.f32.partialorder %v7919, 0.0
    %vm7952 = vcmp.lt.f32.partialorder %v7920, 0.0
    %vm7953 = vcmp.lt.f32.partialorder %v7921, 0.0
    %vm7954 = vcmp.lt.f32.partialorder %v7922, 0.0
    %vm7955 = vcmp.lt.f32.partialorder %v7923, 0.0
    %vm7956 = vcmp.lt.f32.partialorder %v7924, 0.0
    %vm7957 = vcmp.lt.f32.partialorder %v7925, 0.0
    %vm7958 = vcmp.lt.f32.partialorder %v7926, 0.0
    %vm7959 = vcmp.lt.f32.partialorder %v7927, 0.0
    %vm7960 = vcmp.lt.f32.partialorder %v7928, 0.0
    %vm7961 = vcmp.lt.f32.partialorder %v7929, 0.0
    %v7962 = vsel %vm7930, -1.0, 1.0
    %v7963 = vsel %vm7931, -1.0, 1.0
    %v7964 = vsel %vm7932, -1.0, 1.0
    %v7965 = vsel %vm7933, -1.0, 1.0
    %v7966 = vsel %vm7934, -1.0, 1.0
    %v7967 = vsel %vm7935, -1.0, 1.0
    %v7968 = vsel %vm7936, -1.0, 1.0
    %v7969 = vsel %vm7937, -1.0, 1.0
    %v7970 = vsel %vm7938, -1.0, 1.0
    %v7971 = vsel %vm7939, -1.0, 1.0
    %v7972 = vsel %vm7940, -1.0, 1.0
    %v7973 = vsel %vm7941, -1.0, 1.0
    %v7974 = vsel %vm7942, -1.0, 1.0
    %v7975 = vsel %vm7943, -1.0, 1.0
    %v7976 = vsel %vm7944, -1.0, 1.0
    %v7977 = vsel %vm7945, -1.0, 1.0
    %v7978 = vsel %vm7946, -1.0, 1.0
    %v7979 = vsel %vm7947, -1.0, 1.0
    %v7980 = vsel %vm7948, -1.0, 1.0
    %v7981 = vsel %vm7949, -1.0, 1.0
    %v7982 = vsel %vm7950, -1.0, 1.0
    %v7983 = vsel %vm7951, -1.0, 1.0
    %v7984 = vsel %vm7952, -1.0, 1.0
    %v7985 = vsel %vm7953, -1.0, 1.0
    %v7986 = vsel %vm7954, -1.0, 1.0
    %v7987 = vsel %vm7955, -1.0, 1.0
    %v7988 = vsel %vm7956, -1.0, 1.0
    %v7989 = vsel %vm7957, -1.0, 1.0
    %v7990 = vsel %vm7958, -1.0, 1.0
    %v7991 = vsel %vm7959, -1.0, 1.0
    %v7992 = vsel %vm7960, -1.0, 1.0
    %v7993 = vsel %vm7961, -1.0, 1.0
    %v7994 = vand.u32 2147483647, %v7898
    %v7995 = vand.u32 2147483647, %v7899
    %v7996 = vand.u32 2147483647, %v7900
    %v7997 = vand.u32 2147483647, %v7901
    %v7998 = vand.u32 2147483647, %v7902
    %v7999 = vand.u32 2147483647, %v7903
    %v8000 = vand.u32 2147483647, %v7904
    %v8001 = vand.u32 2147483647, %v7905
    %v8002 = vand.u32 2147483647, %v7906
    %v8003 = vand.u32 2147483647, %v7907
    %v8004 = vand.u32 2147483647, %v7908
    %v8005 = vand.u32 2147483647, %v7909
    %v8006 = vand.u32 2147483647, %v7910
    %v8007 = vand.u32 2147483647, %v7911
    %v8008 = vand.u32 2147483647, %v7912
    %v8009 = vand.u32 2147483647, %v7913
    %v8010 = vand.u32 2147483647, %v7914
    %v8011 = vand.u32 2147483647, %v7915
    %v8012 = vand.u32 2147483647, %v7916
    %v8013 = vand.u32 2147483647, %v7917
    %v8014 = vand.u32 2147483647, %v7918
    %v8015 = vand.u32 2147483647, %v7919
    %v8016 = vand.u32 2147483647, %v7920
    %v8017 = vand.u32 2147483647, %v7921
    %v8018 = vand.u32 2147483647, %v7922
    %v8019 = vand.u32 2147483647, %v7923
    %v8020 = vand.u32 2147483647, %v7924
    %v8021 = vand.u32 2147483647, %v7925
    %v8022 = vand.u32 2147483647, %v7926
    %v8023 = vand.u32 2147483647, %v7927
    %v8024 = vand.u32 2147483647, %v7928
    %v8025 = vand.u32 2147483647, %v7929
    %v8026 = vmul.f32 %v7994, 0.3275911
    %v8027 = vmul.f32 %v7995, 0.3275911
    %v8028 = vmul.f32 %v7996, 0.3275911
    %v8029 = vmul.f32 %v7997, 0.3275911
    %v8030 = vmul.f32 %v7998, 0.3275911
    %v8031 = vmul.f32 %v7999, 0.3275911
    %v8032 = vmul.f32 %v8000, 0.3275911
    %v8033 = vmul.f32 %v8001, 0.3275911
    %v8034 = vmul.f32 %v8002, 0.3275911
    %v8035 = vmul.f32 %v8003, 0.3275911
    %v8036 = vmul.f32 %v8004, 0.3275911
    %v8037 = vmul.f32 %v8005, 0.3275911
    %v8038 = vmul.f32 %v8006, 0.3275911
    %v8039 = vmul.f32 %v8007, 0.3275911
    %v8040 = vmul.f32 %v8008, 0.3275911
    %v8041 = vmul.f32 %v8009, 0.3275911
    %v8042 = vmul.f32 %v8010, 0.3275911
    %v8043 = vmul.f32 %v8011, 0.3275911
    %v8044 = vmul.f32 %v8012, 0.3275911
    %v8045 = vmul.f32 %v8013, 0.3275911
    %v8046 = vmul.f32 %v8014, 0.3275911
    %v8047 = vmul.f32 %v8015, 0.3275911
    %v8048 = vmul.f32 %v8016, 0.3275911
    %v8049 = vmul.f32 %v8017, 0.3275911
    %v8050 = vmul.f32 %v8018, 0.3275911
    %v8051 = vmul.f32 %v8019, 0.3275911
    %v8052 = vmul.f32 %v8020, 0.3275911
    %v8053 = vmul.f32 %v8021, 0.3275911
    %v8054 = vmul.f32 %v8022, 0.3275911
    %v8055 = vmul.f32 %v8023, 0.3275911
    %v8056 = vmul.f32 %v8024, 0.3275911
    %v8057 = vmul.f32 %v8025, 0.3275911
    %v8058 = vadd.f32 %v8026, 1.0
    %v8059 = vadd.f32 %v8027, 1.0
    %v8060 = vadd.f32 %v8028, 1.0
    %v8061 = vadd.f32 %v8029, 1.0
    %v8062 = vadd.f32 %v8030, 1.0
    %v8063 = vadd.f32 %v8031, 1.0
    %v8064 = vadd.f32 %v8032, 1.0
    %v8065 = vadd.f32 %v8033, 1.0
    %v8066 = vadd.f32 %v8034, 1.0
    %v8067 = vadd.f32 %v8035, 1.0
    %v8068 = vadd.f32 %v8036, 1.0
    %v8069 = vadd.f32 %v8037, 1.0
    %v8070 = vadd.f32 %v8038, 1.0
    %v8071 = vadd.f32 %v8039, 1.0
    %v8072 = vadd.f32 %v8040, 1.0
    %v8073 = vadd.f32 %v8041, 1.0
    %v8074 = vadd.f32 %v8042, 1.0
    %v8075 = vadd.f32 %v8043, 1.0
    %v8076 = vadd.f32 %v8044, 1.0
    %v8077 = vadd.f32 %v8045, 1.0
    %v8078 = vadd.f32 %v8046, 1.0
    %v8079 = vadd.f32 %v8047, 1.0
    %v8080 = vadd.f32 %v8048, 1.0
    %v8081 = vadd.f32 %v8049, 1.0
    %v8082 = vadd.f32 %v8050, 1.0
    %v8083 = vadd.f32 %v8051, 1.0
    %v8084 = vadd.f32 %v8052, 1.0
    %v8085 = vadd.f32 %v8053, 1.0
    %v8086 = vadd.f32 %v8054, 1.0
    %v8087 = vadd.f32 %v8055, 1.0
    %v8088 = vadd.f32 %v8056, 1.0
    %v8089 = vadd.f32 %v8057, 1.0
    %v8090 = vrcp.pop %v8058
    %v8091 = vmul.f32 1.0, %v8090
    %v8092 = vrcp.pop %v8059
    %v8093 = vmul.f32 1.0, %v8092
    %v8094 = vrcp.pop %v8060
    %v8095 = vmul.f32 1.0, %v8094
    %v8096 = vrcp.pop %v8061
    %v8097 = vmul.f32 1.0, %v8096
    %v8098 = vrcp.pop %v8062
    %v8099 = vmul.f32 1.0, %v8098
    %v8100 = vrcp.pop %v8063
    %v8101 = vmul.f32 1.0, %v8100
    %v8102 = vrcp.pop %v8064
    %v8103 = vmul.f32 1.0, %v8102
    %v8104 = vrcp.pop %v8065
    %v8105 = vmul.f32 1.0, %v8104
    %v8106 = vrcp.pop %v8066
    %v8107 = vmul.f32 1.0, %v8106
    %v8108 = vrcp.pop %v8067
    %v8109 = vmul.f32 1.0, %v8108
    %v8110 = vrcp.pop %v8068
    %v8111 = vmul.f32 1.0, %v8110
    %v8112 = vrcp.pop %v8069
    %v8113 = vmul.f32 1.0, %v8112
    %v8114 = vrcp.pop %v8070
    %v8115 = vmul.f32 1.0, %v8114
    %v8116 = vrcp.pop %v8071
    %v8117 = vmul.f32 1.0, %v8116
    %v8118 = vrcp.pop %v8072
    %v8119 = vmul.f32 1.0, %v8118
    %v8120 = vrcp.pop %v8073
    %v8121 = vmul.f32 1.0, %v8120
    %v8122 = vrcp.pop %v8074
    %v8123 = vmul.f32 1.0, %v8122
    %v8124 = vrcp.pop %v8075
    %v8125 = vmul.f32 1.0, %v8124
    %v8126 = vrcp.pop %v8076
    %v8127 = vmul.f32 1.0, %v8126
    %v8128 = vrcp.pop %v8077
    %v8129 = vmul.f32 1.0, %v8128
    %v8130 = vrcp.pop %v8078
    %v8131 = vmul.f32 1.0, %v8130
    %v8132 = vrcp.pop %v8079
    %v8133 = vmul.f32 1.0, %v8132
    %v8134 = vrcp.pop %v8080
    %v8135 = vmul.f32 1.0, %v8134
    %v8136 = vrcp.pop %v8081
    %v8137 = vmul.f32 1.0, %v8136
    %v8138 = vrcp.pop %v8082
    %v8139 = vmul.f32 1.0, %v8138
    %v8140 = vrcp.pop %v8083
    %v8141 = vmul.f32 1.0, %v8140
    %v8142 = vrcp.pop %v8084
    %v8143 = vmul.f32 1.0, %v8142
    %v8144 = vrcp.pop %v8085
    %v8145 = vmul.f32 1.0, %v8144
    %v8146 = vrcp.pop %v8086
    %v8147 = vmul.f32 1.0, %v8146
    %v8148 = vrcp.pop %v8087
    %v8149 = vmul.f32 1.0, %v8148
    %v8150 = vrcp.pop %v8088
    %v8151 = vmul.f32 1.0, %v8150
    %v8152 = vrcp.pop %v8089
    %v8153 = vmul.f32 1.0, %v8152
    %v8154 = vmul.f32 %v8091, 1.0614054
    %v8155 = vmul.f32 %v8093, 1.0614054
    %v8156 = vmul.f32 %v8095, 1.0614054
    %v8157 = vmul.f32 %v8097, 1.0614054
    %v8158 = vmul.f32 %v8099, 1.0614054
    %v8159 = vmul.f32 %v8101, 1.0614054
    %v8160 = vmul.f32 %v8103, 1.0614054
    %v8161 = vmul.f32 %v8105, 1.0614054
    %v8162 = vmul.f32 %v8107, 1.0614054
    %v8163 = vmul.f32 %v8109, 1.0614054
    %v8164 = vmul.f32 %v8111, 1.0614054
    %v8165 = vmul.f32 %v8113, 1.0614054
    %v8166 = vmul.f32 %v8115, 1.0614054
    %v8167 = vmul.f32 %v8117, 1.0614054
    %v8168 = vmul.f32 %v8119, 1.0614054
    %v8169 = vmul.f32 %v8121, 1.0614054
    %v8170 = vmul.f32 %v8123, 1.0614054
    %v8171 = vmul.f32 %v8125, 1.0614054
    %v8172 = vmul.f32 %v8127, 1.0614054
    %v8173 = vmul.f32 %v8129, 1.0614054
    %v8174 = vmul.f32 %v8131, 1.0614054
    %v8175 = vmul.f32 %v8133, 1.0614054
    %v8176 = vmul.f32 %v8135, 1.0614054
    %v8177 = vmul.f32 %v8137, 1.0614054
    %v8178 = vmul.f32 %v8139, 1.0614054
    %v8179 = vmul.f32 %v8141, 1.0614054
    %v8180 = vmul.f32 %v8143, 1.0614054
    %v8181 = vmul.f32 %v8145, 1.0614054
    %v8182 = vmul.f32 %v8147, 1.0614054
    %v8183 = vmul.f32 %v8149, 1.0614054
    %v8184 = vmul.f32 %v8151, 1.0614054
    %v8185 = vmul.f32 %v8153, 1.0614054
    %v8186 = vadd.f32 %v8154, -1.4531521
    %v8187 = vadd.f32 %v8155, -1.4531521
    %v8188 = vadd.f32 %v8156, -1.4531521
    %v8189 = vadd.f32 %v8157, -1.4531521
    %v8190 = vadd.f32 %v8158, -1.4531521
    %v8191 = vadd.f32 %v8159, -1.4531521
    %v8192 = vadd.f32 %v8160, -1.4531521
    %v8193 = vadd.f32 %v8161, -1.4531521
    %v8194 = vadd.f32 %v8162, -1.4531521
    %v8195 = vadd.f32 %v8163, -1.4531521
    %v8196 = vadd.f32 %v8164, -1.4531521
    %v8197 = vadd.f32 %v8165, -1.4531521
    %v8198 = vadd.f32 %v8166, -1.4531521
    %v8199 = vadd.f32 %v8167, -1.4531521
    %v8200 = vadd.f32 %v8168, -1.4531521
    %v8201 = vadd.f32 %v8169, -1.4531521
    %v8202 = vadd.f32 %v8170, -1.4531521
    %v8203 = vadd.f32 %v8171, -1.4531521
    %v8204 = vadd.f32 %v8172, -1.4531521
    %v8205 = vadd.f32 %v8173, -1.4531521
    %v8206 = vadd.f32 %v8174, -1.4531521
    %v8207 = vadd.f32 %v8175, -1.4531521
    %v8208 = vadd.f32 %v8176, -1.4531521
    %v8209 = vadd.f32 %v8177, -1.4531521
    %v8210 = vadd.f32 %v8178, -1.4531521
    %v8211 = vadd.f32 %v8179, -1.4531521
    %v8212 = vadd.f32 %v8180, -1.4531521
    %v8213 = vadd.f32 %v8181, -1.4531521
    %v8214 = vadd.f32 %v8182, -1.4531521
    %v8215 = vadd.f32 %v8183, -1.4531521
    %v8216 = vadd.f32 %v8184, -1.4531521
    %v8217 = vadd.f32 %v8185, -1.4531521
    %v8218 = vmul.f32 %v8091, %v8186
    %v8219 = vmul.f32 %v8093, %v8187
    %v8220 = vmul.f32 %v8095, %v8188
    %v8221 = vmul.f32 %v8097, %v8189
    %v8222 = vmul.f32 %v8099, %v8190
    %v8223 = vmul.f32 %v8101, %v8191
    %v8224 = vmul.f32 %v8103, %v8192
    %v8225 = vmul.f32 %v8105, %v8193
    %v8226 = vmul.f32 %v8107, %v8194
    %v8227 = vmul.f32 %v8109, %v8195
    %v8228 = vmul.f32 %v8111, %v8196
    %v8229 = vmul.f32 %v8113, %v8197
    %v8230 = vmul.f32 %v8115, %v8198
    %v8231 = vmul.f32 %v8117, %v8199
    %v8232 = vmul.f32 %v8119, %v8200
    %v8233 = vmul.f32 %v8121, %v8201
    %v8234 = vmul.f32 %v8123, %v8202
    %v8235 = vmul.f32 %v8125, %v8203
    %v8236 = vmul.f32 %v8127, %v8204
    %v8237 = vmul.f32 %v8129, %v8205
    %v8238 = vmul.f32 %v8131, %v8206
    %v8239 = vmul.f32 %v8133, %v8207
    %v8240 = vmul.f32 %v8135, %v8208
    %v8241 = vmul.f32 %v8137, %v8209
    %v8242 = vmul.f32 %v8139, %v8210
    %v8243 = vmul.f32 %v8141, %v8211
    %v8244 = vmul.f32 %v8143, %v8212
    %v8245 = vmul.f32 %v8145, %v8213
    %v8246 = vmul.f32 %v8147, %v8214
    %v8247 = vmul.f32 %v8149, %v8215
    %v8248 = vmul.f32 %v8151, %v8216
    %v8249 = vmul.f32 %v8153, %v8217
    %v8250 = vadd.f32 %v8218, 1.4214138
    %v8251 = vadd.f32 %v8219, 1.4214138
    %v8252 = vadd.f32 %v8220, 1.4214138
    %v8253 = vadd.f32 %v8221, 1.4214138
    %v8254 = vadd.f32 %v8222, 1.4214138
    %v8255 = vadd.f32 %v8223, 1.4214138
    %v8256 = vadd.f32 %v8224, 1.4214138
    %v8257 = vadd.f32 %v8225, 1.4214138
    %v8258 = vadd.f32 %v8226, 1.4214138
    %v8259 = vadd.f32 %v8227, 1.4214138
    %v8260 = vadd.f32 %v8228, 1.4214138
    %v8261 = vadd.f32 %v8229, 1.4214138
    %v8262 = vadd.f32 %v8230, 1.4214138
    %v8263 = vadd.f32 %v8231, 1.4214138
    %v8264 = vadd.f32 %v8232, 1.4214138
    %v8265 = vadd.f32 %v8233, 1.4214138
    %v8266 = vadd.f32 %v8234, 1.4214138
    %v8267 = vadd.f32 %v8235, 1.4214138
    %v8268 = vadd.f32 %v8236, 1.4214138
    %v8269 = vadd.f32 %v8237, 1.4214138
    %v8270 = vadd.f32 %v8238, 1.4214138
    %v8271 = vadd.f32 %v8239, 1.4214138
    %v8272 = vadd.f32 %v8240, 1.4214138
    %v8273 = vadd.f32 %v8241, 1.4214138
    %v8274 = vadd.f32 %v8242, 1.4214138
    %v8275 = vadd.f32 %v8243, 1.4214138
    %v8276 = vadd.f32 %v8244, 1.4214138
    %v8277 = vadd.f32 %v8245, 1.4214138
    %v8278 = vadd.f32 %v8246, 1.4214138
    %v8279 = vadd.f32 %v8247, 1.4214138
    %v8280 = vadd.f32 %v8248, 1.4214138
    %v8281 = vadd.f32 %v8249, 1.4214138
    %v8282 = vmul.f32 %v8091, %v8250
    %v8283 = vmul.f32 %v8093, %v8251
    %v8284 = vmul.f32 %v8095, %v8252
    %v8285 = vmul.f32 %v8097, %v8253
    %v8286 = vmul.f32 %v8099, %v8254
    %v8287 = vmul.f32 %v8101, %v8255
    %v8288 = vmul.f32 %v8103, %v8256
    %v8289 = vmul.f32 %v8105, %v8257
    %v8290 = vmul.f32 %v8107, %v8258
    %v8291 = vmul.f32 %v8109, %v8259
    %v8292 = vmul.f32 %v8111, %v8260
    %v8293 = vmul.f32 %v8113, %v8261
    %v8294 = vmul.f32 %v8115, %v8262
    %v8295 = vmul.f32 %v8117, %v8263
    %v8296 = vmul.f32 %v8119, %v8264
    %v8297 = vmul.f32 %v8121, %v8265
    %v8298 = vmul.f32 %v8123, %v8266
    %v8299 = vmul.f32 %v8125, %v8267
    %v8300 = vmul.f32 %v8127, %v8268
    %v8301 = vmul.f32 %v8129, %v8269
    %v8302 = vmul.f32 %v8131, %v8270
    %v8303 = vmul.f32 %v8133, %v8271
    %v8304 = vmul.f32 %v8135, %v8272
    %v8305 = vmul.f32 %v8137, %v8273
    %v8306 = vmul.f32 %v8139, %v8274
    %v8307 = vmul.f32 %v8141, %v8275
    %v8308 = vmul.f32 %v8143, %v8276
    %v8309 = vmul.f32 %v8145, %v8277
    %v8310 = vmul.f32 %v8147, %v8278
    %v8311 = vmul.f32 %v8149, %v8279
    %v8312 = vmul.f32 %v8151, %v8280
    %v8313 = vmul.f32 %v8153, %v8281
    %v8314 = vadd.f32 %v8282, -0.28449672
    %v8315 = vadd.f32 %v8283, -0.28449672
    %v8316 = vadd.f32 %v8284, -0.28449672
    %v8317 = vadd.f32 %v8285, -0.28449672
    %v8318 = vadd.f32 %v8286, -0.28449672
    %v8319 = vadd.f32 %v8287, -0.28449672
    %v8320 = vadd.f32 %v8288, -0.28449672
    %v8321 = vadd.f32 %v8289, -0.28449672
    %v8322 = vadd.f32 %v8290, -0.28449672
    %v8323 = vadd.f32 %v8291, -0.28449672
    %v8324 = vadd.f32 %v8292, -0.28449672
    %v8325 = vadd.f32 %v8293, -0.28449672
    %v8326 = vadd.f32 %v8294, -0.28449672
    %v8327 = vadd.f32 %v8295, -0.28449672
    %v8328 = vadd.f32 %v8296, -0.28449672
    %v8329 = vadd.f32 %v8297, -0.28449672
    %v8330 = vadd.f32 %v8298, -0.28449672
    %v8331 = vadd.f32 %v8299, -0.28449672
    %v8332 = vadd.f32 %v8300, -0.28449672
    %v8333 = vadd.f32 %v8301, -0.28449672
    %v8334 = vadd.f32 %v8302, -0.28449672
    %v8335 = vadd.f32 %v8303, -0.28449672
    %v8336 = vadd.f32 %v8304, -0.28449672
    %v8337 = vadd.f32 %v8305, -0.28449672
    %v8338 = vadd.f32 %v8306, -0.28449672
    %v8339 = vadd.f32 %v8307, -0.28449672
    %v8340 = vadd.f32 %v8308, -0.28449672
    %v8341 = vadd.f32 %v8309, -0.28449672
    %v8342 = vadd.f32 %v8310, -0.28449672
    %v8343 = vadd.f32 %v8311, -0.28449672
    %v8344 = vadd.f32 %v8312, -0.28449672
    %v8345 = vadd.f32 %v8313, -0.28449672
    %v8346 = vmul.f32 %v8091, %v8314
    %v8347 = vmul.f32 %v8093, %v8315
    %v8348 = vmul.f32 %v8095, %v8316
    %v8349 = vmul.f32 %v8097, %v8317
    %v8350 = vmul.f32 %v8099, %v8318
    %v8351 = vmul.f32 %v8101, %v8319
    %v8352 = vmul.f32 %v8103, %v8320
    %v8353 = vmul.f32 %v8105, %v8321
    %v8354 = vmul.f32 %v8107, %v8322
    %v8355 = vmul.f32 %v8109, %v8323
    %v8356 = vmul.f32 %v8111, %v8324
    %v8357 = vmul.f32 %v8113, %v8325
    %v8358 = vmul.f32 %v8115, %v8326
    %v8359 = vmul.f32 %v8117, %v8327
    %v8360 = vmul.f32 %v8119, %v8328
    %v8361 = vmul.f32 %v8121, %v8329
    %v8362 = vmul.f32 %v8123, %v8330
    %v8363 = vmul.f32 %v8125, %v8331
    %v8364 = vmul.f32 %v8127, %v8332
    %v8365 = vmul.f32 %v8129, %v8333
    %v8366 = vmul.f32 %v8131, %v8334
    %v8367 = vmul.f32 %v8133, %v8335
    %v8368 = vmul.f32 %v8135, %v8336
    %v8369 = vmul.f32 %v8137, %v8337
    %v8370 = vmul.f32 %v8139, %v8338
    %v8371 = vmul.f32 %v8141, %v8339
    %v8372 = vmul.f32 %v8143, %v8340
    %v8373 = vmul.f32 %v8145, %v8341
    %v8374 = vmul.f32 %v8147, %v8342
    %v8375 = vmul.f32 %v8149, %v8343
    %v8376 = vmul.f32 %v8151, %v8344
    %v8377 = vmul.f32 %v8153, %v8345
    %v8378 = vadd.f32 %v8346, 0.2548296
    %v8379 = vadd.f32 %v8347, 0.2548296
    %v8380 = vadd.f32 %v8348, 0.2548296
    %v8381 = vadd.f32 %v8349, 0.2548296
    %v8382 = vadd.f32 %v8350, 0.2548296
    %v8383 = vadd.f32 %v8351, 0.2548296
    %v8384 = vadd.f32 %v8352, 0.2548296
    %v8385 = vadd.f32 %v8353, 0.2548296
    %v8386 = vadd.f32 %v8354, 0.2548296
    %v8387 = vadd.f32 %v8355, 0.2548296
    %v8388 = vadd.f32 %v8356, 0.2548296
    %v8389 = vadd.f32 %v8357, 0.2548296
    %v8390 = vadd.f32 %v8358, 0.2548296
    %v8391 = vadd.f32 %v8359, 0.2548296
    %v8392 = vadd.f32 %v8360, 0.2548296
    %v8393 = vadd.f32 %v8361, 0.2548296
    %v8394 = vadd.f32 %v8362, 0.2548296
    %v8395 = vadd.f32 %v8363, 0.2548296
    %v8396 = vadd.f32 %v8364, 0.2548296
    %v8397 = vadd.f32 %v8365, 0.2548296
    %v8398 = vadd.f32 %v8366, 0.2548296
    %v8399 = vadd.f32 %v8367, 0.2548296
    %v8400 = vadd.f32 %v8368, 0.2548296
    %v8401 = vadd.f32 %v8369, 0.2548296
    %v8402 = vadd.f32 %v8370, 0.2548296
    %v8403 = vadd.f32 %v8371, 0.2548296
    %v8404 = vadd.f32 %v8372, 0.2548296
    %v8405 = vadd.f32 %v8373, 0.2548296
    %v8406 = vadd.f32 %v8374, 0.2548296
    %v8407 = vadd.f32 %v8375, 0.2548296
    %v8408 = vadd.f32 %v8376, 0.2548296
    %v8409 = vadd.f32 %v8377, 0.2548296
    %v8410 = vmul.f32 %v8091, %v8378
    %v8411 = vmul.f32 %v8093, %v8379
    %v8412 = vmul.f32 %v8095, %v8380
    %v8413 = vmul.f32 %v8097, %v8381
    %v8414 = vmul.f32 %v8099, %v8382
    %v8415 = vmul.f32 %v8101, %v8383
    %v8416 = vmul.f32 %v8103, %v8384
    %v8417 = vmul.f32 %v8105, %v8385
    %v8418 = vmul.f32 %v8107, %v8386
    %v8419 = vmul.f32 %v8109, %v8387
    %v8420 = vmul.f32 %v8111, %v8388
    %v8421 = vmul.f32 %v8113, %v8389
    %v8422 = vmul.f32 %v8115, %v8390
    %v8423 = vmul.f32 %v8117, %v8391
    %v8424 = vmul.f32 %v8119, %v8392
    %v8425 = vmul.f32 %v8121, %v8393
    %v8426 = vmul.f32 %v8123, %v8394
    %v8427 = vmul.f32 %v8125, %v8395
    %v8428 = vmul.f32 %v8127, %v8396
    %v8429 = vmul.f32 %v8129, %v8397
    %v8430 = vmul.f32 %v8131, %v8398
    %v8431 = vmul.f32 %v8133, %v8399
    %v8432 = vmul.f32 %v8135, %v8400
    %v8433 = vmul.f32 %v8137, %v8401
    %v8434 = vmul.f32 %v8139, %v8402
    %v8435 = vmul.f32 %v8141, %v8403
    %v8436 = vmul.f32 %v8143, %v8404
    %v8437 = vmul.f32 %v8145, %v8405
    %v8438 = vmul.f32 %v8147, %v8406
    %v8439 = vmul.f32 %v8149, %v8407
    %v8440 = vmul.f32 %v8151, %v8408
    %v8441 = vmul.f32 %v8153, %v8409
    %v8442 = vsub.f32 0.0, %v7994
    %v8443 = vsub.f32 0.0, %v7995
    %v8444 = vsub.f32 0.0, %v7996
    %v8445 = vsub.f32 0.0, %v7997
    %v8446 = vsub.f32 0.0, %v7998
    %v8447 = vsub.f32 0.0, %v7999
    %v8448 = vsub.f32 0.0, %v8000
    %v8449 = vsub.f32 0.0, %v8001
    %v8450 = vsub.f32 0.0, %v8002
    %v8451 = vsub.f32 0.0, %v8003
    %v8452 = vsub.f32 0.0, %v8004
    %v8453 = vsub.f32 0.0, %v8005
    %v8454 = vsub.f32 0.0, %v8006
    %v8455 = vsub.f32 0.0, %v8007
    %v8456 = vsub.f32 0.0, %v8008
    %v8457 = vsub.f32 0.0, %v8009
    %v8458 = vsub.f32 0.0, %v8010
    %v8459 = vsub.f32 0.0, %v8011
    %v8460 = vsub.f32 0.0, %v8012
    %v8461 = vsub.f32 0.0, %v8013
    %v8462 = vsub.f32 0.0, %v8014
    %v8463 = vsub.f32 0.0, %v8015
    %v8464 = vsub.f32 0.0, %v8016
    %v8465 = vsub.f32 0.0, %v8017
    %v8466 = vsub.f32 0.0, %v8018
    %v8467 = vsub.f32 0.0, %v8019
    %v8468 = vsub.f32 0.0, %v8020
    %v8469 = vsub.f32 0.0, %v8021
    %v8470 = vsub.f32 0.0, %v8022
    %v8471 = vsub.f32 0.0, %v8023
    %v8472 = vsub.f32 0.0, %v8024
    %v8473 = vsub.f32 0.0, %v8025
    %v8474 = vmul.f32 %v8442, %v7994
    %v8475 = vmul.f32 %v8443, %v7995
    %v8476 = vmul.f32 %v8444, %v7996
    %v8477 = vmul.f32 %v8445, %v7997
    %v8478 = vmul.f32 %v8446, %v7998
    %v8479 = vmul.f32 %v8447, %v7999
    %v8480 = vmul.f32 %v8448, %v8000
    %v8481 = vmul.f32 %v8449, %v8001
    %v8482 = vmul.f32 %v8450, %v8002
    %v8483 = vmul.f32 %v8451, %v8003
    %v8484 = vmul.f32 %v8452, %v8004
    %v8485 = vmul.f32 %v8453, %v8005
    %v8486 = vmul.f32 %v8454, %v8006
    %v8487 = vmul.f32 %v8455, %v8007
    %v8488 = vmul.f32 %v8456, %v8008
    %v8489 = vmul.f32 %v8457, %v8009
    %v8490 = vmul.f32 %v8458, %v8010
    %v8491 = vmul.f32 %v8459, %v8011
    %v8492 = vmul.f32 %v8460, %v8012
    %v8493 = vmul.f32 %v8461, %v8013
    %v8494 = vmul.f32 %v8462, %v8014
    %v8495 = vmul.f32 %v8463, %v8015
    %v8496 = vmul.f32 %v8464, %v8016
    %v8497 = vmul.f32 %v8465, %v8017
    %v8498 = vmul.f32 %v8466, %v8018
    %v8499 = vmul.f32 %v8467, %v8019
    %v8500 = vmul.f32 %v8468, %v8020
    %v8501 = vmul.f32 %v8469, %v8021
    %v8502 = vmul.f32 %v8470, %v8022
    %v8503 = vmul.f32 %v8471, %v8023
    %v8504 = vmul.f32 %v8472, %v8024
    %v8505 = vmul.f32 %v8473, %v8025
    %v8506 = vmul.f32 %v8474, 1.442695
    %v8507 = vpow.pop %v8506
    %v8508 = vmul.f32 %v8475, 1.442695
    %v8509 = vpow.pop %v8508
    %v8510 = vmul.f32 %v8476, 1.442695
    %v8511 = vpow.pop %v8510
    %v8512 = vmul.f32 %v8477, 1.442695
    %v8513 = vpow.pop %v8512
    %v8514 = vmul.f32 %v8478, 1.442695
    %v8515 = vpow.pop %v8514
    %v8516 = vmul.f32 %v8479, 1.442695
    %v8517 = vpow.pop %v8516
    %v8518 = vmul.f32 %v8480, 1.442695
    %v8519 = vpow.pop %v8518
    %v8520 = vmul.f32 %v8481, 1.442695
    %v8521 = vpow.pop %v8520
    %v8522 = vmul.f32 %v8482, 1.442695
    %v8523 = vpow.pop %v8522
    %v8524 = vmul.f32 %v8483, 1.442695
    %v8525 = vpow.pop %v8524
    %v8526 = vmul.f32 %v8484, 1.442695
    %v8527 = vpow.pop %v8526
    %v8528 = vmul.f32 %v8485, 1.442695
    %v8529 = vpow.pop %v8528
    %v8530 = vmul.f32 %v8486, 1.442695
    %v8531 = vpow.pop %v8530
    %v8532 = vmul.f32 %v8487, 1.442695
    %v8533 = vpow.pop %v8532
    %v8534 = vmul.f32 %v8488, 1.442695
    %v8535 = vpow.pop %v8534
    %v8536 = vmul.f32 %v8489, 1.442695
    %v8537 = vpow.pop %v8536
    %v8538 = vmul.f32 %v8490, 1.442695
    %v8539 = vpow.pop %v8538
    %v8540 = vmul.f32 %v8491, 1.442695
    %v8541 = vpow.pop %v8540
    %v8542 = vmul.f32 %v8492, 1.442695
    %v8543 = vpow.pop %v8542
    %v8544 = vmul.f32 %v8493, 1.442695
    %v8545 = vpow.pop %v8544
    %v8546 = vmul.f32 %v8494, 1.442695
    %v8547 = vpow.pop %v8546
    %v8548 = vmul.f32 %v8495, 1.442695
    %v8549 = vpow.pop %v8548
    %v8550 = vmul.f32 %v8496, 1.442695
    %v8551 = vpow.pop %v8550
    %v8552 = vmul.f32 %v8497, 1.442695
    %v8553 = vpow.pop %v8552
    %v8554 = vmul.f32 %v8498, 1.442695
    %v8555 = vpow.pop %v8554
    %v8556 = vmul.f32 %v8499, 1.442695
    %v8557 = vpow.pop %v8556
    %v8558 = vmul.f32 %v8500, 1.442695
    %v8559 = vpow.pop %v8558
    %v8560 = vmul.f32 %v8501, 1.442695
    %v8561 = vpow.pop %v8560
    %v8562 = vmul.f32 %v8502, 1.442695
    %v8563 = vpow.pop %v8562
    %v8564 = vmul.f32 %v8503, 1.442695
    %v8565 = vpow.pop %v8564
    %v8566 = vmul.f32 %v8504, 1.442695
    %v8567 = vpow.pop %v8566
    %v8568 = vmul.f32 %v8505, 1.442695
    %v8569 = vpow.pop %v8568
    %v8570 = vmul.f32 %v8410, %v8507
    %v8571 = vmul.f32 %v8411, %v8509
    %v8572 = vmul.f32 %v8412, %v8511
    %v8573 = vmul.f32 %v8413, %v8513
    %v8574 = vmul.f32 %v8414, %v8515
    %v8575 = vmul.f32 %v8415, %v8517
    %v8576 = vmul.f32 %v8416, %v8519
    %v8577 = vmul.f32 %v8417, %v8521
    %v8578 = vmul.f32 %v8418, %v8523
    %v8579 = vmul.f32 %v8419, %v8525
    %v8580 = vmul.f32 %v8420, %v8527
    %v8581 = vmul.f32 %v8421, %v8529
    %v8582 = vmul.f32 %v8422, %v8531
    %v8583 = vmul.f32 %v8423, %v8533
    %v8584 = vmul.f32 %v8424, %v8535
    %v8585 = vmul.f32 %v8425, %v8537
    %v8586 = vmul.f32 %v8426, %v8539
    %v8587 = vmul.f32 %v8427, %v8541
    %v8588 = vmul.f32 %v8428, %v8543
    %v8589 = vmul.f32 %v8429, %v8545
    %v8590 = vmul.f32 %v8430, %v8547
    %v8591 = vmul.f32 %v8431, %v8549
    %v8592 = vmul.f32 %v8432, %v8551
    %v8593 = vmul.f32 %v8433, %v8553
    %v8594 = vmul.f32 %v8434, %v8555
    %v8595 = vmul.f32 %v8435, %v8557
    %v8596 = vmul.f32 %v8436, %v8559
    %v8597 = vmul.f32 %v8437, %v8561
    %v8598 = vmul.f32 %v8438, %v8563
    %v8599 = vmul.f32 %v8439, %v8565
    %v8600 = vmul.f32 %v8440, %v8567
    %v8601 = vmul.f32 %v8441, %v8569
    %v8602 = vsub.f32 1.0, %v8570
    %v8603 = vsub.f32 1.0, %v8571
    %v8604 = vsub.f32 1.0, %v8572
    %v8605 = vsub.f32 1.0, %v8573
    %v8606 = vsub.f32 1.0, %v8574
    %v8607 = vsub.f32 1.0, %v8575
    %v8608 = vsub.f32 1.0, %v8576
    %v8609 = vsub.f32 1.0, %v8577
    %v8610 = vsub.f32 1.0, %v8578
    %v8611 = vsub.f32 1.0, %v8579
    %v8612 = vsub.f32 1.0, %v8580
    %v8613 = vsub.f32 1.0, %v8581
    %v8614 = vsub.f32 1.0, %v8582
    %v8615 = vsub.f32 1.0, %v8583
    %v8616 = vsub.f32 1.0, %v8584
    %v8617 = vsub.f32 1.0, %v8585
    %v8618 = vsub.f32 1.0, %v8586
    %v8619 = vsub.f32 1.0, %v8587
    %v8620 = vsub.f32 1.0, %v8588
    %v8621 = vsub.f32 1.0, %v8589
    %v8622 = vsub.f32 1.0, %v8590
    %v8623 = vsub.f32 1.0, %v8591
    %v8624 = vsub.f32 1.0, %v8592
    %v8625 = vsub.f32 1.0, %v8593
    %v8626 = vsub.f32 1.0, %v8594
    %v8627 = vsub.f32 1.0, %v8595
    %v8628 = vsub.f32 1.0, %v8596
    %v8629 = vsub.f32 1.0, %v8597
    %v8630 = vsub.f32 1.0, %v8598
    %v8631 = vsub.f32 1.0, %v8599
    %v8632 = vsub.f32 1.0, %v8600
    %v8633 = vsub.f32 1.0, %v8601
    %v8634 = vmul.f32 %v7962, %v8602
    %v8635 = vmul.f32 %v7963, %v8603
    %v8636 = vmul.f32 %v7964, %v8604
    %v8637 = vmul.f32 %v7965, %v8605
    %v8638 = vmul.f32 %v7966, %v8606
    %v8639 = vmul.f32 %v7967, %v8607
    %v8640 = vmul.f32 %v7968, %v8608
    %v8641 = vmul.f32 %v7969, %v8609
    %v8642 = vmul.f32 %v7970, %v8610
    %v8643 = vmul.f32 %v7971, %v8611
    %v8644 = vmul.f32 %v7972, %v8612
    %v8645 = vmul.f32 %v7973, %v8613
    %v8646 = vmul.f32 %v7974, %v8614
    %v8647 = vmul.f32 %v7975, %v8615
    %v8648 = vmul.f32 %v7976, %v8616
    %v8649 = vmul.f32 %v7977, %v8617
    %v8650 = vmul.f32 %v7978, %v8618
    %v8651 = vmul.f32 %v7979, %v8619
    %v8652 = vmul.f32 %v7980, %v8620
    %v8653 = vmul.f32 %v7981, %v8621
    %v8654 = vmul.f32 %v7982, %v8622
    %v8655 = vmul.f32 %v7983, %v8623
    %v8656 = vmul.f32 %v7984, %v8624
    %v8657 = vmul.f32 %v7985, %v8625
    %v8658 = vmul.f32 %v7986, %v8626
    %v8659 = vmul.f32 %v7987, %v8627
    %v8660 = vmul.f32 %v7988, %v8628
    %v8661 = vmul.f32 %v7989, %v8629
    %v8662 = vmul.f32 %v7990, %v8630
    %v8663 = vmul.f32 %v7991, %v8631
    %v8664 = vmul.f32 %v7992, %v8632
    %v8665 = vmul.f32 %v7993, %v8633
    %v8666 = vadd.f32 %v8634, 1.0
    %v8667 = vadd.f32 %v8635, 1.0
    %v8668 = vadd.f32 %v8636, 1.0
    %v8669 = vadd.f32 %v8637, 1.0
    %v8670 = vadd.f32 %v8638, 1.0
    %v8671 = vadd.f32 %v8639, 1.0
    %v8672 = vadd.f32 %v8640, 1.0
    %v8673 = vadd.f32 %v8641, 1.0
    %v8674 = vadd.f32 %v8642, 1.0
    %v8675 = vadd.f32 %v8643, 1.0
    %v8676 = vadd.f32 %v8644, 1.0
    %v8677 = vadd.f32 %v8645, 1.0
    %v8678 = vadd.f32 %v8646, 1.0
    %v8679 = vadd.f32 %v8647, 1.0
    %v8680 = vadd.f32 %v8648, 1.0
    %v8681 = vadd.f32 %v8649, 1.0
    %v8682 = vadd.f32 %v8650, 1.0
    %v8683 = vadd.f32 %v8651, 1.0
    %v8684 = vadd.f32 %v8652, 1.0
    %v8685 = vadd.f32 %v8653, 1.0
    %v8686 = vadd.f32 %v8654, 1.0
    %v8687 = vadd.f32 %v8655, 1.0
    %v8688 = vadd.f32 %v8656, 1.0
    %v8689 = vadd.f32 %v8657, 1.0
    %v8690 = vadd.f32 %v8658, 1.0
    %v8691 = vadd.f32 %v8659, 1.0
    %v8692 = vadd.f32 %v8660, 1.0
    %v8693 = vadd.f32 %v8661, 1.0
    %v8694 = vadd.f32 %v8662, 1.0
    %v8695 = vadd.f32 %v8663, 1.0
    %v8696 = vadd.f32 %v8664, 1.0
    %v8697 = vadd.f32 %v8665, 1.0
    %v8698 = vmul.f32 %v7866, %v8666
    %v8699 = vmul.f32 %v7867, %v8667
    %v8700 = vmul.f32 %v7868, %v8668
    %v8701 = vmul.f32 %v7869, %v8669
    %v8702 = vmul.f32 %v7870, %v8670
    %v8703 = vmul.f32 %v7871, %v8671
    %v8704 = vmul.f32 %v7872, %v8672
    %v8705 = vmul.f32 %v7873, %v8673
    %v8706 = vmul.f32 %v7874, %v8674
    %v8707 = vmul.f32 %v7875, %v8675
    %v8708 = vmul.f32 %v7876, %v8676
    %v8709 = vmul.f32 %v7877, %v8677
    %v8710 = vmul.f32 %v7878, %v8678
    %v8711 = vmul.f32 %v7879, %v8679
    %v8712 = vmul.f32 %v7880, %v8680
    %v8713 = vmul.f32 %v7881, %v8681
    %v8714 = vmul.f32 %v7882, %v8682
    %v8715 = vmul.f32 %v7883, %v8683
    %v8716 = vmul.f32 %v7884, %v8684
    %v8717 = vmul.f32 %v7885, %v8685
    %v8718 = vmul.f32 %v7886, %v8686
    %v8719 = vmul.f32 %v7887, %v8687
    %v8720 = vmul.f32 %v7888, %v8688
    %v8721 = vmul.f32 %v7889, %v8689
    %v8722 = vmul.f32 %v7890, %v8690
    %v8723 = vmul.f32 %v7891, %v8691
    %v8724 = vmul.f32 %v7892, %v8692
    %v8725 = vmul.f32 %v7893, %v8693
    %v8726 = vmul.f32 %v7894, %v8694
    %v8727 = vmul.f32 %v7895, %v8695
    %v8728 = vmul.f32 %v7896, %v8696
    %v8729 = vmul.f32 %v7897, %v8697
    %s8730 = scalar_lea.vmem [#allocation7], 1024
    %v8731 = vld [vmem:[%s8730] sm:$0xff]
    %v8732 = vld [vmem:[%s8730 + $0x8] sm:$0xff]
    %v8733 = vld [vmem:[%s8730 + $0x10] sm:$0xff]
    %v8734 = vld [vmem:[%s8730 + $0x18] sm:$0xff]
    %v8735 = vld [vmem:[%s8730 + $0x20] sm:$0xff]
    %v8736 = vld [vmem:[%s8730 + $0x28] sm:$0xff]
    %v8737 = vld [vmem:[%s8730 + $0x30] sm:$0xff]
    %v8738 = vld [vmem:[%s8730 + $0x38] sm:$0xff]
    %v8739 = vld [vmem:[%s8730 + $0x40] sm:$0xff]
    %v8740 = vld [vmem:[%s8730 + $0x48] sm:$0xff]
    %v8741 = vld [vmem:[%s8730 + $0x50] sm:$0xff]
    %v8742 = vld [vmem:[%s8730 + $0x58] sm:$0xff]
    %v8743 = vld [vmem:[%s8730 + $0x60] sm:$0xff]
    %v8744 = vld [vmem:[%s8730 + $0x68] sm:$0xff]
    %v8745 = vld [vmem:[%s8730 + $0x70] sm:$0xff]
    %v8746 = vld [vmem:[%s8730 + $0x78] sm:$0xff]
    %v8747 = vld [vmem:[%s8730 + $0x80] sm:$0xff]
    %v8748 = vld [vmem:[%s8730 + $0x88] sm:$0xff]
    %v8749 = vld [vmem:[%s8730 + $0x90] sm:$0xff]
    %v8750 = vld [vmem:[%s8730 + $0x98] sm:$0xff]
    %v8751 = vld [vmem:[%s8730 + $0xa0] sm:$0xff]
    %v8752 = vld [vmem:[%s8730 + $0xa8] sm:$0xff]
    %v8753 = vld [vmem:[%s8730 + $0xb0] sm:$0xff]
    %v8754 = vld [vmem:[%s8730 + $0xb8] sm:$0xff]
    %v8755 = vld [vmem:[%s8730 + $0xc0] sm:$0xff]
    %v8756 = vld [vmem:[%s8730 + $0xc8] sm:$0xff]
    %v8757 = vld [vmem:[%s8730 + $0xd0] sm:$0xff]
    %v8758 = vld [vmem:[%s8730 + $0xd8] sm:$0xff]
    %v8759 = vld [vmem:[%s8730 + $0xe0] sm:$0xff]
    %v8760 = vld [vmem:[%s8730 + $0xe8] sm:$0xff]
    %v8761 = vld [vmem:[%s8730 + $0xf0] sm:$0xff]
    %v8762 = vld [vmem:[%s8730 + $0xf8] sm:$0xff]
    %v8763 = vld [vmem:[%s8730 + $0x100] sm:$0xff]
    %v8764 = vld [vmem:[%s8730 + $0x108] sm:$0xff]
    %v8765 = vld [vmem:[%s8730 + $0x110] sm:$0xff]
    %v8766 = vld [vmem:[%s8730 + $0x118] sm:$0xff]
    %v8767 = vld [vmem:[%s8730 + $0x120] sm:$0xff]
    %v8768 = vld [vmem:[%s8730 + $0x128] sm:$0xff]
    %v8769 = vld [vmem:[%s8730 + $0x130] sm:$0xff]
    %v8770 = vld [vmem:[%s8730 + $0x138] sm:$0xff]
    %v8771 = vld [vmem:[%s8730 + $0x140] sm:$0xff]
    %v8772 = vld [vmem:[%s8730 + $0x148] sm:$0xff]
    %v8773 = vld [vmem:[%s8730 + $0x150] sm:$0xff]
    %v8774 = vld [vmem:[%s8730 + $0x158] sm:$0xff]
    %v8775 = vld [vmem:[%s8730 + $0x160] sm:$0xff]
    %v8776 = vld [vmem:[%s8730 + $0x168] sm:$0xff]
    %v8777 = vld [vmem:[%s8730 + $0x170] sm:$0xff]
    %v8778 = vld [vmem:[%s8730 + $0x178] sm:$0xff]
    %v8779 = vld [vmem:[%s8730 + $0x180] sm:$0xff]
    %v8780 = vld [vmem:[%s8730 + $0x188] sm:$0xff]
    %v8781 = vld [vmem:[%s8730 + $0x190] sm:$0xff]
    %v8782 = vld [vmem:[%s8730 + $0x198] sm:$0xff]
    %v8783 = vld [vmem:[%s8730 + $0x1a0] sm:$0xff]
    %v8784 = vld [vmem:[%s8730 + $0x1a8] sm:$0xff]
    %v8785 = vld [vmem:[%s8730 + $0x1b0] sm:$0xff]
    %v8786 = vld [vmem:[%s8730 + $0x1b8] sm:$0xff]
    %v8787 = vld [vmem:[%s8730 + $0x1c0] sm:$0xff]
    %v8788 = vld [vmem:[%s8730 + $0x1c8] sm:$0xff]
    %v8789 = vld [vmem:[%s8730 + $0x1d0] sm:$0xff]
    %v8790 = vld [vmem:[%s8730 + $0x1d8] sm:$0xff]
    %v8791 = vld [vmem:[%s8730 + $0x1e0] sm:$0xff]
    %v8792 = vld [vmem:[%s8730 + $0x1e8] sm:$0xff]
    %v8793 = vld [vmem:[%s8730 + $0x1f0] sm:$0xff]
    %v8794 = vld [vmem:[%s8730 + $0x1f8] sm:$0xff]
    %v8795 = vld [vmem:[%s8730 + $0x200] sm:$0xff]
    %v8796 = vld [vmem:[%s8730 + $0x208] sm:$0xff]
    %v8797 = vld [vmem:[%s8730 + $0x210] sm:$0xff]
    %v8798 = vld [vmem:[%s8730 + $0x218] sm:$0xff]
    %v8799 = vld [vmem:[%s8730 + $0x220] sm:$0xff]
    %v8800 = vld [vmem:[%s8730 + $0x228] sm:$0xff]
    %v8801 = vld [vmem:[%s8730 + $0x230] sm:$0xff]
    %v8802 = vld [vmem:[%s8730 + $0x238] sm:$0xff]
    %v8803 = vld [vmem:[%s8730 + $0x240] sm:$0xff]
    %v8804 = vld [vmem:[%s8730 + $0x248] sm:$0xff]
    %v8805 = vld [vmem:[%s8730 + $0x250] sm:$0xff]
    %v8806 = vld [vmem:[%s8730 + $0x258] sm:$0xff]
    %v8807 = vld [vmem:[%s8730 + $0x260] sm:$0xff]
    %v8808 = vld [vmem:[%s8730 + $0x268] sm:$0xff]
    %v8809 = vld [vmem:[%s8730 + $0x270] sm:$0xff]
    %v8810 = vld [vmem:[%s8730 + $0x278] sm:$0xff]
    %v8811 = vld [vmem:[%s8730 + $0x280] sm:$0xff]
    %v8812 = vld [vmem:[%s8730 + $0x288] sm:$0xff]
    %v8813 = vld [vmem:[%s8730 + $0x290] sm:$0xff]
    %v8814 = vld [vmem:[%s8730 + $0x298] sm:$0xff]
    %v8815 = vld [vmem:[%s8730 + $0x2a0] sm:$0xff]
    %v8816 = vld [vmem:[%s8730 + $0x2a8] sm:$0xff]
    %v8817 = vld [vmem:[%s8730 + $0x2b0] sm:$0xff]
    %v8818 = vld [vmem:[%s8730 + $0x2b8] sm:$0xff]
    %v8819 = vld [vmem:[%s8730 + $0x2c0] sm:$0xff]
    %v8820 = vld [vmem:[%s8730 + $0x2c8] sm:$0xff]
    %v8821 = vld [vmem:[%s8730 + $0x2d0] sm:$0xff]
    %v8822 = vld [vmem:[%s8730 + $0x2d8] sm:$0xff]
    %v8823 = vld [vmem:[%s8730 + $0x2e0] sm:$0xff]
    %v8824 = vld [vmem:[%s8730 + $0x2e8] sm:$0xff]
    %v8825 = vld [vmem:[%s8730 + $0x2f0] sm:$0xff]
    %v8826 = vld [vmem:[%s8730 + $0x2f8] sm:$0xff]
    %v8827 = vld [vmem:[%s8730 + $0x300] sm:$0xff]
    %v8828 = vld [vmem:[%s8730 + $0x308] sm:$0xff]
    %v8829 = vld [vmem:[%s8730 + $0x310] sm:$0xff]
    %v8830 = vld [vmem:[%s8730 + $0x318] sm:$0xff]
    %v8831 = vld [vmem:[%s8730 + $0x320] sm:$0xff]
    %v8832 = vld [vmem:[%s8730 + $0x328] sm:$0xff]
    %v8833 = vld [vmem:[%s8730 + $0x330] sm:$0xff]
    %v8834 = vld [vmem:[%s8730 + $0x338] sm:$0xff]
    %v8835 = vld [vmem:[%s8730 + $0x340] sm:$0xff]
    %v8836 = vld [vmem:[%s8730 + $0x348] sm:$0xff]
    %v8837 = vld [vmem:[%s8730 + $0x350] sm:$0xff]
    %v8838 = vld [vmem:[%s8730 + $0x358] sm:$0xff]
    %v8839 = vld [vmem:[%s8730 + $0x360] sm:$0xff]
    %v8840 = vld [vmem:[%s8730 + $0x368] sm:$0xff]
    %v8841 = vld [vmem:[%s8730 + $0x370] sm:$0xff]
    %v8842 = vld [vmem:[%s8730 + $0x378] sm:$0xff]
    %v8843 = vld [vmem:[%s8730 + $0x380] sm:$0xff]
    %v8844 = vld [vmem:[%s8730 + $0x388] sm:$0xff]
    %v8845 = vld [vmem:[%s8730 + $0x390] sm:$0xff]
    %v8846 = vld [vmem:[%s8730 + $0x398] sm:$0xff]
    %v8847 = vld [vmem:[%s8730 + $0x3a0] sm:$0xff]
    %v8848 = vld [vmem:[%s8730 + $0x3a8] sm:$0xff]
    %v8849 = vld [vmem:[%s8730 + $0x3b0] sm:$0xff]
    %v8850 = vld [vmem:[%s8730 + $0x3b8] sm:$0xff]
    %v8851 = vld [vmem:[%s8730 + $0x3c0] sm:$0xff]
    %v8852 = vld [vmem:[%s8730 + $0x3c8] sm:$0xff]
    %v8853 = vld [vmem:[%s8730 + $0x3d0] sm:$0xff]
    %v8854 = vld [vmem:[%s8730 + $0x3d8] sm:$0xff]
    %v8855 = vld [vmem:[%s8730 + $0x3e0] sm:$0xff]
    %v8856 = vld [vmem:[%s8730 + $0x3e8] sm:$0xff]
    %v8857 = vld [vmem:[%s8730 + $0x3f0] sm:$0xff]
    %v8858 = vld [vmem:[%s8730 + $0x3f8] sm:$0xff]
    %v8859 = vpack.c.bf16 %v8706, %v8698
    %v8860 = vpack.c.bf16 %v8707, %v8699
    %v8861 = vpack.c.bf16 %v8708, %v8700
    %v8862 = vpack.c.bf16 %v8709, %v8701
    %v8863 = vpack.c.bf16 %v8710, %v8702
    %v8864 = vpack.c.bf16 %v8711, %v8703
    %v8865 = vpack.c.bf16 %v8712, %v8704
    %v8866 = vpack.c.bf16 %v8713, %v8705
    %v8867 = vpack.c.bf16 %v8722, %v8714
    %v8868 = vpack.c.bf16 %v8723, %v8715
    %v8869 = vpack.c.bf16 %v8724, %v8716
    %v8870 = vpack.c.bf16 %v8725, %v8717
    %v8871 = vpack.c.bf16 %v8726, %v8718
    %v8872 = vpack.c.bf16 %v8727, %v8719
    %v8873 = vpack.c.bf16 %v8728, %v8720
    %v8874 = vpack.c.bf16 %v8729, %v8721
    %v9003 = vunpack.c.l.b16 %v8731
    %v9004 = vunpack.c.h.b16 %v8731
    %v9005 = vunpack.c.l.b16 %v8732
    %v9006 = vunpack.c.h.b16 %v8732
    %v9007 = vunpack.c.l.b16 %v8733
    %v9008 = vunpack.c.h.b16 %v8733
    %v9009 = vunpack.c.l.b16 %v8734
    %v9010 = vunpack.c.h.b16 %v8734
    %v9011 = vunpack.c.l.b16 %v8735
    %v9012 = vunpack.c.h.b16 %v8735
    %v9013 = vunpack.c.l.b16 %v8736
    %v9014 = vunpack.c.h.b16 %v8736
    %v9015 = vunpack.c.l.b16 %v8737
    %v9016 = vunpack.c.h.b16 %v8737
    %v9017 = vunpack.c.l.b16 %v8738
    %v9018 = vunpack.c.h.b16 %v8738
    %v9019 = vunpack.c.l.b16 %v8739
    %v9020 = vunpack.c.h.b16 %v8739
    %v9021 = vunpack.c.l.b16 %v8740
    %v9022 = vunpack.c.h.b16 %v8740
    %v9023 = vunpack.c.l.b16 %v8741
    %v9024 = vunpack.c.h.b16 %v8741
    %v9025 = vunpack.c.l.b16 %v8742
    %v9026 = vunpack.c.h.b16 %v8742
    %v9027 = vunpack.c.l.b16 %v8743
    %v9028 = vunpack.c.h.b16 %v8743
    %v9029 = vunpack.c.l.b16 %v8744
    %v9030 = vunpack.c.h.b16 %v8744
    %v9031 = vunpack.c.l.b16 %v8745
    %v9032 = vunpack.c.h.b16 %v8745
    %v9033 = vunpack.c.l.b16 %v8746
    %v9034 = vunpack.c.h.b16 %v8746
    %v9035 = vunpack.c.l.b16 %v8747
    %v9036 = vunpack.c.h.b16 %v8747
    %v9037 = vunpack.c.l.b16 %v8748
    %v9038 = vunpack.c.h.b16 %v8748
    %v9039 = vunpack.c.l.b16 %v8749
    %v9040 = vunpack.c.h.b16 %v8749
    %v9041 = vunpack.c.l.b16 %v8750
    %v9042 = vunpack.c.h.b16 %v8750
    %v9043 = vunpack.c.l.b16 %v8751
    %v9044 = vunpack.c.h.b16 %v8751
    %v9045 = vunpack.c.l.b16 %v8752
    %v9046 = vunpack.c.h.b16 %v8752
    %v9047 = vunpack.c.l.b16 %v8753
    %v9048 = vunpack.c.h.b16 %v8753
    %v9049 = vunpack.c.l.b16 %v8754
    %v9050 = vunpack.c.h.b16 %v8754
    %v9051 = vunpack.c.l.b16 %v8755
    %v9052 = vunpack.c.h.b16 %v8755
    %v9053 = vunpack.c.l.b16 %v8756
    %v9054 = vunpack.c.h.b16 %v8756
    %v9055 = vunpack.c.l.b16 %v8757
    %v9056 = vunpack.c.h.b16 %v8757
    %v9057 = vunpack.c.l.b16 %v8758
    %v9058 = vunpack.c.h.b16 %v8758
    %v9059 = vunpack.c.l.b16 %v8759
    %v9060 = vunpack.c.h.b16 %v8759
    %v9061 = vunpack.c.l.b16 %v8760
    %v9062 = vunpack.c.h.b16 %v8760
    %v9063 = vunpack.c.l.b16 %v8761
    %v9064 = vunpack.c.h.b16 %v8761
    %v9065 = vunpack.c.l.b16 %v8762
    %v9066 = vunpack.c.h.b16 %v8762
    %v9067 = vunpack.c.l.b16 %v8763
    %v9068 = vunpack.c.h.b16 %v8763
    %v9069 = vunpack.c.l.b16 %v8764
    %v9070 = vunpack.c.h.b16 %v8764
    %v9071 = vunpack.c.l.b16 %v8765
    %v9072 = vunpack.c.h.b16 %v8765
    %v9073 = vunpack.c.l.b16 %v8766
    %v9074 = vunpack.c.h.b16 %v8766
    %v9075 = vunpack.c.l.b16 %v8767
    %v9076 = vunpack.c.h.b16 %v8767
    %v9077 = vunpack.c.l.b16 %v8768
    %v9078 = vunpack.c.h.b16 %v8768
    %v9079 = vunpack.c.l.b16 %v8769
    %v9080 = vunpack.c.h.b16 %v8769
    %v9081 = vunpack.c.l.b16 %v8770
    %v9082 = vunpack.c.h.b16 %v8770
    %v9083 = vunpack.c.l.b16 %v8771
    %v9084 = vunpack.c.h.b16 %v8771
    %v9085 = vunpack.c.l.b16 %v8772
    %v9086 = vunpack.c.h.b16 %v8772
    %v9087 = vunpack.c.l.b16 %v8773
    %v9088 = vunpack.c.h.b16 %v8773
    %v9089 = vunpack.c.l.b16 %v8774
    %v9090 = vunpack.c.h.b16 %v8774
    %v9091 = vunpack.c.l.b16 %v8775
    %v9092 = vunpack.c.h.b16 %v8775
    %v9093 = vunpack.c.l.b16 %v8776
    %v9094 = vunpack.c.h.b16 %v8776
    %v9095 = vunpack.c.l.b16 %v8777
    %v9096 = vunpack.c.h.b16 %v8777
    %v9097 = vunpack.c.l.b16 %v8778
    %v9098 = vunpack.c.h.b16 %v8778
    %v9099 = vunpack.c.l.b16 %v8779
    %v9100 = vunpack.c.h.b16 %v8779
    %v9101 = vunpack.c.l.b16 %v8780
    %v9102 = vunpack.c.h.b16 %v8780
    %v9103 = vunpack.c.l.b16 %v8781
    %v9104 = vunpack.c.h.b16 %v8781
    %v9105 = vunpack.c.l.b16 %v8782
    %v9106 = vunpack.c.h.b16 %v8782
    %v9107 = vunpack.c.l.b16 %v8783
    %v9108 = vunpack.c.h.b16 %v8783
    %v9109 = vunpack.c.l.b16 %v8784
    %v9110 = vunpack.c.h.b16 %v8784
    %v9111 = vunpack.c.l.b16 %v8785
    %v9112 = vunpack.c.h.b16 %v8785
    %v9113 = vunpack.c.l.b16 %v8786
    %v9114 = vunpack.c.h.b16 %v8786
    %v9115 = vunpack.c.l.b16 %v8787
    %v9116 = vunpack.c.h.b16 %v8787
    %v9117 = vunpack.c.l.b16 %v8788
    %v9118 = vunpack.c.h.b16 %v8788
    %v9119 = vunpack.c.l.b16 %v8789
    %v9120 = vunpack.c.h.b16 %v8789
    %v9121 = vunpack.c.l.b16 %v8790
    %v9122 = vunpack.c.h.b16 %v8790
    %v9123 = vunpack.c.l.b16 %v8791
    %v9124 = vunpack.c.h.b16 %v8791
    %v9125 = vunpack.c.l.b16 %v8792
    %v9126 = vunpack.c.h.b16 %v8792
    %v9127 = vunpack.c.l.b16 %v8793
    %v9128 = vunpack.c.h.b16 %v8793
    %v9129 = vunpack.c.l.b16 %v8794
    %v9130 = vunpack.c.h.b16 %v8794
    %v9131 = vunpack.c.l.b16 %v8795
    %v9132 = vunpack.c.h.b16 %v8795
    %v9133 = vunpack.c.l.b16 %v8796
    %v9134 = vunpack.c.h.b16 %v8796
    %v9135 = vunpack.c.l.b16 %v8797
    %v9136 = vunpack.c.h.b16 %v8797
    %v9137 = vunpack.c.l.b16 %v8798
    %v9138 = vunpack.c.h.b16 %v8798
    %v9139 = vunpack.c.l.b16 %v8799
    %v9140 = vunpack.c.h.b16 %v8799
    %v9141 = vunpack.c.l.b16 %v8800
    %v9142 = vunpack.c.h.b16 %v8800
    %v9143 = vunpack.c.l.b16 %v8801
    %v9144 = vunpack.c.h.b16 %v8801
    %v9145 = vunpack.c.l.b16 %v8802
    %v9146 = vunpack.c.h.b16 %v8802
    %v9147 = vunpack.c.l.b16 %v8803
    %v9148 = vunpack.c.h.b16 %v8803
    %v9149 = vunpack.c.l.b16 %v8804
    %v9150 = vunpack.c.h.b16 %v8804
    %v9151 = vunpack.c.l.b16 %v8805
    %v9152 = vunpack.c.h.b16 %v8805
    %v9153 = vunpack.c.l.b16 %v8806
    %v9154 = vunpack.c.h.b16 %v8806
    %v9155 = vunpack.c.l.b16 %v8807
    %v9156 = vunpack.c.h.b16 %v8807
    %v9157 = vunpack.c.l.b16 %v8808
    %v9158 = vunpack.c.h.b16 %v8808
    %v9159 = vunpack.c.l.b16 %v8809
    %v9160 = vunpack.c.h.b16 %v8809
    %v9161 = vunpack.c.l.b16 %v8810
    %v9162 = vunpack.c.h.b16 %v8810
    %v9163 = vunpack.c.l.b16 %v8811
    %v9164 = vunpack.c.h.b16 %v8811
    %v9165 = vunpack.c.l.b16 %v8812
    %v9166 = vunpack.c.h.b16 %v8812
    %v9167 = vunpack.c.l.b16 %v8813
    %v9168 = vunpack.c.h.b16 %v8813
    %v9169 = vunpack.c.l.b16 %v8814
    %v9170 = vunpack.c.h.b16 %v8814
    %v9171 = vunpack.c.l.b16 %v8815
    %v9172 = vunpack.c.h.b16 %v8815
    %v9173 = vunpack.c.l.b16 %v8816
    %v9174 = vunpack.c.h.b16 %v8816
    %v9175 = vunpack.c.l.b16 %v8817
    %v9176 = vunpack.c.h.b16 %v8817
    %v9177 = vunpack.c.l.b16 %v8818
    %v9178 = vunpack.c.h.b16 %v8818
    %v9179 = vunpack.c.l.b16 %v8819
    %v9180 = vunpack.c.h.b16 %v8819
    %v9181 = vunpack.c.l.b16 %v8820
    %v9182 = vunpack.c.h.b16 %v8820
    %v9183 = vunpack.c.l.b16 %v8821
    %v9184 = vunpack.c.h.b16 %v8821
    %v9185 = vunpack.c.l.b16 %v8822
    %v9186 = vunpack.c.h.b16 %v8822
    %v9187 = vunpack.c.l.b16 %v8823
    %v9188 = vunpack.c.h.b16 %v8823
    %v9189 = vunpack.c.l.b16 %v8824
    %v9190 = vunpack.c.h.b16 %v8824
    %v9191 = vunpack.c.l.b16 %v8825
    %v9192 = vunpack.c.h.b16 %v8825
    %v9193 = vunpack.c.l.b16 %v8826
    %v9194 = vunpack.c.h.b16 %v8826
    %v9195 = vunpack.c.l.b16 %v8827
    %v9196 = vunpack.c.h.b16 %v8827
    %v9197 = vunpack.c.l.b16 %v8828
    %v9198 = vunpack.c.h.b16 %v8828
    %v9199 = vunpack.c.l.b16 %v8829
    %v9200 = vunpack.c.h.b16 %v8829
    %v9201 = vunpack.c.l.b16 %v8830
    %v9202 = vunpack.c.h.b16 %v8830
    %v9203 = vunpack.c.l.b16 %v8831
    %v9204 = vunpack.c.h.b16 %v8831
    %v9205 = vunpack.c.l.b16 %v8832
    %v9206 = vunpack.c.h.b16 %v8832
    %v9207 = vunpack.c.l.b16 %v8833
    %v9208 = vunpack.c.h.b16 %v8833
    %v9209 = vunpack.c.l.b16 %v8834
    %v9210 = vunpack.c.h.b16 %v8834
    %v9211 = vunpack.c.l.b16 %v8835
    %v9212 = vunpack.c.h.b16 %v8835
    %v9213 = vunpack.c.l.b16 %v8836
    %v9214 = vunpack.c.h.b16 %v8836
    %v9215 = vunpack.c.l.b16 %v8837
    %v9216 = vunpack.c.h.b16 %v8837
    %v9217 = vunpack.c.l.b16 %v8838
    %v9218 = vunpack.c.h.b16 %v8838
    %v9219 = vunpack.c.l.b16 %v8839
    %v9220 = vunpack.c.h.b16 %v8839
    %v9221 = vunpack.c.l.b16 %v8840
    %v9222 = vunpack.c.h.b16 %v8840
    %v9223 = vunpack.c.l.b16 %v8841
    %v9224 = vunpack.c.h.b16 %v8841
    %v9225 = vunpack.c.l.b16 %v8842
    %v9226 = vunpack.c.h.b16 %v8842
    %v9227 = vunpack.c.l.b16 %v8843
    %v9228 = vunpack.c.h.b16 %v8843
    %v9229 = vunpack.c.l.b16 %v8844
    %v9230 = vunpack.c.h.b16 %v8844
    %v9231 = vunpack.c.l.b16 %v8845
    %v9232 = vunpack.c.h.b16 %v8845
    %v9233 = vunpack.c.l.b16 %v8846
    %v9234 = vunpack.c.h.b16 %v8846
    %v9235 = vunpack.c.l.b16 %v8847
    %v9236 = vunpack.c.h.b16 %v8847
    %v9237 = vunpack.c.l.b16 %v8848
    %v9238 = vunpack.c.h.b16 %v8848
    %v9239 = vunpack.c.l.b16 %v8849
    %v9240 = vunpack.c.h.b16 %v8849
    %v9241 = vunpack.c.l.b16 %v8850
    %v9242 = vunpack.c.h.b16 %v8850
    %v9243 = vunpack.c.l.b16 %v8851
    %v9244 = vunpack.c.h.b16 %v8851
    %v9245 = vunpack.c.l.b16 %v8852
    %v9246 = vunpack.c.h.b16 %v8852
    %v9247 = vunpack.c.l.b16 %v8853
    %v9248 = vunpack.c.h.b16 %v8853
    %v9249 = vunpack.c.l.b16 %v8854
    %v9250 = vunpack.c.h.b16 %v8854
    %v9251 = vunpack.c.l.b16 %v8855
    %v9252 = vunpack.c.h.b16 %v8855
    %v9253 = vunpack.c.l.b16 %v8856
    %v9254 = vunpack.c.h.b16 %v8856
    %v9255 = vunpack.c.l.b16 %v8857
    %v9256 = vunpack.c.h.b16 %v8857
    %v9257 = vunpack.c.l.b16 %v8858
    %v9258 = vunpack.c.h.b16 %v8858
    %v9259 = vpack.c.b16 %v9005, %v9003
    %v9260 = vpack.c.b16 %v9006, %v9004
    %v9261 = vpack.c.b16 %v9009, %v9007
    %v9262 = vpack.c.b16 %v9010, %v9008
    %v9263 = vpack.c.b16 %v9013, %v9011
    %v9264 = vpack.c.b16 %v9014, %v9012
    %v9265 = vpack.c.b16 %v9017, %v9015
    %v9266 = vpack.c.b16 %v9018, %v9016
    %v9267 = vpack.c.b16 %v9021, %v9019
    %v9268 = vpack.c.b16 %v9022, %v9020
    %v9269 = vpack.c.b16 %v9025, %v9023
    %v9270 = vpack.c.b16 %v9026, %v9024
    %v9271 = vpack.c.b16 %v9029, %v9027
    %v9272 = vpack.c.b16 %v9030, %v9028
    %v9273 = vpack.c.b16 %v9033, %v9031
    %v9274 = vpack.c.b16 %v9034, %v9032
    %v9275 = vpack.c.b16 %v9037, %v9035
    %v9276 = vpack.c.b16 %v9038, %v9036
    %v9277 = vpack.c.b16 %v9041, %v9039
    %v9278 = vpack.c.b16 %v9042, %v9040
    %v9279 = vpack.c.b16 %v9045, %v9043
    %v9280 = vpack.c.b16 %v9046, %v9044
    %v9281 = vpack.c.b16 %v9049, %v9047
    %v9282 = vpack.c.b16 %v9050, %v9048
    %v9283 = vpack.c.b16 %v9053, %v9051
    %v9284 = vpack.c.b16 %v9054, %v9052
    %v9285 = vpack.c.b16 %v9057, %v9055
    %v9286 = vpack.c.b16 %v9058, %v9056
    %v9287 = vpack.c.b16 %v9061, %v9059
    %v9288 = vpack.c.b16 %v9062, %v9060
    %v9289 = vpack.c.b16 %v9065, %v9063
    %v9290 = vpack.c.b16 %v9066, %v9064
    %v9291 = vpack.c.b16 %v9069, %v9067
    %v9292 = vpack.c.b16 %v9070, %v9068
    %v9293 = vpack.c.b16 %v9073, %v9071
    %v9294 = vpack.c.b16 %v9074, %v9072
    %v9295 = vpack.c.b16 %v9077, %v9075
    %v9296 = vpack.c.b16 %v9078, %v9076
    %v9297 = vpack.c.b16 %v9081, %v9079
    %v9298 = vpack.c.b16 %v9082, %v9080
    %v9299 = vpack.c.b16 %v9085, %v9083
    %v9300 = vpack.c.b16 %v9086, %v9084
    %v9301 = vpack.c.b16 %v9089, %v9087
    %v9302 = vpack.c.b16 %v9090, %v9088
    %v9303 = vpack.c.b16 %v9093, %v9091
    %v9304 = vpack.c.b16 %v9094, %v9092
    %v9305 = vpack.c.b16 %v9097, %v9095
    %v9306 = vpack.c.b16 %v9098, %v9096
    %v9307 = vpack.c.b16 %v9101, %v9099
    %v9308 = vpack.c.b16 %v9102, %v9100
    %v9309 = vpack.c.b16 %v9105, %v9103
    %v9310 = vpack.c.b16 %v9106, %v9104
    %v9311 = vpack.c.b16 %v9109, %v9107
    %v9312 = vpack.c.b16 %v9110, %v9108
    %v9313 = vpack.c.b16 %v9113, %v9111
    %v9314 = vpack.c.b16 %v9114, %v9112
    %v9315 = vpack.c.b16 %v9117, %v9115
    %v9316 = vpack.c.b16 %v9118, %v9116
    %v9317 = vpack.c.b16 %v9121, %v9119
    %v9318 = vpack.c.b16 %v9122, %v9120
    %v9319 = vpack.c.b16 %v9125, %v9123
    %v9320 = vpack.c.b16 %v9126, %v9124
    %v9321 = vpack.c.b16 %v9129, %v9127
    %v9322 = vpack.c.b16 %v9130, %v9128
    %v9323 = vpack.c.b16 %v9133, %v9131
    %v9324 = vpack.c.b16 %v9134, %v9132
    %v9325 = vpack.c.b16 %v9137, %v9135
    %v9326 = vpack.c.b16 %v9138, %v9136
    %v9327 = vpack.c.b16 %v9141, %v9139
    %v9328 = vpack.c.b16 %v9142, %v9140
    %v9329 = vpack.c.b16 %v9145, %v9143
    %v9330 = vpack.c.b16 %v9146, %v9144
    %v9331 = vpack.c.b16 %v9149, %v9147
    %v9332 = vpack.c.b16 %v9150, %v9148
    %v9333 = vpack.c.b16 %v9153, %v9151
    %v9334 = vpack.c.b16 %v9154, %v9152
    %v9335 = vpack.c.b16 %v9157, %v9155
    %v9336 = vpack.c.b16 %v9158, %v9156
    %v9337 = vpack.c.b16 %v9161, %v9159
    %v9338 = vpack.c.b16 %v9162, %v9160
    %v9339 = vpack.c.b16 %v9165, %v9163
    %v9340 = vpack.c.b16 %v9166, %v9164
    %v9341 = vpack.c.b16 %v9169, %v9167
    %v9342 = vpack.c.b16 %v9170, %v9168
    %v9343 = vpack.c.b16 %v9173, %v9171
    %v9344 = vpack.c.b16 %v9174, %v9172
    %v9345 = vpack.c.b16 %v9177, %v9175
    %v9346 = vpack.c.b16 %v9178, %v9176
    %v9347 = vpack.c.b16 %v9181, %v9179
    %v9348 = vpack.c.b16 %v9182, %v9180
    %v9349 = vpack.c.b16 %v9185, %v9183
    %v9350 = vpack.c.b16 %v9186, %v9184
    %v9351 = vpack.c.b16 %v9189, %v9187
    %v9352 = vpack.c.b16 %v9190, %v9188
    %v9353 = vpack.c.b16 %v9193, %v9191
    %v9354 = vpack.c.b16 %v9194, %v9192
    %v9355 = vpack.c.b16 %v9197, %v9195
    %v9356 = vpack.c.b16 %v9198, %v9196
    %v9357 = vpack.c.b16 %v9201, %v9199
    %v9358 = vpack.c.b16 %v9202, %v9200
    %v9359 = vpack.c.b16 %v9205, %v9203
    %v9360 = vpack.c.b16 %v9206, %v9204
    %v9361 = vpack.c.b16 %v9209, %v9207
    %v9362 = vpack.c.b16 %v9210, %v9208
    %v9363 = vpack.c.b16 %v9213, %v9211
    %v9364 = vpack.c.b16 %v9214, %v9212
    %v9365 = vpack.c.b16 %v9217, %v9215
    %v9366 = vpack.c.b16 %v9218, %v9216
    %v9367 = vpack.c.b16 %v9221, %v9219
    %v9368 = vpack.c.b16 %v9222, %v9220
    %v9369 = vpack.c.b16 %v9225, %v9223
    %v9370 = vpack.c.b16 %v9226, %v9224
    %v9371 = vpack.c.b16 %v9229, %v9227
    %v9372 = vpack.c.b16 %v9230, %v9228
    %v9373 = vpack.c.b16 %v9233, %v9231
    %v9374 = vpack.c.b16 %v9234, %v9232
    %v9375 = vpack.c.b16 %v9237, %v9235
    %v9376 = vpack.c.b16 %v9238, %v9236
    %v9377 = vpack.c.b16 %v9241, %v9239
    %v9378 = vpack.c.b16 %v9242, %v9240
    %v9379 = vpack.c.b16 %v9245, %v9243
    %v9380 = vpack.c.b16 %v9246, %v9244
    %v9381 = vpack.c.b16 %v9249, %v9247
    %v9382 = vpack.c.b16 %v9250, %v9248
    %v9383 = vpack.c.b16 %v9253, %v9251
    %v9384 = vpack.c.b16 %v9254, %v9252
    %v9385 = vpack.c.b16 %v9257, %v9255
    %v9386 = vpack.c.b16 %v9258, %v9256
    %9515 = vmatprep.subr.bf16.mxu0 %v9274
    %9516 = vmatpush1.bf16.msra.mxu0 %v9273
    %9517 = vmatprep.subr.bf16.mxu0 %v9272
    %9518 = vmatpush1.bf16.msra.mxu0 %v9271
    %9519 = vmatprep.subr.bf16.mxu0 %v9270
    %9520 = vmatpush1.bf16.msra.mxu0 %v9269
    %9521 = vmatprep.subr.bf16.mxu0 %v9268
    %9522 = vmatpush1.bf16.msra.mxu0 %v9267
    %9523 = vmatprep.subr.bf16.mxu0 %v9266
    %9524 = vmatpush1.bf16.msra.mxu0 %v9265
    %9525 = vmatprep.subr.bf16.mxu0 %v9264
    %9526 = vmatpush1.bf16.msra.mxu0 %v9263
    %9527 = vmatprep.subr.bf16.mxu0 %v9262
    %9528 = vmatpush1.bf16.msra.mxu0 %v9261
    %9529 = vmatprep.subr.bf16.mxu0 %v9260
    %9530 = vmatpush1.bf16.msra.mxu0 %v9259
    %9531 = vmatprep.subr.bf16.mxu0 %v9290
    %9532 = vmatpush2.bf16.msra.mxu0 %v9289
    %9533 = vmatprep.subr.bf16.mxu0 %v9288
    %9534 = vmatpush2.bf16.msra.mxu0 %v9287
    %9535 = vmatprep.subr.bf16.mxu0 %v9286
    %9536 = vmatpush2.bf16.msra.mxu0 %v9285
    %9537 = vmatprep.subr.bf16.mxu0 %v9284
    %9538 = vmatpush2.bf16.msra.mxu0 %v9283
    %9539 = vmatprep.subr.bf16.mxu0 %v9282
    %9540 = vmatpush2.bf16.msra.mxu0 %v9281
    %9541 = vmatprep.subr.bf16.mxu0 %v9280
    %9542 = vmatpush2.bf16.msra.mxu0 %v9279
    %9543 = vmatprep.subr.bf16.mxu0 %v9278
    %9544 = vmatpush2.bf16.msra.mxu0 %v9277
    %9545 = vmatprep.subr.bf16.mxu0 %v9276
    %9546 = vmatpush2.bf16.msra.mxu0 %v9275
    %9547 = vmatprep.mubr.bf16.mxu0 %v8860
    %9548 = vmatmul.mubr.bf16.gmra.mxu0 %v8859
    %v9549 = vpop.f32.mrf.mxu0
    %v9550 = vadd.f32 0.0, %v9549
    %v9551 = vpop.f32.mrf.mxu0
    %v9552 = vadd.f32 0.0, %v9551
    %v9553 = vpop.f32.mrf.mxu0
    %v9554 = vadd.f32 0.0, %v9553
    %v9555 = vpop.f32.mrf.mxu0
    %v9556 = vadd.f32 0.0, %v9555
    %9557 = vmatprep.mubr.bf16.mxu0 %v8868
    %9558 = vmatmul.mubr.bf16.gmra.mxu0 %v8867
    %v9559 = vpop.f32.mrf.mxu0
    %v9560 = vadd.f32 0.0, %v9559
    %v9561 = vpop.f32.mrf.mxu0
    %v9562 = vadd.f32 0.0, %v9561
    %v9563 = vpop.f32.mrf.mxu0
    %v9564 = vadd.f32 0.0, %v9563
    %v9565 = vpop.f32.mrf.mxu0
    %v9566 = vadd.f32 0.0, %v9565
    %9567 = vdwg.mxu0
    %9568 = vmatprep.subr.bf16.mxu0 %v9306
    %9569 = vmatpush1.bf16.msra.mxu0 %v9305
    %9570 = vmatprep.subr.bf16.mxu0 %v9304
    %9571 = vmatpush1.bf16.msra.mxu0 %v9303
    %9572 = vmatprep.subr.bf16.mxu0 %v9302
    %9573 = vmatpush1.bf16.msra.mxu0 %v9301
    %9574 = vmatprep.subr.bf16.mxu0 %v9300
    %9575 = vmatpush1.bf16.msra.mxu0 %v9299
    %9576 = vmatprep.subr.bf16.mxu0 %v9298
    %9577 = vmatpush1.bf16.msra.mxu0 %v9297
    %9578 = vmatprep.subr.bf16.mxu0 %v9296
    %9579 = vmatpush1.bf16.msra.mxu0 %v9295
    %9580 = vmatprep.subr.bf16.mxu0 %v9294
    %9581 = vmatpush1.bf16.msra.mxu0 %v9293
    %9582 = vmatprep.subr.bf16.mxu0 %v9292
    %9583 = vmatpush1.bf16.msra.mxu0 %v9291
    %9584 = vmatprep.subr.bf16.mxu0 %v9322
    %9585 = vmatpush2.bf16.msra.mxu0 %v9321
    %9586 = vmatprep.subr.bf16.mxu0 %v9320
    %9587 = vmatpush2.bf16.msra.mxu0 %v9319
    %9588 = vmatprep.subr.bf16.mxu0 %v9318
    %9589 = vmatpush2.bf16.msra.mxu0 %v9317
    %9590 = vmatprep.subr.bf16.mxu0 %v9316
    %9591 = vmatpush2.bf16.msra.mxu0 %v9315
    %9592 = vmatprep.subr.bf16.mxu0 %v9314
    %9593 = vmatpush2.bf16.msra.mxu0 %v9313
    %9594 = vmatprep.subr.bf16.mxu0 %v9312
    %9595 = vmatpush2.bf16.msra.mxu0 %v9311
    %9596 = vmatprep.subr.bf16.mxu0 %v9310
    %9597 = vmatpush2.bf16.msra.mxu0 %v9309
    %9598 = vmatprep.subr.bf16.mxu0 %v9308
    %9599 = vmatpush2.bf16.msra.mxu0 %v9307
    %9600 = vmatprep.mubr.bf16.mxu0 %v8862
    %9601 = vmatmul.mubr.bf16.gmra.mxu0 %v8861
    %v9602 = vpop.f32.mrf.mxu0
    %v9603 = vadd.f32 %v9550, %v9602
    %v9604 = vpop.f32.mrf.mxu0
    %v9605 = vadd.f32 %v9552, %v9604
    %v9606 = vpop.f32.mrf.mxu0
    %v9607 = vadd.f32 %v9554, %v9606
    %v9608 = vpop.f32.mrf.mxu0
    %v9609 = vadd.f32 %v9556, %v9608
    %9610 = vmatprep.mubr.bf16.mxu0 %v8870
    %9611 = vmatmul.mubr.bf16.gmra.mxu0 %v8869
    %v9612 = vpop.f32.mrf.mxu0
    %v9613 = vadd.f32 %v9560, %v9612
    %v9614 = vpop.f32.mrf.mxu0
    %v9615 = vadd.f32 %v9562, %v9614
    %v9616 = vpop.f32.mrf.mxu0
    %v9617 = vadd.f32 %v9564, %v9616
    %v9618 = vpop.f32.mrf.mxu0
    %v9619 = vadd.f32 %v9566, %v9618
    %9620 = vdwg.mxu0
    %9621 = vmatprep.subr.bf16.mxu0 %v9338
    %9622 = vmatpush1.bf16.msra.mxu0 %v9337
    %9623 = vmatprep.subr.bf16.mxu0 %v9336
    %9624 = vmatpush1.bf16.msra.mxu0 %v9335
    %9625 = vmatprep.subr.bf16.mxu0 %v9334
    %9626 = vmatpush1.bf16.msra.mxu0 %v9333
    %9627 = vmatprep.subr.bf16.mxu0 %v9332
    %9628 = vmatpush1.bf16.msra.mxu0 %v9331
    %9629 = vmatprep.subr.bf16.mxu0 %v9330
    %9630 = vmatpush1.bf16.msra.mxu0 %v9329
    %9631 = vmatprep.subr.bf16.mxu0 %v9328
    %9632 = vmatpush1.bf16.msra.mxu0 %v9327
    %9633 = vmatprep.subr.bf16.mxu0 %v9326
    %9634 = vmatpush1.bf16.msra.mxu0 %v9325
    %9635 = vmatprep.subr.bf16.mxu0 %v9324
    %9636 = vmatpush1.bf16.msra.mxu0 %v9323
    %9637 = vmatprep.subr.bf16.mxu0 %v9354
    %9638 = vmatpush2.bf16.msra.mxu0 %v9353
    %9639 = vmatprep.subr.bf16.mxu0 %v9352
    %9640 = vmatpush2.bf16.msra.mxu0 %v9351
    %9641 = vmatprep.subr.bf16.mxu0 %v9350
    %9642 = vmatpush2.bf16.msra.mxu0 %v9349
    %9643 = vmatprep.subr.bf16.mxu0 %v9348
    %9644 = vmatpush2.bf16.msra.mxu0 %v9347
    %9645 = vmatprep.subr.bf16.mxu0 %v9346
    %9646 = vmatpush2.bf16.msra.mxu0 %v9345
    %9647 = vmatprep.subr.bf16.mxu0 %v9344
    %9648 = vmatpush2.bf16.msra.mxu0 %v9343
    %9649 = vmatprep.subr.bf16.mxu0 %v9342
    %9650 = vmatpush2.bf16.msra.mxu0 %v9341
    %9651 = vmatprep.subr.bf16.mxu0 %v9340
    %9652 = vmatpush2.bf16.msra.mxu0 %v9339
    %9653 = vmatprep.mubr.bf16.mxu0 %v8864
    %9654 = vmatmul.mubr.bf16.gmra.mxu0 %v8863
    %v9655 = vpop.f32.mrf.mxu0
    %v9656 = vadd.f32 %v9603, %v9655
    %v9657 = vpop.f32.mrf.mxu0
    %v9658 = vadd.f32 %v9605, %v9657
    %v9659 = vpop.f32.mrf.mxu0
    %v9660 = vadd.f32 %v9607, %v9659
    %v9661 = vpop.f32.mrf.mxu0
    %v9662 = vadd.f32 %v9609, %v9661
    %9663 = vmatprep.mubr.bf16.mxu0 %v8872
    %9664 = vmatmul.mubr.bf16.gmra.mxu0 %v8871
    %v9665 = vpop.f32.mrf.mxu0
    %v9666 = vadd.f32 %v9613, %v9665
    %v9667 = vpop.f32.mrf.mxu0
    %v9668 = vadd.f32 %v9615, %v9667
    %v9669 = vpop.f32.mrf.mxu0
    %v9670 = vadd.f32 %v9617, %v9669
    %v9671 = vpop.f32.mrf.mxu0
    %v9672 = vadd.f32 %v9619, %v9671
    %9673 = vdwg.mxu0
    %9674 = vmatprep.subr.bf16.mxu0 %v9370
    %9675 = vmatpush1.bf16.msra.mxu0 %v9369
    %9676 = vmatprep.subr.bf16.mxu0 %v9368
    %9677 = vmatpush1.bf16.msra.mxu0 %v9367
    %9678 = vmatprep.subr.bf16.mxu0 %v9366
    %9679 = vmatpush1.bf16.msra.mxu0 %v9365
    %9680 = vmatprep.subr.bf16.mxu0 %v9364
    %9681 = vmatpush1.bf16.msra.mxu0 %v9363
    %9682 = vmatprep.subr.bf16.mxu0 %v9362
    %9683 = vmatpush1.bf16.msra.mxu0 %v9361
    %9684 = vmatprep.subr.bf16.mxu0 %v9360
    %9685 = vmatpush1.bf16.msra.mxu0 %v9359
    %9686 = vmatprep.subr.bf16.mxu0 %v9358
    %9687 = vmatpush1.bf16.msra.mxu0 %v9357
    %9688 = vmatprep.subr.bf16.mxu0 %v9356
    %9689 = vmatpush1.bf16.msra.mxu0 %v9355
    %9690 = vmatprep.subr.bf16.mxu0 %v9386
    %9691 = vmatpush2.bf16.msra.mxu0 %v9385
    %9692 = vmatprep.subr.bf16.mxu0 %v9384
    %9693 = vmatpush2.bf16.msra.mxu0 %v9383
    %9694 = vmatprep.subr.bf16.mxu0 %v9382
    %9695 = vmatpush2.bf16.msra.mxu0 %v9381
    %9696 = vmatprep.subr.bf16.mxu0 %v9380
    %9697 = vmatpush2.bf16.msra.mxu0 %v9379
    %9698 = vmatprep.subr.bf16.mxu0 %v9378
    %9699 = vmatpush2.bf16.msra.mxu0 %v9377
    %9700 = vmatprep.subr.bf16.mxu0 %v9376
    %9701 = vmatpush2.bf16.msra.mxu0 %v9375
    %9702 = vmatprep.subr.bf16.mxu0 %v9374
    %9703 = vmatpush2.bf16.msra.mxu0 %v9373
    %9704 = vmatprep.subr.bf16.mxu0 %v9372
    %9705 = vmatpush2.bf16.msra.mxu0 %v9371
    %9706 = vmatprep.mubr.bf16.mxu0 %v8866
    %9707 = vmatmul.mubr.bf16.gmra.mxu0 %v8865
    %v9708 = vpop.f32.mrf.mxu0
    %v9709 = vadd.f32 %v9656, %v9708
    %v9710 = vpop.f32.mrf.mxu0
    %v9711 = vadd.f32 %v9658, %v9710
    %v9712 = vpop.f32.mrf.mxu0
    %v9713 = vadd.f32 %v9660, %v9712
    %v9714 = vpop.f32.mrf.mxu0
    %v9715 = vadd.f32 %v9662, %v9714
    %9716 = vmatprep.mubr.bf16.mxu0 %v8874
    %9717 = vmatmul.mubr.bf16.gmra.mxu0 %v8873
    %v9718 = vpop.f32.mrf.mxu0
    %v9719 = vadd.f32 %v9666, %v9718
    %v9720 = vpop.f32.mrf.mxu0
    %v9721 = vadd.f32 %v9668, %v9720
    %v9722 = vpop.f32.mrf.mxu0
    %v9723 = vadd.f32 %v9670, %v9722
    %v9724 = vpop.f32.mrf.mxu0
    %v9725 = vadd.f32 %v9672, %v9724
    %9726 = vdwg.mxu0
    %v9727 = vadd.f32 %v6724, %v9709
    %v9728 = vadd.f32 %v6725, %v9711
    %v9729 = vadd.f32 %v6726, %v9713
    %v9730 = vadd.f32 %v6727, %v9715
    %v9731 = vadd.f32 %v6728, %v9719
    %v9732 = vadd.f32 %v6729, %v9721
    %v9733 = vadd.f32 %v6730, %v9723
    %v9734 = vadd.f32 %v6731, %v9725
    %s9735 = scalar_lea.vmem %s16, 2
    %v9736 = vld [vmem:[%s9735] sm:$0x3]
    %v9738 = vlaneseq
    %v9739 = vshrl.u32 %v9738, 7
    %v9740 = vsub.s32 0, %v9739
    %v9741 = vrot.slane %v9736, %v9740
    %v9742 = vlaneseq
    %v9743 = vshrl.u32 %v9742, 7
    %v9744 = vsub.s32 1, %v9743
    %v9745 = vrot.slane %v9736, %v9744
    %v9748 = vadd.f32 %v9727, %v9741
    %v9749 = vadd.f32 %v9728, %v9745
    %v9750 = vadd.f32 %v9729, %v9741
    %v9751 = vadd.f32 %v9730, %v9745
    %v9752 = vadd.f32 %v9731, %v9741
    %v9753 = vadd.f32 %v9732, %v9745
    %v9754 = vadd.f32 %v9733, %v9741
    %v9755 = vadd.f32 %v9734, %v9745
    %v9756 = vld [vmem:[%s17] sm:$0x3]
    %v9757 = vld [vmem:[%s18] sm:$0x3]
    %v9758 = vadd.f32 %v9748, %v9749
    %9759 = vadd.xlane.f32.xlu0 %v9758
    %v9760 = vpop.xlane.xlu0 %9759
    %v9761 = vadd.f32 %v9750, %v9751
    %9762 = vadd.xlane.f32.xlu0 %v9761
    %v9763 = vpop.xlane.xlu0 %9762
    %v9764 = vadd.f32 %v9752, %v9753
    %9765 = vadd.xlane.f32.xlu0 %v9764
    %v9766 = vpop.xlane.xlu0 %9765
    %v9767 = vadd.f32 %v9754, %v9755
    %9768 = vadd.xlane.f32.xlu0 %v9767
    %v9769 = vpop.xlane.xlu0 %9768
    %v9770 = vmul.f32 %v9760, %v302
    %v9771 = vmul.f32 %v9763, %v302
    %v9772 = vmul.f32 %v9766, %v302
    %v9773 = vmul.f32 %v9769, %v302
    %v9774 = vsub.f32 %v9748, %v9770
    %v9775 = vsub.f32 %v9749, %v9770
    %v9776 = vsub.f32 %v9750, %v9771
    %v9777 = vsub.f32 %v9751, %v9771
    %v9778 = vsub.f32 %v9752, %v9772
    %v9779 = vsub.f32 %v9753, %v9772
    %v9780 = vsub.f32 %v9754, %v9773
    %v9781 = vsub.f32 %v9755, %v9773
    %v9782 = vmul.f32 %v9774, %v9774
    %v9783 = vmul.f32 %v9775, %v9775
    %v9784 = vmul.f32 %v9776, %v9776
    %v9785 = vmul.f32 %v9777, %v9777
    %v9786 = vmul.f32 %v9778, %v9778
    %v9787 = vmul.f32 %v9779, %v9779
    %v9788 = vmul.f32 %v9780, %v9780
    %v9789 = vmul.f32 %v9781, %v9781
    %v9790 = vadd.f32 %v9782, %v9783
    %9791 = vadd.xlane.f32.xlu0 %v9790
    %v9792 = vpop.xlane.xlu0 %9791
    %v9793 = vadd.f32 %v9784, %v9785
    %9794 = vadd.xlane.f32.xlu0 %v9793
    %v9795 = vpop.xlane.xlu0 %9794
    %v9796 = vadd.f32 %v9786, %v9787
    %9797 = vadd.xlane.f32.xlu0 %v9796
    %v9798 = vpop.xlane.xlu0 %9797
    %v9799 = vadd.f32 %v9788, %v9789
    %9800 = vadd.xlane.f32.xlu0 %v9799
    %v9801 = vpop.xlane.xlu0 %9800
    %v9802 = vmul.f32 %v9792, %v302
    %v9803 = vmul.f32 %v9795, %v302
    %v9804 = vmul.f32 %v9798, %v302
    %v9805 = vmul.f32 %v9801, %v302
    %v9806 = vadd.f32 %v9802, 1e-05
    %v9807 = vadd.f32 %v9803, 1e-05
    %v9808 = vadd.f32 %v9804, 1e-05
    %v9809 = vadd.f32 %v9805, 1e-05
    %v9810 = vrsqrt.pop %v9806
    %v9811 = vrsqrt.pop %v9807
    %v9812 = vrsqrt.pop %v9808
    %v9813 = vrsqrt.pop %v9809
    %v9814 = vmul.f32 %v9774, %v9810
    %v9815 = vmul.f32 %v9775, %v9810
    %v9816 = vmul.f32 %v9776, %v9811
    %v9817 = vmul.f32 %v9777, %v9811
    %v9818 = vmul.f32 %v9778, %v9812
    %v9819 = vmul.f32 %v9779, %v9812
    %v9820 = vmul.f32 %v9780, %v9813
    %v9821 = vmul.f32 %v9781, %v9813
    %v9823 = vlaneseq
    %v9824 = vshrl.u32 %v9823, 7
    %v9825 = vsub.s32 0, %v9824
    %v9826 = vrot.slane %v9756, %v9825
    %v9827 = vlaneseq
    %v9828 = vshrl.u32 %v9827, 7
    %v9829 = vsub.s32 1, %v9828
    %v9830 = vrot.slane %v9756, %v9829
    %v9833 = vmul.f32 %v9814, %v9826
    %v9834 = vmul.f32 %v9815, %v9830
    %v9835 = vmul.f32 %v9816, %v9826
    %v9836 = vmul.f32 %v9817, %v9830
    %v9837 = vmul.f32 %v9818, %v9826
    %v9838 = vmul.f32 %v9819, %v9830
    %v9839 = vmul.f32 %v9820, %v9826
    %v9840 = vmul.f32 %v9821, %v9830
    %v9842 = vlaneseq
    %v9843 = vshrl.u32 %v9842, 7
    %v9844 = vsub.s32 0, %v9843
    %v9845 = vrot.slane %v9757, %v9844
    %v9846 = vlaneseq
    %v9847 = vshrl.u32 %v9846, 7
    %v9848 = vsub.s32 1, %v9847
    %v9849 = vrot.slane %v9757, %v9848
    %v9852 = vadd.f32 %v9833, %v9845
    %v9853 = vadd.f32 %v9834, %v9849
    %v9854 = vadd.f32 %v9835, %v9845
    %v9855 = vadd.f32 %v9836, %v9849
    %v9856 = vadd.f32 %v9837, %v9845
    %v9857 = vadd.f32 %v9838, %v9849
    %v9858 = vadd.f32 %v9839, %v9845
    %v9859 = vadd.f32 %v9840, %v9849
    %v9860 = vadd.f32 %v9852, %v9854
    %v9861 = vrot.slane %v9860, 4
    %v9862 = vadd.f32 %v9860, %v9861
    %v9863 = vrot.slane %v9862, 2
    %v9864 = vadd.f32 %v9862, %v9863
    %v9865 = vrot.slane %v9864, 1
    %v9866 = vadd.f32 %v9864, %v9865
    %v9867 = vadd.f32 %v9853, %v9855
    %v9868 = vrot.slane %v9867, 4
    %v9869 = vadd.f32 %v9867, %v9868
    %v9870 = vrot.slane %v9869, 2
    %v9871 = vadd.f32 %v9869, %v9870
    %v9872 = vrot.slane %v9871, 1
    %v9873 = vadd.f32 %v9871, %v9872
    %v9874 = vadd.f32 %v9856, %v9858
    %v9875 = vrot.slane %v9874, 4
    %v9876 = vadd.f32 %v9874, %v9875
    %v9877 = vrot.slane %v9876, 2
    %v9878 = vadd.f32 %v9876, %v9877
    %v9879 = vrot.slane %v9878, 1
    %v9880 = vadd.f32 %v9878, %v9879
    %v9881 = vadd.f32 %v9857, %v9859
    %v9882 = vrot.slane %v9881, 4
    %v9883 = vadd.f32 %v9881, %v9882
    %v9884 = vrot.slane %v9883, 2
    %v9885 = vadd.f32 %v9883, %v9884
    %v9886 = vrot.slane %v9885, 1
    %v9887 = vadd.f32 %v9885, %v9886
    %v9888 = vrcp.pop 16.0
    %v9889 = vmul.f32 %v9866, %v9888
    %v9890 = vmul.f32 %v9873, %v9888
    %v9891 = vmul.f32 %v9880, %v9888
    %v9892 = vmul.f32 %v9887, %v9888
    %v9893 = vld [vmem:[%s19] sm:$0xf]
    %v9894 = vld [vmem:[%s19 + $0x4] sm:$0xf]
    %v9895 = vld [vmem:[%s19 + $0x8] sm:$0xf]
    %v9896 = vld [vmem:[%s19 + $0xc] sm:$0xf]
    %v9897 = vld [vmem:[%s19 + $0x10] sm:$0xf]
    %v9898 = vld [vmem:[%s19 + $0x14] sm:$0xf]
    %v9899 = vld [vmem:[%s19 + $0x18] sm:$0xf]
    %v9900 = vld [vmem:[%s19 + $0x1c] sm:$0xf]
    %v9901 = vld [vmem:[%s19 + $0x20] sm:$0xf]
    %v9902 = vld [vmem:[%s19 + $0x24] sm:$0xf]
    %v9903 = vld [vmem:[%s19 + $0x28] sm:$0xf]
    %v9904 = vld [vmem:[%s19 + $0x2c] sm:$0xf]
    %v9905 = vld [vmem:[%s19 + $0x30] sm:$0xf]
    %v9906 = vld [vmem:[%s19 + $0x34] sm:$0xf]
    %v9907 = vld [vmem:[%s19 + $0x38] sm:$0xf]
    %v9908 = vld [vmem:[%s19 + $0x3c] sm:$0xf]
    %v9909 = vld [vmem:[%s19 + $0x40] sm:$0xf]
    %v9910 = vld [vmem:[%s19 + $0x44] sm:$0xf]
    %v9911 = vld [vmem:[%s19 + $0x48] sm:$0xf]
    %v9912 = vld [vmem:[%s19 + $0x4c] sm:$0xf]
    %v9913 = vld [vmem:[%s19 + $0x50] sm:$0xf]
    %v9914 = vld [vmem:[%s19 + $0x54] sm:$0xf]
    %v9915 = vld [vmem:[%s19 + $0x58] sm:$0xf]
    %v9916 = vld [vmem:[%s19 + $0x5c] sm:$0xf]
    %v9917 = vld [vmem:[%s19 + $0x60] sm:$0xf]
    %v9918 = vld [vmem:[%s19 + $0x64] sm:$0xf]
    %v9919 = vld [vmem:[%s19 + $0x68] sm:$0xf]
    %v9920 = vld [vmem:[%s19 + $0x6c] sm:$0xf]
    %v9921 = vld [vmem:[%s19 + $0x70] sm:$0xf]
    %v9922 = vld [vmem:[%s19 + $0x74] sm:$0xf]
    %v9923 = vld [vmem:[%s19 + $0x78] sm:$0xf]
    %v9924 = vld [vmem:[%s19 + $0x7c] sm:$0xf]
    %v9925 = vpack.c.bf16 %v9889, %v9889
    %v9926 = vpack.c.bf16 %v9890, %v9890
    %v9927 = vpack.c.bf16 %v9891, %v9891
    %v9928 = vpack.c.bf16 %v9892, %v9892
    %v9929 = vld [vmem:[%s20] sm:$0x1]
    %v9931 = vlaneseq
    %v9932 = vshrl.u32 %v9931, 7
    %v9933 = vsub.s32 0, %v9932
    %v9934 = vrot.slane %v9929, %v9933
    %v9940 = vunpack.c.l.b16 %v9925
    %v9941 = vunpack.c.l.b16 %v9926
    %v9942 = vunpack.c.l.b16 %v9927
    %v9943 = vunpack.c.l.b16 %v9928
    %vm9944 = vcmask 1041409
    %v9945 = vsel %vm9944, %v9942, %v9940
    %v9946 = vsel %vm9944, %v9943, %v9941
    %v9947 = vpack.c.b16 %v9945, %v9945
    %v9948 = vpack.c.b16 %v9946, %v9946
    %v9983 = vunpack.c.l.b16 %v9893
    %v9984 = vunpack.c.l.b16 %v9894
    %v9985 = vunpack.c.l.b16 %v9895
    %v9986 = vunpack.c.l.b16 %v9896
    %v9987 = vunpack.c.l.b16 %v9897
    %v9988 = vunpack.c.l.b16 %v9898
    %v9989 = vunpack.c.l.b16 %v9899
    %v9990 = vunpack.c.l.b16 %v9900
    %v9991 = vunpack.c.l.b16 %v9901
    %v9992 = vunpack.c.l.b16 %v9902
    %v9993 = vunpack.c.l.b16 %v9903
    %v9994 = vunpack.c.l.b16 %v9904
    %v9995 = vunpack.c.l.b16 %v9905
    %v9996 = vunpack.c.l.b16 %v9906
    %v9997 = vunpack.c.l.b16 %v9907
    %v9998 = vunpack.c.l.b16 %v9908
    %v9999 = vunpack.c.l.b16 %v9909
    %v10000 = vunpack.c.l.b16 %v9910
    %v10001 = vunpack.c.l.b16 %v9911
    %v10002 = vunpack.c.l.b16 %v9912
    %v10003 = vunpack.c.l.b16 %v9913
    %v10004 = vunpack.c.l.b16 %v9914
    %v10005 = vunpack.c.l.b16 %v9915
    %v10006 = vunpack.c.l.b16 %v9916
    %v10007 = vunpack.c.l.b16 %v9917
    %v10008 = vunpack.c.l.b16 %v9918
    %v10009 = vunpack.c.l.b16 %v9919
    %v10010 = vunpack.c.l.b16 %v9920
    %v10011 = vunpack.c.l.b16 %v9921
    %v10012 = vunpack.c.l.b16 %v9922
    %v10013 = vunpack.c.l.b16 %v9923
    %v10014 = vunpack.c.l.b16 %v9924
    %v10015 = vpack.c.b16 %v9984, %v9983
    %v10016 = vpack.c.b16 %v9986, %v9985
    %v10017 = vpack.c.b16 %v9988, %v9987
    %v10018 = vpack.c.b16 %v9990, %v9989
    %v10019 = vpack.c.b16 %v9992, %v9991
    %v10020 = vpack.c.b16 %v9994, %v9993
    %v10021 = vpack.c.b16 %v9996, %v9995
    %v10022 = vpack.c.b16 %v9998, %v9997
    %v10023 = vpack.c.b16 %v10000, %v9999
    %v10024 = vpack.c.b16 %v10002, %v10001
    %v10025 = vpack.c.b16 %v10004, %v10003
    %v10026 = vpack.c.b16 %v10006, %v10005
    %v10027 = vpack.c.b16 %v10008, %v10007
    %v10028 = vpack.c.b16 %v10010, %v10009
    %v10029 = vpack.c.b16 %v10012, %v10011
    %v10030 = vpack.c.b16 %v10014, %v10013
    %10047 = vmatprep.subr.bf16.mxu0 0
    %10048 = vmatpush1.bf16.msra.mxu0 %v10022
    %10049 = vmatprep.subr.bf16.mxu0 0
    %10050 = vmatpush1.bf16.msra.mxu0 %v10021
    %10051 = vmatprep.subr.bf16.mxu0 0
    %10052 = vmatpush1.bf16.msra.mxu0 %v10020
    %10053 = vmatprep.subr.bf16.mxu0 0
    %10054 = vmatpush1.bf16.msra.mxu0 %v10019
    %10055 = vmatprep.subr.bf16.mxu0 0
    %10056 = vmatpush1.bf16.msra.mxu0 %v10018
    %10057 = vmatprep.subr.bf16.mxu0 0
    %10058 = vmatpush1.bf16.msra.mxu0 %v10017
    %10059 = vmatprep.subr.bf16.mxu0 0
    %10060 = vmatpush1.bf16.msra.mxu0 %v10016
    %10061 = vmatprep.subr.bf16.mxu0 0
    %10062 = vmatpush1.bf16.msra.mxu0 %v10015
    %10063 = vmatprep.subr.bf16.mxu0 0
    %10064 = vmatpush2.bf16.msra.mxu0 %v10030
    %10065 = vmatprep.subr.bf16.mxu0 0
    %10066 = vmatpush2.bf16.msra.mxu0 %v10029
    %10067 = vmatprep.subr.bf16.mxu0 0
    %10068 = vmatpush2.bf16.msra.mxu0 %v10028
    %10069 = vmatprep.subr.bf16.mxu0 0
    %10070 = vmatpush2.bf16.msra.mxu0 %v10027
    %10071 = vmatprep.subr.bf16.mxu0 0
    %10072 = vmatpush2.bf16.msra.mxu0 %v10026
    %10073 = vmatprep.subr.bf16.mxu0 0
    %10074 = vmatpush2.bf16.msra.mxu0 %v10025
    %10075 = vmatprep.subr.bf16.mxu0 0
    %10076 = vmatpush2.bf16.msra.mxu0 %v10024
    %10077 = vmatprep.subr.bf16.mxu0 0
    %10078 = vmatpush2.bf16.msra.mxu0 %v10023
    %10079 = vmatprep.mubr.bf16.mxu0 %v9948
    %10080 = vmatmul.mubr.bf16.gmra.mxu0 %v9947
    %v10081 = vpop.f32.mrf.mxu0
    %v10082 = vadd.f32 %v9934, %v10081
    %v10083 = vpop.f32.mrf.mxu0
    %v10084 = vpop.f32.mrf.mxu0
    %v10085 = vpop.f32.mrf.mxu0
    %10086 = vdwg.mxu0
    %10087 = vst [vmem:[#allocation8] sm:$0x3] %v10082
    // Predicated region
    $region98: #{regnet_forward.1} parent=1 // pred_check
      _
    $region99: #{regnet_forward.1} parent=1 // pred_check_branch
      %10089 = sbr.rel (0) target = $region101
    $region100: #{regnet_forward.1} parent=1 // pred_region
      %s10091 = ssub.s32 32, 32
      %10092 = vsyncadd [#allocation4], %s10091
      %s10094 = sshll.u32 [#allocation8], 4
      %s10095 = int_to_ptr.vmem [resolvable:$true] %s10094
      %10097 = dma.vmem_to_hbm [thread:$0]  %s10095, 32, %s21, [#allocation4]
    $region101: #{regnet_forward.1} parent=1 // pred_fallthru
      _
    // Predicated region
    $region102: #{regnet_forward.1} parent=1 // pred_check
      _
    $region103: #{regnet_forward.1} parent=1 // pred_check_branch
      %10099 = sbr.rel (0) target = $region105
    $region104: #{regnet_forward.1} parent=1 // pred_region
      %10100 = dma.done [#allocation4], 32
    $region105: #{regnet_forward.1} parent=1 // pred_fallthru
      _
    %10101 = vsyncpa [#allocation3], 1
    %10102 = vsyncpa [#allocation6], 1
    %10103 = vsyncpa [#allocation4], 1

</llo_original>
